<compile_context>
chip_gen: v5e
topology: v5e:2x2
jax: 0.10.0
libtpu: 0.0.40
codegen_flags: <defaults>
</compile_context>

<pallas_src>
import jax
import jax.numpy as jnp
from jax.experimental import pallas as pl
from jax.experimental.pallas import tpu as pltpu


def _round_up(x, m):
    return ((x + m - 1) // m) * m


# ---------------- fused: layer-1 input proj + 2-layer recurrence + FC ----------------
def fused_lstm_fc_kernel(x_ref, wih1_ref, b1_ref, whh1_hbm, w2_hbm, b2_ref,
                         wfc_hbm, bfc_ref, out_ref,
                         gx_buf, whh1_v, w2_v, wfc_v, sem, h1, c1, h2, c2):
    # x_ref   : (Tc*Bp, D)  f32  time-major x chunk (auto-pipelined BlockSpec)
    # wih1_ref: (D, 4H)     f32  layer-1 input->gates (transposed; off the serial path)
    # b1_ref  : (1, 4H)     f32  layer-1 combined bias
    # whh1_hbm: (H, 4H)     bf16 layer-1 hidden->gates, HBM (pl.ANY), manual DMA
    # w2_hbm  : (2H, 4H)    bf16 layer-2 [input;hidden]->gates fused, HBM, manual DMA
    # b2_ref  : (1, 4H)     f32  layer-2 combined bias
    # wfc_hbm : (H, Op)     bf16 FC weight (transposed, lane-padded), HBM, manual DMA
    # bfc_ref : (1, Op)     f32  FC bias (lane-padded)
    # out_ref : (Bp, Op)    f32  written only on the last chunk
    # gx_buf  : (Tc*Bp, 4H) f32  VMEM scratch for layer-1 input-projection gates
    # whh1_v / w2_v / wfc_v: VMEM bf16 scratch, resident weights (single-buffered)
    # h1/c1/h2/c2: (Bp, H)  f32  recurrent state carried in VMEM across grid steps
    chunk = pl.program_id(0)
    Bp, H = h1.shape
    t_chunk = x_ref.shape[0] // Bp

    @pl.when(chunk == 0)
    def _():
        # Kick off the bf16 weight fetches; they overlap the input-projection GEMM.
        pltpu.make_async_copy(whh1_hbm, whh1_v, sem.at[0]).start()
        pltpu.make_async_copy(w2_hbm, w2_v, sem.at[1]).start()
        pltpu.make_async_copy(wfc_hbm, wfc_v, sem.at[2]).start()
        h1[...] = jnp.zeros_like(h1)
        c1[...] = jnp.zeros_like(c1)
        h2[...] = jnp.zeros_like(h2)
        c2[...] = jnp.zeros_like(c2)

    # Layer-1 input projection for the whole chunk: one big MXU GEMM (f32 operands;
    # this is a one-time cost off the serial recurrence, kept f32 for accuracy).
    gx_buf[...] = (jnp.dot(x_ref[...], wih1_ref[...],
                           preferred_element_type=jnp.float32) + b1_ref[...])

    @pl.when(chunk == 0)
    def _():
        # Weights must be resident before the time loop starts.
        pltpu.make_async_copy(whh1_hbm, whh1_v, sem.at[0]).wait()
        pltpu.make_async_copy(w2_hbm, w2_v, sem.at[1]).wait()
        pltpu.make_async_copy(wfc_hbm, wfc_v, sem.at[2]).wait()

    whh1 = whh1_v[...]        # (H, 4H)  bf16
    w2 = w2_v[...]            # (2H, 4H) bf16
    b2 = b2_ref[...]          # (1, 4H)  f32

    def cell(gates, c):
        # PyTorch gate order: i, f, g, o. H is a multiple of 128 -> lane-aligned slices.
        # Gate / state elementwise math strictly f32 (v5e has no bf16 VPU/EUP).
        i = jax.nn.sigmoid(gates[:, 0:H])
        f = jax.nn.sigmoid(gates[:, H:2 * H])
        g = jnp.tanh(gates[:, 2 * H:3 * H])
        o = jax.nn.sigmoid(gates[:, 3 * H:4 * H])
        c_new = f * c + i * g
        h_new = o * jnp.tanh(c_new)
        return h_new, c_new

    def step(s, carry):
        h1v, c1v, h2v, c2v = carry
        row = pl.multiple_of(s * Bp, Bp)
        # Layer 1: only the bf16 recurrent matmul is on the serial critical path.
        g1 = gx_buf[pl.ds(row, Bp), :] + jnp.dot(
            h1v.astype(jnp.bfloat16), whh1, preferred_element_type=jnp.float32)
        h1n, c1n = cell(g1, c1v)
        # Layer 2: single fused GEMM over [h1_t ; h2_{t-1}] (one MXU weight pass).
        h_cat = jnp.concatenate([h1n, h2v], axis=-1).astype(jnp.bfloat16)
        g2 = jnp.dot(h_cat, w2, preferred_element_type=jnp.float32) + b2
        h2n, c2n = cell(g2, c2v)
        return (h1n, c1n, h2n, c2n)

    h1n, c1n, h2n, c2n = jax.lax.fori_loop(
        0, t_chunk, step, (h1[...], c1[...], h2[...], c2[...]),
        unroll=min(t_chunk, 8))
    h1[...], c1[...], h2[...], c2[...] = h1n, c1n, h2n, c2n

    @pl.when(chunk == pl.num_programs(0) - 1)
    def _():
        # Fused FC head on the final hidden state; (Bp, Op) is a lane-dense store.
        out_ref[...] = (jnp.dot(h2n.astype(jnp.bfloat16), wfc_v[...],
                                preferred_element_type=jnp.float32)
                        + bfc_ref[...]).astype(out_ref.dtype)


def fused_lstm_fc(x2d, wih1_t, b1, whh1_t, w2, b2, wfc_t, bfc, *, t_chunk, bp):
    TBp, D = x2d.shape
    T = TBp // bp
    H = whh1_t.shape[0]
    G = 4 * H
    Op = wfc_t.shape[1]
    assert T % t_chunk == 0
    return pl.pallas_call(
        fused_lstm_fc_kernel,
        out_shape=jax.ShapeDtypeStruct((bp, Op), jnp.float32),
        grid=(T // t_chunk,),
        in_specs=[
            pl.BlockSpec((t_chunk * bp, D), lambda c: (c, 0)),   # x chunk (pipelined)
            pl.BlockSpec((D, G), lambda c: (0, 0)),              # Wih1^T (small, f32)
            pl.BlockSpec((1, G), lambda c: (0, 0)),              # b1
            pl.BlockSpec(memory_space=pl.ANY),                   # Whh1^T (manual DMA)
            pl.BlockSpec(memory_space=pl.ANY),                   # W2     (manual DMA)
            pl.BlockSpec((1, G), lambda c: (0, 0)),              # b2
            pl.BlockSpec(memory_space=pl.ANY),                   # Wfc^T  (manual DMA)
            pl.BlockSpec((1, Op), lambda c: (0, 0)),             # bfc
        ],
        out_specs=pl.BlockSpec((bp, Op), lambda c: (0, 0)),
        scratch_shapes=[
            pltpu.VMEM((t_chunk * bp, G), jnp.float32),          # gx_buf
            pltpu.VMEM((H, G), jnp.bfloat16),                    # whh1_v
            pltpu.VMEM((2 * H, G), jnp.bfloat16),                # w2_v
            pltpu.VMEM((H, Op), jnp.bfloat16),                   # wfc_v
            pltpu.SemaphoreType.DMA((3,)),
            pltpu.VMEM((bp, H), jnp.float32),                    # h1
            pltpu.VMEM((bp, H), jnp.float32),                    # c1
            pltpu.VMEM((bp, H), jnp.float32),                    # h2
            pltpu.VMEM((bp, H), jnp.float32),                    # c2
        ],
        compiler_params=pltpu.CompilerParams(
            dimension_semantics=("arbitrary",),      # sequential recurrence over time
            vmem_limit_bytes=64 * 1024 * 1024,
        ),
    )(x2d, wih1_t, b1, whh1_t, w2, b2, wfc_t, bfc)


# ----------------------------- parameters / forward ---------------------------------
def init_params(key, input_size, hidden_size, num_layers, output_size):
    params = {"lstm": [], "fc": None}
    k = 1.0 / jnp.sqrt(hidden_size)
    for layer in range(num_layers):
        d_in = input_size if layer == 0 else hidden_size
        key, k1, k2, k3, k4 = jax.random.split(key, 5)
        params["lstm"].append({
            "w_ih": jax.random.uniform(k1, (4 * hidden_size, d_in), jnp.float32, -k, k),
            "w_hh": jax.random.uniform(k2, (4 * hidden_size, hidden_size), jnp.float32, -k, k),
            "b_ih": jax.random.uniform(k3, (4 * hidden_size,), jnp.float32, -k, k),
            "b_hh": jax.random.uniform(k4, (4 * hidden_size,), jnp.float32, -k, k),
        })
    key, k1, k2 = jax.random.split(key, 3)
    params["fc"] = {
        "w": jax.random.uniform(k1, (output_size, hidden_size), jnp.float32, -k, k),
        "b": jax.random.uniform(k2, (output_size,), jnp.float32, -k, k),
    }
    return params


def rnn_forward(params, x):
    """x: (B, T, D_in) batch-first, like PyTorch nn.LSTM(batch_first=True)."""
    assert len(params["lstm"]) == 2, "fused kernel implements the 2-layer module"
    B, T, D = x.shape
    l1, l2 = params["lstm"]
    H = l1["w_hh"].shape[1]
    O = params["fc"]["w"].shape[0]

    Bp = _round_up(max(B, 8), 8)       # sublane-dense batch
    Op = _round_up(max(O, 128), 128)   # lane-dense FC output

    if Bp != B:
        x = jnp.pad(x, ((0, Bp - B), (0, 0), (0, 0)))  # zero rows; sliced off at the end

    # Only x (D_in-wide) is reordered to time-major; gates are produced in-kernel.
    x2d = jnp.transpose(x, (1, 0, 2)).reshape(T * Bp, D)

    b1 = (l1["b_ih"] + l1["b_hh"])[None, :].astype(jnp.float32)
    b2 = (l2["b_ih"] + l2["b_hh"])[None, :].astype(jnp.float32)

    wih1_t = l1["w_ih"].T                                  # (D, 4H) f32
    whh1_t = l1["w_hh"].T.astype(jnp.bfloat16)             # (H, 4H) bf16
    w2 = jnp.concatenate([l2["w_ih"].T, l2["w_hh"].T],
                         axis=0).astype(jnp.bfloat16)      # (2H, 4H) bf16
    wfc_t = jnp.pad(params["fc"]["w"].T,
                    ((0, 0), (0, Op - O))).astype(jnp.bfloat16)   # (H, Op) bf16
    bfc = jnp.pad(params["fc"]["b"], (0, Op - O))[None, :].astype(jnp.float32)

    # Chunk cap of 8: for larger T this yields a grid >= 2 so the next x-chunk DMA
    # pipelines under the current chunk's compute; unroll in-kernel is capped at 8 too.
    t_chunk = next(tc for tc in (8, 4, 2, 1) if T % tc == 0)
    out = fused_lstm_fc(x2d, wih1_t, b1, whh1_t, w2, b2, wfc_t, bfc,
                        t_chunk=t_chunk, bp=Bp)
    return out[:B, :O]


# ------------------------------- pure-JAX reference ---------------------------------
def rnn_forward_ref(params, x):
    B, T, _ = x.shape
    hp = jax.lax.Precision.HIGHEST
    h_seq = x
    for lp in params["lstm"]:
        H = lp["w_hh"].shape[1]
        h = jnp.zeros((B, H), jnp.float32)
        c = jnp.zeros((B, H), jnp.float32)

        def step(carry, x_t, lp=lp, H=H):
            h, c = carry
            gates = (jnp.dot(x_t, lp["w_ih"].T, precision=hp)
                     + jnp.dot(h, lp["w_hh"].T, precision=hp)
                     + lp["b_ih"] + lp["b_hh"])
            i = jax.nn.sigmoid(gates[:, 0:H])
            f = jax.nn.sigmoid(gates[:, H:2 * H])
            g = jnp.tanh(gates[:, 2 * H:3 * H])
            o = jax.nn.sigmoid(gates[:, 3 * H:4 * H])
            c = f * c + i * g
            h = o * jnp.tanh(c)
            return (h, c), h

        (_, _), outs = jax.lax.scan(step, (h, c), jnp.transpose(h_seq, (1, 0, 2)))
        h_seq = jnp.transpose(outs, (1, 0, 2))
    return (jnp.dot(h_seq[:, -1, :], params["fc"]["w"].T, precision=hp)
            + params["fc"]["b"])


if __name__ == "__main__":
    # Shapes implied by the module: hidden_size=256, num_layer=2; small B/T/input/output.
    B, T, INPUT, HIDDEN, NUM_LAYERS, OUTPUT = 2, 8, 16, 256, 2, 10

    key = jax.random.PRNGKey(0)
    key, pkey, xkey = jax.random.split(key, 3)
    params = init_params(pkey, INPUT, HIDDEN, NUM_LAYERS, OUTPUT)
    x = jax.random.normal(xkey, (B, T, INPUT), jnp.float32)

    out = rnn_forward(params, x)
    jax.block_until_ready(out)

    ref = rnn_forward_ref(params, x)
    assert out.shape == (B, OUTPUT)
    # Tolerance covers bf16 MXU operands (f32 accumulation / f32 gate math).
    assert jnp.allclose(out, ref, atol=5e-3, rtol=5e-3), "mismatch vs reference"

    print("KERNEL_OK")
</pallas_src>

<mosaic_0001>
module attributes {stable_mosaic.version = 11 : i64} {
  func.func @fused_lstm_fc_kernel(%arg0: i32, %arg1: memref<64x16xf32, #tpu.memory_space<vmem>>, %arg2: memref<16x1024xf32, #tpu.memory_space<vmem>>, %arg3: memref<1x1024xf32, #tpu.memory_space<vmem>>, %arg4: memref<256x1024xbf16, #tpu.memory_space<any>>, %arg5: memref<512x1024xbf16, #tpu.memory_space<any>>, %arg6: memref<1x1024xf32, #tpu.memory_space<vmem>>, %arg7: memref<256x128xbf16, #tpu.memory_space<any>>, %arg8: memref<1x128xf32, #tpu.memory_space<vmem>>, %arg9: memref<8x128xf32, #tpu.memory_space<vmem>>, %arg10: memref<64x1024xf32, #tpu.memory_space<vmem>>, %arg11: memref<256x1024xbf16, #tpu.memory_space<vmem>>, %arg12: memref<512x1024xbf16, #tpu.memory_space<vmem>>, %arg13: memref<256x128xbf16, #tpu.memory_space<vmem>>, %arg14: memref<3x!tpu.dma_semaphore, #tpu.memory_space<semaphore_mem>>, %arg15: memref<8x256xf32, #tpu.memory_space<vmem>>, %arg16: memref<8x256xf32, #tpu.memory_space<vmem>>, %arg17: memref<8x256xf32, #tpu.memory_space<vmem>>, %arg18: memref<8x256xf32, #tpu.memory_space<vmem>>) attributes {dimension_semantics = [#tpu.dimension_semantics<arbitrary>], iteration_bounds = array<i64: 1>, scalar_prefetch = 0 : i64, scratch_operands = 9 : i64, tpu.core_type = #tpu.core_type<tc>, window_params = [{transform_indices = @transform_0, window_bounds = array<i64: 64, 16>}, {pipeline_mode = #tpu.pipeline_mode<synchronous>, transform_indices = @transform_1, window_bounds = array<i64: 16, 1024>}, {pipeline_mode = #tpu.pipeline_mode<synchronous>, transform_indices = @transform_2, window_bounds = array<i64: 1, 1024>}, {}, {}, {pipeline_mode = #tpu.pipeline_mode<synchronous>, transform_indices = @transform_5, window_bounds = array<i64: 1, 1024>}, {}, {pipeline_mode = #tpu.pipeline_mode<synchronous>, transform_indices = @transform_7, window_bounds = array<i64: 1, 128>}, {pipeline_mode = #tpu.pipeline_mode<synchronous>, transform_indices = @transform_8, window_bounds = array<i64: 8, 128>}]} {
    %c0_i32 = arith.constant 0 : i32
    %0 = arith.cmpi eq, %arg0, %c0_i32 : i32
    %1 = arith.extui %0 : i1 to i32
    %c0_i32_0 = arith.constant 0 : i32
    %2 = arith.cmpi ne, %1, %c0_i32_0 : i32
    scf.if %2 {
      %c0_i32_115 = arith.constant 0 : i32
      %523 = tpu.memref_slice %arg14[%c0_i32_115] : memref<3x!tpu.dma_semaphore, #tpu.memory_space<semaphore_mem>> -> memref<1x!tpu.dma_semaphore, #tpu.memory_space<semaphore_mem>>
      %524 = tpu.memref_squeeze %523 : memref<1x!tpu.dma_semaphore, #tpu.memory_space<semaphore_mem>> -> memref<!tpu.dma_semaphore, #tpu.memory_space<semaphore_mem>>
      tpu.enqueue_dma source(%arg4 : memref<256x1024xbf16, #tpu.memory_space<any>>) target(%arg11 : memref<256x1024xbf16, #tpu.memory_space<vmem>>) target_semaphore(%524 : memref<!tpu.dma_semaphore, #tpu.memory_space<semaphore_mem>>)
      %c1_i32_116 = arith.constant 1 : i32
      %525 = tpu.memref_slice %arg14[%c1_i32_116] : memref<3x!tpu.dma_semaphore, #tpu.memory_space<semaphore_mem>> -> memref<1x!tpu.dma_semaphore, #tpu.memory_space<semaphore_mem>>
      %526 = tpu.memref_squeeze %525 : memref<1x!tpu.dma_semaphore, #tpu.memory_space<semaphore_mem>> -> memref<!tpu.dma_semaphore, #tpu.memory_space<semaphore_mem>>
      tpu.enqueue_dma source(%arg5 : memref<512x1024xbf16, #tpu.memory_space<any>>) target(%arg12 : memref<512x1024xbf16, #tpu.memory_space<vmem>>) target_semaphore(%526 : memref<!tpu.dma_semaphore, #tpu.memory_space<semaphore_mem>>)
      %c2_i32_117 = arith.constant 2 : i32
      %527 = tpu.memref_slice %arg14[%c2_i32_117] : memref<3x!tpu.dma_semaphore, #tpu.memory_space<semaphore_mem>> -> memref<1x!tpu.dma_semaphore, #tpu.memory_space<semaphore_mem>>
      %528 = tpu.memref_squeeze %527 : memref<1x!tpu.dma_semaphore, #tpu.memory_space<semaphore_mem>> -> memref<!tpu.dma_semaphore, #tpu.memory_space<semaphore_mem>>
      tpu.enqueue_dma source(%arg7 : memref<256x128xbf16, #tpu.memory_space<any>>) target(%arg13 : memref<256x128xbf16, #tpu.memory_space<vmem>>) target_semaphore(%528 : memref<!tpu.dma_semaphore, #tpu.memory_space<semaphore_mem>>)
      %cst_118 = arith.constant 0.000000e+00 : f32
      %529 = vector.broadcast %cst_118 : f32 to vector<8x256xf32>
      %c0_119 = arith.constant 0 : index
      %c0_120 = arith.constant 0 : index
      %530 = vector.load %arg15[%c0_119, %c0_120] : memref<8x256xf32, #tpu.memory_space<vmem>>, vector<8x256xf32>
      tpu.vector_store %arg15[%c0_119, %c0_120], %529 {strides = array<i32>} : memref<8x256xf32, #tpu.memory_space<vmem>>, vector<8x256xf32>,
      %cst_121 = arith.constant 0.000000e+00 : f32
      %531 = vector.broadcast %cst_121 : f32 to vector<8x256xf32>
      %c0_122 = arith.constant 0 : index
      %c0_123 = arith.constant 0 : index
      %532 = vector.load %arg16[%c0_122, %c0_123] : memref<8x256xf32, #tpu.memory_space<vmem>>, vector<8x256xf32>
      tpu.vector_store %arg16[%c0_122, %c0_123], %531 {strides = array<i32>} : memref<8x256xf32, #tpu.memory_space<vmem>>, vector<8x256xf32>,
      %cst_124 = arith.constant 0.000000e+00 : f32
      %533 = vector.broadcast %cst_124 : f32 to vector<8x256xf32>
      %c0_125 = arith.constant 0 : index
      %c0_126 = arith.constant 0 : index
      %534 = vector.load %arg17[%c0_125, %c0_126] : memref<8x256xf32, #tpu.memory_space<vmem>>, vector<8x256xf32>
      tpu.vector_store %arg17[%c0_125, %c0_126], %533 {strides = array<i32>} : memref<8x256xf32, #tpu.memory_space<vmem>>, vector<8x256xf32>,
      %cst_127 = arith.constant 0.000000e+00 : f32
      %535 = vector.broadcast %cst_127 : f32 to vector<8x256xf32>
      %c0_128 = arith.constant 0 : index
      %c0_129 = arith.constant 0 : index
      %536 = vector.load %arg18[%c0_128, %c0_129] : memref<8x256xf32, #tpu.memory_space<vmem>>, vector<8x256xf32>
      tpu.vector_store %arg18[%c0_128, %c0_129], %535 {strides = array<i32>} : memref<8x256xf32, #tpu.memory_space<vmem>>, vector<8x256xf32>,
    } else {
    }
    %c0 = arith.constant 0 : index
    %c0_1 = arith.constant 0 : index
    %3 = vector.load %arg1[%c0, %c0_1] : memref<64x16xf32, #tpu.memory_space<vmem>>, vector<64x16xf32>
    %c0_2 = arith.constant 0 : index
    %c0_3 = arith.constant 0 : index
    %4 = vector.load %arg2[%c0_2, %c0_3] : memref<16x1024xf32, #tpu.memory_space<vmem>>, vector<16x1024xf32>
    %cst = arith.constant dense<0.000000e+00> : vector<64x1024xf32>
    %5 = tpu.matmul %3, %4, %cst {dimension_numbers = #tpu.dot_dimension_numbers<[1], [0], [0], [1], [0, 0, 1, 1], [], []>} : vector<64x16xf32>, vector<16x1024xf32>, vector<64x1024xf32> -> vector<64x1024xf32>
    %c0_4 = arith.constant 0 : index
    %c0_5 = arith.constant 0 : index
    %6 = vector.load %arg3[%c0_4, %c0_5] : memref<1x1024xf32, #tpu.memory_space<vmem>>, vector<1x1024xf32>
    %7 = vector.broadcast %6 : vector<1x1024xf32> to vector<64x1024xf32>
    %8 = arith.addf %5, %7 : vector<64x1024xf32>
    %c0_6 = arith.constant 0 : index
    %c0_7 = arith.constant 0 : index
    %9 = vector.load %arg10[%c0_6, %c0_7] : memref<64x1024xf32, #tpu.memory_space<vmem>>, vector<64x1024xf32>
    tpu.vector_store %arg10[%c0_6, %c0_7], %8 {strides = array<i32>} : memref<64x1024xf32, #tpu.memory_space<vmem>>, vector<64x1024xf32>,
    %c0_i32_8 = arith.constant 0 : i32
    %10 = arith.cmpi eq, %arg0, %c0_i32_8 : i32
    %11 = arith.extui %10 : i1 to i32
    %c0_i32_9 = arith.constant 0 : i32
    %12 = arith.cmpi ne, %11, %c0_i32_9 : i32
    scf.if %12 {
      %c0_i32_115 = arith.constant 0 : i32
      %523 = tpu.memref_slice %arg14[%c0_i32_115] : memref<3x!tpu.dma_semaphore, #tpu.memory_space<semaphore_mem>> -> memref<1x!tpu.dma_semaphore, #tpu.memory_space<semaphore_mem>>
      %524 = tpu.memref_squeeze %523 : memref<1x!tpu.dma_semaphore, #tpu.memory_space<semaphore_mem>> -> memref<!tpu.dma_semaphore, #tpu.memory_space<semaphore_mem>>
      tpu.wait_dma2 semaphore(%524 : memref<!tpu.dma_semaphore, #tpu.memory_space<semaphore_mem>>) src(%arg4 : memref<256x1024xbf16, #tpu.memory_space<any>>) dst(%arg11 : memref<256x1024xbf16, #tpu.memory_space<vmem>>)
      %c1_i32_116 = arith.constant 1 : i32
      %525 = tpu.memref_slice %arg14[%c1_i32_116] : memref<3x!tpu.dma_semaphore, #tpu.memory_space<semaphore_mem>> -> memref<1x!tpu.dma_semaphore, #tpu.memory_space<semaphore_mem>>
      %526 = tpu.memref_squeeze %525 : memref<1x!tpu.dma_semaphore, #tpu.memory_space<semaphore_mem>> -> memref<!tpu.dma_semaphore, #tpu.memory_space<semaphore_mem>>
      tpu.wait_dma2 semaphore(%526 : memref<!tpu.dma_semaphore, #tpu.memory_space<semaphore_mem>>) src(%arg5 : memref<512x1024xbf16, #tpu.memory_space<any>>) dst(%arg12 : memref<512x1024xbf16, #tpu.memory_space<vmem>>)
      %c2_i32_117 = arith.constant 2 : i32
      %527 = tpu.memref_slice %arg14[%c2_i32_117] : memref<3x!tpu.dma_semaphore, #tpu.memory_space<semaphore_mem>> -> memref<1x!tpu.dma_semaphore, #tpu.memory_space<semaphore_mem>>
      %528 = tpu.memref_squeeze %527 : memref<1x!tpu.dma_semaphore, #tpu.memory_space<semaphore_mem>> -> memref<!tpu.dma_semaphore, #tpu.memory_space<semaphore_mem>>
      tpu.wait_dma2 semaphore(%528 : memref<!tpu.dma_semaphore, #tpu.memory_space<semaphore_mem>>) src(%arg7 : memref<256x128xbf16, #tpu.memory_space<any>>) dst(%arg13 : memref<256x128xbf16, #tpu.memory_space<vmem>>)
    } else {
    }
    %c0_10 = arith.constant 0 : index
    %c0_11 = arith.constant 0 : index
    %13 = vector.load %arg11[%c0_10, %c0_11] : memref<256x1024xbf16, #tpu.memory_space<vmem>>, vector<256x1024xbf16>
    %c0_12 = arith.constant 0 : index
    %c0_13 = arith.constant 0 : index
    %14 = vector.load %arg12[%c0_12, %c0_13] : memref<512x1024xbf16, #tpu.memory_space<vmem>>, vector<512x1024xbf16>
    %c0_14 = arith.constant 0 : index
    %c0_15 = arith.constant 0 : index
    %15 = vector.load %arg6[%c0_14, %c0_15] : memref<1x1024xf32, #tpu.memory_space<vmem>>, vector<1x1024xf32>
    %c0_16 = arith.constant 0 : index
    %c0_17 = arith.constant 0 : index
    %16 = vector.load %arg15[%c0_16, %c0_17] : memref<8x256xf32, #tpu.memory_space<vmem>>, vector<8x256xf32>
    %c0_18 = arith.constant 0 : index
    %c0_19 = arith.constant 0 : index
    %17 = vector.load %arg16[%c0_18, %c0_19] : memref<8x256xf32, #tpu.memory_space<vmem>>, vector<8x256xf32>
    %c0_20 = arith.constant 0 : index
    %c0_21 = arith.constant 0 : index
    %18 = vector.load %arg17[%c0_20, %c0_21] : memref<8x256xf32, #tpu.memory_space<vmem>>, vector<8x256xf32>
    %c0_22 = arith.constant 0 : index
    %c0_23 = arith.constant 0 : index
    %19 = vector.load %arg18[%c0_22, %c0_23] : memref<8x256xf32, #tpu.memory_space<vmem>>, vector<8x256xf32>
    %c0_i32_24 = arith.constant 0 : i32
    %c8_i32 = arith.constant 8 : i32
    %20 = arith.muli %c0_i32_24, %c8_i32 : i32
    %21 = tpu.assume_multiple %20, 8 : i32
    %22 = arith.index_cast %21 : i32 to index
    %c0_25 = arith.constant 0 : index
    %23 = vector.load %arg10[%22, %c0_25] : memref<64x1024xf32, #tpu.memory_space<vmem>>, vector<8x1024xf32>
    %24 = arith.truncf %16 : vector<8x256xf32> to vector<8x256xbf16>
    %cst_26 = arith.constant dense<0.000000e+00> : vector<8x1024xf32>
    %25 = tpu.matmul %24, %13, %cst_26 {dimension_numbers = #tpu.dot_dimension_numbers<[1], [0], [0], [1], [0, 0, 1, 1], [], []>} : vector<8x256xbf16>, vector<256x1024xbf16>, vector<8x1024xf32> -> vector<8x1024xf32>
    %26 = arith.addf %23, %25 : vector<8x1024xf32>
    %27 = vector.extract_strided_slice %26 {offsets = [0, 0], sizes = [8, 256], strides = [1, 1]} : vector<8x1024xf32> to vector<8x256xf32>
    %28 = arith.negf %27 : vector<8x256xf32>
    %29 = math.exp %28 : vector<8x256xf32>
    %cst_27 = arith.constant 1.000000e+00 : f32
    %30 = vector.broadcast %cst_27 : f32 to vector<8x256xf32>
    %31 = arith.addf %30, %29 : vector<8x256xf32>
    %32 = arith.divf %30, %31 : vector<8x256xf32>
    %33 = vector.extract_strided_slice %26 {offsets = [0, 256], sizes = [8, 256], strides = [1, 1]} : vector<8x1024xf32> to vector<8x256xf32>
    %34 = arith.negf %33 : vector<8x256xf32>
    %35 = math.exp %34 : vector<8x256xf32>
    %cst_28 = arith.constant 1.000000e+00 : f32
    %36 = vector.broadcast %cst_28 : f32 to vector<8x256xf32>
    %37 = arith.addf %36, %35 : vector<8x256xf32>
    %38 = arith.divf %36, %37 : vector<8x256xf32>
    %39 = vector.extract_strided_slice %26 {offsets = [0, 512], sizes = [8, 256], strides = [1, 1]} : vector<8x1024xf32> to vector<8x256xf32>
    %40 = math.tanh %39 : vector<8x256xf32>
    %41 = vector.extract_strided_slice %26 {offsets = [0, 768], sizes = [8, 256], strides = [1, 1]} : vector<8x1024xf32> to vector<8x256xf32>
    %42 = arith.negf %41 : vector<8x256xf32>
    %43 = math.exp %42 : vector<8x256xf32>
    %cst_29 = arith.constant 1.000000e+00 : f32
    %44 = vector.broadcast %cst_29 : f32 to vector<8x256xf32>
    %45 = arith.addf %44, %43 : vector<8x256xf32>
    %46 = arith.divf %44, %45 : vector<8x256xf32>
    %47 = arith.mulf %38, %17 : vector<8x256xf32>
    %48 = arith.mulf %32, %40 : vector<8x256xf32>
    %49 = arith.addf %47, %48 : vector<8x256xf32>
    %50 = math.tanh %49 : vector<8x256xf32>
    %51 = arith.mulf %46, %50 : vector<8x256xf32>
    %52 = tpu.concatenate %51, %18 in 1 : vector<8x256xf32>, vector<8x256xf32> -> vector<8x512xf32>
    %53 = arith.truncf %52 : vector<8x512xf32> to vector<8x512xbf16>
    %cst_30 = arith.constant dense<0.000000e+00> : vector<8x1024xf32>
    %54 = tpu.matmul %53, %14, %cst_30 {dimension_numbers = #tpu.dot_dimension_numbers<[1], [0], [0], [1], [0, 0, 1, 1], [], []>} : vector<8x512xbf16>, vector<512x1024xbf16>, vector<8x1024xf32> -> vector<8x1024xf32>
    %55 = vector.broadcast %15 : vector<1x1024xf32> to vector<8x1024xf32>
    %56 = arith.addf %54, %55 : vector<8x1024xf32>
    %57 = vector.extract_strided_slice %56 {offsets = [0, 0], sizes = [8, 256], strides = [1, 1]} : vector<8x1024xf32> to vector<8x256xf32>
    %58 = arith.negf %57 : vector<8x256xf32>
    %59 = math.exp %58 : vector<8x256xf32>
    %cst_31 = arith.constant 1.000000e+00 : f32
    %60 = vector.broadcast %cst_31 : f32 to vector<8x256xf32>
    %61 = arith.addf %60, %59 : vector<8x256xf32>
    %62 = arith.divf %60, %61 : vector<8x256xf32>
    %63 = vector.extract_strided_slice %56 {offsets = [0, 256], sizes = [8, 256], strides = [1, 1]} : vector<8x1024xf32> to vector<8x256xf32>
    %64 = arith.negf %63 : vector<8x256xf32>
    %65 = math.exp %64 : vector<8x256xf32>
    %cst_32 = arith.constant 1.000000e+00 : f32
    %66 = vector.broadcast %cst_32 : f32 to vector<8x256xf32>
    %67 = arith.addf %66, %65 : vector<8x256xf32>
    %68 = arith.divf %66, %67 : vector<8x256xf32>
    %69 = vector.extract_strided_slice %56 {offsets = [0, 512], sizes = [8, 256], strides = [1, 1]} : vector<8x1024xf32> to vector<8x256xf32>
    %70 = math.tanh %69 : vector<8x256xf32>
    %71 = vector.extract_strided_slice %56 {offsets = [0, 768], sizes = [8, 256], strides = [1, 1]} : vector<8x1024xf32> to vector<8x256xf32>
    %72 = arith.negf %71 : vector<8x256xf32>
    %73 = math.exp %72 : vector<8x256xf32>
    %cst_33 = arith.constant 1.000000e+00 : f32
    %74 = vector.broadcast %cst_33 : f32 to vector<8x256xf32>
    %75 = arith.addf %74, %73 : vector<8x256xf32>
    %76 = arith.divf %74, %75 : vector<8x256xf32>
    %77 = arith.mulf %68, %19 : vector<8x256xf32>
    %78 = arith.mulf %62, %70 : vector<8x256xf32>
    %79 = arith.addf %77, %78 : vector<8x256xf32>
    %80 = math.tanh %79 : vector<8x256xf32>
    %81 = arith.mulf %76, %80 : vector<8x256xf32>
    %c1_i32 = arith.constant 1 : i32
    %c8_i32_34 = arith.constant 8 : i32
    %82 = arith.muli %c1_i32, %c8_i32_34 : i32
    %83 = tpu.assume_multiple %82, 8 : i32
    %84 = arith.index_cast %83 : i32 to index
    %c0_35 = arith.constant 0 : index
    %85 = vector.load %arg10[%84, %c0_35] : memref<64x1024xf32, #tpu.memory_space<vmem>>, vector<8x1024xf32>
    %86 = arith.truncf %51 : vector<8x256xf32> to vector<8x256xbf16>
    %cst_36 = arith.constant dense<0.000000e+00> : vector<8x1024xf32>
    %87 = tpu.matmul %86, %13, %cst_36 {dimension_numbers = #tpu.dot_dimension_numbers<[1], [0], [0], [1], [0, 0, 1, 1], [], []>} : vector<8x256xbf16>, vector<256x1024xbf16>, vector<8x1024xf32> -> vector<8x1024xf32>
    %88 = arith.addf %85, %87 : vector<8x1024xf32>
    %89 = vector.extract_strided_slice %88 {offsets = [0, 0], sizes = [8, 256], strides = [1, 1]} : vector<8x1024xf32> to vector<8x256xf32>
    %90 = arith.negf %89 : vector<8x256xf32>
    %91 = math.exp %90 : vector<8x256xf32>
    %cst_37 = arith.constant 1.000000e+00 : f32
    %92 = vector.broadcast %cst_37 : f32 to vector<8x256xf32>
    %93 = arith.addf %92, %91 : vector<8x256xf32>
    %94 = arith.divf %92, %93 : vector<8x256xf32>
    %95 = vector.extract_strided_slice %88 {offsets = [0, 256], sizes = [8, 256], strides = [1, 1]} : vector<8x1024xf32> to vector<8x256xf32>
    %96 = arith.negf %95 : vector<8x256xf32>
    %97 = math.exp %96 : vector<8x256xf32>
    %cst_38 = arith.constant 1.000000e+00 : f32
    %98 = vector.broadcast %cst_38 : f32 to vector<8x256xf32>
    %99 = arith.addf %98, %97 : vector<8x256xf32>
    %100 = arith.divf %98, %99 : vector<8x256xf32>
    %101 = vector.extract_strided_slice %88 {offsets = [0, 512], sizes = [8, 256], strides = [1, 1]} : vector<8x1024xf32> to vector<8x256xf32>
    %102 = math.tanh %101 : vector<8x256xf32>
    %103 = vector.extract_strided_slice %88 {offsets = [0, 768], sizes = [8, 256], strides = [1, 1]} : vector<8x1024xf32> to vector<8x256xf32>
    %104 = arith.negf %103 : vector<8x256xf32>
    %105 = math.exp %104 : vector<8x256xf32>
    %cst_39 = arith.constant 1.000000e+00 : f32
    %106 = vector.broadcast %cst_39 : f32 to vector<8x256xf32>
    %107 = arith.addf %106, %105 : vector<8x256xf32>
    %108 = arith.divf %106, %107 : vector<8x256xf32>
    %109 = arith.mulf %100, %49 : vector<8x256xf32>
    %110 = arith.mulf %94, %102 : vector<8x256xf32>
    %111 = arith.addf %109, %110 : vector<8x256xf32>
    %112 = math.tanh %111 : vector<8x256xf32>
    %113 = arith.mulf %108, %112 : vector<8x256xf32>
    %114 = tpu.concatenate %113, %81 in 1 : vector<8x256xf32>, vector<8x256xf32> -> vector<8x512xf32>
    %115 = arith.truncf %114 : vector<8x512xf32> to vector<8x512xbf16>
    %cst_40 = arith.constant dense<0.000000e+00> : vector<8x1024xf32>
    %116 = tpu.matmul %115, %14, %cst_40 {dimension_numbers = #tpu.dot_dimension_numbers<[1], [0], [0], [1], [0, 0, 1, 1], [], []>} : vector<8x512xbf16>, vector<512x1024xbf16>, vector<8x1024xf32> -> vector<8x1024xf32>
    %117 = vector.broadcast %15 : vector<1x1024xf32> to vector<8x1024xf32>
    %118 = arith.addf %116, %117 : vector<8x1024xf32>
    %119 = vector.extract_strided_slice %118 {offsets = [0, 0], sizes = [8, 256], strides = [1, 1]} : vector<8x1024xf32> to vector<8x256xf32>
    %120 = arith.negf %119 : vector<8x256xf32>
    %121 = math.exp %120 : vector<8x256xf32>
    %cst_41 = arith.constant 1.000000e+00 : f32
    %122 = vector.broadcast %cst_41 : f32 to vector<8x256xf32>
    %123 = arith.addf %122, %121 : vector<8x256xf32>
    %124 = arith.divf %122, %123 : vector<8x256xf32>
    %125 = vector.extract_strided_slice %118 {offsets = [0, 256], sizes = [8, 256], strides = [1, 1]} : vector<8x1024xf32> to vector<8x256xf32>
    %126 = arith.negf %125 : vector<8x256xf32>
    %127 = math.exp %126 : vector<8x256xf32>
    %cst_42 = arith.constant 1.000000e+00 : f32
    %128 = vector.broadcast %cst_42 : f32 to vector<8x256xf32>
    %129 = arith.addf %128, %127 : vector<8x256xf32>
    %130 = arith.divf %128, %129 : vector<8x256xf32>
    %131 = vector.extract_strided_slice %118 {offsets = [0, 512], sizes = [8, 256], strides = [1, 1]} : vector<8x1024xf32> to vector<8x256xf32>
    %132 = math.tanh %131 : vector<8x256xf32>
    %133 = vector.extract_strided_slice %118 {offsets = [0, 768], sizes = [8, 256], strides = [1, 1]} : vector<8x1024xf32> to vector<8x256xf32>
    %134 = arith.negf %133 : vector<8x256xf32>
    %135 = math.exp %134 : vector<8x256xf32>
    %cst_43 = arith.constant 1.000000e+00 : f32
    %136 = vector.broadcast %cst_43 : f32 to vector<8x256xf32>
    %137 = arith.addf %136, %135 : vector<8x256xf32>
    %138 = arith.divf %136, %137 : vector<8x256xf32>
    %139 = arith.mulf %130, %79 : vector<8x256xf32>
    %140 = arith.mulf %124, %132 : vector<8x256xf32>
    %141 = arith.addf %139, %140 : vector<8x256xf32>
    %142 = math.tanh %141 : vector<8x256xf32>
    %143 = arith.mulf %138, %142 : vector<8x256xf32>
    %c2_i32 = arith.constant 2 : i32
    %c8_i32_44 = arith.constant 8 : i32
    %144 = arith.muli %c2_i32, %c8_i32_44 : i32
    %145 = tpu.assume_multiple %144, 8 : i32
    %146 = arith.index_cast %145 : i32 to index
    %c0_45 = arith.constant 0 : index
    %147 = vector.load %arg10[%146, %c0_45] : memref<64x1024xf32, #tpu.memory_space<vmem>>, vector<8x1024xf32>
    %148 = arith.truncf %113 : vector<8x256xf32> to vector<8x256xbf16>
    %cst_46 = arith.constant dense<0.000000e+00> : vector<8x1024xf32>
    %149 = tpu.matmul %148, %13, %cst_46 {dimension_numbers = #tpu.dot_dimension_numbers<[1], [0], [0], [1], [0, 0, 1, 1], [], []>} : vector<8x256xbf16>, vector<256x1024xbf16>, vector<8x1024xf32> -> vector<8x1024xf32>
    %150 = arith.addf %147, %149 : vector<8x1024xf32>
    %151 = vector.extract_strided_slice %150 {offsets = [0, 0], sizes = [8, 256], strides = [1, 1]} : vector<8x1024xf32> to vector<8x256xf32>
    %152 = arith.negf %151 : vector<8x256xf32>
    %153 = math.exp %152 : vector<8x256xf32>
    %cst_47 = arith.constant 1.000000e+00 : f32
    %154 = vector.broadcast %cst_47 : f32 to vector<8x256xf32>
    %155 = arith.addf %154, %153 : vector<8x256xf32>
    %156 = arith.divf %154, %155 : vector<8x256xf32>
    %157 = vector.extract_strided_slice %150 {offsets = [0, 256], sizes = [8, 256], strides = [1, 1]} : vector<8x1024xf32> to vector<8x256xf32>
    %158 = arith.negf %157 : vector<8x256xf32>
    %159 = math.exp %158 : vector<8x256xf32>
    %cst_48 = arith.constant 1.000000e+00 : f32
    %160 = vector.broadcast %cst_48 : f32 to vector<8x256xf32>
    %161 = arith.addf %160, %159 : vector<8x256xf32>
    %162 = arith.divf %160, %161 : vector<8x256xf32>
    %163 = vector.extract_strided_slice %150 {offsets = [0, 512], sizes = [8, 256], strides = [1, 1]} : vector<8x1024xf32> to vector<8x256xf32>
    %164 = math.tanh %163 : vector<8x256xf32>
    %165 = vector.extract_strided_slice %150 {offsets = [0, 768], sizes = [8, 256], strides = [1, 1]} : vector<8x1024xf32> to vector<8x256xf32>
    %166 = arith.negf %165 : vector<8x256xf32>
    %167 = math.exp %166 : vector<8x256xf32>
    %cst_49 = arith.constant 1.000000e+00 : f32
    %168 = vector.broadcast %cst_49 : f32 to vector<8x256xf32>
    %169 = arith.addf %168, %167 : vector<8x256xf32>
    %170 = arith.divf %168, %169 : vector<8x256xf32>
    %171 = arith.mulf %162, %111 : vector<8x256xf32>
    %172 = arith.mulf %156, %164 : vector<8x256xf32>
    %173 = arith.addf %171, %172 : vector<8x256xf32>
    %174 = math.tanh %173 : vector<8x256xf32>
    %175 = arith.mulf %170, %174 : vector<8x256xf32>
    %176 = tpu.concatenate %175, %143 in 1 : vector<8x256xf32>, vector<8x256xf32> -> vector<8x512xf32>
    %177 = arith.truncf %176 : vector<8x512xf32> to vector<8x512xbf16>
    %cst_50 = arith.constant dense<0.000000e+00> : vector<8x1024xf32>
    %178 = tpu.matmul %177, %14, %cst_50 {dimension_numbers = #tpu.dot_dimension_numbers<[1], [0], [0], [1], [0, 0, 1, 1], [], []>} : vector<8x512xbf16>, vector<512x1024xbf16>, vector<8x1024xf32> -> vector<8x1024xf32>
    %179 = vector.broadcast %15 : vector<1x1024xf32> to vector<8x1024xf32>
    %180 = arith.addf %178, %179 : vector<8x1024xf32>
    %181 = vector.extract_strided_slice %180 {offsets = [0, 0], sizes = [8, 256], strides = [1, 1]} : vector<8x1024xf32> to vector<8x256xf32>
    %182 = arith.negf %181 : vector<8x256xf32>
    %183 = math.exp %182 : vector<8x256xf32>
    %cst_51 = arith.constant 1.000000e+00 : f32
    %184 = vector.broadcast %cst_51 : f32 to vector<8x256xf32>
    %185 = arith.addf %184, %183 : vector<8x256xf32>
    %186 = arith.divf %184, %185 : vector<8x256xf32>
    %187 = vector.extract_strided_slice %180 {offsets = [0, 256], sizes = [8, 256], strides = [1, 1]} : vector<8x1024xf32> to vector<8x256xf32>
    %188 = arith.negf %187 : vector<8x256xf32>
    %189 = math.exp %188 : vector<8x256xf32>
    %cst_52 = arith.constant 1.000000e+00 : f32
    %190 = vector.broadcast %cst_52 : f32 to vector<8x256xf32>
    %191 = arith.addf %190, %189 : vector<8x256xf32>
    %192 = arith.divf %190, %191 : vector<8x256xf32>
    %193 = vector.extract_strided_slice %180 {offsets = [0, 512], sizes = [8, 256], strides = [1, 1]} : vector<8x1024xf32> to vector<8x256xf32>
    %194 = math.tanh %193 : vector<8x256xf32>
    %195 = vector.extract_strided_slice %180 {offsets = [0, 768], sizes = [8, 256], strides = [1, 1]} : vector<8x1024xf32> to vector<8x256xf32>
    %196 = arith.negf %195 : vector<8x256xf32>
    %197 = math.exp %196 : vector<8x256xf32>
    %cst_53 = arith.constant 1.000000e+00 : f32
    %198 = vector.broadcast %cst_53 : f32 to vector<8x256xf32>
    %199 = arith.addf %198, %197 : vector<8x256xf32>
    %200 = arith.divf %198, %199 : vector<8x256xf32>
    %201 = arith.mulf %192, %141 : vector<8x256xf32>
    %202 = arith.mulf %186, %194 : vector<8x256xf32>
    %203 = arith.addf %201, %202 : vector<8x256xf32>
    %204 = math.tanh %203 : vector<8x256xf32>
    %205 = arith.mulf %200, %204 : vector<8x256xf32>
    %c3_i32 = arith.constant 3 : i32
    %c8_i32_54 = arith.constant 8 : i32
    %206 = arith.muli %c3_i32, %c8_i32_54 : i32
    %207 = tpu.assume_multiple %206, 8 : i32
    %208 = arith.index_cast %207 : i32 to index
    %c0_55 = arith.constant 0 : index
    %209 = vector.load %arg10[%208, %c0_55] : memref<64x1024xf32, #tpu.memory_space<vmem>>, vector<8x1024xf32>
    %210 = arith.truncf %175 : vector<8x256xf32> to vector<8x256xbf16>
    %cst_56 = arith.constant dense<0.000000e+00> : vector<8x1024xf32>
    %211 = tpu.matmul %210, %13, %cst_56 {dimension_numbers = #tpu.dot_dimension_numbers<[1], [0], [0], [1], [0, 0, 1, 1], [], []>} : vector<8x256xbf16>, vector<256x1024xbf16>, vector<8x1024xf32> -> vector<8x1024xf32>
    %212 = arith.addf %209, %211 : vector<8x1024xf32>
    %213 = vector.extract_strided_slice %212 {offsets = [0, 0], sizes = [8, 256], strides = [1, 1]} : vector<8x1024xf32> to vector<8x256xf32>
    %214 = arith.negf %213 : vector<8x256xf32>
    %215 = math.exp %214 : vector<8x256xf32>
    %cst_57 = arith.constant 1.000000e+00 : f32
    %216 = vector.broadcast %cst_57 : f32 to vector<8x256xf32>
    %217 = arith.addf %216, %215 : vector<8x256xf32>
    %218 = arith.divf %216, %217 : vector<8x256xf32>
    %219 = vector.extract_strided_slice %212 {offsets = [0, 256], sizes = [8, 256], strides = [1, 1]} : vector<8x1024xf32> to vector<8x256xf32>
    %220 = arith.negf %219 : vector<8x256xf32>
    %221 = math.exp %220 : vector<8x256xf32>
    %cst_58 = arith.constant 1.000000e+00 : f32
    %222 = vector.broadcast %cst_58 : f32 to vector<8x256xf32>
    %223 = arith.addf %222, %221 : vector<8x256xf32>
    %224 = arith.divf %222, %223 : vector<8x256xf32>
    %225 = vector.extract_strided_slice %212 {offsets = [0, 512], sizes = [8, 256], strides = [1, 1]} : vector<8x1024xf32> to vector<8x256xf32>
    %226 = math.tanh %225 : vector<8x256xf32>
    %227 = vector.extract_strided_slice %212 {offsets = [0, 768], sizes = [8, 256], strides = [1, 1]} : vector<8x1024xf32> to vector<8x256xf32>
    %228 = arith.negf %227 : vector<8x256xf32>
    %229 = math.exp %228 : vector<8x256xf32>
    %cst_59 = arith.constant 1.000000e+00 : f32
    %230 = vector.broadcast %cst_59 : f32 to vector<8x256xf32>
    %231 = arith.addf %230, %229 : vector<8x256xf32>
    %232 = arith.divf %230, %231 : vector<8x256xf32>
    %233 = arith.mulf %224, %173 : vector<8x256xf32>
    %234 = arith.mulf %218, %226 : vector<8x256xf32>
    %235 = arith.addf %233, %234 : vector<8x256xf32>
    %236 = math.tanh %235 : vector<8x256xf32>
    %237 = arith.mulf %232, %236 : vector<8x256xf32>
    %238 = tpu.concatenate %237, %205 in 1 : vector<8x256xf32>, vector<8x256xf32> -> vector<8x512xf32>
    %239 = arith.truncf %238 : vector<8x512xf32> to vector<8x512xbf16>
    %cst_60 = arith.constant dense<0.000000e+00> : vector<8x1024xf32>
    %240 = tpu.matmul %239, %14, %cst_60 {dimension_numbers = #tpu.dot_dimension_numbers<[1], [0], [0], [1], [0, 0, 1, 1], [], []>} : vector<8x512xbf16>, vector<512x1024xbf16>, vector<8x1024xf32> -> vector<8x1024xf32>
    %241 = vector.broadcast %15 : vector<1x1024xf32> to vector<8x1024xf32>
    %242 = arith.addf %240, %241 : vector<8x1024xf32>
    %243 = vector.extract_strided_slice %242 {offsets = [0, 0], sizes = [8, 256], strides = [1, 1]} : vector<8x1024xf32> to vector<8x256xf32>
    %244 = arith.negf %243 : vector<8x256xf32>
    %245 = math.exp %244 : vector<8x256xf32>
    %cst_61 = arith.constant 1.000000e+00 : f32
    %246 = vector.broadcast %cst_61 : f32 to vector<8x256xf32>
    %247 = arith.addf %246, %245 : vector<8x256xf32>
    %248 = arith.divf %246, %247 : vector<8x256xf32>
    %249 = vector.extract_strided_slice %242 {offsets = [0, 256], sizes = [8, 256], strides = [1, 1]} : vector<8x1024xf32> to vector<8x256xf32>
    %250 = arith.negf %249 : vector<8x256xf32>
    %251 = math.exp %250 : vector<8x256xf32>
    %cst_62 = arith.constant 1.000000e+00 : f32
    %252 = vector.broadcast %cst_62 : f32 to vector<8x256xf32>
    %253 = arith.addf %252, %251 : vector<8x256xf32>
    %254 = arith.divf %252, %253 : vector<8x256xf32>
    %255 = vector.extract_strided_slice %242 {offsets = [0, 512], sizes = [8, 256], strides = [1, 1]} : vector<8x1024xf32> to vector<8x256xf32>
    %256 = math.tanh %255 : vector<8x256xf32>
    %257 = vector.extract_strided_slice %242 {offsets = [0, 768], sizes = [8, 256], strides = [1, 1]} : vector<8x1024xf32> to vector<8x256xf32>
    %258 = arith.negf %257 : vector<8x256xf32>
    %259 = math.exp %258 : vector<8x256xf32>
    %cst_63 = arith.constant 1.000000e+00 : f32
    %260 = vector.broadcast %cst_63 : f32 to vector<8x256xf32>
    %261 = arith.addf %260, %259 : vector<8x256xf32>
    %262 = arith.divf %260, %261 : vector<8x256xf32>
    %263 = arith.mulf %254, %203 : vector<8x256xf32>
    %264 = arith.mulf %248, %256 : vector<8x256xf32>
    %265 = arith.addf %263, %264 : vector<8x256xf32>
    %266 = math.tanh %265 : vector<8x256xf32>
    %267 = arith.mulf %262, %266 : vector<8x256xf32>
    %c4_i32 = arith.constant 4 : i32
    %c8_i32_64 = arith.constant 8 : i32
    %268 = arith.muli %c4_i32, %c8_i32_64 : i32
    %269 = tpu.assume_multiple %268, 8 : i32
    %270 = arith.index_cast %269 : i32 to index
    %c0_65 = arith.constant 0 : index
    %271 = vector.load %arg10[%270, %c0_65] : memref<64x1024xf32, #tpu.memory_space<vmem>>, vector<8x1024xf32>
    %272 = arith.truncf %237 : vector<8x256xf32> to vector<8x256xbf16>
    %cst_66 = arith.constant dense<0.000000e+00> : vector<8x1024xf32>
    %273 = tpu.matmul %272, %13, %cst_66 {dimension_numbers = #tpu.dot_dimension_numbers<[1], [0], [0], [1], [0, 0, 1, 1], [], []>} : vector<8x256xbf16>, vector<256x1024xbf16>, vector<8x1024xf32> -> vector<8x1024xf32>
    %274 = arith.addf %271, %273 : vector<8x1024xf32>
    %275 = vector.extract_strided_slice %274 {offsets = [0, 0], sizes = [8, 256], strides = [1, 1]} : vector<8x1024xf32> to vector<8x256xf32>
    %276 = arith.negf %275 : vector<8x256xf32>
    %277 = math.exp %276 : vector<8x256xf32>
    %cst_67 = arith.constant 1.000000e+00 : f32
    %278 = vector.broadcast %cst_67 : f32 to vector<8x256xf32>
    %279 = arith.addf %278, %277 : vector<8x256xf32>
    %280 = arith.divf %278, %279 : vector<8x256xf32>
    %281 = vector.extract_strided_slice %274 {offsets = [0, 256], sizes = [8, 256], strides = [1, 1]} : vector<8x1024xf32> to vector<8x256xf32>
    %282 = arith.negf %281 : vector<8x256xf32>
    %283 = math.exp %282 : vector<8x256xf32>
    %cst_68 = arith.constant 1.000000e+00 : f32
    %284 = vector.broadcast %cst_68 : f32 to vector<8x256xf32>
    %285 = arith.addf %284, %283 : vector<8x256xf32>
    %286 = arith.divf %284, %285 : vector<8x256xf32>
    %287 = vector.extract_strided_slice %274 {offsets = [0, 512], sizes = [8, 256], strides = [1, 1]} : vector<8x1024xf32> to vector<8x256xf32>
    %288 = math.tanh %287 : vector<8x256xf32>
    %289 = vector.extract_strided_slice %274 {offsets = [0, 768], sizes = [8, 256], strides = [1, 1]} : vector<8x1024xf32> to vector<8x256xf32>
    %290 = arith.negf %289 : vector<8x256xf32>
    %291 = math.exp %290 : vector<8x256xf32>
    %cst_69 = arith.constant 1.000000e+00 : f32
    %292 = vector.broadcast %cst_69 : f32 to vector<8x256xf32>
    %293 = arith.addf %292, %291 : vector<8x256xf32>
    %294 = arith.divf %292, %293 : vector<8x256xf32>
    %295 = arith.mulf %286, %235 : vector<8x256xf32>
    %296 = arith.mulf %280, %288 : vector<8x256xf32>
    %297 = arith.addf %295, %296 : vector<8x256xf32>
    %298 = math.tanh %297 : vector<8x256xf32>
    %299 = arith.mulf %294, %298 : vector<8x256xf32>
    %300 = tpu.concatenate %299, %267 in 1 : vector<8x256xf32>, vector<8x256xf32> -> vector<8x512xf32>
    %301 = arith.truncf %300 : vector<8x512xf32> to vector<8x512xbf16>
    %cst_70 = arith.constant dense<0.000000e+00> : vector<8x1024xf32>
    %302 = tpu.matmul %301, %14, %cst_70 {dimension_numbers = #tpu.dot_dimension_numbers<[1], [0], [0], [1], [0, 0, 1, 1], [], []>} : vector<8x512xbf16>, vector<512x1024xbf16>, vector<8x1024xf32> -> vector<8x1024xf32>
    %303 = vector.broadcast %15 : vector<1x1024xf32> to vector<8x1024xf32>
    %304 = arith.addf %302, %303 : vector<8x1024xf32>
    %305 = vector.extract_strided_slice %304 {offsets = [0, 0], sizes = [8, 256], strides = [1, 1]} : vector<8x1024xf32> to vector<8x256xf32>
    %306 = arith.negf %305 : vector<8x256xf32>
    %307 = math.exp %306 : vector<8x256xf32>
    %cst_71 = arith.constant 1.000000e+00 : f32
    %308 = vector.broadcast %cst_71 : f32 to vector<8x256xf32>
    %309 = arith.addf %308, %307 : vector<8x256xf32>
    %310 = arith.divf %308, %309 : vector<8x256xf32>
    %311 = vector.extract_strided_slice %304 {offsets = [0, 256], sizes = [8, 256], strides = [1, 1]} : vector<8x1024xf32> to vector<8x256xf32>
    %312 = arith.negf %311 : vector<8x256xf32>
    %313 = math.exp %312 : vector<8x256xf32>
    %cst_72 = arith.constant 1.000000e+00 : f32
    %314 = vector.broadcast %cst_72 : f32 to vector<8x256xf32>
    %315 = arith.addf %314, %313 : vector<8x256xf32>
    %316 = arith.divf %314, %315 : vector<8x256xf32>
    %317 = vector.extract_strided_slice %304 {offsets = [0, 512], sizes = [8, 256], strides = [1, 1]} : vector<8x1024xf32> to vector<8x256xf32>
    %318 = math.tanh %317 : vector<8x256xf32>
    %319 = vector.extract_strided_slice %304 {offsets = [0, 768], sizes = [8, 256], strides = [1, 1]} : vector<8x1024xf32> to vector<8x256xf32>
    %320 = arith.negf %319 : vector<8x256xf32>
    %321 = math.exp %320 : vector<8x256xf32>
    %cst_73 = arith.constant 1.000000e+00 : f32
    %322 = vector.broadcast %cst_73 : f32 to vector<8x256xf32>
    %323 = arith.addf %322, %321 : vector<8x256xf32>
    %324 = arith.divf %322, %323 : vector<8x256xf32>
    %325 = arith.mulf %316, %265 : vector<8x256xf32>
    %326 = arith.mulf %310, %318 : vector<8x256xf32>
    %327 = arith.addf %325, %326 : vector<8x256xf32>
    %328 = math.tanh %327 : vector<8x256xf32>
    %329 = arith.mulf %324, %328 : vector<8x256xf32>
    %c5_i32 = arith.constant 5 : i32
    %c8_i32_74 = arith.constant 8 : i32
    %330 = arith.muli %c5_i32, %c8_i32_74 : i32
    %331 = tpu.assume_multiple %330, 8 : i32
    %332 = arith.index_cast %331 : i32 to index
    %c0_75 = arith.constant 0 : index
    %333 = vector.load %arg10[%332, %c0_75] : memref<64x1024xf32, #tpu.memory_space<vmem>>, vector<8x1024xf32>
    %334 = arith.truncf %299 : vector<8x256xf32> to vector<8x256xbf16>
    %cst_76 = arith.constant dense<0.000000e+00> : vector<8x1024xf32>
    %335 = tpu.matmul %334, %13, %cst_76 {dimension_numbers = #tpu.dot_dimension_numbers<[1], [0], [0], [1], [0, 0, 1, 1], [], []>} : vector<8x256xbf16>, vector<256x1024xbf16>, vector<8x1024xf32> -> vector<8x1024xf32>
    %336 = arith.addf %333, %335 : vector<8x1024xf32>
    %337 = vector.extract_strided_slice %336 {offsets = [0, 0], sizes = [8, 256], strides = [1, 1]} : vector<8x1024xf32> to vector<8x256xf32>
    %338 = arith.negf %337 : vector<8x256xf32>
    %339 = math.exp %338 : vector<8x256xf32>
    %cst_77 = arith.constant 1.000000e+00 : f32
    %340 = vector.broadcast %cst_77 : f32 to vector<8x256xf32>
    %341 = arith.addf %340, %339 : vector<8x256xf32>
    %342 = arith.divf %340, %341 : vector<8x256xf32>
    %343 = vector.extract_strided_slice %336 {offsets = [0, 256], sizes = [8, 256], strides = [1, 1]} : vector<8x1024xf32> to vector<8x256xf32>
    %344 = arith.negf %343 : vector<8x256xf32>
    %345 = math.exp %344 : vector<8x256xf32>
    %cst_78 = arith.constant 1.000000e+00 : f32
    %346 = vector.broadcast %cst_78 : f32 to vector<8x256xf32>
    %347 = arith.addf %346, %345 : vector<8x256xf32>
    %348 = arith.divf %346, %347 : vector<8x256xf32>
    %349 = vector.extract_strided_slice %336 {offsets = [0, 512], sizes = [8, 256], strides = [1, 1]} : vector<8x1024xf32> to vector<8x256xf32>
    %350 = math.tanh %349 : vector<8x256xf32>
    %351 = vector.extract_strided_slice %336 {offsets = [0, 768], sizes = [8, 256], strides = [1, 1]} : vector<8x1024xf32> to vector<8x256xf32>
    %352 = arith.negf %351 : vector<8x256xf32>
    %353 = math.exp %352 : vector<8x256xf32>
    %cst_79 = arith.constant 1.000000e+00 : f32
    %354 = vector.broadcast %cst_79 : f32 to vector<8x256xf32>
    %355 = arith.addf %354, %353 : vector<8x256xf32>
    %356 = arith.divf %354, %355 : vector<8x256xf32>
    %357 = arith.mulf %348, %297 : vector<8x256xf32>
    %358 = arith.mulf %342, %350 : vector<8x256xf32>
    %359 = arith.addf %357, %358 : vector<8x256xf32>
    %360 = math.tanh %359 : vector<8x256xf32>
    %361 = arith.mulf %356, %360 : vector<8x256xf32>
    %362 = tpu.concatenate %361, %329 in 1 : vector<8x256xf32>, vector<8x256xf32> -> vector<8x512xf32>
    %363 = arith.truncf %362 : vector<8x512xf32> to vector<8x512xbf16>
    %cst_80 = arith.constant dense<0.000000e+00> : vector<8x1024xf32>
    %364 = tpu.matmul %363, %14, %cst_80 {dimension_numbers = #tpu.dot_dimension_numbers<[1], [0], [0], [1], [0, 0, 1, 1], [], []>} : vector<8x512xbf16>, vector<512x1024xbf16>, vector<8x1024xf32> -> vector<8x1024xf32>
    %365 = vector.broadcast %15 : vector<1x1024xf32> to vector<8x1024xf32>
    %366 = arith.addf %364, %365 : vector<8x1024xf32>
    %367 = vector.extract_strided_slice %366 {offsets = [0, 0], sizes = [8, 256], strides = [1, 1]} : vector<8x1024xf32> to vector<8x256xf32>
    %368 = arith.negf %367 : vector<8x256xf32>
    %369 = math.exp %368 : vector<8x256xf32>
    %cst_81 = arith.constant 1.000000e+00 : f32
    %370 = vector.broadcast %cst_81 : f32 to vector<8x256xf32>
    %371 = arith.addf %370, %369 : vector<8x256xf32>
    %372 = arith.divf %370, %371 : vector<8x256xf32>
    %373 = vector.extract_strided_slice %366 {offsets = [0, 256], sizes = [8, 256], strides = [1, 1]} : vector<8x1024xf32> to vector<8x256xf32>
    %374 = arith.negf %373 : vector<8x256xf32>
    %375 = math.exp %374 : vector<8x256xf32>
    %cst_82 = arith.constant 1.000000e+00 : f32
    %376 = vector.broadcast %cst_82 : f32 to vector<8x256xf32>
    %377 = arith.addf %376, %375 : vector<8x256xf32>
    %378 = arith.divf %376, %377 : vector<8x256xf32>
    %379 = vector.extract_strided_slice %366 {offsets = [0, 512], sizes = [8, 256], strides = [1, 1]} : vector<8x1024xf32> to vector<8x256xf32>
    %380 = math.tanh %379 : vector<8x256xf32>
    %381 = vector.extract_strided_slice %366 {offsets = [0, 768], sizes = [8, 256], strides = [1, 1]} : vector<8x1024xf32> to vector<8x256xf32>
    %382 = arith.negf %381 : vector<8x256xf32>
    %383 = math.exp %382 : vector<8x256xf32>
    %cst_83 = arith.constant 1.000000e+00 : f32
    %384 = vector.broadcast %cst_83 : f32 to vector<8x256xf32>
    %385 = arith.addf %384, %383 : vector<8x256xf32>
    %386 = arith.divf %384, %385 : vector<8x256xf32>
    %387 = arith.mulf %378, %327 : vector<8x256xf32>
    %388 = arith.mulf %372, %380 : vector<8x256xf32>
    %389 = arith.addf %387, %388 : vector<8x256xf32>
    %390 = math.tanh %389 : vector<8x256xf32>
    %391 = arith.mulf %386, %390 : vector<8x256xf32>
    %c6_i32 = arith.constant 6 : i32
    %c8_i32_84 = arith.constant 8 : i32
    %392 = arith.muli %c6_i32, %c8_i32_84 : i32
    %393 = tpu.assume_multiple %392, 8 : i32
    %394 = arith.index_cast %393 : i32 to index
    %c0_85 = arith.constant 0 : index
    %395 = vector.load %arg10[%394, %c0_85] : memref<64x1024xf32, #tpu.memory_space<vmem>>, vector<8x1024xf32>
    %396 = arith.truncf %361 : vector<8x256xf32> to vector<8x256xbf16>
    %cst_86 = arith.constant dense<0.000000e+00> : vector<8x1024xf32>
    %397 = tpu.matmul %396, %13, %cst_86 {dimension_numbers = #tpu.dot_dimension_numbers<[1], [0], [0], [1], [0, 0, 1, 1], [], []>} : vector<8x256xbf16>, vector<256x1024xbf16>, vector<8x1024xf32> -> vector<8x1024xf32>
    %398 = arith.addf %395, %397 : vector<8x1024xf32>
    %399 = vector.extract_strided_slice %398 {offsets = [0, 0], sizes = [8, 256], strides = [1, 1]} : vector<8x1024xf32> to vector<8x256xf32>
    %400 = arith.negf %399 : vector<8x256xf32>
    %401 = math.exp %400 : vector<8x256xf32>
    %cst_87 = arith.constant 1.000000e+00 : f32
    %402 = vector.broadcast %cst_87 : f32 to vector<8x256xf32>
    %403 = arith.addf %402, %401 : vector<8x256xf32>
    %404 = arith.divf %402, %403 : vector<8x256xf32>
    %405 = vector.extract_strided_slice %398 {offsets = [0, 256], sizes = [8, 256], strides = [1, 1]} : vector<8x1024xf32> to vector<8x256xf32>
    %406 = arith.negf %405 : vector<8x256xf32>
    %407 = math.exp %406 : vector<8x256xf32>
    %cst_88 = arith.constant 1.000000e+00 : f32
    %408 = vector.broadcast %cst_88 : f32 to vector<8x256xf32>
    %409 = arith.addf %408, %407 : vector<8x256xf32>
    %410 = arith.divf %408, %409 : vector<8x256xf32>
    %411 = vector.extract_strided_slice %398 {offsets = [0, 512], sizes = [8, 256], strides = [1, 1]} : vector<8x1024xf32> to vector<8x256xf32>
    %412 = math.tanh %411 : vector<8x256xf32>
    %413 = vector.extract_strided_slice %398 {offsets = [0, 768], sizes = [8, 256], strides = [1, 1]} : vector<8x1024xf32> to vector<8x256xf32>
    %414 = arith.negf %413 : vector<8x256xf32>
    %415 = math.exp %414 : vector<8x256xf32>
    %cst_89 = arith.constant 1.000000e+00 : f32
    %416 = vector.broadcast %cst_89 : f32 to vector<8x256xf32>
    %417 = arith.addf %416, %415 : vector<8x256xf32>
    %418 = arith.divf %416, %417 : vector<8x256xf32>
    %419 = arith.mulf %410, %359 : vector<8x256xf32>
    %420 = arith.mulf %404, %412 : vector<8x256xf32>
    %421 = arith.addf %419, %420 : vector<8x256xf32>
    %422 = math.tanh %421 : vector<8x256xf32>
    %423 = arith.mulf %418, %422 : vector<8x256xf32>
    %424 = tpu.concatenate %423, %391 in 1 : vector<8x256xf32>, vector<8x256xf32> -> vector<8x512xf32>
    %425 = arith.truncf %424 : vector<8x512xf32> to vector<8x512xbf16>
    %cst_90 = arith.constant dense<0.000000e+00> : vector<8x1024xf32>
    %426 = tpu.matmul %425, %14, %cst_90 {dimension_numbers = #tpu.dot_dimension_numbers<[1], [0], [0], [1], [0, 0, 1, 1], [], []>} : vector<8x512xbf16>, vector<512x1024xbf16>, vector<8x1024xf32> -> vector<8x1024xf32>
    %427 = vector.broadcast %15 : vector<1x1024xf32> to vector<8x1024xf32>
    %428 = arith.addf %426, %427 : vector<8x1024xf32>
    %429 = vector.extract_strided_slice %428 {offsets = [0, 0], sizes = [8, 256], strides = [1, 1]} : vector<8x1024xf32> to vector<8x256xf32>
    %430 = arith.negf %429 : vector<8x256xf32>
    %431 = math.exp %430 : vector<8x256xf32>
    %cst_91 = arith.constant 1.000000e+00 : f32
    %432 = vector.broadcast %cst_91 : f32 to vector<8x256xf32>
    %433 = arith.addf %432, %431 : vector<8x256xf32>
    %434 = arith.divf %432, %433 : vector<8x256xf32>
    %435 = vector.extract_strided_slice %428 {offsets = [0, 256], sizes = [8, 256], strides = [1, 1]} : vector<8x1024xf32> to vector<8x256xf32>
    %436 = arith.negf %435 : vector<8x256xf32>
    %437 = math.exp %436 : vector<8x256xf32>
    %cst_92 = arith.constant 1.000000e+00 : f32
    %438 = vector.broadcast %cst_92 : f32 to vector<8x256xf32>
    %439 = arith.addf %438, %437 : vector<8x256xf32>
    %440 = arith.divf %438, %439 : vector<8x256xf32>
    %441 = vector.extract_strided_slice %428 {offsets = [0, 512], sizes = [8, 256], strides = [1, 1]} : vector<8x1024xf32> to vector<8x256xf32>
    %442 = math.tanh %441 : vector<8x256xf32>
    %443 = vector.extract_strided_slice %428 {offsets = [0, 768], sizes = [8, 256], strides = [1, 1]} : vector<8x1024xf32> to vector<8x256xf32>
    %444 = arith.negf %443 : vector<8x256xf32>
    %445 = math.exp %444 : vector<8x256xf32>
    %cst_93 = arith.constant 1.000000e+00 : f32
    %446 = vector.broadcast %cst_93 : f32 to vector<8x256xf32>
    %447 = arith.addf %446, %445 : vector<8x256xf32>
    %448 = arith.divf %446, %447 : vector<8x256xf32>
    %449 = arith.mulf %440, %389 : vector<8x256xf32>
    %450 = arith.mulf %434, %442 : vector<8x256xf32>
    %451 = arith.addf %449, %450 : vector<8x256xf32>
    %452 = math.tanh %451 : vector<8x256xf32>
    %453 = arith.mulf %448, %452 : vector<8x256xf32>
    %c7_i32 = arith.constant 7 : i32
    %c8_i32_94 = arith.constant 8 : i32
    %454 = arith.muli %c7_i32, %c8_i32_94 : i32
    %455 = tpu.assume_multiple %454, 8 : i32
    %456 = arith.index_cast %455 : i32 to index
    %c0_95 = arith.constant 0 : index
    %457 = vector.load %arg10[%456, %c0_95] : memref<64x1024xf32, #tpu.memory_space<vmem>>, vector<8x1024xf32>
    %458 = arith.truncf %423 : vector<8x256xf32> to vector<8x256xbf16>
    %cst_96 = arith.constant dense<0.000000e+00> : vector<8x1024xf32>
    %459 = tpu.matmul %458, %13, %cst_96 {dimension_numbers = #tpu.dot_dimension_numbers<[1], [0], [0], [1], [0, 0, 1, 1], [], []>} : vector<8x256xbf16>, vector<256x1024xbf16>, vector<8x1024xf32> -> vector<8x1024xf32>
    %460 = arith.addf %457, %459 : vector<8x1024xf32>
    %461 = vector.extract_strided_slice %460 {offsets = [0, 0], sizes = [8, 256], strides = [1, 1]} : vector<8x1024xf32> to vector<8x256xf32>
    %462 = arith.negf %461 : vector<8x256xf32>
    %463 = math.exp %462 : vector<8x256xf32>
    %cst_97 = arith.constant 1.000000e+00 : f32
    %464 = vector.broadcast %cst_97 : f32 to vector<8x256xf32>
    %465 = arith.addf %464, %463 : vector<8x256xf32>
    %466 = arith.divf %464, %465 : vector<8x256xf32>
    %467 = vector.extract_strided_slice %460 {offsets = [0, 256], sizes = [8, 256], strides = [1, 1]} : vector<8x1024xf32> to vector<8x256xf32>
    %468 = arith.negf %467 : vector<8x256xf32>
    %469 = math.exp %468 : vector<8x256xf32>
    %cst_98 = arith.constant 1.000000e+00 : f32
    %470 = vector.broadcast %cst_98 : f32 to vector<8x256xf32>
    %471 = arith.addf %470, %469 : vector<8x256xf32>
    %472 = arith.divf %470, %471 : vector<8x256xf32>
    %473 = vector.extract_strided_slice %460 {offsets = [0, 512], sizes = [8, 256], strides = [1, 1]} : vector<8x1024xf32> to vector<8x256xf32>
    %474 = math.tanh %473 : vector<8x256xf32>
    %475 = vector.extract_strided_slice %460 {offsets = [0, 768], sizes = [8, 256], strides = [1, 1]} : vector<8x1024xf32> to vector<8x256xf32>
    %476 = arith.negf %475 : vector<8x256xf32>
    %477 = math.exp %476 : vector<8x256xf32>
    %cst_99 = arith.constant 1.000000e+00 : f32
    %478 = vector.broadcast %cst_99 : f32 to vector<8x256xf32>
    %479 = arith.addf %478, %477 : vector<8x256xf32>
    %480 = arith.divf %478, %479 : vector<8x256xf32>
    %481 = arith.mulf %472, %421 : vector<8x256xf32>
    %482 = arith.mulf %466, %474 : vector<8x256xf32>
    %483 = arith.addf %481, %482 : vector<8x256xf32>
    %484 = math.tanh %483 : vector<8x256xf32>
    %485 = arith.mulf %480, %484 : vector<8x256xf32>
    %486 = tpu.concatenate %485, %453 in 1 : vector<8x256xf32>, vector<8x256xf32> -> vector<8x512xf32>
    %487 = arith.truncf %486 : vector<8x512xf32> to vector<8x512xbf16>
    %cst_100 = arith.constant dense<0.000000e+00> : vector<8x1024xf32>
    %488 = tpu.matmul %487, %14, %cst_100 {dimension_numbers = #tpu.dot_dimension_numbers<[1], [0], [0], [1], [0, 0, 1, 1], [], []>} : vector<8x512xbf16>, vector<512x1024xbf16>, vector<8x1024xf32> -> vector<8x1024xf32>
    %489 = vector.broadcast %15 : vector<1x1024xf32> to vector<8x1024xf32>
    %490 = arith.addf %488, %489 : vector<8x1024xf32>
    %491 = vector.extract_strided_slice %490 {offsets = [0, 0], sizes = [8, 256], strides = [1, 1]} : vector<8x1024xf32> to vector<8x256xf32>
    %492 = arith.negf %491 : vector<8x256xf32>
    %493 = math.exp %492 : vector<8x256xf32>
    %cst_101 = arith.constant 1.000000e+00 : f32
    %494 = vector.broadcast %cst_101 : f32 to vector<8x256xf32>
    %495 = arith.addf %494, %493 : vector<8x256xf32>
    %496 = arith.divf %494, %495 : vector<8x256xf32>
    %497 = vector.extract_strided_slice %490 {offsets = [0, 256], sizes = [8, 256], strides = [1, 1]} : vector<8x1024xf32> to vector<8x256xf32>
    %498 = arith.negf %497 : vector<8x256xf32>
    %499 = math.exp %498 : vector<8x256xf32>
    %cst_102 = arith.constant 1.000000e+00 : f32
    %500 = vector.broadcast %cst_102 : f32 to vector<8x256xf32>
    %501 = arith.addf %500, %499 : vector<8x256xf32>
    %502 = arith.divf %500, %501 : vector<8x256xf32>
    %503 = vector.extract_strided_slice %490 {offsets = [0, 512], sizes = [8, 256], strides = [1, 1]} : vector<8x1024xf32> to vector<8x256xf32>
    %504 = math.tanh %503 : vector<8x256xf32>
    %505 = vector.extract_strided_slice %490 {offsets = [0, 768], sizes = [8, 256], strides = [1, 1]} : vector<8x1024xf32> to vector<8x256xf32>
    %506 = arith.negf %505 : vector<8x256xf32>
    %507 = math.exp %506 : vector<8x256xf32>
    %cst_103 = arith.constant 1.000000e+00 : f32
    %508 = vector.broadcast %cst_103 : f32 to vector<8x256xf32>
    %509 = arith.addf %508, %507 : vector<8x256xf32>
    %510 = arith.divf %508, %509 : vector<8x256xf32>
    %511 = arith.mulf %502, %451 : vector<8x256xf32>
    %512 = arith.mulf %496, %504 : vector<8x256xf32>
    %513 = arith.addf %511, %512 : vector<8x256xf32>
    %514 = math.tanh %513 : vector<8x256xf32>
    %515 = arith.mulf %510, %514 : vector<8x256xf32>
    %c8_i32_104 = arith.constant 8 : i32
    %c0_105 = arith.constant 0 : index
    %c0_106 = arith.constant 0 : index
    %516 = vector.load %arg15[%c0_105, %c0_106] : memref<8x256xf32, #tpu.memory_space<vmem>>, vector<8x256xf32>
    tpu.vector_store %arg15[%c0_105, %c0_106], %485 {strides = array<i32>} : memref<8x256xf32, #tpu.memory_space<vmem>>, vector<8x256xf32>,
    %c0_107 = arith.constant 0 : index
    %c0_108 = arith.constant 0 : index
    %517 = vector.load %arg16[%c0_107, %c0_108] : memref<8x256xf32, #tpu.memory_space<vmem>>, vector<8x256xf32>
    tpu.vector_store %arg16[%c0_107, %c0_108], %483 {strides = array<i32>} : memref<8x256xf32, #tpu.memory_space<vmem>>, vector<8x256xf32>,
    %c0_109 = arith.constant 0 : index
    %c0_110 = arith.constant 0 : index
    %518 = vector.load %arg17[%c0_109, %c0_110] : memref<8x256xf32, #tpu.memory_space<vmem>>, vector<8x256xf32>
    tpu.vector_store %arg17[%c0_109, %c0_110], %515 {strides = array<i32>} : memref<8x256xf32, #tpu.memory_space<vmem>>, vector<8x256xf32>,
    %c0_111 = arith.constant 0 : index
    %c0_112 = arith.constant 0 : index
    %519 = vector.load %arg18[%c0_111, %c0_112] : memref<8x256xf32, #tpu.memory_space<vmem>>, vector<8x256xf32>
    tpu.vector_store %arg18[%c0_111, %c0_112], %513 {strides = array<i32>} : memref<8x256xf32, #tpu.memory_space<vmem>>, vector<8x256xf32>,
    %c0_i32_113 = arith.constant 0 : i32
    %520 = arith.cmpi eq, %arg0, %c0_i32_113 : i32
    %521 = arith.extui %520 : i1 to i32
    %c0_i32_114 = arith.constant 0 : i32
    %522 = arith.cmpi ne, %521, %c0_i32_114 : i32
    scf.if %522 {
      %523 = arith.truncf %515 : vector<8x256xf32> to vector<8x256xbf16>
      %c0_115 = arith.constant 0 : index
      %c0_116 = arith.constant 0 : index
      %524 = vector.load %arg13[%c0_115, %c0_116] : memref<256x128xbf16, #tpu.memory_space<vmem>>, vector<256x128xbf16>
      %cst_117 = arith.constant dense<0.000000e+00> : vector<8x128xf32>
      %525 = tpu.matmul %523, %524, %cst_117 {dimension_numbers = #tpu.dot_dimension_numbers<[1], [0], [0], [1], [0, 0, 1, 1], [], []>} : vector<8x256xbf16>, vector<256x128xbf16>, vector<8x128xf32> -> vector<8x128xf32>
      %c0_118 = arith.constant 0 : index
      %c0_119 = arith.constant 0 : index
      %526 = vector.load %arg8[%c0_118, %c0_119] : memref<1x128xf32, #tpu.memory_space<vmem>>, vector<1x128xf32>
      %527 = vector.broadcast %526 : vector<1x128xf32> to vector<8x128xf32>
      %528 = arith.addf %525, %527 : vector<8x128xf32>
      %c0_120 = arith.constant 0 : index
      %c0_121 = arith.constant 0 : index
      %529 = vector.load %arg9[%c0_120, %c0_121] : memref<8x128xf32, #tpu.memory_space<vmem>>, vector<8x128xf32>
      tpu.vector_store %arg9[%c0_120, %c0_121], %528 {strides = array<i32>} : memref<8x128xf32, #tpu.memory_space<vmem>>, vector<8x128xf32>,
    } else {
    }
    return
  }
  func.func @transform_0(%arg0: i32) -> (i32, i32) {
    %c0_i32 = arith.constant 0 : i32
    %c0_i32_0 = arith.constant 0 : i32
    return %arg0, %c0_i32 : i32, i32
  }
  func.func @transform_1(%arg0: i32) -> (i32, i32) {
    %c0_i32 = arith.constant 0 : i32
    %c0_i32_0 = arith.constant 0 : i32
    %c0_i32_1 = arith.constant 0 : i32
    return %c0_i32, %c0_i32_0 : i32, i32
  }
  func.func @transform_2(%arg0: i32) -> (i32, i32) {
    %c0_i32 = arith.constant 0 : i32
    %c0_i32_0 = arith.constant 0 : i32
    %c0_i32_1 = arith.constant 0 : i32
    return %c0_i32, %c0_i32_0 : i32, i32
  }
  func.func @transform_5(%arg0: i32) -> (i32, i32) {
    %c0_i32 = arith.constant 0 : i32
    %c0_i32_0 = arith.constant 0 : i32
    %c0_i32_1 = arith.constant 0 : i32
    return %c0_i32, %c0_i32_0 : i32, i32
  }
  func.func @transform_7(%arg0: i32) -> (i32, i32) {
    %c0_i32 = arith.constant 0 : i32
    %c0_i32_0 = arith.constant 0 : i32
    %c0_i32_1 = arith.constant 0 : i32
    return %c0_i32, %c0_i32_0 : i32, i32
  }
  func.func @transform_8(%arg0: i32) -> (i32, i32) {
    %c0_i32 = arith.constant 0 : i32
    %c0_i32_0 = arith.constant 0 : i32
    %c0_i32_1 = arith.constant 0 : i32
    return %c0_i32, %c0_i32_0 : i32, i32
  }
}

</mosaic_0001>

<llo_original>
// kernel: tpu_custom_call.1
$region0: #{tpu_custom_call.1}
  #allocation0 [shape = 'u32[]', space=smem, size = 0x4, offset = 0x4, fixed_abs, tag = 'smem constant byte address 0x4 - core index']
  #allocation1 [shape = 'u32[72,128]{1,0:T(1,128)}', space=vmem, size = 0x9000, scoped, tag = 'internal scratch']
  #allocation2 [shape = 'f32[64,1024]{1,0:T(8,128)}', space=vmem, size = 0x40000, scoped, tag = 'scratch operand']
  #allocation3 [shape = 'bf16[256,1024]{1,0:T(8,128)(2,1)}', space=vmem, size = 0x80000, scoped, tag = 'scratch operand']
  #allocation4 [shape = 'bf16[512,1024]{1,0:T(8,128)(2,1)}', space=vmem, size = 0x100000, scoped, tag = 'scratch operand']
  #allocation5 [shape = 'bf16[256,128]{1,0:T(8,128)(2,1)}', space=vmem, size = 0x10000, scoped, tag = 'scratch operand']
  #allocation6 [shape = 's32[3]{0}', space=sflag, size = 0xc, scoped, tag = 'scratch operand']
  #allocation7 [shape = 'f32[8,256]{1,0:T(8,128)}', space=vmem, size = 0x2000, scoped, tag = 'scratch operand']
  #allocation8 [shape = 'f32[8,256]{1,0:T(8,128)}', space=vmem, size = 0x2000, scoped, tag = 'scratch operand']
  #allocation9 [shape = 'f32[8,256]{1,0:T(8,128)}', space=vmem, size = 0x2000, scoped, tag = 'scratch operand']
  #allocation10 [shape = 'f32[8,256]{1,0:T(8,128)}', space=vmem, size = 0x2000, scoped, tag = 'scratch operand']
  #allocation15 [shape = 's32[]', space=sflag, size = 0x4, offset = 0, fixed_abs, tag = 'sflag constant byte address 0x0 - dummy sync flag']
  #allocation16 [shape = 's32[]', space=sflag, size = 0x4, offset = 0, fixed_abs, tag = 'sflag constant byte address 0x0 - dummy sync flag']
  #allocation17 [shape = 'u32[]', space=smem, size = 0x4, offset = 0x44, fixed_abs, tag = 'smem constant byte address 0x44 - assertion arg 0']
  #allocation18 [shape = 'u32[]', space=smem, size = 0x4, offset = 0x48, fixed_abs, tag = 'smem constant byte address 0x48 - assertion arg 1']
  #allocation19 [shape = 's32[]', space=sflag, size = 0x4, offset = 0, fixed_abs, tag = 'sflag constant byte address 0x0 - dummy sync flag']
  #allocation20 [shape = 's32[]', space=sflag, size = 0x4, offset = 0, fixed_abs, tag = 'sflag constant byte address 0x0 - dummy sync flag']
  #allocation21 [shape = 's32[]', space=sflag, size = 0x4, offset = 0, fixed_abs, tag = 'sflag constant byte address 0x0 - dummy sync flag']
  #allocation22 [shape = 's32[]', space=sflag, size = 0x4, offset = 0, fixed_abs, tag = 'sflag constant byte address 0x0 - dummy sync flag']
  %s0 = inlined_call_operand.vmem [shape: f32[64,16], index: 0, kind: input, shape index: {}]
  %s1 = inlined_call_operand.hbm [shape: f32[16,1024], index: 1, kind: input, shape index: {}]
  %s2 = inlined_call_operand.vmem [shape: f32[1,1024], index: 2, kind: input, shape index: {}]
  %s3 = inlined_call_operand.hbm [shape: bf16[256,1024], index: 3, kind: input, shape index: {}]
  %s4 = inlined_call_operand.hbm [shape: bf16[512,1024], index: 4, kind: input, shape index: {}]
  %s5 = inlined_call_operand.vmem [shape: f32[1,1024], index: 5, kind: input, shape index: {}]
  %s6 = inlined_call_operand.hbm [shape: bf16[256,128], index: 6, kind: input, shape index: {}]
  %s7 = inlined_call_operand.vmem [shape: f32[1,128], index: 7, kind: input, shape index: {}]
  %s8 = inlined_call_operand.hbm [shape: f32[8,128], index: 8, kind: output, shape index: {}]
  %s9 = sld [smem:[#allocation0]]
  $region58: #{tpu_custom_call.1} parent=0
    _
  %s11 = ssub.s32 1, %s9
  %s12 = scalar_select 0, %s11, %s9
  $region1: #{tpu_custom_call.1} parent=0
    #allocation11 [shape = 'u8[65536]{0}', space=vmem, size = 0x10000, scoped, tag = 'input window, operand 1, single buffered']
    #allocation12 [shape = 's32[1]{0}', space=sflag, size = 0x4, scoped, tag = 'scoped memory for tpu_custom_call.1']
    #allocation13 [shape = 's32[1]{0}', space=sflag, size = 0x4, scoped, tag = 'scoped memory for tpu_custom_call.1']
    #allocation14 [shape = 'u8[4096]{0}', space=vmem, size = 0x1000, scoped, tag = 'output window, operand 0, single buffered']
    %13 = vsyncpa [#allocation12], 0
    %14 = vsyncpa [#allocation13], 0
    // Predicated region
    $region2: #{tpu_custom_call.1} parent=1 // pred_check
      _
    $region3: #{tpu_custom_call.1} parent=1 // pred_check_branch
      %16 = sbr.rel (0) target = $region5
    $region4: #{tpu_custom_call.1} parent=1 // pred_region
      _
    $region5: #{tpu_custom_call.1} parent=1 // pred_fallthru
      _
    // Predicated region
    $region6: #{tpu_custom_call.1} parent=1 // pred_check
      _
    $region7: #{tpu_custom_call.1} parent=1 // pred_check_branch
      %18 = sbr.rel (0) target = $region9
    $region8: #{tpu_custom_call.1} parent=1 // pred_region
      %20 = vsyncadd [#allocation12], 0
      %s21 = sshll.u32 %s1, 4
      %s22 = int_to_ptr.hbm [resolvable:$true] %s21
      %s23 = sshll.u32 [#allocation11], 4
      %s24 = int_to_ptr.vmem [resolvable:$true] %s23
      %29 = dma.hbm_to_vmem [thread:$0]  %s22, 2048, %s24, [#allocation12], 1024, 1024, 64
    $region9: #{tpu_custom_call.1} parent=1 // pred_fallthru
      _
    // Predicated region
    $region10: #{tpu_custom_call.1} parent=1 // pred_check
      _
    $region11: #{tpu_custom_call.1} parent=1 // pred_check_branch
      %31 = sbr.rel (0) target = $region13
    $region12: #{tpu_custom_call.1} parent=1 // pred_region
      _
    $region13: #{tpu_custom_call.1} parent=1 // pred_fallthru
      _
    // Predicated region
    $region14: #{tpu_custom_call.1} parent=1 // pred_check
      _
    $region15: #{tpu_custom_call.1} parent=1 // pred_check_branch
      %33 = sbr.rel (0) target = $region17
    $region16: #{tpu_custom_call.1} parent=1 // pred_region
      _
    $region17: #{tpu_custom_call.1} parent=1 // pred_fallthru
      _
    // Predicated region
    $region18: #{tpu_custom_call.1} parent=1 // pred_check
      _
    $region19: #{tpu_custom_call.1} parent=1 // pred_check_branch
      %35 = sbr.rel (0) target = $region21
    $region20: #{tpu_custom_call.1} parent=1 // pred_region
      _
    $region21: #{tpu_custom_call.1} parent=1 // pred_fallthru
      _
    // Predicated region
    $region22: #{tpu_custom_call.1} parent=1 // pred_check
      _
    $region23: #{tpu_custom_call.1} parent=1 // pred_check_branch
      %37 = sbr.rel (0) target = $region25
    $region24: #{tpu_custom_call.1} parent=1 // pred_region
      %39 = dma.done [#allocation12], 2048
    $region25: #{tpu_custom_call.1} parent=1 // pred_fallthru
      _
    %p40 = scmp.eq.s32.totalorder 0, 0
    // Predicated region
    $region26: #{tpu_custom_call.1} parent=1 // pred_check
      %p41 = pneg %p40
    $region27: #{tpu_custom_call.1} parent=1 // pred_check_branch
      %43 = sbr.rel (%p41) target = $region29
    $region28: #{tpu_custom_call.1} parent=1 // pred_region
      // Predicated region
      $region30: #{tpu_custom_call.1} parent=28 // pred_check
        _
      $region31: #{tpu_custom_call.1} parent=28 // pred_check_branch
        %45 = sbr.rel target = $region33
      $region32: #{tpu_custom_call.1} parent=28 // pred_region
        %46 = sst [smem:[#allocation17]] [#allocation16]
        %47 = sst [smem:[#allocation18]] [#allocation15]
      $region33: #{tpu_custom_call.1} parent=28 // pred_fallthru
        _
      %49 = shalt.err (0)
      %s51 = sshll.u32 %s3, 4
      %s52 = int_to_ptr.hbm [resolvable:$true] %s51
      %s53 = sshll.u32 [#allocation3], 4
      %s54 = int_to_ptr.vmem [resolvable:$true] %s53
      %56 = dma.hbm_to_vmem [thread:$0]  %s52, 16384, %s54, [#allocation6]
      %s57 = scalar_lea.sflag [#allocation6], 1
      // Predicated region
      $region34: #{tpu_custom_call.1} parent=28 // pred_check
        _
      $region35: #{tpu_custom_call.1} parent=28 // pred_check_branch
        %59 = sbr.rel target = $region37
      $region36: #{tpu_custom_call.1} parent=28 // pred_region
        %60 = sst [smem:[#allocation17]] [#allocation20]
        %61 = sst [smem:[#allocation18]] [#allocation19]
      $region37: #{tpu_custom_call.1} parent=28 // pred_fallthru
        _
      %63 = shalt.err (0)
      %s65 = sshll.u32 %s4, 4
      %s66 = int_to_ptr.hbm [resolvable:$true] %s65
      %s67 = sshll.u32 [#allocation4], 4
      %s68 = int_to_ptr.vmem [resolvable:$true] %s67
      %70 = dma.hbm_to_vmem [thread:$0]  %s66, 32768, %s68, %s57
      %s71 = scalar_lea.sflag [#allocation6], 2
      // Predicated region
      $region38: #{tpu_custom_call.1} parent=28 // pred_check
        _
      $region39: #{tpu_custom_call.1} parent=28 // pred_check_branch
        %73 = sbr.rel target = $region41
      $region40: #{tpu_custom_call.1} parent=28 // pred_region
        %74 = sst [smem:[#allocation17]] [#allocation22]
        %75 = sst [smem:[#allocation18]] [#allocation21]
      $region41: #{tpu_custom_call.1} parent=28 // pred_fallthru
        _
      %77 = shalt.err (0)
      %s79 = sshll.u32 %s6, 4
      %s80 = int_to_ptr.hbm [resolvable:$true] %s79
      %s81 = sshll.u32 [#allocation5], 4
      %s82 = int_to_ptr.vmem [resolvable:$true] %s81
      %84 = dma.hbm_to_vmem [thread:$0]  %s80, 2048, %s82, %s71
      %85 = vst [vmem:[#allocation7] sm:$0xff] 0.0
      %86 = vst [vmem:[#allocation7 + $0x8] sm:$0xff] 0.0
      %87 = vst [vmem:[#allocation8] sm:$0xff] 0.0
      %88 = vst [vmem:[#allocation8 + $0x8] sm:$0xff] 0.0
      %89 = vst [vmem:[#allocation9] sm:$0xff] 0.0
      %90 = vst [vmem:[#allocation9 + $0x8] sm:$0xff] 0.0
      %91 = vst [vmem:[#allocation10] sm:$0xff] 0.0
      %92 = vst [vmem:[#allocation10 + $0x8] sm:$0xff] 0.0
    $region29: #{tpu_custom_call.1} parent=1 // pred_fallthru
      _
    %v93 = vld [vmem:[%s0] sm:$0xff]
    %v94 = vld [vmem:[%s0 + $0x8] sm:$0xff]
    %v95 = vld [vmem:[%s0 + $0x10] sm:$0xff]
    %v96 = vld [vmem:[%s0 + $0x18] sm:$0xff]
    %v97 = vld [vmem:[%s0 + $0x20] sm:$0xff]
    %v98 = vld [vmem:[%s0 + $0x28] sm:$0xff]
    %v99 = vld [vmem:[%s0 + $0x30] sm:$0xff]
    %v100 = vld [vmem:[%s0 + $0x38] sm:$0xff]
    %v101 = vld [vmem:[#allocation11] sm:$0xff]
    %v102 = vld [vmem:[#allocation11 + $0x8] sm:$0xff]
    %v103 = vld [vmem:[#allocation11 + $0x10] sm:$0xff]
    %v104 = vld [vmem:[#allocation11 + $0x18] sm:$0xff]
    %v105 = vld [vmem:[#allocation11 + $0x20] sm:$0xff]
    %v106 = vld [vmem:[#allocation11 + $0x28] sm:$0xff]
    %v107 = vld [vmem:[#allocation11 + $0x30] sm:$0xff]
    %v108 = vld [vmem:[#allocation11 + $0x38] sm:$0xff]
    %v109 = vld [vmem:[#allocation11 + $0x40] sm:$0xff]
    %v110 = vld [vmem:[#allocation11 + $0x48] sm:$0xff]
    %v111 = vld [vmem:[#allocation11 + $0x50] sm:$0xff]
    %v112 = vld [vmem:[#allocation11 + $0x58] sm:$0xff]
    %v113 = vld [vmem:[#allocation11 + $0x60] sm:$0xff]
    %v114 = vld [vmem:[#allocation11 + $0x68] sm:$0xff]
    %v115 = vld [vmem:[#allocation11 + $0x70] sm:$0xff]
    %v116 = vld [vmem:[#allocation11 + $0x78] sm:$0xff]
    %v117 = vld [vmem:[%s2] sm:$0xff]
    %v119 = vperm.slane %v117, 0
    %v120 = vperm.slane %v117, 1
    %v121 = vperm.slane %v117, 2
    %v122 = vperm.slane %v117, 3
    %v123 = vperm.slane %v117, 4
    %v124 = vperm.slane %v117, 5
    %v125 = vperm.slane %v117, 6
    %v126 = vperm.slane %v117, 7
    %vm135 = vcmask 130048
    %v137 = vsel %vm135, %v93, 0
    %v140 = vsel %vm135, %v94, 0
    %v143 = vsel %vm135, %v95, 0
    %v146 = vsel %vm135, %v96, 0
    %v149 = vsel %vm135, %v97, 0
    %v152 = vsel %vm135, %v98, 0
    %v155 = vsel %vm135, %v99, 0
    %v158 = vsel %vm135, %v100, 0
    %160 = vmatpush.msra.mxu0 0.0
    %161 = vmatpush.msra.mxu0 0.0
    %162 = vmatpush.msra.mxu0 0.0
    %163 = vmatpush.msra.mxu0 0.0
    %164 = vmatpush.msra.mxu0 0.0
    %165 = vmatpush.msra.mxu0 0.0
    %166 = vmatpush.msra.mxu0 0.0
    %167 = vmatpush.msra.mxu0 0.0
    %168 = vmatpush.msra.mxu0 0.0
    %169 = vmatpush.msra.mxu0 0.0
    %170 = vmatpush.msra.mxu0 0.0
    %171 = vmatpush.msra.mxu0 0.0
    %172 = vmatpush.msra.mxu0 0.0
    %173 = vmatpush.msra.mxu0 0.0
    %174 = vmatpush.msra.mxu0 %v109
    %175 = vmatpush.msra.mxu0 %v101
    %176 = vmatmul.f32.gmra.mxu0 %v137
    %v177 = vpop.f32.mrf.mxu0
    %v178 = vadd.f32 %v119, %v177
    %179 = vmatmul.f32.gmra.mxu0 %v140
    %v180 = vpop.f32.mrf.mxu0
    %v181 = vadd.f32 %v119, %v180
    %182 = vmatmul.f32.gmra.mxu0 %v143
    %v183 = vpop.f32.mrf.mxu0
    %v184 = vadd.f32 %v119, %v183
    %185 = vmatmul.f32.gmra.mxu0 %v146
    %v186 = vpop.f32.mrf.mxu0
    %v187 = vadd.f32 %v119, %v186
    %188 = vmatmul.f32.gmra.mxu0 %v149
    %v189 = vpop.f32.mrf.mxu0
    %v190 = vadd.f32 %v119, %v189
    %191 = vmatmul.f32.gmra.mxu0 %v152
    %v192 = vpop.f32.mrf.mxu0
    %v193 = vadd.f32 %v119, %v192
    %194 = vmatmul.f32.gmra.mxu0 %v155
    %v195 = vpop.f32.mrf.mxu0
    %v196 = vadd.f32 %v119, %v195
    %197 = vmatmul.f32.gmra.mxu0 %v158
    %v198 = vpop.f32.mrf.mxu0
    %v199 = vadd.f32 %v119, %v198
    %200 = vdwg.mxu0
    %201 = vmatpush.msra.mxu0 0.0
    %202 = vmatpush.msra.mxu0 0.0
    %203 = vmatpush.msra.mxu0 0.0
    %204 = vmatpush.msra.mxu0 0.0
    %205 = vmatpush.msra.mxu0 0.0
    %206 = vmatpush.msra.mxu0 0.0
    %207 = vmatpush.msra.mxu0 0.0
    %208 = vmatpush.msra.mxu0 0.0
    %209 = vmatpush.msra.mxu0 0.0
    %210 = vmatpush.msra.mxu0 0.0
    %211 = vmatpush.msra.mxu0 0.0
    %212 = vmatpush.msra.mxu0 0.0
    %213 = vmatpush.msra.mxu0 0.0
    %214 = vmatpush.msra.mxu0 0.0
    %215 = vmatpush.msra.mxu0 %v110
    %216 = vmatpush.msra.mxu0 %v102
    %217 = vmatmul.f32.gmra.mxu0 %v137
    %v218 = vpop.f32.mrf.mxu0
    %v219 = vadd.f32 %v120, %v218
    %220 = vmatmul.f32.gmra.mxu0 %v140
    %v221 = vpop.f32.mrf.mxu0
    %v222 = vadd.f32 %v120, %v221
    %223 = vmatmul.f32.gmra.mxu0 %v143
    %v224 = vpop.f32.mrf.mxu0
    %v225 = vadd.f32 %v120, %v224
    %226 = vmatmul.f32.gmra.mxu0 %v146
    %v227 = vpop.f32.mrf.mxu0
    %v228 = vadd.f32 %v120, %v227
    %229 = vmatmul.f32.gmra.mxu0 %v149
    %v230 = vpop.f32.mrf.mxu0
    %v231 = vadd.f32 %v120, %v230
    %232 = vmatmul.f32.gmra.mxu0 %v152
    %v233 = vpop.f32.mrf.mxu0
    %v234 = vadd.f32 %v120, %v233
    %235 = vmatmul.f32.gmra.mxu0 %v155
    %v236 = vpop.f32.mrf.mxu0
    %v237 = vadd.f32 %v120, %v236
    %238 = vmatmul.f32.gmra.mxu0 %v158
    %v239 = vpop.f32.mrf.mxu0
    %v240 = vadd.f32 %v120, %v239
    %241 = vdwg.mxu0
    %242 = vmatpush.msra.mxu0 0.0
    %243 = vmatpush.msra.mxu0 0.0
    %244 = vmatpush.msra.mxu0 0.0
    %245 = vmatpush.msra.mxu0 0.0
    %246 = vmatpush.msra.mxu0 0.0
    %247 = vmatpush.msra.mxu0 0.0
    %248 = vmatpush.msra.mxu0 0.0
    %249 = vmatpush.msra.mxu0 0.0
    %250 = vmatpush.msra.mxu0 0.0
    %251 = vmatpush.msra.mxu0 0.0
    %252 = vmatpush.msra.mxu0 0.0
    %253 = vmatpush.msra.mxu0 0.0
    %254 = vmatpush.msra.mxu0 0.0
    %255 = vmatpush.msra.mxu0 0.0
    %256 = vmatpush.msra.mxu0 %v111
    %257 = vmatpush.msra.mxu0 %v103
    %258 = vmatmul.f32.gmra.mxu0 %v137
    %v259 = vpop.f32.mrf.mxu0
    %v260 = vadd.f32 %v121, %v259
    %261 = vmatmul.f32.gmra.mxu0 %v140
    %v262 = vpop.f32.mrf.mxu0
    %v263 = vadd.f32 %v121, %v262
    %264 = vmatmul.f32.gmra.mxu0 %v143
    %v265 = vpop.f32.mrf.mxu0
    %v266 = vadd.f32 %v121, %v265
    %267 = vmatmul.f32.gmra.mxu0 %v146
    %v268 = vpop.f32.mrf.mxu0
    %v269 = vadd.f32 %v121, %v268
    %270 = vmatmul.f32.gmra.mxu0 %v149
    %v271 = vpop.f32.mrf.mxu0
    %v272 = vadd.f32 %v121, %v271
    %273 = vmatmul.f32.gmra.mxu0 %v152
    %v274 = vpop.f32.mrf.mxu0
    %v275 = vadd.f32 %v121, %v274
    %276 = vmatmul.f32.gmra.mxu0 %v155
    %v277 = vpop.f32.mrf.mxu0
    %v278 = vadd.f32 %v121, %v277
    %279 = vmatmul.f32.gmra.mxu0 %v158
    %v280 = vpop.f32.mrf.mxu0
    %v281 = vadd.f32 %v121, %v280
    %282 = vdwg.mxu0
    %283 = vmatpush.msra.mxu0 0.0
    %284 = vmatpush.msra.mxu0 0.0
    %285 = vmatpush.msra.mxu0 0.0
    %286 = vmatpush.msra.mxu0 0.0
    %287 = vmatpush.msra.mxu0 0.0
    %288 = vmatpush.msra.mxu0 0.0
    %289 = vmatpush.msra.mxu0 0.0
    %290 = vmatpush.msra.mxu0 0.0
    %291 = vmatpush.msra.mxu0 0.0
    %292 = vmatpush.msra.mxu0 0.0
    %293 = vmatpush.msra.mxu0 0.0
    %294 = vmatpush.msra.mxu0 0.0
    %295 = vmatpush.msra.mxu0 0.0
    %296 = vmatpush.msra.mxu0 0.0
    %297 = vmatpush.msra.mxu0 %v112
    %298 = vmatpush.msra.mxu0 %v104
    %299 = vmatmul.f32.gmra.mxu0 %v137
    %v300 = vpop.f32.mrf.mxu0
    %v301 = vadd.f32 %v122, %v300
    %302 = vmatmul.f32.gmra.mxu0 %v140
    %v303 = vpop.f32.mrf.mxu0
    %v304 = vadd.f32 %v122, %v303
    %305 = vmatmul.f32.gmra.mxu0 %v143
    %v306 = vpop.f32.mrf.mxu0
    %v307 = vadd.f32 %v122, %v306
    %308 = vmatmul.f32.gmra.mxu0 %v146
    %v309 = vpop.f32.mrf.mxu0
    %v310 = vadd.f32 %v122, %v309
    %311 = vmatmul.f32.gmra.mxu0 %v149
    %v312 = vpop.f32.mrf.mxu0
    %v313 = vadd.f32 %v122, %v312
    %314 = vmatmul.f32.gmra.mxu0 %v152
    %v315 = vpop.f32.mrf.mxu0
    %v316 = vadd.f32 %v122, %v315
    %317 = vmatmul.f32.gmra.mxu0 %v155
    %v318 = vpop.f32.mrf.mxu0
    %v319 = vadd.f32 %v122, %v318
    %320 = vmatmul.f32.gmra.mxu0 %v158
    %v321 = vpop.f32.mrf.mxu0
    %v322 = vadd.f32 %v122, %v321
    %323 = vdwg.mxu0
    %324 = vmatpush.msra.mxu0 0.0
    %325 = vmatpush.msra.mxu0 0.0
    %326 = vmatpush.msra.mxu0 0.0
    %327 = vmatpush.msra.mxu0 0.0
    %328 = vmatpush.msra.mxu0 0.0
    %329 = vmatpush.msra.mxu0 0.0
    %330 = vmatpush.msra.mxu0 0.0
    %331 = vmatpush.msra.mxu0 0.0
    %332 = vmatpush.msra.mxu0 0.0
    %333 = vmatpush.msra.mxu0 0.0
    %334 = vmatpush.msra.mxu0 0.0
    %335 = vmatpush.msra.mxu0 0.0
    %336 = vmatpush.msra.mxu0 0.0
    %337 = vmatpush.msra.mxu0 0.0
    %338 = vmatpush.msra.mxu0 %v113
    %339 = vmatpush.msra.mxu0 %v105
    %340 = vmatmul.f32.gmra.mxu0 %v137
    %v341 = vpop.f32.mrf.mxu0
    %v342 = vadd.f32 %v123, %v341
    %343 = vmatmul.f32.gmra.mxu0 %v140
    %v344 = vpop.f32.mrf.mxu0
    %v345 = vadd.f32 %v123, %v344
    %346 = vmatmul.f32.gmra.mxu0 %v143
    %v347 = vpop.f32.mrf.mxu0
    %v348 = vadd.f32 %v123, %v347
    %349 = vmatmul.f32.gmra.mxu0 %v146
    %v350 = vpop.f32.mrf.mxu0
    %v351 = vadd.f32 %v123, %v350
    %352 = vmatmul.f32.gmra.mxu0 %v149
    %v353 = vpop.f32.mrf.mxu0
    %v354 = vadd.f32 %v123, %v353
    %355 = vmatmul.f32.gmra.mxu0 %v152
    %v356 = vpop.f32.mrf.mxu0
    %v357 = vadd.f32 %v123, %v356
    %358 = vmatmul.f32.gmra.mxu0 %v155
    %v359 = vpop.f32.mrf.mxu0
    %v360 = vadd.f32 %v123, %v359
    %361 = vmatmul.f32.gmra.mxu0 %v158
    %v362 = vpop.f32.mrf.mxu0
    %v363 = vadd.f32 %v123, %v362
    %364 = vdwg.mxu0
    %365 = vmatpush.msra.mxu0 0.0
    %366 = vmatpush.msra.mxu0 0.0
    %367 = vmatpush.msra.mxu0 0.0
    %368 = vmatpush.msra.mxu0 0.0
    %369 = vmatpush.msra.mxu0 0.0
    %370 = vmatpush.msra.mxu0 0.0
    %371 = vmatpush.msra.mxu0 0.0
    %372 = vmatpush.msra.mxu0 0.0
    %373 = vmatpush.msra.mxu0 0.0
    %374 = vmatpush.msra.mxu0 0.0
    %375 = vmatpush.msra.mxu0 0.0
    %376 = vmatpush.msra.mxu0 0.0
    %377 = vmatpush.msra.mxu0 0.0
    %378 = vmatpush.msra.mxu0 0.0
    %379 = vmatpush.msra.mxu0 %v114
    %380 = vmatpush.msra.mxu0 %v106
    %381 = vmatmul.f32.gmra.mxu0 %v137
    %v382 = vpop.f32.mrf.mxu0
    %v383 = vadd.f32 %v124, %v382
    %384 = vmatmul.f32.gmra.mxu0 %v140
    %v385 = vpop.f32.mrf.mxu0
    %v386 = vadd.f32 %v124, %v385
    %387 = vmatmul.f32.gmra.mxu0 %v143
    %v388 = vpop.f32.mrf.mxu0
    %v389 = vadd.f32 %v124, %v388
    %390 = vmatmul.f32.gmra.mxu0 %v146
    %v391 = vpop.f32.mrf.mxu0
    %v392 = vadd.f32 %v124, %v391
    %393 = vmatmul.f32.gmra.mxu0 %v149
    %v394 = vpop.f32.mrf.mxu0
    %v395 = vadd.f32 %v124, %v394
    %396 = vmatmul.f32.gmra.mxu0 %v152
    %v397 = vpop.f32.mrf.mxu0
    %v398 = vadd.f32 %v124, %v397
    %399 = vmatmul.f32.gmra.mxu0 %v155
    %v400 = vpop.f32.mrf.mxu0
    %v401 = vadd.f32 %v124, %v400
    %402 = vmatmul.f32.gmra.mxu0 %v158
    %v403 = vpop.f32.mrf.mxu0
    %v404 = vadd.f32 %v124, %v403
    %405 = vdwg.mxu0
    %406 = vmatpush.msra.mxu0 0.0
    %407 = vmatpush.msra.mxu0 0.0
    %408 = vmatpush.msra.mxu0 0.0
    %409 = vmatpush.msra.mxu0 0.0
    %410 = vmatpush.msra.mxu0 0.0
    %411 = vmatpush.msra.mxu0 0.0
    %412 = vmatpush.msra.mxu0 0.0
    %413 = vmatpush.msra.mxu0 0.0
    %414 = vmatpush.msra.mxu0 0.0
    %415 = vmatpush.msra.mxu0 0.0
    %416 = vmatpush.msra.mxu0 0.0
    %417 = vmatpush.msra.mxu0 0.0
    %418 = vmatpush.msra.mxu0 0.0
    %419 = vmatpush.msra.mxu0 0.0
    %420 = vmatpush.msra.mxu0 %v115
    %421 = vmatpush.msra.mxu0 %v107
    %422 = vmatmul.f32.gmra.mxu0 %v137
    %v423 = vpop.f32.mrf.mxu0
    %v424 = vadd.f32 %v125, %v423
    %425 = vmatmul.f32.gmra.mxu0 %v140
    %v426 = vpop.f32.mrf.mxu0
    %v427 = vadd.f32 %v125, %v426
    %428 = vmatmul.f32.gmra.mxu0 %v143
    %v429 = vpop.f32.mrf.mxu0
    %v430 = vadd.f32 %v125, %v429
    %431 = vmatmul.f32.gmra.mxu0 %v146
    %v432 = vpop.f32.mrf.mxu0
    %v433 = vadd.f32 %v125, %v432
    %434 = vmatmul.f32.gmra.mxu0 %v149
    %v435 = vpop.f32.mrf.mxu0
    %v436 = vadd.f32 %v125, %v435
    %437 = vmatmul.f32.gmra.mxu0 %v152
    %v438 = vpop.f32.mrf.mxu0
    %v439 = vadd.f32 %v125, %v438
    %440 = vmatmul.f32.gmra.mxu0 %v155
    %v441 = vpop.f32.mrf.mxu0
    %v442 = vadd.f32 %v125, %v441
    %443 = vmatmul.f32.gmra.mxu0 %v158
    %v444 = vpop.f32.mrf.mxu0
    %v445 = vadd.f32 %v125, %v444
    %446 = vdwg.mxu0
    %447 = vmatpush.msra.mxu0 0.0
    %448 = vmatpush.msra.mxu0 0.0
    %449 = vmatpush.msra.mxu0 0.0
    %450 = vmatpush.msra.mxu0 0.0
    %451 = vmatpush.msra.mxu0 0.0
    %452 = vmatpush.msra.mxu0 0.0
    %453 = vmatpush.msra.mxu0 0.0
    %454 = vmatpush.msra.mxu0 0.0
    %455 = vmatpush.msra.mxu0 0.0
    %456 = vmatpush.msra.mxu0 0.0
    %457 = vmatpush.msra.mxu0 0.0
    %458 = vmatpush.msra.mxu0 0.0
    %459 = vmatpush.msra.mxu0 0.0
    %460 = vmatpush.msra.mxu0 0.0
    %461 = vmatpush.msra.mxu0 %v116
    %462 = vmatpush.msra.mxu0 %v108
    %463 = vmatmul.f32.gmra.mxu0 %v137
    %v464 = vpop.f32.mrf.mxu0
    %v465 = vadd.f32 %v126, %v464
    %466 = vmatmul.f32.gmra.mxu0 %v140
    %v467 = vpop.f32.mrf.mxu0
    %v468 = vadd.f32 %v126, %v467
    %469 = vmatmul.f32.gmra.mxu0 %v143
    %v470 = vpop.f32.mrf.mxu0
    %v471 = vadd.f32 %v126, %v470
    %472 = vmatmul.f32.gmra.mxu0 %v146
    %v473 = vpop.f32.mrf.mxu0
    %v474 = vadd.f32 %v126, %v473
    %475 = vmatmul.f32.gmra.mxu0 %v149
    %v476 = vpop.f32.mrf.mxu0
    %v477 = vadd.f32 %v126, %v476
    %478 = vmatmul.f32.gmra.mxu0 %v152
    %v479 = vpop.f32.mrf.mxu0
    %v480 = vadd.f32 %v126, %v479
    %481 = vmatmul.f32.gmra.mxu0 %v155
    %v482 = vpop.f32.mrf.mxu0
    %v483 = vadd.f32 %v126, %v482
    %484 = vmatmul.f32.gmra.mxu0 %v158
    %v485 = vpop.f32.mrf.mxu0
    %v486 = vadd.f32 %v126, %v485
    %487 = vdwg.mxu0
    %488 = vst [vmem:[#allocation2] sm:$0xff] %v178
    %489 = vst [vmem:[#allocation2 + $0x8] sm:$0xff] %v219
    %490 = vst [vmem:[#allocation2 + $0x10] sm:$0xff] %v260
    %491 = vst [vmem:[#allocation2 + $0x18] sm:$0xff] %v301
    %492 = vst [vmem:[#allocation2 + $0x20] sm:$0xff] %v342
    %493 = vst [vmem:[#allocation2 + $0x28] sm:$0xff] %v383
    %494 = vst [vmem:[#allocation2 + $0x30] sm:$0xff] %v424
    %495 = vst [vmem:[#allocation2 + $0x38] sm:$0xff] %v465
    %496 = vst [vmem:[#allocation2 + $0x40] sm:$0xff] %v181
    %497 = vst [vmem:[#allocation2 + $0x48] sm:$0xff] %v222
    %498 = vst [vmem:[#allocation2 + $0x50] sm:$0xff] %v263
    %499 = vst [vmem:[#allocation2 + $0x58] sm:$0xff] %v304
    %500 = vst [vmem:[#allocation2 + $0x60] sm:$0xff] %v345
    %501 = vst [vmem:[#allocation2 + $0x68] sm:$0xff] %v386
    %502 = vst [vmem:[#allocation2 + $0x70] sm:$0xff] %v427
    %503 = vst [vmem:[#allocation2 + $0x78] sm:$0xff] %v468
    %504 = vst [vmem:[#allocation2 + $0x80] sm:$0xff] %v184
    %505 = vst [vmem:[#allocation2 + $0x88] sm:$0xff] %v225
    %506 = vst [vmem:[#allocation2 + $0x90] sm:$0xff] %v266
    %507 = vst [vmem:[#allocation2 + $0x98] sm:$0xff] %v307
    %508 = vst [vmem:[#allocation2 + $0xa0] sm:$0xff] %v348
    %509 = vst [vmem:[#allocation2 + $0xa8] sm:$0xff] %v389
    %510 = vst [vmem:[#allocation2 + $0xb0] sm:$0xff] %v430
    %511 = vst [vmem:[#allocation2 + $0xb8] sm:$0xff] %v471
    %512 = vst [vmem:[#allocation2 + $0xc0] sm:$0xff] %v187
    %513 = vst [vmem:[#allocation2 + $0xc8] sm:$0xff] %v228
    %514 = vst [vmem:[#allocation2 + $0xd0] sm:$0xff] %v269
    %515 = vst [vmem:[#allocation2 + $0xd8] sm:$0xff] %v310
    %516 = vst [vmem:[#allocation2 + $0xe0] sm:$0xff] %v351
    %517 = vst [vmem:[#allocation2 + $0xe8] sm:$0xff] %v392
    %518 = vst [vmem:[#allocation2 + $0xf0] sm:$0xff] %v433
    %519 = vst [vmem:[#allocation2 + $0xf8] sm:$0xff] %v474
    %520 = vst [vmem:[#allocation2 + $0x100] sm:$0xff] %v190
    %521 = vst [vmem:[#allocation2 + $0x108] sm:$0xff] %v231
    %522 = vst [vmem:[#allocation2 + $0x110] sm:$0xff] %v272
    %523 = vst [vmem:[#allocation2 + $0x118] sm:$0xff] %v313
    %524 = vst [vmem:[#allocation2 + $0x120] sm:$0xff] %v354
    %525 = vst [vmem:[#allocation2 + $0x128] sm:$0xff] %v395
    %526 = vst [vmem:[#allocation2 + $0x130] sm:$0xff] %v436
    %527 = vst [vmem:[#allocation2 + $0x138] sm:$0xff] %v477
    %528 = vst [vmem:[#allocation2 + $0x140] sm:$0xff] %v193
    %529 = vst [vmem:[#allocation2 + $0x148] sm:$0xff] %v234
    %530 = vst [vmem:[#allocation2 + $0x150] sm:$0xff] %v275
    %531 = vst [vmem:[#allocation2 + $0x158] sm:$0xff] %v316
    %532 = vst [vmem:[#allocation2 + $0x160] sm:$0xff] %v357
    %533 = vst [vmem:[#allocation2 + $0x168] sm:$0xff] %v398
    %534 = vst [vmem:[#allocation2 + $0x170] sm:$0xff] %v439
    %535 = vst [vmem:[#allocation2 + $0x178] sm:$0xff] %v480
    %536 = vst [vmem:[#allocation2 + $0x180] sm:$0xff] %v196
    %537 = vst [vmem:[#allocation2 + $0x188] sm:$0xff] %v237
    %538 = vst [vmem:[#allocation2 + $0x190] sm:$0xff] %v278
    %539 = vst [vmem:[#allocation2 + $0x198] sm:$0xff] %v319
    %540 = vst [vmem:[#allocation2 + $0x1a0] sm:$0xff] %v360
    %541 = vst [vmem:[#allocation2 + $0x1a8] sm:$0xff] %v401
    %542 = vst [vmem:[#allocation2 + $0x1b0] sm:$0xff] %v442
    %543 = vst [vmem:[#allocation2 + $0x1b8] sm:$0xff] %v483
    %544 = vst [vmem:[#allocation2 + $0x1c0] sm:$0xff] %v199
    %545 = vst [vmem:[#allocation2 + $0x1c8] sm:$0xff] %v240
    %546 = vst [vmem:[#allocation2 + $0x1d0] sm:$0xff] %v281
    %547 = vst [vmem:[#allocation2 + $0x1d8] sm:$0xff] %v322
    %548 = vst [vmem:[#allocation2 + $0x1e0] sm:$0xff] %v363
    %549 = vst [vmem:[#allocation2 + $0x1e8] sm:$0xff] %v404
    %550 = vst [vmem:[#allocation2 + $0x1f0] sm:$0xff] %v445
    %551 = vst [vmem:[#allocation2 + $0x1f8] sm:$0xff] %v486
    // Predicated region
    $region42: #{tpu_custom_call.1} parent=1 // pred_check
      %p552 = pneg %p40
    $region43: #{tpu_custom_call.1} parent=1 // pred_check_branch
      %554 = sbr.rel (%p552) target = $region45
    $region44: #{tpu_custom_call.1} parent=1 // pred_region
      %s555 = smul.u32 4, 32
      %s556 = smul.u32 %s555, 8
      %s557 = sshll.u32 %s556, 4
      %558 = dma.done [#allocation6], %s557
      %s559 = scalar_lea.sflag [#allocation6], 1
      %s560 = smul.u32 4, 64
      %s561 = smul.u32 %s560, 8
      %s562 = sshll.u32 %s561, 4
      %563 = dma.done %s559, %s562
      %s564 = scalar_lea.sflag [#allocation6], 2
      %s565 = smul.u32 %s555, 1
      %s566 = sshll.u32 %s565, 4
      %567 = dma.done %s564, %s566
    $region45: #{tpu_custom_call.1} parent=1 // pred_fallthru
      _
    %v568 = vld [vmem:[#allocation3] sm:$0xff]
    %v569 = vld [vmem:[#allocation3 + $0x8] sm:$0xff]
    %v570 = vld [vmem:[#allocation3 + $0x10] sm:$0xff]
    %v571 = vld [vmem:[#allocation3 + $0x18] sm:$0xff]
    %v572 = vld [vmem:[#allocation3 + $0x20] sm:$0xff]
    %v573 = vld [vmem:[#allocation3 + $0x28] sm:$0xff]
    %v574 = vld [vmem:[#allocation3 + $0x30] sm:$0xff]
    %v575 = vld [vmem:[#allocation3 + $0x38] sm:$0xff]
    %v576 = vld [vmem:[#allocation3 + $0x40] sm:$0xff]
    %v577 = vld [vmem:[#allocation3 + $0x48] sm:$0xff]
    %v578 = vld [vmem:[#allocation3 + $0x50] sm:$0xff]
    %v579 = vld [vmem:[#allocation3 + $0x58] sm:$0xff]
    %v580 = vld [vmem:[#allocation3 + $0x60] sm:$0xff]
    %v581 = vld [vmem:[#allocation3 + $0x68] sm:$0xff]
    %v582 = vld [vmem:[#allocation3 + $0x70] sm:$0xff]
    %v583 = vld [vmem:[#allocation3 + $0x78] sm:$0xff]
    %v584 = vld [vmem:[#allocation3 + $0x80] sm:$0xff]
    %v585 = vld [vmem:[#allocation3 + $0x88] sm:$0xff]
    %v586 = vld [vmem:[#allocation3 + $0x90] sm:$0xff]
    %v587 = vld [vmem:[#allocation3 + $0x98] sm:$0xff]
    %v588 = vld [vmem:[#allocation3 + $0xa0] sm:$0xff]
    %v589 = vld [vmem:[#allocation3 + $0xa8] sm:$0xff]
    %v590 = vld [vmem:[#allocation3 + $0xb0] sm:$0xff]
    %v591 = vld [vmem:[#allocation3 + $0xb8] sm:$0xff]
    %v592 = vld [vmem:[#allocation3 + $0xc0] sm:$0xff]
    %v593 = vld [vmem:[#allocation3 + $0xc8] sm:$0xff]
    %v594 = vld [vmem:[#allocation3 + $0xd0] sm:$0xff]
    %v595 = vld [vmem:[#allocation3 + $0xd8] sm:$0xff]
    %v596 = vld [vmem:[#allocation3 + $0xe0] sm:$0xff]
    %v597 = vld [vmem:[#allocation3 + $0xe8] sm:$0xff]
    %v598 = vld [vmem:[#allocation3 + $0xf0] sm:$0xff]
    %v599 = vld [vmem:[#allocation3 + $0xf8] sm:$0xff]
    %v600 = vld [vmem:[#allocation3 + $0x100] sm:$0xff]
    %v601 = vld [vmem:[#allocation3 + $0x108] sm:$0xff]
    %v602 = vld [vmem:[#allocation3 + $0x110] sm:$0xff]
    %v603 = vld [vmem:[#allocation3 + $0x118] sm:$0xff]
    %v604 = vld [vmem:[#allocation3 + $0x120] sm:$0xff]
    %v605 = vld [vmem:[#allocation3 + $0x128] sm:$0xff]
    %v606 = vld [vmem:[#allocation3 + $0x130] sm:$0xff]
    %v607 = vld [vmem:[#allocation3 + $0x138] sm:$0xff]
    %v608 = vld [vmem:[#allocation3 + $0x140] sm:$0xff]
    %v609 = vld [vmem:[#allocation3 + $0x148] sm:$0xff]
    %v610 = vld [vmem:[#allocation3 + $0x150] sm:$0xff]
    %v611 = vld [vmem:[#allocation3 + $0x158] sm:$0xff]
    %v612 = vld [vmem:[#allocation3 + $0x160] sm:$0xff]
    %v613 = vld [vmem:[#allocation3 + $0x168] sm:$0xff]
    %v614 = vld [vmem:[#allocation3 + $0x170] sm:$0xff]
    %v615 = vld [vmem:[#allocation3 + $0x178] sm:$0xff]
    %v616 = vld [vmem:[#allocation3 + $0x180] sm:$0xff]
    %v617 = vld [vmem:[#allocation3 + $0x188] sm:$0xff]
    %v618 = vld [vmem:[#allocation3 + $0x190] sm:$0xff]
    %v619 = vld [vmem:[#allocation3 + $0x198] sm:$0xff]
    %v620 = vld [vmem:[#allocation3 + $0x1a0] sm:$0xff]
    %v621 = vld [vmem:[#allocation3 + $0x1a8] sm:$0xff]
    %v622 = vld [vmem:[#allocation3 + $0x1b0] sm:$0xff]
    %v623 = vld [vmem:[#allocation3 + $0x1b8] sm:$0xff]
    %v624 = vld [vmem:[#allocation3 + $0x1c0] sm:$0xff]
    %v625 = vld [vmem:[#allocation3 + $0x1c8] sm:$0xff]
    %v626 = vld [vmem:[#allocation3 + $0x1d0] sm:$0xff]
    %v627 = vld [vmem:[#allocation3 + $0x1d8] sm:$0xff]
    %v628 = vld [vmem:[#allocation3 + $0x1e0] sm:$0xff]
    %v629 = vld [vmem:[#allocation3 + $0x1e8] sm:$0xff]
    %v630 = vld [vmem:[#allocation3 + $0x1f0] sm:$0xff]
    %v631 = vld [vmem:[#allocation3 + $0x1f8] sm:$0xff]
    %v632 = vld [vmem:[#allocation3 + $0x200] sm:$0xff]
    %v633 = vld [vmem:[#allocation3 + $0x208] sm:$0xff]
    %v634 = vld [vmem:[#allocation3 + $0x210] sm:$0xff]
    %v635 = vld [vmem:[#allocation3 + $0x218] sm:$0xff]
    %v636 = vld [vmem:[#allocation3 + $0x220] sm:$0xff]
    %v637 = vld [vmem:[#allocation3 + $0x228] sm:$0xff]
    %v638 = vld [vmem:[#allocation3 + $0x230] sm:$0xff]
    %v639 = vld [vmem:[#allocation3 + $0x238] sm:$0xff]
    %v640 = vld [vmem:[#allocation3 + $0x240] sm:$0xff]
    %v641 = vld [vmem:[#allocation3 + $0x248] sm:$0xff]
    %v642 = vld [vmem:[#allocation3 + $0x250] sm:$0xff]
    %v643 = vld [vmem:[#allocation3 + $0x258] sm:$0xff]
    %v644 = vld [vmem:[#allocation3 + $0x260] sm:$0xff]
    %v645 = vld [vmem:[#allocation3 + $0x268] sm:$0xff]
    %v646 = vld [vmem:[#allocation3 + $0x270] sm:$0xff]
    %v647 = vld [vmem:[#allocation3 + $0x278] sm:$0xff]
    %v648 = vld [vmem:[#allocation3 + $0x280] sm:$0xff]
    %v649 = vld [vmem:[#allocation3 + $0x288] sm:$0xff]
    %v650 = vld [vmem:[#allocation3 + $0x290] sm:$0xff]
    %v651 = vld [vmem:[#allocation3 + $0x298] sm:$0xff]
    %v652 = vld [vmem:[#allocation3 + $0x2a0] sm:$0xff]
    %v653 = vld [vmem:[#allocation3 + $0x2a8] sm:$0xff]
    %v654 = vld [vmem:[#allocation3 + $0x2b0] sm:$0xff]
    %v655 = vld [vmem:[#allocation3 + $0x2b8] sm:$0xff]
    %v656 = vld [vmem:[#allocation3 + $0x2c0] sm:$0xff]
    %v657 = vld [vmem:[#allocation3 + $0x2c8] sm:$0xff]
    %v658 = vld [vmem:[#allocation3 + $0x2d0] sm:$0xff]
    %v659 = vld [vmem:[#allocation3 + $0x2d8] sm:$0xff]
    %v660 = vld [vmem:[#allocation3 + $0x2e0] sm:$0xff]
    %v661 = vld [vmem:[#allocation3 + $0x2e8] sm:$0xff]
    %v662 = vld [vmem:[#allocation3 + $0x2f0] sm:$0xff]
    %v663 = vld [vmem:[#allocation3 + $0x2f8] sm:$0xff]
    %v664 = vld [vmem:[#allocation3 + $0x300] sm:$0xff]
    %v665 = vld [vmem:[#allocation3 + $0x308] sm:$0xff]
    %v666 = vld [vmem:[#allocation3 + $0x310] sm:$0xff]
    %v667 = vld [vmem:[#allocation3 + $0x318] sm:$0xff]
    %v668 = vld [vmem:[#allocation3 + $0x320] sm:$0xff]
    %v669 = vld [vmem:[#allocation3 + $0x328] sm:$0xff]
    %v670 = vld [vmem:[#allocation3 + $0x330] sm:$0xff]
    %v671 = vld [vmem:[#allocation3 + $0x338] sm:$0xff]
    %v672 = vld [vmem:[#allocation3 + $0x340] sm:$0xff]
    %v673 = vld [vmem:[#allocation3 + $0x348] sm:$0xff]
    %v674 = vld [vmem:[#allocation3 + $0x350] sm:$0xff]
    %v675 = vld [vmem:[#allocation3 + $0x358] sm:$0xff]
    %v676 = vld [vmem:[#allocation3 + $0x360] sm:$0xff]
    %v677 = vld [vmem:[#allocation3 + $0x368] sm:$0xff]
    %v678 = vld [vmem:[#allocation3 + $0x370] sm:$0xff]
    %v679 = vld [vmem:[#allocation3 + $0x378] sm:$0xff]
    %v680 = vld [vmem:[#allocation3 + $0x380] sm:$0xff]
    %v681 = vld [vmem:[#allocation3 + $0x388] sm:$0xff]
    %v682 = vld [vmem:[#allocation3 + $0x390] sm:$0xff]
    %v683 = vld [vmem:[#allocation3 + $0x398] sm:$0xff]
    %v684 = vld [vmem:[#allocation3 + $0x3a0] sm:$0xff]
    %v685 = vld [vmem:[#allocation3 + $0x3a8] sm:$0xff]
    %v686 = vld [vmem:[#allocation3 + $0x3b0] sm:$0xff]
    %v687 = vld [vmem:[#allocation3 + $0x3b8] sm:$0xff]
    %v688 = vld [vmem:[#allocation3 + $0x3c0] sm:$0xff]
    %v689 = vld [vmem:[#allocation3 + $0x3c8] sm:$0xff]
    %v690 = vld [vmem:[#allocation3 + $0x3d0] sm:$0xff]
    %v691 = vld [vmem:[#allocation3 + $0x3d8] sm:$0xff]
    %v692 = vld [vmem:[#allocation3 + $0x3e0] sm:$0xff]
    %v693 = vld [vmem:[#allocation3 + $0x3e8] sm:$0xff]
    %v694 = vld [vmem:[#allocation3 + $0x3f0] sm:$0xff]
    %v695 = vld [vmem:[#allocation3 + $0x3f8] sm:$0xff]
    %v696 = vld [vmem:[#allocation4] sm:$0xff]
    %v697 = vld [vmem:[#allocation4 + $0x8] sm:$0xff]
    %v698 = vld [vmem:[#allocation4 + $0x10] sm:$0xff]
    %v699 = vld [vmem:[#allocation4 + $0x18] sm:$0xff]
    %v700 = vld [vmem:[#allocation4 + $0x20] sm:$0xff]
    %v701 = vld [vmem:[#allocation4 + $0x28] sm:$0xff]
    %v702 = vld [vmem:[#allocation4 + $0x30] sm:$0xff]
    %v703 = vld [vmem:[#allocation4 + $0x38] sm:$0xff]
    %v704 = vld [vmem:[#allocation4 + $0x40] sm:$0xff]
    %v705 = vld [vmem:[#allocation4 + $0x48] sm:$0xff]
    %v706 = vld [vmem:[#allocation4 + $0x50] sm:$0xff]
    %v707 = vld [vmem:[#allocation4 + $0x58] sm:$0xff]
    %v708 = vld [vmem:[#allocation4 + $0x60] sm:$0xff]
    %v709 = vld [vmem:[#allocation4 + $0x68] sm:$0xff]
    %v710 = vld [vmem:[#allocation4 + $0x70] sm:$0xff]
    %v711 = vld [vmem:[#allocation4 + $0x78] sm:$0xff]
    %v712 = vld [vmem:[#allocation4 + $0x80] sm:$0xff]
    %v713 = vld [vmem:[#allocation4 + $0x88] sm:$0xff]
    %v714 = vld [vmem:[#allocation4 + $0x90] sm:$0xff]
    %v715 = vld [vmem:[#allocation4 + $0x98] sm:$0xff]
    %v716 = vld [vmem:[#allocation4 + $0xa0] sm:$0xff]
    %v717 = vld [vmem:[#allocation4 + $0xa8] sm:$0xff]
    %v718 = vld [vmem:[#allocation4 + $0xb0] sm:$0xff]
    %v719 = vld [vmem:[#allocation4 + $0xb8] sm:$0xff]
    %v720 = vld [vmem:[#allocation4 + $0xc0] sm:$0xff]
    %v721 = vld [vmem:[#allocation4 + $0xc8] sm:$0xff]
    %v722 = vld [vmem:[#allocation4 + $0xd0] sm:$0xff]
    %v723 = vld [vmem:[#allocation4 + $0xd8] sm:$0xff]
    %v724 = vld [vmem:[#allocation4 + $0xe0] sm:$0xff]
    %v725 = vld [vmem:[#allocation4 + $0xe8] sm:$0xff]
    %v726 = vld [vmem:[#allocation4 + $0xf0] sm:$0xff]
    %v727 = vld [vmem:[#allocation4 + $0xf8] sm:$0xff]
    %v728 = vld [vmem:[#allocation4 + $0x100] sm:$0xff]
    %v729 = vld [vmem:[#allocation4 + $0x108] sm:$0xff]
    %v730 = vld [vmem:[#allocation4 + $0x110] sm:$0xff]
    %v731 = vld [vmem:[#allocation4 + $0x118] sm:$0xff]
    %v732 = vld [vmem:[#allocation4 + $0x120] sm:$0xff]
    %v733 = vld [vmem:[#allocation4 + $0x128] sm:$0xff]
    %v734 = vld [vmem:[#allocation4 + $0x130] sm:$0xff]
    %v735 = vld [vmem:[#allocation4 + $0x138] sm:$0xff]
    %v736 = vld [vmem:[#allocation4 + $0x140] sm:$0xff]
    %v737 = vld [vmem:[#allocation4 + $0x148] sm:$0xff]
    %v738 = vld [vmem:[#allocation4 + $0x150] sm:$0xff]
    %v739 = vld [vmem:[#allocation4 + $0x158] sm:$0xff]
    %v740 = vld [vmem:[#allocation4 + $0x160] sm:$0xff]
    %v741 = vld [vmem:[#allocation4 + $0x168] sm:$0xff]
    %v742 = vld [vmem:[#allocation4 + $0x170] sm:$0xff]
    %v743 = vld [vmem:[#allocation4 + $0x178] sm:$0xff]
    %v744 = vld [vmem:[#allocation4 + $0x180] sm:$0xff]
    %v745 = vld [vmem:[#allocation4 + $0x188] sm:$0xff]
    %v746 = vld [vmem:[#allocation4 + $0x190] sm:$0xff]
    %v747 = vld [vmem:[#allocation4 + $0x198] sm:$0xff]
    %v748 = vld [vmem:[#allocation4 + $0x1a0] sm:$0xff]
    %v749 = vld [vmem:[#allocation4 + $0x1a8] sm:$0xff]
    %v750 = vld [vmem:[#allocation4 + $0x1b0] sm:$0xff]
    %v751 = vld [vmem:[#allocation4 + $0x1b8] sm:$0xff]
    %v752 = vld [vmem:[#allocation4 + $0x1c0] sm:$0xff]
    %v753 = vld [vmem:[#allocation4 + $0x1c8] sm:$0xff]
    %v754 = vld [vmem:[#allocation4 + $0x1d0] sm:$0xff]
    %v755 = vld [vmem:[#allocation4 + $0x1d8] sm:$0xff]
    %v756 = vld [vmem:[#allocation4 + $0x1e0] sm:$0xff]
    %v757 = vld [vmem:[#allocation4 + $0x1e8] sm:$0xff]
    %v758 = vld [vmem:[#allocation4 + $0x1f0] sm:$0xff]
    %v759 = vld [vmem:[#allocation4 + $0x1f8] sm:$0xff]
    %v760 = vld [vmem:[#allocation4 + $0x200] sm:$0xff]
    %v761 = vld [vmem:[#allocation4 + $0x208] sm:$0xff]
    %v762 = vld [vmem:[#allocation4 + $0x210] sm:$0xff]
    %v763 = vld [vmem:[#allocation4 + $0x218] sm:$0xff]
    %v764 = vld [vmem:[#allocation4 + $0x220] sm:$0xff]
    %v765 = vld [vmem:[#allocation4 + $0x228] sm:$0xff]
    %v766 = vld [vmem:[#allocation4 + $0x230] sm:$0xff]
    %v767 = vld [vmem:[#allocation4 + $0x238] sm:$0xff]
    %v768 = vld [vmem:[#allocation4 + $0x240] sm:$0xff]
    %v769 = vld [vmem:[#allocation4 + $0x248] sm:$0xff]
    %v770 = vld [vmem:[#allocation4 + $0x250] sm:$0xff]
    %v771 = vld [vmem:[#allocation4 + $0x258] sm:$0xff]
    %v772 = vld [vmem:[#allocation4 + $0x260] sm:$0xff]
    %v773 = vld [vmem:[#allocation4 + $0x268] sm:$0xff]
    %v774 = vld [vmem:[#allocation4 + $0x270] sm:$0xff]
    %v775 = vld [vmem:[#allocation4 + $0x278] sm:$0xff]
    %v776 = vld [vmem:[#allocation4 + $0x280] sm:$0xff]
    %v777 = vld [vmem:[#allocation4 + $0x288] sm:$0xff]
    %v778 = vld [vmem:[#allocation4 + $0x290] sm:$0xff]
    %v779 = vld [vmem:[#allocation4 + $0x298] sm:$0xff]
    %v780 = vld [vmem:[#allocation4 + $0x2a0] sm:$0xff]
    %v781 = vld [vmem:[#allocation4 + $0x2a8] sm:$0xff]
    %v782 = vld [vmem:[#allocation4 + $0x2b0] sm:$0xff]
    %v783 = vld [vmem:[#allocation4 + $0x2b8] sm:$0xff]
    %v784 = vld [vmem:[#allocation4 + $0x2c0] sm:$0xff]
    %v785 = vld [vmem:[#allocation4 + $0x2c8] sm:$0xff]
    %v786 = vld [vmem:[#allocation4 + $0x2d0] sm:$0xff]
    %v787 = vld [vmem:[#allocation4 + $0x2d8] sm:$0xff]
    %v788 = vld [vmem:[#allocation4 + $0x2e0] sm:$0xff]
    %v789 = vld [vmem:[#allocation4 + $0x2e8] sm:$0xff]
    %v790 = vld [vmem:[#allocation4 + $0x2f0] sm:$0xff]
    %v791 = vld [vmem:[#allocation4 + $0x2f8] sm:$0xff]
    %v792 = vld [vmem:[#allocation4 + $0x300] sm:$0xff]
    %v793 = vld [vmem:[#allocation4 + $0x308] sm:$0xff]
    %v794 = vld [vmem:[#allocation4 + $0x310] sm:$0xff]
    %v795 = vld [vmem:[#allocation4 + $0x318] sm:$0xff]
    %v796 = vld [vmem:[#allocation4 + $0x320] sm:$0xff]
    %v797 = vld [vmem:[#allocation4 + $0x328] sm:$0xff]
    %v798 = vld [vmem:[#allocation4 + $0x330] sm:$0xff]
    %v799 = vld [vmem:[#allocation4 + $0x338] sm:$0xff]
    %v800 = vld [vmem:[#allocation4 + $0x340] sm:$0xff]
    %v801 = vld [vmem:[#allocation4 + $0x348] sm:$0xff]
    %v802 = vld [vmem:[#allocation4 + $0x350] sm:$0xff]
    %v803 = vld [vmem:[#allocation4 + $0x358] sm:$0xff]
    %v804 = vld [vmem:[#allocation4 + $0x360] sm:$0xff]
    %v805 = vld [vmem:[#allocation4 + $0x368] sm:$0xff]
    %v806 = vld [vmem:[#allocation4 + $0x370] sm:$0xff]
    %v807 = vld [vmem:[#allocation4 + $0x378] sm:$0xff]
    %v808 = vld [vmem:[#allocation4 + $0x380] sm:$0xff]
    %v809 = vld [vmem:[#allocation4 + $0x388] sm:$0xff]
    %v810 = vld [vmem:[#allocation4 + $0x390] sm:$0xff]
    %v811 = vld [vmem:[#allocation4 + $0x398] sm:$0xff]
    %v812 = vld [vmem:[#allocation4 + $0x3a0] sm:$0xff]
    %v813 = vld [vmem:[#allocation4 + $0x3a8] sm:$0xff]
    %v814 = vld [vmem:[#allocation4 + $0x3b0] sm:$0xff]
    %v815 = vld [vmem:[#allocation4 + $0x3b8] sm:$0xff]
    %v816 = vld [vmem:[#allocation4 + $0x3c0] sm:$0xff]
    %v817 = vld [vmem:[#allocation4 + $0x3c8] sm:$0xff]
    %v818 = vld [vmem:[#allocation4 + $0x3d0] sm:$0xff]
    %v819 = vld [vmem:[#allocation4 + $0x3d8] sm:$0xff]
    %v820 = vld [vmem:[#allocation4 + $0x3e0] sm:$0xff]
    %v821 = vld [vmem:[#allocation4 + $0x3e8] sm:$0xff]
    %v822 = vld [vmem:[#allocation4 + $0x3f0] sm:$0xff]
    %v823 = vld [vmem:[#allocation4 + $0x3f8] sm:$0xff]
    %v824 = vld [vmem:[#allocation4 + $0x400] sm:$0xff]
    %v825 = vld [vmem:[#allocation4 + $0x408] sm:$0xff]
    %v826 = vld [vmem:[#allocation4 + $0x410] sm:$0xff]
    %v827 = vld [vmem:[#allocation4 + $0x418] sm:$0xff]
    %v828 = vld [vmem:[#allocation4 + $0x420] sm:$0xff]
    %v829 = vld [vmem:[#allocation4 + $0x428] sm:$0xff]
    %v830 = vld [vmem:[#allocation4 + $0x430] sm:$0xff]
    %v831 = vld [vmem:[#allocation4 + $0x438] sm:$0xff]
    %v832 = vld [vmem:[#allocation4 + $0x440] sm:$0xff]
    %v833 = vld [vmem:[#allocation4 + $0x448] sm:$0xff]
    %v834 = vld [vmem:[#allocation4 + $0x450] sm:$0xff]
    %v835 = vld [vmem:[#allocation4 + $0x458] sm:$0xff]
    %v836 = vld [vmem:[#allocation4 + $0x460] sm:$0xff]
    %v837 = vld [vmem:[#allocation4 + $0x468] sm:$0xff]
    %v838 = vld [vmem:[#allocation4 + $0x470] sm:$0xff]
    %v839 = vld [vmem:[#allocation4 + $0x478] sm:$0xff]
    %v840 = vld [vmem:[#allocation4 + $0x480] sm:$0xff]
    %v841 = vld [vmem:[#allocation4 + $0x488] sm:$0xff]
    %v842 = vld [vmem:[#allocation4 + $0x490] sm:$0xff]
    %v843 = vld [vmem:[#allocation4 + $0x498] sm:$0xff]
    %v844 = vld [vmem:[#allocation4 + $0x4a0] sm:$0xff]
    %v845 = vld [vmem:[#allocation4 + $0x4a8] sm:$0xff]
    %v846 = vld [vmem:[#allocation4 + $0x4b0] sm:$0xff]
    %v847 = vld [vmem:[#allocation4 + $0x4b8] sm:$0xff]
    %v848 = vld [vmem:[#allocation4 + $0x4c0] sm:$0xff]
    %v849 = vld [vmem:[#allocation4 + $0x4c8] sm:$0xff]
    %v850 = vld [vmem:[#allocation4 + $0x4d0] sm:$0xff]
    %v851 = vld [vmem:[#allocation4 + $0x4d8] sm:$0xff]
    %v852 = vld [vmem:[#allocation4 + $0x4e0] sm:$0xff]
    %v853 = vld [vmem:[#allocation4 + $0x4e8] sm:$0xff]
    %v854 = vld [vmem:[#allocation4 + $0x4f0] sm:$0xff]
    %v855 = vld [vmem:[#allocation4 + $0x4f8] sm:$0xff]
    %v856 = vld [vmem:[#allocation4 + $0x500] sm:$0xff]
    %v857 = vld [vmem:[#allocation4 + $0x508] sm:$0xff]
    %v858 = vld [vmem:[#allocation4 + $0x510] sm:$0xff]
    %v859 = vld [vmem:[#allocation4 + $0x518] sm:$0xff]
    %v860 = vld [vmem:[#allocation4 + $0x520] sm:$0xff]
    %v861 = vld [vmem:[#allocation4 + $0x528] sm:$0xff]
    %v862 = vld [vmem:[#allocation4 + $0x530] sm:$0xff]
    %v863 = vld [vmem:[#allocation4 + $0x538] sm:$0xff]
    %v864 = vld [vmem:[#allocation4 + $0x540] sm:$0xff]
    %v865 = vld [vmem:[#allocation4 + $0x548] sm:$0xff]
    %v866 = vld [vmem:[#allocation4 + $0x550] sm:$0xff]
    %v867 = vld [vmem:[#allocation4 + $0x558] sm:$0xff]
    %v868 = vld [vmem:[#allocation4 + $0x560] sm:$0xff]
    %v869 = vld [vmem:[#allocation4 + $0x568] sm:$0xff]
    %v870 = vld [vmem:[#allocation4 + $0x570] sm:$0xff]
    %v871 = vld [vmem:[#allocation4 + $0x578] sm:$0xff]
    %v872 = vld [vmem:[#allocation4 + $0x580] sm:$0xff]
    %v873 = vld [vmem:[#allocation4 + $0x588] sm:$0xff]
    %v874 = vld [vmem:[#allocation4 + $0x590] sm:$0xff]
    %v875 = vld [vmem:[#allocation4 + $0x598] sm:$0xff]
    %v876 = vld [vmem:[#allocation4 + $0x5a0] sm:$0xff]
    %v877 = vld [vmem:[#allocation4 + $0x5a8] sm:$0xff]
    %v878 = vld [vmem:[#allocation4 + $0x5b0] sm:$0xff]
    %v879 = vld [vmem:[#allocation4 + $0x5b8] sm:$0xff]
    %v880 = vld [vmem:[#allocation4 + $0x5c0] sm:$0xff]
    %v881 = vld [vmem:[#allocation4 + $0x5c8] sm:$0xff]
    %v882 = vld [vmem:[#allocation4 + $0x5d0] sm:$0xff]
    %v883 = vld [vmem:[#allocation4 + $0x5d8] sm:$0xff]
    %v884 = vld [vmem:[#allocation4 + $0x5e0] sm:$0xff]
    %v885 = vld [vmem:[#allocation4 + $0x5e8] sm:$0xff]
    %v886 = vld [vmem:[#allocation4 + $0x5f0] sm:$0xff]
    %v887 = vld [vmem:[#allocation4 + $0x5f8] sm:$0xff]
    %v888 = vld [vmem:[#allocation4 + $0x600] sm:$0xff]
    %v889 = vld [vmem:[#allocation4 + $0x608] sm:$0xff]
    %v890 = vld [vmem:[#allocation4 + $0x610] sm:$0xff]
    %v891 = vld [vmem:[#allocation4 + $0x618] sm:$0xff]
    %v892 = vld [vmem:[#allocation4 + $0x620] sm:$0xff]
    %v893 = vld [vmem:[#allocation4 + $0x628] sm:$0xff]
    %v894 = vld [vmem:[#allocation4 + $0x630] sm:$0xff]
    %v895 = vld [vmem:[#allocation4 + $0x638] sm:$0xff]
    %v896 = vld [vmem:[#allocation4 + $0x640] sm:$0xff]
    %v897 = vld [vmem:[#allocation4 + $0x648] sm:$0xff]
    %v898 = vld [vmem:[#allocation4 + $0x650] sm:$0xff]
    %v899 = vld [vmem:[#allocation4 + $0x658] sm:$0xff]
    %v900 = vld [vmem:[#allocation4 + $0x660] sm:$0xff]
    %v901 = vld [vmem:[#allocation4 + $0x668] sm:$0xff]
    %v902 = vld [vmem:[#allocation4 + $0x670] sm:$0xff]
    %v903 = vld [vmem:[#allocation4 + $0x678] sm:$0xff]
    %v904 = vld [vmem:[#allocation4 + $0x680] sm:$0xff]
    %v905 = vld [vmem:[#allocation4 + $0x688] sm:$0xff]
    %v906 = vld [vmem:[#allocation4 + $0x690] sm:$0xff]
    %v907 = vld [vmem:[#allocation4 + $0x698] sm:$0xff]
    %v908 = vld [vmem:[#allocation4 + $0x6a0] sm:$0xff]
    %v909 = vld [vmem:[#allocation4 + $0x6a8] sm:$0xff]
    %v910 = vld [vmem:[#allocation4 + $0x6b0] sm:$0xff]
    %v911 = vld [vmem:[#allocation4 + $0x6b8] sm:$0xff]
    %v912 = vld [vmem:[#allocation4 + $0x6c0] sm:$0xff]
    %v913 = vld [vmem:[#allocation4 + $0x6c8] sm:$0xff]
    %v914 = vld [vmem:[#allocation4 + $0x6d0] sm:$0xff]
    %v915 = vld [vmem:[#allocation4 + $0x6d8] sm:$0xff]
    %v916 = vld [vmem:[#allocation4 + $0x6e0] sm:$0xff]
    %v917 = vld [vmem:[#allocation4 + $0x6e8] sm:$0xff]
    %v918 = vld [vmem:[#allocation4 + $0x6f0] sm:$0xff]
    %v919 = vld [vmem:[#allocation4 + $0x6f8] sm:$0xff]
    %v920 = vld [vmem:[#allocation4 + $0x700] sm:$0xff]
    %v921 = vld [vmem:[#allocation4 + $0x708] sm:$0xff]
    %v922 = vld [vmem:[#allocation4 + $0x710] sm:$0xff]
    %v923 = vld [vmem:[#allocation4 + $0x718] sm:$0xff]
    %v924 = vld [vmem:[#allocation4 + $0x720] sm:$0xff]
    %v925 = vld [vmem:[#allocation4 + $0x728] sm:$0xff]
    %v926 = vld [vmem:[#allocation4 + $0x730] sm:$0xff]
    %v927 = vld [vmem:[#allocation4 + $0x738] sm:$0xff]
    %v928 = vld [vmem:[#allocation4 + $0x740] sm:$0xff]
    %v929 = vld [vmem:[#allocation4 + $0x748] sm:$0xff]
    %v930 = vld [vmem:[#allocation4 + $0x750] sm:$0xff]
    %v931 = vld [vmem:[#allocation4 + $0x758] sm:$0xff]
    %v932 = vld [vmem:[#allocation4 + $0x760] sm:$0xff]
    %v933 = vld [vmem:[#allocation4 + $0x768] sm:$0xff]
    %v934 = vld [vmem:[#allocation4 + $0x770] sm:$0xff]
    %v935 = vld [vmem:[#allocation4 + $0x778] sm:$0xff]
    %v936 = vld [vmem:[#allocation4 + $0x780] sm:$0xff]
    %v937 = vld [vmem:[#allocation4 + $0x788] sm:$0xff]
    %v938 = vld [vmem:[#allocation4 + $0x790] sm:$0xff]
    %v939 = vld [vmem:[#allocation4 + $0x798] sm:$0xff]
    %v940 = vld [vmem:[#allocation4 + $0x7a0] sm:$0xff]
    %v941 = vld [vmem:[#allocation4 + $0x7a8] sm:$0xff]
    %v942 = vld [vmem:[#allocation4 + $0x7b0] sm:$0xff]
    %v943 = vld [vmem:[#allocation4 + $0x7b8] sm:$0xff]
    %v944 = vld [vmem:[#allocation4 + $0x7c0] sm:$0xff]
    %v945 = vld [vmem:[#allocation4 + $0x7c8] sm:$0xff]
    %v946 = vld [vmem:[#allocation4 + $0x7d0] sm:$0xff]
    %v947 = vld [vmem:[#allocation4 + $0x7d8] sm:$0xff]
    %v948 = vld [vmem:[#allocation4 + $0x7e0] sm:$0xff]
    %v949 = vld [vmem:[#allocation4 + $0x7e8] sm:$0xff]
    %v950 = vld [vmem:[#allocation4 + $0x7f0] sm:$0xff]
    %v951 = vld [vmem:[#allocation4 + $0x7f8] sm:$0xff]
    %v952 = vld [vmem:[%s5] sm:$0xff]
    %v953 = vld [vmem:[#allocation7] sm:$0xff]
    %v954 = vld [vmem:[#allocation7 + $0x8] sm:$0xff]
    %v955 = vld [vmem:[#allocation8] sm:$0xff]
    %v956 = vld [vmem:[#allocation8 + $0x8] sm:$0xff]
    %v957 = vld [vmem:[#allocation9] sm:$0xff]
    %v958 = vld [vmem:[#allocation9 + $0x8] sm:$0xff]
    %v959 = vld [vmem:[#allocation10] sm:$0xff]
    %v960 = vld [vmem:[#allocation10 + $0x8] sm:$0xff]
    %s961 = smul.u32 0, 8
    %s962 = smul.addr %s961, 8
    %s963 = scalar_lea.vmem [#allocation2], %s962
    %v964 = vld [vmem:[%s963] sm:$0xff]
    %v965 = vld [vmem:[%s963 + $0x8] sm:$0xff]
    %v966 = vld [vmem:[%s963 + $0x10] sm:$0xff]
    %v967 = vld [vmem:[%s963 + $0x18] sm:$0xff]
    %v968 = vld [vmem:[%s963 + $0x20] sm:$0xff]
    %v969 = vld [vmem:[%s963 + $0x28] sm:$0xff]
    %v970 = vld [vmem:[%s963 + $0x30] sm:$0xff]
    %v971 = vld [vmem:[%s963 + $0x38] sm:$0xff]
    %v972 = vpack.c.bf16 %v953, %v953
    %v973 = vpack.c.bf16 %v954, %v954
    %v1102 = vunpack.c.l.b16 %v568
    %v1103 = vunpack.c.h.b16 %v568
    %v1104 = vunpack.c.l.b16 %v569
    %v1105 = vunpack.c.h.b16 %v569
    %v1106 = vunpack.c.l.b16 %v570
    %v1107 = vunpack.c.h.b16 %v570
    %v1108 = vunpack.c.l.b16 %v571
    %v1109 = vunpack.c.h.b16 %v571
    %v1110 = vunpack.c.l.b16 %v572
    %v1111 = vunpack.c.h.b16 %v572
    %v1112 = vunpack.c.l.b16 %v573
    %v1113 = vunpack.c.h.b16 %v573
    %v1114 = vunpack.c.l.b16 %v574
    %v1115 = vunpack.c.h.b16 %v574
    %v1116 = vunpack.c.l.b16 %v575
    %v1117 = vunpack.c.h.b16 %v575
    %v1118 = vunpack.c.l.b16 %v576
    %v1119 = vunpack.c.h.b16 %v576
    %v1120 = vunpack.c.l.b16 %v577
    %v1121 = vunpack.c.h.b16 %v577
    %v1122 = vunpack.c.l.b16 %v578
    %v1123 = vunpack.c.h.b16 %v578
    %v1124 = vunpack.c.l.b16 %v579
    %v1125 = vunpack.c.h.b16 %v579
    %v1126 = vunpack.c.l.b16 %v580
    %v1127 = vunpack.c.h.b16 %v580
    %v1128 = vunpack.c.l.b16 %v581
    %v1129 = vunpack.c.h.b16 %v581
    %v1130 = vunpack.c.l.b16 %v582
    %v1131 = vunpack.c.h.b16 %v582
    %v1132 = vunpack.c.l.b16 %v583
    %v1133 = vunpack.c.h.b16 %v583
    %v1134 = vunpack.c.l.b16 %v584
    %v1135 = vunpack.c.h.b16 %v584
    %v1136 = vunpack.c.l.b16 %v585
    %v1137 = vunpack.c.h.b16 %v585
    %v1138 = vunpack.c.l.b16 %v586
    %v1139 = vunpack.c.h.b16 %v586
    %v1140 = vunpack.c.l.b16 %v587
    %v1141 = vunpack.c.h.b16 %v587
    %v1142 = vunpack.c.l.b16 %v588
    %v1143 = vunpack.c.h.b16 %v588
    %v1144 = vunpack.c.l.b16 %v589
    %v1145 = vunpack.c.h.b16 %v589
    %v1146 = vunpack.c.l.b16 %v590
    %v1147 = vunpack.c.h.b16 %v590
    %v1148 = vunpack.c.l.b16 %v591
    %v1149 = vunpack.c.h.b16 %v591
    %v1150 = vunpack.c.l.b16 %v592
    %v1151 = vunpack.c.h.b16 %v592
    %v1152 = vunpack.c.l.b16 %v593
    %v1153 = vunpack.c.h.b16 %v593
    %v1154 = vunpack.c.l.b16 %v594
    %v1155 = vunpack.c.h.b16 %v594
    %v1156 = vunpack.c.l.b16 %v595
    %v1157 = vunpack.c.h.b16 %v595
    %v1158 = vunpack.c.l.b16 %v596
    %v1159 = vunpack.c.h.b16 %v596
    %v1160 = vunpack.c.l.b16 %v597
    %v1161 = vunpack.c.h.b16 %v597
    %v1162 = vunpack.c.l.b16 %v598
    %v1163 = vunpack.c.h.b16 %v598
    %v1164 = vunpack.c.l.b16 %v599
    %v1165 = vunpack.c.h.b16 %v599
    %v1166 = vunpack.c.l.b16 %v600
    %v1167 = vunpack.c.h.b16 %v600
    %v1168 = vunpack.c.l.b16 %v601
    %v1169 = vunpack.c.h.b16 %v601
    %v1170 = vunpack.c.l.b16 %v602
    %v1171 = vunpack.c.h.b16 %v602
    %v1172 = vunpack.c.l.b16 %v603
    %v1173 = vunpack.c.h.b16 %v603
    %v1174 = vunpack.c.l.b16 %v604
    %v1175 = vunpack.c.h.b16 %v604
    %v1176 = vunpack.c.l.b16 %v605
    %v1177 = vunpack.c.h.b16 %v605
    %v1178 = vunpack.c.l.b16 %v606
    %v1179 = vunpack.c.h.b16 %v606
    %v1180 = vunpack.c.l.b16 %v607
    %v1181 = vunpack.c.h.b16 %v607
    %v1182 = vunpack.c.l.b16 %v608
    %v1183 = vunpack.c.h.b16 %v608
    %v1184 = vunpack.c.l.b16 %v609
    %v1185 = vunpack.c.h.b16 %v609
    %v1186 = vunpack.c.l.b16 %v610
    %v1187 = vunpack.c.h.b16 %v610
    %v1188 = vunpack.c.l.b16 %v611
    %v1189 = vunpack.c.h.b16 %v611
    %v1190 = vunpack.c.l.b16 %v612
    %v1191 = vunpack.c.h.b16 %v612
    %v1192 = vunpack.c.l.b16 %v613
    %v1193 = vunpack.c.h.b16 %v613
    %v1194 = vunpack.c.l.b16 %v614
    %v1195 = vunpack.c.h.b16 %v614
    %v1196 = vunpack.c.l.b16 %v615
    %v1197 = vunpack.c.h.b16 %v615
    %v1198 = vunpack.c.l.b16 %v616
    %v1199 = vunpack.c.h.b16 %v616
    %v1200 = vunpack.c.l.b16 %v617
    %v1201 = vunpack.c.h.b16 %v617
    %v1202 = vunpack.c.l.b16 %v618
    %v1203 = vunpack.c.h.b16 %v618
    %v1204 = vunpack.c.l.b16 %v619
    %v1205 = vunpack.c.h.b16 %v619
    %v1206 = vunpack.c.l.b16 %v620
    %v1207 = vunpack.c.h.b16 %v620
    %v1208 = vunpack.c.l.b16 %v621
    %v1209 = vunpack.c.h.b16 %v621
    %v1210 = vunpack.c.l.b16 %v622
    %v1211 = vunpack.c.h.b16 %v622
    %v1212 = vunpack.c.l.b16 %v623
    %v1213 = vunpack.c.h.b16 %v623
    %v1214 = vunpack.c.l.b16 %v624
    %v1215 = vunpack.c.h.b16 %v624
    %v1216 = vunpack.c.l.b16 %v625
    %v1217 = vunpack.c.h.b16 %v625
    %v1218 = vunpack.c.l.b16 %v626
    %v1219 = vunpack.c.h.b16 %v626
    %v1220 = vunpack.c.l.b16 %v627
    %v1221 = vunpack.c.h.b16 %v627
    %v1222 = vunpack.c.l.b16 %v628
    %v1223 = vunpack.c.h.b16 %v628
    %v1224 = vunpack.c.l.b16 %v629
    %v1225 = vunpack.c.h.b16 %v629
    %v1226 = vunpack.c.l.b16 %v630
    %v1227 = vunpack.c.h.b16 %v630
    %v1228 = vunpack.c.l.b16 %v631
    %v1229 = vunpack.c.h.b16 %v631
    %v1230 = vunpack.c.l.b16 %v632
    %v1231 = vunpack.c.h.b16 %v632
    %v1232 = vunpack.c.l.b16 %v633
    %v1233 = vunpack.c.h.b16 %v633
    %v1234 = vunpack.c.l.b16 %v634
    %v1235 = vunpack.c.h.b16 %v634
    %v1236 = vunpack.c.l.b16 %v635
    %v1237 = vunpack.c.h.b16 %v635
    %v1238 = vunpack.c.l.b16 %v636
    %v1239 = vunpack.c.h.b16 %v636
    %v1240 = vunpack.c.l.b16 %v637
    %v1241 = vunpack.c.h.b16 %v637
    %v1242 = vunpack.c.l.b16 %v638
    %v1243 = vunpack.c.h.b16 %v638
    %v1244 = vunpack.c.l.b16 %v639
    %v1245 = vunpack.c.h.b16 %v639
    %v1246 = vunpack.c.l.b16 %v640
    %v1247 = vunpack.c.h.b16 %v640
    %v1248 = vunpack.c.l.b16 %v641
    %v1249 = vunpack.c.h.b16 %v641
    %v1250 = vunpack.c.l.b16 %v642
    %v1251 = vunpack.c.h.b16 %v642
    %v1252 = vunpack.c.l.b16 %v643
    %v1253 = vunpack.c.h.b16 %v643
    %v1254 = vunpack.c.l.b16 %v644
    %v1255 = vunpack.c.h.b16 %v644
    %v1256 = vunpack.c.l.b16 %v645
    %v1257 = vunpack.c.h.b16 %v645
    %v1258 = vunpack.c.l.b16 %v646
    %v1259 = vunpack.c.h.b16 %v646
    %v1260 = vunpack.c.l.b16 %v647
    %v1261 = vunpack.c.h.b16 %v647
    %v1262 = vunpack.c.l.b16 %v648
    %v1263 = vunpack.c.h.b16 %v648
    %v1264 = vunpack.c.l.b16 %v649
    %v1265 = vunpack.c.h.b16 %v649
    %v1266 = vunpack.c.l.b16 %v650
    %v1267 = vunpack.c.h.b16 %v650
    %v1268 = vunpack.c.l.b16 %v651
    %v1269 = vunpack.c.h.b16 %v651
    %v1270 = vunpack.c.l.b16 %v652
    %v1271 = vunpack.c.h.b16 %v652
    %v1272 = vunpack.c.l.b16 %v653
    %v1273 = vunpack.c.h.b16 %v653
    %v1274 = vunpack.c.l.b16 %v654
    %v1275 = vunpack.c.h.b16 %v654
    %v1276 = vunpack.c.l.b16 %v655
    %v1277 = vunpack.c.h.b16 %v655
    %v1278 = vunpack.c.l.b16 %v656
    %v1279 = vunpack.c.h.b16 %v656
    %v1280 = vunpack.c.l.b16 %v657
    %v1281 = vunpack.c.h.b16 %v657
    %v1282 = vunpack.c.l.b16 %v658
    %v1283 = vunpack.c.h.b16 %v658
    %v1284 = vunpack.c.l.b16 %v659
    %v1285 = vunpack.c.h.b16 %v659
    %v1286 = vunpack.c.l.b16 %v660
    %v1287 = vunpack.c.h.b16 %v660
    %v1288 = vunpack.c.l.b16 %v661
    %v1289 = vunpack.c.h.b16 %v661
    %v1290 = vunpack.c.l.b16 %v662
    %v1291 = vunpack.c.h.b16 %v662
    %v1292 = vunpack.c.l.b16 %v663
    %v1293 = vunpack.c.h.b16 %v663
    %v1294 = vunpack.c.l.b16 %v664
    %v1295 = vunpack.c.h.b16 %v664
    %v1296 = vunpack.c.l.b16 %v665
    %v1297 = vunpack.c.h.b16 %v665
    %v1298 = vunpack.c.l.b16 %v666
    %v1299 = vunpack.c.h.b16 %v666
    %v1300 = vunpack.c.l.b16 %v667
    %v1301 = vunpack.c.h.b16 %v667
    %v1302 = vunpack.c.l.b16 %v668
    %v1303 = vunpack.c.h.b16 %v668
    %v1304 = vunpack.c.l.b16 %v669
    %v1305 = vunpack.c.h.b16 %v669
    %v1306 = vunpack.c.l.b16 %v670
    %v1307 = vunpack.c.h.b16 %v670
    %v1308 = vunpack.c.l.b16 %v671
    %v1309 = vunpack.c.h.b16 %v671
    %v1310 = vunpack.c.l.b16 %v672
    %v1311 = vunpack.c.h.b16 %v672
    %v1312 = vunpack.c.l.b16 %v673
    %v1313 = vunpack.c.h.b16 %v673
    %v1314 = vunpack.c.l.b16 %v674
    %v1315 = vunpack.c.h.b16 %v674
    %v1316 = vunpack.c.l.b16 %v675
    %v1317 = vunpack.c.h.b16 %v675
    %v1318 = vunpack.c.l.b16 %v676
    %v1319 = vunpack.c.h.b16 %v676
    %v1320 = vunpack.c.l.b16 %v677
    %v1321 = vunpack.c.h.b16 %v677
    %v1322 = vunpack.c.l.b16 %v678
    %v1323 = vunpack.c.h.b16 %v678
    %v1324 = vunpack.c.l.b16 %v679
    %v1325 = vunpack.c.h.b16 %v679
    %v1326 = vunpack.c.l.b16 %v680
    %v1327 = vunpack.c.h.b16 %v680
    %v1328 = vunpack.c.l.b16 %v681
    %v1329 = vunpack.c.h.b16 %v681
    %v1330 = vunpack.c.l.b16 %v682
    %v1331 = vunpack.c.h.b16 %v682
    %v1332 = vunpack.c.l.b16 %v683
    %v1333 = vunpack.c.h.b16 %v683
    %v1334 = vunpack.c.l.b16 %v684
    %v1335 = vunpack.c.h.b16 %v684
    %v1336 = vunpack.c.l.b16 %v685
    %v1337 = vunpack.c.h.b16 %v685
    %v1338 = vunpack.c.l.b16 %v686
    %v1339 = vunpack.c.h.b16 %v686
    %v1340 = vunpack.c.l.b16 %v687
    %v1341 = vunpack.c.h.b16 %v687
    %v1342 = vunpack.c.l.b16 %v688
    %v1343 = vunpack.c.h.b16 %v688
    %v1344 = vunpack.c.l.b16 %v689
    %v1345 = vunpack.c.h.b16 %v689
    %v1346 = vunpack.c.l.b16 %v690
    %v1347 = vunpack.c.h.b16 %v690
    %v1348 = vunpack.c.l.b16 %v691
    %v1349 = vunpack.c.h.b16 %v691
    %v1350 = vunpack.c.l.b16 %v692
    %v1351 = vunpack.c.h.b16 %v692
    %v1352 = vunpack.c.l.b16 %v693
    %v1353 = vunpack.c.h.b16 %v693
    %v1354 = vunpack.c.l.b16 %v694
    %v1355 = vunpack.c.h.b16 %v694
    %v1356 = vunpack.c.l.b16 %v695
    %v1357 = vunpack.c.h.b16 %v695
    %v1358 = vpack.c.b16 %v1110, %v1102
    %v1359 = vpack.c.b16 %v1111, %v1103
    %v1360 = vpack.c.b16 %v1112, %v1104
    %v1361 = vpack.c.b16 %v1113, %v1105
    %v1362 = vpack.c.b16 %v1114, %v1106
    %v1363 = vpack.c.b16 %v1115, %v1107
    %v1364 = vpack.c.b16 %v1116, %v1108
    %v1365 = vpack.c.b16 %v1117, %v1109
    %v1366 = vpack.c.b16 %v1126, %v1118
    %v1367 = vpack.c.b16 %v1127, %v1119
    %v1368 = vpack.c.b16 %v1128, %v1120
    %v1369 = vpack.c.b16 %v1129, %v1121
    %v1370 = vpack.c.b16 %v1130, %v1122
    %v1371 = vpack.c.b16 %v1131, %v1123
    %v1372 = vpack.c.b16 %v1132, %v1124
    %v1373 = vpack.c.b16 %v1133, %v1125
    %v1374 = vpack.c.b16 %v1142, %v1134
    %v1375 = vpack.c.b16 %v1143, %v1135
    %v1376 = vpack.c.b16 %v1144, %v1136
    %v1377 = vpack.c.b16 %v1145, %v1137
    %v1378 = vpack.c.b16 %v1146, %v1138
    %v1379 = vpack.c.b16 %v1147, %v1139
    %v1380 = vpack.c.b16 %v1148, %v1140
    %v1381 = vpack.c.b16 %v1149, %v1141
    %v1382 = vpack.c.b16 %v1158, %v1150
    %v1383 = vpack.c.b16 %v1159, %v1151
    %v1384 = vpack.c.b16 %v1160, %v1152
    %v1385 = vpack.c.b16 %v1161, %v1153
    %v1386 = vpack.c.b16 %v1162, %v1154
    %v1387 = vpack.c.b16 %v1163, %v1155
    %v1388 = vpack.c.b16 %v1164, %v1156
    %v1389 = vpack.c.b16 %v1165, %v1157
    %v1390 = vpack.c.b16 %v1174, %v1166
    %v1391 = vpack.c.b16 %v1175, %v1167
    %v1392 = vpack.c.b16 %v1176, %v1168
    %v1393 = vpack.c.b16 %v1177, %v1169
    %v1394 = vpack.c.b16 %v1178, %v1170
    %v1395 = vpack.c.b16 %v1179, %v1171
    %v1396 = vpack.c.b16 %v1180, %v1172
    %v1397 = vpack.c.b16 %v1181, %v1173
    %v1398 = vpack.c.b16 %v1190, %v1182
    %v1399 = vpack.c.b16 %v1191, %v1183
    %v1400 = vpack.c.b16 %v1192, %v1184
    %v1401 = vpack.c.b16 %v1193, %v1185
    %v1402 = vpack.c.b16 %v1194, %v1186
    %v1403 = vpack.c.b16 %v1195, %v1187
    %v1404 = vpack.c.b16 %v1196, %v1188
    %v1405 = vpack.c.b16 %v1197, %v1189
    %v1406 = vpack.c.b16 %v1206, %v1198
    %v1407 = vpack.c.b16 %v1207, %v1199
    %v1408 = vpack.c.b16 %v1208, %v1200
    %v1409 = vpack.c.b16 %v1209, %v1201
    %v1410 = vpack.c.b16 %v1210, %v1202
    %v1411 = vpack.c.b16 %v1211, %v1203
    %v1412 = vpack.c.b16 %v1212, %v1204
    %v1413 = vpack.c.b16 %v1213, %v1205
    %v1414 = vpack.c.b16 %v1222, %v1214
    %v1415 = vpack.c.b16 %v1223, %v1215
    %v1416 = vpack.c.b16 %v1224, %v1216
    %v1417 = vpack.c.b16 %v1225, %v1217
    %v1418 = vpack.c.b16 %v1226, %v1218
    %v1419 = vpack.c.b16 %v1227, %v1219
    %v1420 = vpack.c.b16 %v1228, %v1220
    %v1421 = vpack.c.b16 %v1229, %v1221
    %v1422 = vpack.c.b16 %v1238, %v1230
    %v1423 = vpack.c.b16 %v1239, %v1231
    %v1424 = vpack.c.b16 %v1240, %v1232
    %v1425 = vpack.c.b16 %v1241, %v1233
    %v1426 = vpack.c.b16 %v1242, %v1234
    %v1427 = vpack.c.b16 %v1243, %v1235
    %v1428 = vpack.c.b16 %v1244, %v1236
    %v1429 = vpack.c.b16 %v1245, %v1237
    %v1430 = vpack.c.b16 %v1254, %v1246
    %v1431 = vpack.c.b16 %v1255, %v1247
    %v1432 = vpack.c.b16 %v1256, %v1248
    %v1433 = vpack.c.b16 %v1257, %v1249
    %v1434 = vpack.c.b16 %v1258, %v1250
    %v1435 = vpack.c.b16 %v1259, %v1251
    %v1436 = vpack.c.b16 %v1260, %v1252
    %v1437 = vpack.c.b16 %v1261, %v1253
    %v1438 = vpack.c.b16 %v1270, %v1262
    %v1439 = vpack.c.b16 %v1271, %v1263
    %v1440 = vpack.c.b16 %v1272, %v1264
    %v1441 = vpack.c.b16 %v1273, %v1265
    %v1442 = vpack.c.b16 %v1274, %v1266
    %v1443 = vpack.c.b16 %v1275, %v1267
    %v1444 = vpack.c.b16 %v1276, %v1268
    %v1445 = vpack.c.b16 %v1277, %v1269
    %v1446 = vpack.c.b16 %v1286, %v1278
    %v1447 = vpack.c.b16 %v1287, %v1279
    %v1448 = vpack.c.b16 %v1288, %v1280
    %v1449 = vpack.c.b16 %v1289, %v1281
    %v1450 = vpack.c.b16 %v1290, %v1282
    %v1451 = vpack.c.b16 %v1291, %v1283
    %v1452 = vpack.c.b16 %v1292, %v1284
    %v1453 = vpack.c.b16 %v1293, %v1285
    %v1454 = vpack.c.b16 %v1302, %v1294
    %v1455 = vpack.c.b16 %v1303, %v1295
    %v1456 = vpack.c.b16 %v1304, %v1296
    %v1457 = vpack.c.b16 %v1305, %v1297
    %v1458 = vpack.c.b16 %v1306, %v1298
    %v1459 = vpack.c.b16 %v1307, %v1299
    %v1460 = vpack.c.b16 %v1308, %v1300
    %v1461 = vpack.c.b16 %v1309, %v1301
    %v1462 = vpack.c.b16 %v1318, %v1310
    %v1463 = vpack.c.b16 %v1319, %v1311
    %v1464 = vpack.c.b16 %v1320, %v1312
    %v1465 = vpack.c.b16 %v1321, %v1313
    %v1466 = vpack.c.b16 %v1322, %v1314
    %v1467 = vpack.c.b16 %v1323, %v1315
    %v1468 = vpack.c.b16 %v1324, %v1316
    %v1469 = vpack.c.b16 %v1325, %v1317
    %v1470 = vpack.c.b16 %v1334, %v1326
    %v1471 = vpack.c.b16 %v1335, %v1327
    %v1472 = vpack.c.b16 %v1336, %v1328
    %v1473 = vpack.c.b16 %v1337, %v1329
    %v1474 = vpack.c.b16 %v1338, %v1330
    %v1475 = vpack.c.b16 %v1339, %v1331
    %v1476 = vpack.c.b16 %v1340, %v1332
    %v1477 = vpack.c.b16 %v1341, %v1333
    %v1478 = vpack.c.b16 %v1350, %v1342
    %v1479 = vpack.c.b16 %v1351, %v1343
    %v1480 = vpack.c.b16 %v1352, %v1344
    %v1481 = vpack.c.b16 %v1353, %v1345
    %v1482 = vpack.c.b16 %v1354, %v1346
    %v1483 = vpack.c.b16 %v1355, %v1347
    %v1484 = vpack.c.b16 %v1356, %v1348
    %v1485 = vpack.c.b16 %v1357, %v1349
    %1614 = vmatpush.bf16.msra.mxu0 %v1414
    %1615 = vmatpush.bf16.msra.mxu0 %v1406
    %1616 = vmatpush.bf16.msra.mxu0 %v1398
    %1617 = vmatpush.bf16.msra.mxu0 %v1390
    %1618 = vmatpush.bf16.msra.mxu0 %v1382
    %1619 = vmatpush.bf16.msra.mxu0 %v1374
    %1620 = vmatpush.bf16.msra.mxu0 %v1366
    %1621 = vmatpush.bf16.msra.mxu0 %v1358
    %1622 = vmatmul.bf16.gmra.mxu0 %v972
    %v1623 = vpop.f32.mrf.mxu0
    %v1624 = vadd.f32 0.0, %v1623
    %v1625 = vpop.f32.mrf.mxu0
    %1626 = vdwg.mxu0
    %1627 = vmatpush.bf16.msra.mxu0 %v1478
    %1628 = vmatpush.bf16.msra.mxu0 %v1470
    %1629 = vmatpush.bf16.msra.mxu0 %v1462
    %1630 = vmatpush.bf16.msra.mxu0 %v1454
    %1631 = vmatpush.bf16.msra.mxu0 %v1446
    %1632 = vmatpush.bf16.msra.mxu0 %v1438
    %1633 = vmatpush.bf16.msra.mxu0 %v1430
    %1634 = vmatpush.bf16.msra.mxu0 %v1422
    %1635 = vmatmul.bf16.gmra.mxu0 %v973
    %v1636 = vpop.f32.mrf.mxu0
    %v1637 = vadd.f32 %v1624, %v1636
    %v1638 = vpop.f32.mrf.mxu0
    %1639 = vdwg.mxu0
    %1640 = vmatpush.bf16.msra.mxu0 %v1415
    %1641 = vmatpush.bf16.msra.mxu0 %v1407
    %1642 = vmatpush.bf16.msra.mxu0 %v1399
    %1643 = vmatpush.bf16.msra.mxu0 %v1391
    %1644 = vmatpush.bf16.msra.mxu0 %v1383
    %1645 = vmatpush.bf16.msra.mxu0 %v1375
    %1646 = vmatpush.bf16.msra.mxu0 %v1367
    %1647 = vmatpush.bf16.msra.mxu0 %v1359
    %1648 = vmatmul.bf16.gmra.mxu0 %v972
    %v1649 = vpop.f32.mrf.mxu0
    %v1650 = vadd.f32 0.0, %v1649
    %v1651 = vpop.f32.mrf.mxu0
    %1652 = vdwg.mxu0
    %1653 = vmatpush.bf16.msra.mxu0 %v1479
    %1654 = vmatpush.bf16.msra.mxu0 %v1471
    %1655 = vmatpush.bf16.msra.mxu0 %v1463
    %1656 = vmatpush.bf16.msra.mxu0 %v1455
    %1657 = vmatpush.bf16.msra.mxu0 %v1447
    %1658 = vmatpush.bf16.msra.mxu0 %v1439
    %1659 = vmatpush.bf16.msra.mxu0 %v1431
    %1660 = vmatpush.bf16.msra.mxu0 %v1423
    %1661 = vmatmul.bf16.gmra.mxu0 %v973
    %v1662 = vpop.f32.mrf.mxu0
    %v1663 = vadd.f32 %v1650, %v1662
    %v1664 = vpop.f32.mrf.mxu0
    %1665 = vdwg.mxu0
    %1666 = vmatpush.bf16.msra.mxu0 %v1416
    %1667 = vmatpush.bf16.msra.mxu0 %v1408
    %1668 = vmatpush.bf16.msra.mxu0 %v1400
    %1669 = vmatpush.bf16.msra.mxu0 %v1392
    %1670 = vmatpush.bf16.msra.mxu0 %v1384
    %1671 = vmatpush.bf16.msra.mxu0 %v1376
    %1672 = vmatpush.bf16.msra.mxu0 %v1368
    %1673 = vmatpush.bf16.msra.mxu0 %v1360
    %1674 = vmatmul.bf16.gmra.mxu0 %v972
    %v1675 = vpop.f32.mrf.mxu0
    %v1676 = vadd.f32 0.0, %v1675
    %v1677 = vpop.f32.mrf.mxu0
    %1678 = vdwg.mxu0
    %1679 = vmatpush.bf16.msra.mxu0 %v1480
    %1680 = vmatpush.bf16.msra.mxu0 %v1472
    %1681 = vmatpush.bf16.msra.mxu0 %v1464
    %1682 = vmatpush.bf16.msra.mxu0 %v1456
    %1683 = vmatpush.bf16.msra.mxu0 %v1448
    %1684 = vmatpush.bf16.msra.mxu0 %v1440
    %1685 = vmatpush.bf16.msra.mxu0 %v1432
    %1686 = vmatpush.bf16.msra.mxu0 %v1424
    %1687 = vmatmul.bf16.gmra.mxu0 %v973
    %v1688 = vpop.f32.mrf.mxu0
    %v1689 = vadd.f32 %v1676, %v1688
    %v1690 = vpop.f32.mrf.mxu0
    %1691 = vdwg.mxu0
    %1692 = vmatpush.bf16.msra.mxu0 %v1417
    %1693 = vmatpush.bf16.msra.mxu0 %v1409
    %1694 = vmatpush.bf16.msra.mxu0 %v1401
    %1695 = vmatpush.bf16.msra.mxu0 %v1393
    %1696 = vmatpush.bf16.msra.mxu0 %v1385
    %1697 = vmatpush.bf16.msra.mxu0 %v1377
    %1698 = vmatpush.bf16.msra.mxu0 %v1369
    %1699 = vmatpush.bf16.msra.mxu0 %v1361
    %1700 = vmatmul.bf16.gmra.mxu0 %v972
    %v1701 = vpop.f32.mrf.mxu0
    %v1702 = vadd.f32 0.0, %v1701
    %v1703 = vpop.f32.mrf.mxu0
    %1704 = vdwg.mxu0
    %1705 = vmatpush.bf16.msra.mxu0 %v1481
    %1706 = vmatpush.bf16.msra.mxu0 %v1473
    %1707 = vmatpush.bf16.msra.mxu0 %v1465
    %1708 = vmatpush.bf16.msra.mxu0 %v1457
    %1709 = vmatpush.bf16.msra.mxu0 %v1449
    %1710 = vmatpush.bf16.msra.mxu0 %v1441
    %1711 = vmatpush.bf16.msra.mxu0 %v1433
    %1712 = vmatpush.bf16.msra.mxu0 %v1425
    %1713 = vmatmul.bf16.gmra.mxu0 %v973
    %v1714 = vpop.f32.mrf.mxu0
    %v1715 = vadd.f32 %v1702, %v1714
    %v1716 = vpop.f32.mrf.mxu0
    %1717 = vdwg.mxu0
    %1718 = vmatpush.bf16.msra.mxu0 %v1418
    %1719 = vmatpush.bf16.msra.mxu0 %v1410
    %1720 = vmatpush.bf16.msra.mxu0 %v1402
    %1721 = vmatpush.bf16.msra.mxu0 %v1394
    %1722 = vmatpush.bf16.msra.mxu0 %v1386
    %1723 = vmatpush.bf16.msra.mxu0 %v1378
    %1724 = vmatpush.bf16.msra.mxu0 %v1370
    %1725 = vmatpush.bf16.msra.mxu0 %v1362
    %1726 = vmatmul.bf16.gmra.mxu0 %v972
    %v1727 = vpop.f32.mrf.mxu0
    %v1728 = vadd.f32 0.0, %v1727
    %v1729 = vpop.f32.mrf.mxu0
    %1730 = vdwg.mxu0
    %1731 = vmatpush.bf16.msra.mxu0 %v1482
    %1732 = vmatpush.bf16.msra.mxu0 %v1474
    %1733 = vmatpush.bf16.msra.mxu0 %v1466
    %1734 = vmatpush.bf16.msra.mxu0 %v1458
    %1735 = vmatpush.bf16.msra.mxu0 %v1450
    %1736 = vmatpush.bf16.msra.mxu0 %v1442
    %1737 = vmatpush.bf16.msra.mxu0 %v1434
    %1738 = vmatpush.bf16.msra.mxu0 %v1426
    %1739 = vmatmul.bf16.gmra.mxu0 %v973
    %v1740 = vpop.f32.mrf.mxu0
    %v1741 = vadd.f32 %v1728, %v1740
    %v1742 = vpop.f32.mrf.mxu0
    %1743 = vdwg.mxu0
    %1744 = vmatpush.bf16.msra.mxu0 %v1419
    %1745 = vmatpush.bf16.msra.mxu0 %v1411
    %1746 = vmatpush.bf16.msra.mxu0 %v1403
    %1747 = vmatpush.bf16.msra.mxu0 %v1395
    %1748 = vmatpush.bf16.msra.mxu0 %v1387
    %1749 = vmatpush.bf16.msra.mxu0 %v1379
    %1750 = vmatpush.bf16.msra.mxu0 %v1371
    %1751 = vmatpush.bf16.msra.mxu0 %v1363
    %1752 = vmatmul.bf16.gmra.mxu0 %v972
    %v1753 = vpop.f32.mrf.mxu0
    %v1754 = vadd.f32 0.0, %v1753
    %v1755 = vpop.f32.mrf.mxu0
    %1756 = vdwg.mxu0
    %1757 = vmatpush.bf16.msra.mxu0 %v1483
    %1758 = vmatpush.bf16.msra.mxu0 %v1475
    %1759 = vmatpush.bf16.msra.mxu0 %v1467
    %1760 = vmatpush.bf16.msra.mxu0 %v1459
    %1761 = vmatpush.bf16.msra.mxu0 %v1451
    %1762 = vmatpush.bf16.msra.mxu0 %v1443
    %1763 = vmatpush.bf16.msra.mxu0 %v1435
    %1764 = vmatpush.bf16.msra.mxu0 %v1427
    %1765 = vmatmul.bf16.gmra.mxu0 %v973
    %v1766 = vpop.f32.mrf.mxu0
    %v1767 = vadd.f32 %v1754, %v1766
    %v1768 = vpop.f32.mrf.mxu0
    %1769 = vdwg.mxu0
    %1770 = vmatpush.bf16.msra.mxu0 %v1420
    %1771 = vmatpush.bf16.msra.mxu0 %v1412
    %1772 = vmatpush.bf16.msra.mxu0 %v1404
    %1773 = vmatpush.bf16.msra.mxu0 %v1396
    %1774 = vmatpush.bf16.msra.mxu0 %v1388
    %1775 = vmatpush.bf16.msra.mxu0 %v1380
    %1776 = vmatpush.bf16.msra.mxu0 %v1372
    %1777 = vmatpush.bf16.msra.mxu0 %v1364
    %1778 = vmatmul.bf16.gmra.mxu0 %v972
    %v1779 = vpop.f32.mrf.mxu0
    %v1780 = vadd.f32 0.0, %v1779
    %v1781 = vpop.f32.mrf.mxu0
    %1782 = vdwg.mxu0
    %1783 = vmatpush.bf16.msra.mxu0 %v1484
    %1784 = vmatpush.bf16.msra.mxu0 %v1476
    %1785 = vmatpush.bf16.msra.mxu0 %v1468
    %1786 = vmatpush.bf16.msra.mxu0 %v1460
    %1787 = vmatpush.bf16.msra.mxu0 %v1452
    %1788 = vmatpush.bf16.msra.mxu0 %v1444
    %1789 = vmatpush.bf16.msra.mxu0 %v1436
    %1790 = vmatpush.bf16.msra.mxu0 %v1428
    %1791 = vmatmul.bf16.gmra.mxu0 %v973
    %v1792 = vpop.f32.mrf.mxu0
    %v1793 = vadd.f32 %v1780, %v1792
    %v1794 = vpop.f32.mrf.mxu0
    %1795 = vdwg.mxu0
    %1796 = vmatpush.bf16.msra.mxu0 %v1421
    %1797 = vmatpush.bf16.msra.mxu0 %v1413
    %1798 = vmatpush.bf16.msra.mxu0 %v1405
    %1799 = vmatpush.bf16.msra.mxu0 %v1397
    %1800 = vmatpush.bf16.msra.mxu0 %v1389
    %1801 = vmatpush.bf16.msra.mxu0 %v1381
    %1802 = vmatpush.bf16.msra.mxu0 %v1373
    %1803 = vmatpush.bf16.msra.mxu0 %v1365
    %1804 = vmatmul.bf16.gmra.mxu0 %v972
    %v1805 = vpop.f32.mrf.mxu0
    %v1806 = vadd.f32 0.0, %v1805
    %v1807 = vpop.f32.mrf.mxu0
    %1808 = vdwg.mxu0
    %1809 = vmatpush.bf16.msra.mxu0 %v1485
    %1810 = vmatpush.bf16.msra.mxu0 %v1477
    %1811 = vmatpush.bf16.msra.mxu0 %v1469
    %1812 = vmatpush.bf16.msra.mxu0 %v1461
    %1813 = vmatpush.bf16.msra.mxu0 %v1453
    %1814 = vmatpush.bf16.msra.mxu0 %v1445
    %1815 = vmatpush.bf16.msra.mxu0 %v1437
    %1816 = vmatpush.bf16.msra.mxu0 %v1429
    %1817 = vmatmul.bf16.gmra.mxu0 %v973
    %v1818 = vpop.f32.mrf.mxu0
    %v1819 = vadd.f32 %v1806, %v1818
    %v1820 = vpop.f32.mrf.mxu0
    %1821 = vdwg.mxu0
    %v1822 = vadd.f32 %v964, %v1637
    %v1823 = vadd.f32 %v965, %v1663
    %v1824 = vadd.f32 %v966, %v1689
    %v1825 = vadd.f32 %v967, %v1715
    %v1826 = vadd.f32 %v968, %v1741
    %v1827 = vadd.f32 %v969, %v1767
    %v1828 = vadd.f32 %v970, %v1793
    %v1829 = vadd.f32 %v971, %v1819
    %v1830 = vxor.u32 %v1822, 2147483648
    %v1831 = vxor.u32 %v1823, 2147483648
    %v1832 = vmul.f32 %v1830, 1.442695
    %v1833 = vpow.pop %v1832
    %v1834 = vmul.f32 %v1831, 1.442695
    %v1835 = vpow.pop %v1834
    %v1836 = vadd.f32 %v1833, 1.0
    %v1837 = vadd.f32 %v1835, 1.0
    %v1838 = vrcp.pop %v1836
    %v1839 = vmul.f32 %v1836, %v1838
    %v1840 = vsub.f32 1.0, %v1839
    %v1841 = vmul.f32 %v1838, %v1840
    %v1842 = vadd.f32 %v1838, %v1841
    %vm1843 = vweird.f32 %v1836
    %vm1844 = vweird.f32 %v1838
    %vm1845 = vmor %vm1843, %vm1844
    %v1846 = vsel %vm1845, %v1838, %v1842
    %v1847 = vand.u32 2147483647, %v1836
    %vm1848 = vcmp.eq.f32.partialorder %v1847, 8.507059e+37
    %v1849 = vand.u32 %v1836, 2147483648
    %v1850 = vor.u32 1.1754944e-38, %v1849
    %v1851 = vsel %vm1848, %v1850, %v1846
    %v1852 = vmul.f32 1.0, %v1851
    %v1853 = vrcp.pop %v1837
    %v1854 = vmul.f32 %v1837, %v1853
    %v1855 = vsub.f32 1.0, %v1854
    %v1856 = vmul.f32 %v1853, %v1855
    %v1857 = vadd.f32 %v1853, %v1856
    %vm1858 = vweird.f32 %v1837
    %vm1859 = vweird.f32 %v1853
    %vm1860 = vmor %vm1858, %vm1859
    %v1861 = vsel %vm1860, %v1853, %v1857
    %v1862 = vand.u32 2147483647, %v1837
    %vm1863 = vcmp.eq.f32.partialorder %v1862, 8.507059e+37
    %v1864 = vand.u32 %v1837, 2147483648
    %v1865 = vor.u32 1.1754944e-38, %v1864
    %v1866 = vsel %vm1863, %v1865, %v1861
    %v1867 = vmul.f32 1.0, %v1866
    %v1868 = vxor.u32 %v1824, 2147483648
    %v1869 = vxor.u32 %v1825, 2147483648
    %v1870 = vmul.f32 %v1868, 1.442695
    %v1871 = vpow.pop %v1870
    %v1872 = vmul.f32 %v1869, 1.442695
    %v1873 = vpow.pop %v1872
    %v1874 = vadd.f32 %v1871, 1.0
    %v1875 = vadd.f32 %v1873, 1.0
    %v1876 = vrcp.pop %v1874
    %v1877 = vmul.f32 %v1874, %v1876
    %v1878 = vsub.f32 1.0, %v1877
    %v1879 = vmul.f32 %v1876, %v1878
    %v1880 = vadd.f32 %v1876, %v1879
    %vm1881 = vweird.f32 %v1874
    %vm1882 = vweird.f32 %v1876
    %vm1883 = vmor %vm1881, %vm1882
    %v1884 = vsel %vm1883, %v1876, %v1880
    %v1885 = vand.u32 2147483647, %v1874
    %vm1886 = vcmp.eq.f32.partialorder %v1885, 8.507059e+37
    %v1887 = vand.u32 %v1874, 2147483648
    %v1888 = vor.u32 1.1754944e-38, %v1887
    %v1889 = vsel %vm1886, %v1888, %v1884
    %v1890 = vmul.f32 1.0, %v1889
    %v1891 = vrcp.pop %v1875
    %v1892 = vmul.f32 %v1875, %v1891
    %v1893 = vsub.f32 1.0, %v1892
    %v1894 = vmul.f32 %v1891, %v1893
    %v1895 = vadd.f32 %v1891, %v1894
    %vm1896 = vweird.f32 %v1875
    %vm1897 = vweird.f32 %v1891
    %vm1898 = vmor %vm1896, %vm1897
    %v1899 = vsel %vm1898, %v1891, %v1895
    %v1900 = vand.u32 2147483647, %v1875
    %vm1901 = vcmp.eq.f32.partialorder %v1900, 8.507059e+37
    %v1902 = vand.u32 %v1875, 2147483648
    %v1903 = vor.u32 1.1754944e-38, %v1902
    %v1904 = vsel %vm1901, %v1903, %v1899
    %v1905 = vmul.f32 1.0, %v1904
    %v1906 = vtanh.pop %v1826
    %v1907 = vtanh.pop %v1827
    %v1908 = vxor.u32 %v1828, 2147483648
    %v1909 = vxor.u32 %v1829, 2147483648
    %v1910 = vmul.f32 %v1908, 1.442695
    %v1911 = vpow.pop %v1910
    %v1912 = vmul.f32 %v1909, 1.442695
    %v1913 = vpow.pop %v1912
    %v1914 = vadd.f32 %v1911, 1.0
    %v1915 = vadd.f32 %v1913, 1.0
    %v1916 = vrcp.pop %v1914
    %v1917 = vmul.f32 %v1914, %v1916
    %v1918 = vsub.f32 1.0, %v1917
    %v1919 = vmul.f32 %v1916, %v1918
    %v1920 = vadd.f32 %v1916, %v1919
    %vm1921 = vweird.f32 %v1914
    %vm1922 = vweird.f32 %v1916
    %vm1923 = vmor %vm1921, %vm1922
    %v1924 = vsel %vm1923, %v1916, %v1920
    %v1925 = vand.u32 2147483647, %v1914
    %vm1926 = vcmp.eq.f32.partialorder %v1925, 8.507059e+37
    %v1927 = vand.u32 %v1914, 2147483648
    %v1928 = vor.u32 1.1754944e-38, %v1927
    %v1929 = vsel %vm1926, %v1928, %v1924
    %v1930 = vmul.f32 1.0, %v1929
    %v1931 = vrcp.pop %v1915
    %v1932 = vmul.f32 %v1915, %v1931
    %v1933 = vsub.f32 1.0, %v1932
    %v1934 = vmul.f32 %v1931, %v1933
    %v1935 = vadd.f32 %v1931, %v1934
    %vm1936 = vweird.f32 %v1915
    %vm1937 = vweird.f32 %v1931
    %vm1938 = vmor %vm1936, %vm1937
    %v1939 = vsel %vm1938, %v1931, %v1935
    %v1940 = vand.u32 2147483647, %v1915
    %vm1941 = vcmp.eq.f32.partialorder %v1940, 8.507059e+37
    %v1942 = vand.u32 %v1915, 2147483648
    %v1943 = vor.u32 1.1754944e-38, %v1942
    %v1944 = vsel %vm1941, %v1943, %v1939
    %v1945 = vmul.f32 1.0, %v1944
    %v1946 = vmul.f32 %v1890, %v955
    %v1947 = vmul.f32 %v1905, %v956
    %v1948 = vmul.f32 %v1852, %v1906
    %v1949 = vmul.f32 %v1867, %v1907
    %v1950 = vadd.f32 %v1946, %v1948
    %v1951 = vadd.f32 %v1947, %v1949
    %v1952 = vtanh.pop %v1950
    %v1953 = vtanh.pop %v1951
    %v1954 = vmul.f32 %v1930, %v1952
    %v1955 = vmul.f32 %v1945, %v1953
    %v1956 = vpack.c.bf16 %v1954, %v1954
    %v1957 = vpack.c.bf16 %v1955, %v1955
    %v1958 = vpack.c.bf16 %v957, %v957
    %v1959 = vpack.c.bf16 %v958, %v958
    %v1961 = vperm.slane %v952, 0
    %v1962 = vperm.slane %v952, 1
    %v1963 = vperm.slane %v952, 2
    %v1964 = vperm.slane %v952, 3
    %v1965 = vperm.slane %v952, 4
    %v1966 = vperm.slane %v952, 5
    %v1967 = vperm.slane %v952, 6
    %v1968 = vperm.slane %v952, 7
    %v2233 = vunpack.c.l.b16 %v696
    %v2234 = vunpack.c.h.b16 %v696
    %v2235 = vunpack.c.l.b16 %v697
    %v2236 = vunpack.c.h.b16 %v697
    %v2237 = vunpack.c.l.b16 %v698
    %v2238 = vunpack.c.h.b16 %v698
    %v2239 = vunpack.c.l.b16 %v699
    %v2240 = vunpack.c.h.b16 %v699
    %v2241 = vunpack.c.l.b16 %v700
    %v2242 = vunpack.c.h.b16 %v700
    %v2243 = vunpack.c.l.b16 %v701
    %v2244 = vunpack.c.h.b16 %v701
    %v2245 = vunpack.c.l.b16 %v702
    %v2246 = vunpack.c.h.b16 %v702
    %v2247 = vunpack.c.l.b16 %v703
    %v2248 = vunpack.c.h.b16 %v703
    %v2249 = vunpack.c.l.b16 %v704
    %v2250 = vunpack.c.h.b16 %v704
    %v2251 = vunpack.c.l.b16 %v705
    %v2252 = vunpack.c.h.b16 %v705
    %v2253 = vunpack.c.l.b16 %v706
    %v2254 = vunpack.c.h.b16 %v706
    %v2255 = vunpack.c.l.b16 %v707
    %v2256 = vunpack.c.h.b16 %v707
    %v2257 = vunpack.c.l.b16 %v708
    %v2258 = vunpack.c.h.b16 %v708
    %v2259 = vunpack.c.l.b16 %v709
    %v2260 = vunpack.c.h.b16 %v709
    %v2261 = vunpack.c.l.b16 %v710
    %v2262 = vunpack.c.h.b16 %v710
    %v2263 = vunpack.c.l.b16 %v711
    %v2264 = vunpack.c.h.b16 %v711
    %v2265 = vunpack.c.l.b16 %v712
    %v2266 = vunpack.c.h.b16 %v712
    %v2267 = vunpack.c.l.b16 %v713
    %v2268 = vunpack.c.h.b16 %v713
    %v2269 = vunpack.c.l.b16 %v714
    %v2270 = vunpack.c.h.b16 %v714
    %v2271 = vunpack.c.l.b16 %v715
    %v2272 = vunpack.c.h.b16 %v715
    %v2273 = vunpack.c.l.b16 %v716
    %v2274 = vunpack.c.h.b16 %v716
    %v2275 = vunpack.c.l.b16 %v717
    %v2276 = vunpack.c.h.b16 %v717
    %v2277 = vunpack.c.l.b16 %v718
    %v2278 = vunpack.c.h.b16 %v718
    %v2279 = vunpack.c.l.b16 %v719
    %v2280 = vunpack.c.h.b16 %v719
    %v2281 = vunpack.c.l.b16 %v720
    %v2282 = vunpack.c.h.b16 %v720
    %v2283 = vunpack.c.l.b16 %v721
    %v2284 = vunpack.c.h.b16 %v721
    %v2285 = vunpack.c.l.b16 %v722
    %v2286 = vunpack.c.h.b16 %v722
    %v2287 = vunpack.c.l.b16 %v723
    %v2288 = vunpack.c.h.b16 %v723
    %v2289 = vunpack.c.l.b16 %v724
    %v2290 = vunpack.c.h.b16 %v724
    %v2291 = vunpack.c.l.b16 %v725
    %v2292 = vunpack.c.h.b16 %v725
    %v2293 = vunpack.c.l.b16 %v726
    %v2294 = vunpack.c.h.b16 %v726
    %v2295 = vunpack.c.l.b16 %v727
    %v2296 = vunpack.c.h.b16 %v727
    %v2297 = vunpack.c.l.b16 %v728
    %v2298 = vunpack.c.h.b16 %v728
    %v2299 = vunpack.c.l.b16 %v729
    %v2300 = vunpack.c.h.b16 %v729
    %v2301 = vunpack.c.l.b16 %v730
    %v2302 = vunpack.c.h.b16 %v730
    %v2303 = vunpack.c.l.b16 %v731
    %v2304 = vunpack.c.h.b16 %v731
    %v2305 = vunpack.c.l.b16 %v732
    %v2306 = vunpack.c.h.b16 %v732
    %v2307 = vunpack.c.l.b16 %v733
    %v2308 = vunpack.c.h.b16 %v733
    %v2309 = vunpack.c.l.b16 %v734
    %v2310 = vunpack.c.h.b16 %v734
    %v2311 = vunpack.c.l.b16 %v735
    %v2312 = vunpack.c.h.b16 %v735
    %v2313 = vunpack.c.l.b16 %v736
    %v2314 = vunpack.c.h.b16 %v736
    %v2315 = vunpack.c.l.b16 %v737
    %v2316 = vunpack.c.h.b16 %v737
    %v2317 = vunpack.c.l.b16 %v738
    %v2318 = vunpack.c.h.b16 %v738
    %v2319 = vunpack.c.l.b16 %v739
    %v2320 = vunpack.c.h.b16 %v739
    %v2321 = vunpack.c.l.b16 %v740
    %v2322 = vunpack.c.h.b16 %v740
    %v2323 = vunpack.c.l.b16 %v741
    %v2324 = vunpack.c.h.b16 %v741
    %v2325 = vunpack.c.l.b16 %v742
    %v2326 = vunpack.c.h.b16 %v742
    %v2327 = vunpack.c.l.b16 %v743
    %v2328 = vunpack.c.h.b16 %v743
    %v2329 = vunpack.c.l.b16 %v744
    %v2330 = vunpack.c.h.b16 %v744
    %v2331 = vunpack.c.l.b16 %v745
    %v2332 = vunpack.c.h.b16 %v745
    %v2333 = vunpack.c.l.b16 %v746
    %v2334 = vunpack.c.h.b16 %v746
    %v2335 = vunpack.c.l.b16 %v747
    %v2336 = vunpack.c.h.b16 %v747
    %v2337 = vunpack.c.l.b16 %v748
    %v2338 = vunpack.c.h.b16 %v748
    %v2339 = vunpack.c.l.b16 %v749
    %v2340 = vunpack.c.h.b16 %v749
    %v2341 = vunpack.c.l.b16 %v750
    %v2342 = vunpack.c.h.b16 %v750
    %v2343 = vunpack.c.l.b16 %v751
    %v2344 = vunpack.c.h.b16 %v751
    %v2345 = vunpack.c.l.b16 %v752
    %v2346 = vunpack.c.h.b16 %v752
    %v2347 = vunpack.c.l.b16 %v753
    %v2348 = vunpack.c.h.b16 %v753
    %v2349 = vunpack.c.l.b16 %v754
    %v2350 = vunpack.c.h.b16 %v754
    %v2351 = vunpack.c.l.b16 %v755
    %v2352 = vunpack.c.h.b16 %v755
    %v2353 = vunpack.c.l.b16 %v756
    %v2354 = vunpack.c.h.b16 %v756
    %v2355 = vunpack.c.l.b16 %v757
    %v2356 = vunpack.c.h.b16 %v757
    %v2357 = vunpack.c.l.b16 %v758
    %v2358 = vunpack.c.h.b16 %v758
    %v2359 = vunpack.c.l.b16 %v759
    %v2360 = vunpack.c.h.b16 %v759
    %v2361 = vunpack.c.l.b16 %v760
    %v2362 = vunpack.c.h.b16 %v760
    %v2363 = vunpack.c.l.b16 %v761
    %v2364 = vunpack.c.h.b16 %v761
    %v2365 = vunpack.c.l.b16 %v762
    %v2366 = vunpack.c.h.b16 %v762
    %v2367 = vunpack.c.l.b16 %v763
    %v2368 = vunpack.c.h.b16 %v763
    %v2369 = vunpack.c.l.b16 %v764
    %v2370 = vunpack.c.h.b16 %v764
    %v2371 = vunpack.c.l.b16 %v765
    %v2372 = vunpack.c.h.b16 %v765
    %v2373 = vunpack.c.l.b16 %v766
    %v2374 = vunpack.c.h.b16 %v766
    %v2375 = vunpack.c.l.b16 %v767
    %v2376 = vunpack.c.h.b16 %v767
    %v2377 = vunpack.c.l.b16 %v768
    %v2378 = vunpack.c.h.b16 %v768
    %v2379 = vunpack.c.l.b16 %v769
    %v2380 = vunpack.c.h.b16 %v769
    %v2381 = vunpack.c.l.b16 %v770
    %v2382 = vunpack.c.h.b16 %v770
    %v2383 = vunpack.c.l.b16 %v771
    %v2384 = vunpack.c.h.b16 %v771
    %v2385 = vunpack.c.l.b16 %v772
    %v2386 = vunpack.c.h.b16 %v772
    %v2387 = vunpack.c.l.b16 %v773
    %v2388 = vunpack.c.h.b16 %v773
    %v2389 = vunpack.c.l.b16 %v774
    %v2390 = vunpack.c.h.b16 %v774
    %v2391 = vunpack.c.l.b16 %v775
    %v2392 = vunpack.c.h.b16 %v775
    %v2393 = vunpack.c.l.b16 %v776
    %v2394 = vunpack.c.h.b16 %v776
    %v2395 = vunpack.c.l.b16 %v777
    %v2396 = vunpack.c.h.b16 %v777
    %v2397 = vunpack.c.l.b16 %v778
    %v2398 = vunpack.c.h.b16 %v778
    %v2399 = vunpack.c.l.b16 %v779
    %v2400 = vunpack.c.h.b16 %v779
    %v2401 = vunpack.c.l.b16 %v780
    %v2402 = vunpack.c.h.b16 %v780
    %v2403 = vunpack.c.l.b16 %v781
    %v2404 = vunpack.c.h.b16 %v781
    %v2405 = vunpack.c.l.b16 %v782
    %v2406 = vunpack.c.h.b16 %v782
    %v2407 = vunpack.c.l.b16 %v783
    %v2408 = vunpack.c.h.b16 %v783
    %v2409 = vunpack.c.l.b16 %v784
    %v2410 = vunpack.c.h.b16 %v784
    %v2411 = vunpack.c.l.b16 %v785
    %v2412 = vunpack.c.h.b16 %v785
    %v2413 = vunpack.c.l.b16 %v786
    %v2414 = vunpack.c.h.b16 %v786
    %v2415 = vunpack.c.l.b16 %v787
    %v2416 = vunpack.c.h.b16 %v787
    %v2417 = vunpack.c.l.b16 %v788
    %v2418 = vunpack.c.h.b16 %v788
    %v2419 = vunpack.c.l.b16 %v789
    %v2420 = vunpack.c.h.b16 %v789
    %v2421 = vunpack.c.l.b16 %v790
    %v2422 = vunpack.c.h.b16 %v790
    %v2423 = vunpack.c.l.b16 %v791
    %v2424 = vunpack.c.h.b16 %v791
    %v2425 = vunpack.c.l.b16 %v792
    %v2426 = vunpack.c.h.b16 %v792
    %v2427 = vunpack.c.l.b16 %v793
    %v2428 = vunpack.c.h.b16 %v793
    %v2429 = vunpack.c.l.b16 %v794
    %v2430 = vunpack.c.h.b16 %v794
    %v2431 = vunpack.c.l.b16 %v795
    %v2432 = vunpack.c.h.b16 %v795
    %v2433 = vunpack.c.l.b16 %v796
    %v2434 = vunpack.c.h.b16 %v796
    %v2435 = vunpack.c.l.b16 %v797
    %v2436 = vunpack.c.h.b16 %v797
    %v2437 = vunpack.c.l.b16 %v798
    %v2438 = vunpack.c.h.b16 %v798
    %v2439 = vunpack.c.l.b16 %v799
    %v2440 = vunpack.c.h.b16 %v799
    %v2441 = vunpack.c.l.b16 %v800
    %v2442 = vunpack.c.h.b16 %v800
    %v2443 = vunpack.c.l.b16 %v801
    %v2444 = vunpack.c.h.b16 %v801
    %v2445 = vunpack.c.l.b16 %v802
    %v2446 = vunpack.c.h.b16 %v802
    %v2447 = vunpack.c.l.b16 %v803
    %v2448 = vunpack.c.h.b16 %v803
    %v2449 = vunpack.c.l.b16 %v804
    %v2450 = vunpack.c.h.b16 %v804
    %v2451 = vunpack.c.l.b16 %v805
    %v2452 = vunpack.c.h.b16 %v805
    %v2453 = vunpack.c.l.b16 %v806
    %v2454 = vunpack.c.h.b16 %v806
    %v2455 = vunpack.c.l.b16 %v807
    %v2456 = vunpack.c.h.b16 %v807
    %v2457 = vunpack.c.l.b16 %v808
    %v2458 = vunpack.c.h.b16 %v808
    %v2459 = vunpack.c.l.b16 %v809
    %v2460 = vunpack.c.h.b16 %v809
    %v2461 = vunpack.c.l.b16 %v810
    %v2462 = vunpack.c.h.b16 %v810
    %v2463 = vunpack.c.l.b16 %v811
    %v2464 = vunpack.c.h.b16 %v811
    %v2465 = vunpack.c.l.b16 %v812
    %v2466 = vunpack.c.h.b16 %v812
    %v2467 = vunpack.c.l.b16 %v813
    %v2468 = vunpack.c.h.b16 %v813
    %v2469 = vunpack.c.l.b16 %v814
    %v2470 = vunpack.c.h.b16 %v814
    %v2471 = vunpack.c.l.b16 %v815
    %v2472 = vunpack.c.h.b16 %v815
    %v2473 = vunpack.c.l.b16 %v816
    %v2474 = vunpack.c.h.b16 %v816
    %v2475 = vunpack.c.l.b16 %v817
    %v2476 = vunpack.c.h.b16 %v817
    %v2477 = vunpack.c.l.b16 %v818
    %v2478 = vunpack.c.h.b16 %v818
    %v2479 = vunpack.c.l.b16 %v819
    %v2480 = vunpack.c.h.b16 %v819
    %v2481 = vunpack.c.l.b16 %v820
    %v2482 = vunpack.c.h.b16 %v820
    %v2483 = vunpack.c.l.b16 %v821
    %v2484 = vunpack.c.h.b16 %v821
    %v2485 = vunpack.c.l.b16 %v822
    %v2486 = vunpack.c.h.b16 %v822
    %v2487 = vunpack.c.l.b16 %v823
    %v2488 = vunpack.c.h.b16 %v823
    %v2489 = vunpack.c.l.b16 %v824
    %v2490 = vunpack.c.h.b16 %v824
    %v2491 = vunpack.c.l.b16 %v825
    %v2492 = vunpack.c.h.b16 %v825
    %v2493 = vunpack.c.l.b16 %v826
    %v2494 = vunpack.c.h.b16 %v826
    %v2495 = vunpack.c.l.b16 %v827
    %v2496 = vunpack.c.h.b16 %v827
    %v2497 = vunpack.c.l.b16 %v828
    %v2498 = vunpack.c.h.b16 %v828
    %v2499 = vunpack.c.l.b16 %v829
    %v2500 = vunpack.c.h.b16 %v829
    %v2501 = vunpack.c.l.b16 %v830
    %v2502 = vunpack.c.h.b16 %v830
    %v2503 = vunpack.c.l.b16 %v831
    %v2504 = vunpack.c.h.b16 %v831
    %v2505 = vunpack.c.l.b16 %v832
    %v2506 = vunpack.c.h.b16 %v832
    %v2507 = vunpack.c.l.b16 %v833
    %v2508 = vunpack.c.h.b16 %v833
    %v2509 = vunpack.c.l.b16 %v834
    %v2510 = vunpack.c.h.b16 %v834
    %v2511 = vunpack.c.l.b16 %v835
    %v2512 = vunpack.c.h.b16 %v835
    %v2513 = vunpack.c.l.b16 %v836
    %v2514 = vunpack.c.h.b16 %v836
    %v2515 = vunpack.c.l.b16 %v837
    %v2516 = vunpack.c.h.b16 %v837
    %v2517 = vunpack.c.l.b16 %v838
    %v2518 = vunpack.c.h.b16 %v838
    %v2519 = vunpack.c.l.b16 %v839
    %v2520 = vunpack.c.h.b16 %v839
    %v2521 = vunpack.c.l.b16 %v840
    %v2522 = vunpack.c.h.b16 %v840
    %v2523 = vunpack.c.l.b16 %v841
    %v2524 = vunpack.c.h.b16 %v841
    %v2525 = vunpack.c.l.b16 %v842
    %v2526 = vunpack.c.h.b16 %v842
    %v2527 = vunpack.c.l.b16 %v843
    %v2528 = vunpack.c.h.b16 %v843
    %v2529 = vunpack.c.l.b16 %v844
    %v2530 = vunpack.c.h.b16 %v844
    %v2531 = vunpack.c.l.b16 %v845
    %v2532 = vunpack.c.h.b16 %v845
    %v2533 = vunpack.c.l.b16 %v846
    %v2534 = vunpack.c.h.b16 %v846
    %v2535 = vunpack.c.l.b16 %v847
    %v2536 = vunpack.c.h.b16 %v847
    %v2537 = vunpack.c.l.b16 %v848
    %v2538 = vunpack.c.h.b16 %v848
    %v2539 = vunpack.c.l.b16 %v849
    %v2540 = vunpack.c.h.b16 %v849
    %v2541 = vunpack.c.l.b16 %v850
    %v2542 = vunpack.c.h.b16 %v850
    %v2543 = vunpack.c.l.b16 %v851
    %v2544 = vunpack.c.h.b16 %v851
    %v2545 = vunpack.c.l.b16 %v852
    %v2546 = vunpack.c.h.b16 %v852
    %v2547 = vunpack.c.l.b16 %v853
    %v2548 = vunpack.c.h.b16 %v853
    %v2549 = vunpack.c.l.b16 %v854
    %v2550 = vunpack.c.h.b16 %v854
    %v2551 = vunpack.c.l.b16 %v855
    %v2552 = vunpack.c.h.b16 %v855
    %v2553 = vunpack.c.l.b16 %v856
    %v2554 = vunpack.c.h.b16 %v856
    %v2555 = vunpack.c.l.b16 %v857
    %v2556 = vunpack.c.h.b16 %v857
    %v2557 = vunpack.c.l.b16 %v858
    %v2558 = vunpack.c.h.b16 %v858
    %v2559 = vunpack.c.l.b16 %v859
    %v2560 = vunpack.c.h.b16 %v859
    %v2561 = vunpack.c.l.b16 %v860
    %v2562 = vunpack.c.h.b16 %v860
    %v2563 = vunpack.c.l.b16 %v861
    %v2564 = vunpack.c.h.b16 %v861
    %v2565 = vunpack.c.l.b16 %v862
    %v2566 = vunpack.c.h.b16 %v862
    %v2567 = vunpack.c.l.b16 %v863
    %v2568 = vunpack.c.h.b16 %v863
    %v2569 = vunpack.c.l.b16 %v864
    %v2570 = vunpack.c.h.b16 %v864
    %v2571 = vunpack.c.l.b16 %v865
    %v2572 = vunpack.c.h.b16 %v865
    %v2573 = vunpack.c.l.b16 %v866
    %v2574 = vunpack.c.h.b16 %v866
    %v2575 = vunpack.c.l.b16 %v867
    %v2576 = vunpack.c.h.b16 %v867
    %v2577 = vunpack.c.l.b16 %v868
    %v2578 = vunpack.c.h.b16 %v868
    %v2579 = vunpack.c.l.b16 %v869
    %v2580 = vunpack.c.h.b16 %v869
    %v2581 = vunpack.c.l.b16 %v870
    %v2582 = vunpack.c.h.b16 %v870
    %v2583 = vunpack.c.l.b16 %v871
    %v2584 = vunpack.c.h.b16 %v871
    %v2585 = vunpack.c.l.b16 %v872
    %v2586 = vunpack.c.h.b16 %v872
    %v2587 = vunpack.c.l.b16 %v873
    %v2588 = vunpack.c.h.b16 %v873
    %v2589 = vunpack.c.l.b16 %v874
    %v2590 = vunpack.c.h.b16 %v874
    %v2591 = vunpack.c.l.b16 %v875
    %v2592 = vunpack.c.h.b16 %v875
    %v2593 = vunpack.c.l.b16 %v876
    %v2594 = vunpack.c.h.b16 %v876
    %v2595 = vunpack.c.l.b16 %v877
    %v2596 = vunpack.c.h.b16 %v877
    %v2597 = vunpack.c.l.b16 %v878
    %v2598 = vunpack.c.h.b16 %v878
    %v2599 = vunpack.c.l.b16 %v879
    %v2600 = vunpack.c.h.b16 %v879
    %v2601 = vunpack.c.l.b16 %v880
    %v2602 = vunpack.c.h.b16 %v880
    %v2603 = vunpack.c.l.b16 %v881
    %v2604 = vunpack.c.h.b16 %v881
    %v2605 = vunpack.c.l.b16 %v882
    %v2606 = vunpack.c.h.b16 %v882
    %v2607 = vunpack.c.l.b16 %v883
    %v2608 = vunpack.c.h.b16 %v883
    %v2609 = vunpack.c.l.b16 %v884
    %v2610 = vunpack.c.h.b16 %v884
    %v2611 = vunpack.c.l.b16 %v885
    %v2612 = vunpack.c.h.b16 %v885
    %v2613 = vunpack.c.l.b16 %v886
    %v2614 = vunpack.c.h.b16 %v886
    %v2615 = vunpack.c.l.b16 %v887
    %v2616 = vunpack.c.h.b16 %v887
    %v2617 = vunpack.c.l.b16 %v888
    %v2618 = vunpack.c.h.b16 %v888
    %v2619 = vunpack.c.l.b16 %v889
    %v2620 = vunpack.c.h.b16 %v889
    %v2621 = vunpack.c.l.b16 %v890
    %v2622 = vunpack.c.h.b16 %v890
    %v2623 = vunpack.c.l.b16 %v891
    %v2624 = vunpack.c.h.b16 %v891
    %v2625 = vunpack.c.l.b16 %v892
    %v2626 = vunpack.c.h.b16 %v892
    %v2627 = vunpack.c.l.b16 %v893
    %v2628 = vunpack.c.h.b16 %v893
    %v2629 = vunpack.c.l.b16 %v894
    %v2630 = vunpack.c.h.b16 %v894
    %v2631 = vunpack.c.l.b16 %v895
    %v2632 = vunpack.c.h.b16 %v895
    %v2633 = vunpack.c.l.b16 %v896
    %v2634 = vunpack.c.h.b16 %v896
    %v2635 = vunpack.c.l.b16 %v897
    %v2636 = vunpack.c.h.b16 %v897
    %v2637 = vunpack.c.l.b16 %v898
    %v2638 = vunpack.c.h.b16 %v898
    %v2639 = vunpack.c.l.b16 %v899
    %v2640 = vunpack.c.h.b16 %v899
    %v2641 = vunpack.c.l.b16 %v900
    %v2642 = vunpack.c.h.b16 %v900
    %v2643 = vunpack.c.l.b16 %v901
    %v2644 = vunpack.c.h.b16 %v901
    %v2645 = vunpack.c.l.b16 %v902
    %v2646 = vunpack.c.h.b16 %v902
    %v2647 = vunpack.c.l.b16 %v903
    %v2648 = vunpack.c.h.b16 %v903
    %v2649 = vunpack.c.l.b16 %v904
    %v2650 = vunpack.c.h.b16 %v904
    %v2651 = vunpack.c.l.b16 %v905
    %v2652 = vunpack.c.h.b16 %v905
    %v2653 = vunpack.c.l.b16 %v906
    %v2654 = vunpack.c.h.b16 %v906
    %v2655 = vunpack.c.l.b16 %v907
    %v2656 = vunpack.c.h.b16 %v907
    %v2657 = vunpack.c.l.b16 %v908
    %v2658 = vunpack.c.h.b16 %v908
    %v2659 = vunpack.c.l.b16 %v909
    %v2660 = vunpack.c.h.b16 %v909
    %v2661 = vunpack.c.l.b16 %v910
    %v2662 = vunpack.c.h.b16 %v910
    %v2663 = vunpack.c.l.b16 %v911
    %v2664 = vunpack.c.h.b16 %v911
    %v2665 = vunpack.c.l.b16 %v912
    %v2666 = vunpack.c.h.b16 %v912
    %v2667 = vunpack.c.l.b16 %v913
    %v2668 = vunpack.c.h.b16 %v913
    %v2669 = vunpack.c.l.b16 %v914
    %v2670 = vunpack.c.h.b16 %v914
    %v2671 = vunpack.c.l.b16 %v915
    %v2672 = vunpack.c.h.b16 %v915
    %v2673 = vunpack.c.l.b16 %v916
    %v2674 = vunpack.c.h.b16 %v916
    %v2675 = vunpack.c.l.b16 %v917
    %v2676 = vunpack.c.h.b16 %v917
    %v2677 = vunpack.c.l.b16 %v918
    %v2678 = vunpack.c.h.b16 %v918
    %v2679 = vunpack.c.l.b16 %v919
    %v2680 = vunpack.c.h.b16 %v919
    %v2681 = vunpack.c.l.b16 %v920
    %v2682 = vunpack.c.h.b16 %v920
    %v2683 = vunpack.c.l.b16 %v921
    %v2684 = vunpack.c.h.b16 %v921
    %v2685 = vunpack.c.l.b16 %v922
    %v2686 = vunpack.c.h.b16 %v922
    %v2687 = vunpack.c.l.b16 %v923
    %v2688 = vunpack.c.h.b16 %v923
    %v2689 = vunpack.c.l.b16 %v924
    %v2690 = vunpack.c.h.b16 %v924
    %v2691 = vunpack.c.l.b16 %v925
    %v2692 = vunpack.c.h.b16 %v925
    %v2693 = vunpack.c.l.b16 %v926
    %v2694 = vunpack.c.h.b16 %v926
    %v2695 = vunpack.c.l.b16 %v927
    %v2696 = vunpack.c.h.b16 %v927
    %v2697 = vunpack.c.l.b16 %v928
    %v2698 = vunpack.c.h.b16 %v928
    %v2699 = vunpack.c.l.b16 %v929
    %v2700 = vunpack.c.h.b16 %v929
    %v2701 = vunpack.c.l.b16 %v930
    %v2702 = vunpack.c.h.b16 %v930
    %v2703 = vunpack.c.l.b16 %v931
    %v2704 = vunpack.c.h.b16 %v931
    %v2705 = vunpack.c.l.b16 %v932
    %v2706 = vunpack.c.h.b16 %v932
    %v2707 = vunpack.c.l.b16 %v933
    %v2708 = vunpack.c.h.b16 %v933
    %v2709 = vunpack.c.l.b16 %v934
    %v2710 = vunpack.c.h.b16 %v934
    %v2711 = vunpack.c.l.b16 %v935
    %v2712 = vunpack.c.h.b16 %v935
    %v2713 = vunpack.c.l.b16 %v936
    %v2714 = vunpack.c.h.b16 %v936
    %v2715 = vunpack.c.l.b16 %v937
    %v2716 = vunpack.c.h.b16 %v937
    %v2717 = vunpack.c.l.b16 %v938
    %v2718 = vunpack.c.h.b16 %v938
    %v2719 = vunpack.c.l.b16 %v939
    %v2720 = vunpack.c.h.b16 %v939
    %v2721 = vunpack.c.l.b16 %v940
    %v2722 = vunpack.c.h.b16 %v940
    %v2723 = vunpack.c.l.b16 %v941
    %v2724 = vunpack.c.h.b16 %v941
    %v2725 = vunpack.c.l.b16 %v942
    %v2726 = vunpack.c.h.b16 %v942
    %v2727 = vunpack.c.l.b16 %v943
    %v2728 = vunpack.c.h.b16 %v943
    %v2729 = vunpack.c.l.b16 %v944
    %v2730 = vunpack.c.h.b16 %v944
    %v2731 = vunpack.c.l.b16 %v945
    %v2732 = vunpack.c.h.b16 %v945
    %v2733 = vunpack.c.l.b16 %v946
    %v2734 = vunpack.c.h.b16 %v946
    %v2735 = vunpack.c.l.b16 %v947
    %v2736 = vunpack.c.h.b16 %v947
    %v2737 = vunpack.c.l.b16 %v948
    %v2738 = vunpack.c.h.b16 %v948
    %v2739 = vunpack.c.l.b16 %v949
    %v2740 = vunpack.c.h.b16 %v949
    %v2741 = vunpack.c.l.b16 %v950
    %v2742 = vunpack.c.h.b16 %v950
    %v2743 = vunpack.c.l.b16 %v951
    %v2744 = vunpack.c.h.b16 %v951
    %v2745 = vpack.c.b16 %v2241, %v2233
    %v2746 = vpack.c.b16 %v2242, %v2234
    %v2747 = vpack.c.b16 %v2243, %v2235
    %v2748 = vpack.c.b16 %v2244, %v2236
    %v2749 = vpack.c.b16 %v2245, %v2237
    %v2750 = vpack.c.b16 %v2246, %v2238
    %v2751 = vpack.c.b16 %v2247, %v2239
    %v2752 = vpack.c.b16 %v2248, %v2240
    %v2753 = vpack.c.b16 %v2257, %v2249
    %v2754 = vpack.c.b16 %v2258, %v2250
    %v2755 = vpack.c.b16 %v2259, %v2251
    %v2756 = vpack.c.b16 %v2260, %v2252
    %v2757 = vpack.c.b16 %v2261, %v2253
    %v2758 = vpack.c.b16 %v2262, %v2254
    %v2759 = vpack.c.b16 %v2263, %v2255
    %v2760 = vpack.c.b16 %v2264, %v2256
    %v2761 = vpack.c.b16 %v2273, %v2265
    %v2762 = vpack.c.b16 %v2274, %v2266
    %v2763 = vpack.c.b16 %v2275, %v2267
    %v2764 = vpack.c.b16 %v2276, %v2268
    %v2765 = vpack.c.b16 %v2277, %v2269
    %v2766 = vpack.c.b16 %v2278, %v2270
    %v2767 = vpack.c.b16 %v2279, %v2271
    %v2768 = vpack.c.b16 %v2280, %v2272
    %v2769 = vpack.c.b16 %v2289, %v2281
    %v2770 = vpack.c.b16 %v2290, %v2282
    %v2771 = vpack.c.b16 %v2291, %v2283
    %v2772 = vpack.c.b16 %v2292, %v2284
    %v2773 = vpack.c.b16 %v2293, %v2285
    %v2774 = vpack.c.b16 %v2294, %v2286
    %v2775 = vpack.c.b16 %v2295, %v2287
    %v2776 = vpack.c.b16 %v2296, %v2288
    %v2777 = vpack.c.b16 %v2305, %v2297
    %v2778 = vpack.c.b16 %v2306, %v2298
    %v2779 = vpack.c.b16 %v2307, %v2299
    %v2780 = vpack.c.b16 %v2308, %v2300
    %v2781 = vpack.c.b16 %v2309, %v2301
    %v2782 = vpack.c.b16 %v2310, %v2302
    %v2783 = vpack.c.b16 %v2311, %v2303
    %v2784 = vpack.c.b16 %v2312, %v2304
    %v2785 = vpack.c.b16 %v2321, %v2313
    %v2786 = vpack.c.b16 %v2322, %v2314
    %v2787 = vpack.c.b16 %v2323, %v2315
    %v2788 = vpack.c.b16 %v2324, %v2316
    %v2789 = vpack.c.b16 %v2325, %v2317
    %v2790 = vpack.c.b16 %v2326, %v2318
    %v2791 = vpack.c.b16 %v2327, %v2319
    %v2792 = vpack.c.b16 %v2328, %v2320
    %v2793 = vpack.c.b16 %v2337, %v2329
    %v2794 = vpack.c.b16 %v2338, %v2330
    %v2795 = vpack.c.b16 %v2339, %v2331
    %v2796 = vpack.c.b16 %v2340, %v2332
    %v2797 = vpack.c.b16 %v2341, %v2333
    %v2798 = vpack.c.b16 %v2342, %v2334
    %v2799 = vpack.c.b16 %v2343, %v2335
    %v2800 = vpack.c.b16 %v2344, %v2336
    %v2801 = vpack.c.b16 %v2353, %v2345
    %v2802 = vpack.c.b16 %v2354, %v2346
    %v2803 = vpack.c.b16 %v2355, %v2347
    %v2804 = vpack.c.b16 %v2356, %v2348
    %v2805 = vpack.c.b16 %v2357, %v2349
    %v2806 = vpack.c.b16 %v2358, %v2350
    %v2807 = vpack.c.b16 %v2359, %v2351
    %v2808 = vpack.c.b16 %v2360, %v2352
    %v2809 = vpack.c.b16 %v2369, %v2361
    %v2810 = vpack.c.b16 %v2370, %v2362
    %v2811 = vpack.c.b16 %v2371, %v2363
    %v2812 = vpack.c.b16 %v2372, %v2364
    %v2813 = vpack.c.b16 %v2373, %v2365
    %v2814 = vpack.c.b16 %v2374, %v2366
    %v2815 = vpack.c.b16 %v2375, %v2367
    %v2816 = vpack.c.b16 %v2376, %v2368
    %v2817 = vpack.c.b16 %v2385, %v2377
    %v2818 = vpack.c.b16 %v2386, %v2378
    %v2819 = vpack.c.b16 %v2387, %v2379
    %v2820 = vpack.c.b16 %v2388, %v2380
    %v2821 = vpack.c.b16 %v2389, %v2381
    %v2822 = vpack.c.b16 %v2390, %v2382
    %v2823 = vpack.c.b16 %v2391, %v2383
    %v2824 = vpack.c.b16 %v2392, %v2384
    %v2825 = vpack.c.b16 %v2401, %v2393
    %v2826 = vpack.c.b16 %v2402, %v2394
    %v2827 = vpack.c.b16 %v2403, %v2395
    %v2828 = vpack.c.b16 %v2404, %v2396
    %v2829 = vpack.c.b16 %v2405, %v2397
    %v2830 = vpack.c.b16 %v2406, %v2398
    %v2831 = vpack.c.b16 %v2407, %v2399
    %v2832 = vpack.c.b16 %v2408, %v2400
    %v2833 = vpack.c.b16 %v2417, %v2409
    %v2834 = vpack.c.b16 %v2418, %v2410
    %v2835 = vpack.c.b16 %v2419, %v2411
    %v2836 = vpack.c.b16 %v2420, %v2412
    %v2837 = vpack.c.b16 %v2421, %v2413
    %v2838 = vpack.c.b16 %v2422, %v2414
    %v2839 = vpack.c.b16 %v2423, %v2415
    %v2840 = vpack.c.b16 %v2424, %v2416
    %v2841 = vpack.c.b16 %v2433, %v2425
    %v2842 = vpack.c.b16 %v2434, %v2426
    %v2843 = vpack.c.b16 %v2435, %v2427
    %v2844 = vpack.c.b16 %v2436, %v2428
    %v2845 = vpack.c.b16 %v2437, %v2429
    %v2846 = vpack.c.b16 %v2438, %v2430
    %v2847 = vpack.c.b16 %v2439, %v2431
    %v2848 = vpack.c.b16 %v2440, %v2432
    %v2849 = vpack.c.b16 %v2449, %v2441
    %v2850 = vpack.c.b16 %v2450, %v2442
    %v2851 = vpack.c.b16 %v2451, %v2443
    %v2852 = vpack.c.b16 %v2452, %v2444
    %v2853 = vpack.c.b16 %v2453, %v2445
    %v2854 = vpack.c.b16 %v2454, %v2446
    %v2855 = vpack.c.b16 %v2455, %v2447
    %v2856 = vpack.c.b16 %v2456, %v2448
    %v2857 = vpack.c.b16 %v2465, %v2457
    %v2858 = vpack.c.b16 %v2466, %v2458
    %v2859 = vpack.c.b16 %v2467, %v2459
    %v2860 = vpack.c.b16 %v2468, %v2460
    %v2861 = vpack.c.b16 %v2469, %v2461
    %v2862 = vpack.c.b16 %v2470, %v2462
    %v2863 = vpack.c.b16 %v2471, %v2463
    %v2864 = vpack.c.b16 %v2472, %v2464
    %v2865 = vpack.c.b16 %v2481, %v2473
    %v2866 = vpack.c.b16 %v2482, %v2474
    %v2867 = vpack.c.b16 %v2483, %v2475
    %v2868 = vpack.c.b16 %v2484, %v2476
    %v2869 = vpack.c.b16 %v2485, %v2477
    %v2870 = vpack.c.b16 %v2486, %v2478
    %v2871 = vpack.c.b16 %v2487, %v2479
    %v2872 = vpack.c.b16 %v2488, %v2480
    %v2873 = vpack.c.b16 %v2497, %v2489
    %v2874 = vpack.c.b16 %v2498, %v2490
    %v2875 = vpack.c.b16 %v2499, %v2491
    %v2876 = vpack.c.b16 %v2500, %v2492
    %v2877 = vpack.c.b16 %v2501, %v2493
    %v2878 = vpack.c.b16 %v2502, %v2494
    %v2879 = vpack.c.b16 %v2503, %v2495
    %v2880 = vpack.c.b16 %v2504, %v2496
    %v2881 = vpack.c.b16 %v2513, %v2505
    %v2882 = vpack.c.b16 %v2514, %v2506
    %v2883 = vpack.c.b16 %v2515, %v2507
    %v2884 = vpack.c.b16 %v2516, %v2508
    %v2885 = vpack.c.b16 %v2517, %v2509
    %v2886 = vpack.c.b16 %v2518, %v2510
    %v2887 = vpack.c.b16 %v2519, %v2511
    %v2888 = vpack.c.b16 %v2520, %v2512
    %v2889 = vpack.c.b16 %v2529, %v2521
    %v2890 = vpack.c.b16 %v2530, %v2522
    %v2891 = vpack.c.b16 %v2531, %v2523
    %v2892 = vpack.c.b16 %v2532, %v2524
    %v2893 = vpack.c.b16 %v2533, %v2525
    %v2894 = vpack.c.b16 %v2534, %v2526
    %v2895 = vpack.c.b16 %v2535, %v2527
    %v2896 = vpack.c.b16 %v2536, %v2528
    %v2897 = vpack.c.b16 %v2545, %v2537
    %v2898 = vpack.c.b16 %v2546, %v2538
    %v2899 = vpack.c.b16 %v2547, %v2539
    %v2900 = vpack.c.b16 %v2548, %v2540
    %v2901 = vpack.c.b16 %v2549, %v2541
    %v2902 = vpack.c.b16 %v2550, %v2542
    %v2903 = vpack.c.b16 %v2551, %v2543
    %v2904 = vpack.c.b16 %v2552, %v2544
    %v2905 = vpack.c.b16 %v2561, %v2553
    %v2906 = vpack.c.b16 %v2562, %v2554
    %v2907 = vpack.c.b16 %v2563, %v2555
    %v2908 = vpack.c.b16 %v2564, %v2556
    %v2909 = vpack.c.b16 %v2565, %v2557
    %v2910 = vpack.c.b16 %v2566, %v2558
    %v2911 = vpack.c.b16 %v2567, %v2559
    %v2912 = vpack.c.b16 %v2568, %v2560
    %v2913 = vpack.c.b16 %v2577, %v2569
    %v2914 = vpack.c.b16 %v2578, %v2570
    %v2915 = vpack.c.b16 %v2579, %v2571
    %v2916 = vpack.c.b16 %v2580, %v2572
    %v2917 = vpack.c.b16 %v2581, %v2573
    %v2918 = vpack.c.b16 %v2582, %v2574
    %v2919 = vpack.c.b16 %v2583, %v2575
    %v2920 = vpack.c.b16 %v2584, %v2576
    %v2921 = vpack.c.b16 %v2593, %v2585
    %v2922 = vpack.c.b16 %v2594, %v2586
    %v2923 = vpack.c.b16 %v2595, %v2587
    %v2924 = vpack.c.b16 %v2596, %v2588
    %v2925 = vpack.c.b16 %v2597, %v2589
    %v2926 = vpack.c.b16 %v2598, %v2590
    %v2927 = vpack.c.b16 %v2599, %v2591
    %v2928 = vpack.c.b16 %v2600, %v2592
    %v2929 = vpack.c.b16 %v2609, %v2601
    %v2930 = vpack.c.b16 %v2610, %v2602
    %v2931 = vpack.c.b16 %v2611, %v2603
    %v2932 = vpack.c.b16 %v2612, %v2604
    %v2933 = vpack.c.b16 %v2613, %v2605
    %v2934 = vpack.c.b16 %v2614, %v2606
    %v2935 = vpack.c.b16 %v2615, %v2607
    %v2936 = vpack.c.b16 %v2616, %v2608
    %v2937 = vpack.c.b16 %v2625, %v2617
    %v2938 = vpack.c.b16 %v2626, %v2618
    %v2939 = vpack.c.b16 %v2627, %v2619
    %v2940 = vpack.c.b16 %v2628, %v2620
    %v2941 = vpack.c.b16 %v2629, %v2621
    %v2942 = vpack.c.b16 %v2630, %v2622
    %v2943 = vpack.c.b16 %v2631, %v2623
    %v2944 = vpack.c.b16 %v2632, %v2624
    %v2945 = vpack.c.b16 %v2641, %v2633
    %v2946 = vpack.c.b16 %v2642, %v2634
    %v2947 = vpack.c.b16 %v2643, %v2635
    %v2948 = vpack.c.b16 %v2644, %v2636
    %v2949 = vpack.c.b16 %v2645, %v2637
    %v2950 = vpack.c.b16 %v2646, %v2638
    %v2951 = vpack.c.b16 %v2647, %v2639
    %v2952 = vpack.c.b16 %v2648, %v2640
    %v2953 = vpack.c.b16 %v2657, %v2649
    %v2954 = vpack.c.b16 %v2658, %v2650
    %v2955 = vpack.c.b16 %v2659, %v2651
    %v2956 = vpack.c.b16 %v2660, %v2652
    %v2957 = vpack.c.b16 %v2661, %v2653
    %v2958 = vpack.c.b16 %v2662, %v2654
    %v2959 = vpack.c.b16 %v2663, %v2655
    %v2960 = vpack.c.b16 %v2664, %v2656
    %v2961 = vpack.c.b16 %v2673, %v2665
    %v2962 = vpack.c.b16 %v2674, %v2666
    %v2963 = vpack.c.b16 %v2675, %v2667
    %v2964 = vpack.c.b16 %v2676, %v2668
    %v2965 = vpack.c.b16 %v2677, %v2669
    %v2966 = vpack.c.b16 %v2678, %v2670
    %v2967 = vpack.c.b16 %v2679, %v2671
    %v2968 = vpack.c.b16 %v2680, %v2672
    %v2969 = vpack.c.b16 %v2689, %v2681
    %v2970 = vpack.c.b16 %v2690, %v2682
    %v2971 = vpack.c.b16 %v2691, %v2683
    %v2972 = vpack.c.b16 %v2692, %v2684
    %v2973 = vpack.c.b16 %v2693, %v2685
    %v2974 = vpack.c.b16 %v2694, %v2686
    %v2975 = vpack.c.b16 %v2695, %v2687
    %v2976 = vpack.c.b16 %v2696, %v2688
    %v2977 = vpack.c.b16 %v2705, %v2697
    %v2978 = vpack.c.b16 %v2706, %v2698
    %v2979 = vpack.c.b16 %v2707, %v2699
    %v2980 = vpack.c.b16 %v2708, %v2700
    %v2981 = vpack.c.b16 %v2709, %v2701
    %v2982 = vpack.c.b16 %v2710, %v2702
    %v2983 = vpack.c.b16 %v2711, %v2703
    %v2984 = vpack.c.b16 %v2712, %v2704
    %v2985 = vpack.c.b16 %v2721, %v2713
    %v2986 = vpack.c.b16 %v2722, %v2714
    %v2987 = vpack.c.b16 %v2723, %v2715
    %v2988 = vpack.c.b16 %v2724, %v2716
    %v2989 = vpack.c.b16 %v2725, %v2717
    %v2990 = vpack.c.b16 %v2726, %v2718
    %v2991 = vpack.c.b16 %v2727, %v2719
    %v2992 = vpack.c.b16 %v2728, %v2720
    %v2993 = vpack.c.b16 %v2737, %v2729
    %v2994 = vpack.c.b16 %v2738, %v2730
    %v2995 = vpack.c.b16 %v2739, %v2731
    %v2996 = vpack.c.b16 %v2740, %v2732
    %v2997 = vpack.c.b16 %v2741, %v2733
    %v2998 = vpack.c.b16 %v2742, %v2734
    %v2999 = vpack.c.b16 %v2743, %v2735
    %v3000 = vpack.c.b16 %v2744, %v2736
    %3257 = vmatpush.bf16.msra.mxu0 %v2801
    %3258 = vmatpush.bf16.msra.mxu0 %v2793
    %3259 = vmatpush.bf16.msra.mxu0 %v2785
    %3260 = vmatpush.bf16.msra.mxu0 %v2777
    %3261 = vmatpush.bf16.msra.mxu0 %v2769
    %3262 = vmatpush.bf16.msra.mxu0 %v2761
    %3263 = vmatpush.bf16.msra.mxu0 %v2753
    %3264 = vmatpush.bf16.msra.mxu0 %v2745
    %3265 = vmatmul.bf16.gmra.mxu0 %v1956
    %v3266 = vpop.f32.mrf.mxu0
    %v3267 = vadd.f32 %v1961, %v3266
    %v3268 = vpop.f32.mrf.mxu0
    %3269 = vdwg.mxu0
    %3270 = vmatpush.bf16.msra.mxu0 %v2865
    %3271 = vmatpush.bf16.msra.mxu0 %v2857
    %3272 = vmatpush.bf16.msra.mxu0 %v2849
    %3273 = vmatpush.bf16.msra.mxu0 %v2841
    %3274 = vmatpush.bf16.msra.mxu0 %v2833
    %3275 = vmatpush.bf16.msra.mxu0 %v2825
    %3276 = vmatpush.bf16.msra.mxu0 %v2817
    %3277 = vmatpush.bf16.msra.mxu0 %v2809
    %3278 = vmatmul.bf16.gmra.mxu0 %v1957
    %v3279 = vpop.f32.mrf.mxu0
    %v3280 = vadd.f32 %v3267, %v3279
    %v3281 = vpop.f32.mrf.mxu0
    %3282 = vdwg.mxu0
    %3283 = vmatpush.bf16.msra.mxu0 %v2929
    %3284 = vmatpush.bf16.msra.mxu0 %v2921
    %3285 = vmatpush.bf16.msra.mxu0 %v2913
    %3286 = vmatpush.bf16.msra.mxu0 %v2905
    %3287 = vmatpush.bf16.msra.mxu0 %v2897
    %3288 = vmatpush.bf16.msra.mxu0 %v2889
    %3289 = vmatpush.bf16.msra.mxu0 %v2881
    %3290 = vmatpush.bf16.msra.mxu0 %v2873
    %3291 = vmatmul.bf16.gmra.mxu0 %v1958
    %v3292 = vpop.f32.mrf.mxu0
    %v3293 = vadd.f32 %v3280, %v3292
    %v3294 = vpop.f32.mrf.mxu0
    %3295 = vdwg.mxu0
    %3296 = vmatpush.bf16.msra.mxu0 %v2993
    %3297 = vmatpush.bf16.msra.mxu0 %v2985
    %3298 = vmatpush.bf16.msra.mxu0 %v2977
    %3299 = vmatpush.bf16.msra.mxu0 %v2969
    %3300 = vmatpush.bf16.msra.mxu0 %v2961
    %3301 = vmatpush.bf16.msra.mxu0 %v2953
    %3302 = vmatpush.bf16.msra.mxu0 %v2945
    %3303 = vmatpush.bf16.msra.mxu0 %v2937
    %3304 = vmatmul.bf16.gmra.mxu0 %v1959
    %v3305 = vpop.f32.mrf.mxu0
    %v3306 = vadd.f32 %v3293, %v3305
    %v3307 = vpop.f32.mrf.mxu0
    %3308 = vdwg.mxu0
    %3309 = vmatpush.bf16.msra.mxu0 %v2802
    %3310 = vmatpush.bf16.msra.mxu0 %v2794
    %3311 = vmatpush.bf16.msra.mxu0 %v2786
    %3312 = vmatpush.bf16.msra.mxu0 %v2778
    %3313 = vmatpush.bf16.msra.mxu0 %v2770
    %3314 = vmatpush.bf16.msra.mxu0 %v2762
    %3315 = vmatpush.bf16.msra.mxu0 %v2754
    %3316 = vmatpush.bf16.msra.mxu0 %v2746
    %3317 = vmatmul.bf16.gmra.mxu0 %v1956
    %v3318 = vpop.f32.mrf.mxu0
    %v3319 = vadd.f32 %v1962, %v3318
    %v3320 = vpop.f32.mrf.mxu0
    %3321 = vdwg.mxu0
    %3322 = vmatpush.bf16.msra.mxu0 %v2866
    %3323 = vmatpush.bf16.msra.mxu0 %v2858
    %3324 = vmatpush.bf16.msra.mxu0 %v2850
    %3325 = vmatpush.bf16.msra.mxu0 %v2842
    %3326 = vmatpush.bf16.msra.mxu0 %v2834
    %3327 = vmatpush.bf16.msra.mxu0 %v2826
    %3328 = vmatpush.bf16.msra.mxu0 %v2818
    %3329 = vmatpush.bf16.msra.mxu0 %v2810
    %3330 = vmatmul.bf16.gmra.mxu0 %v1957
    %v3331 = vpop.f32.mrf.mxu0
    %v3332 = vadd.f32 %v3319, %v3331
    %v3333 = vpop.f32.mrf.mxu0
    %3334 = vdwg.mxu0
    %3335 = vmatpush.bf16.msra.mxu0 %v2930
    %3336 = vmatpush.bf16.msra.mxu0 %v2922
    %3337 = vmatpush.bf16.msra.mxu0 %v2914
    %3338 = vmatpush.bf16.msra.mxu0 %v2906
    %3339 = vmatpush.bf16.msra.mxu0 %v2898
    %3340 = vmatpush.bf16.msra.mxu0 %v2890
    %3341 = vmatpush.bf16.msra.mxu0 %v2882
    %3342 = vmatpush.bf16.msra.mxu0 %v2874
    %3343 = vmatmul.bf16.gmra.mxu0 %v1958
    %v3344 = vpop.f32.mrf.mxu0
    %v3345 = vadd.f32 %v3332, %v3344
    %v3346 = vpop.f32.mrf.mxu0
    %3347 = vdwg.mxu0
    %3348 = vmatpush.bf16.msra.mxu0 %v2994
    %3349 = vmatpush.bf16.msra.mxu0 %v2986
    %3350 = vmatpush.bf16.msra.mxu0 %v2978
    %3351 = vmatpush.bf16.msra.mxu0 %v2970
    %3352 = vmatpush.bf16.msra.mxu0 %v2962
    %3353 = vmatpush.bf16.msra.mxu0 %v2954
    %3354 = vmatpush.bf16.msra.mxu0 %v2946
    %3355 = vmatpush.bf16.msra.mxu0 %v2938
    %3356 = vmatmul.bf16.gmra.mxu0 %v1959
    %v3357 = vpop.f32.mrf.mxu0
    %v3358 = vadd.f32 %v3345, %v3357
    %v3359 = vpop.f32.mrf.mxu0
    %3360 = vdwg.mxu0
    %3361 = vmatpush.bf16.msra.mxu0 %v2803
    %3362 = vmatpush.bf16.msra.mxu0 %v2795
    %3363 = vmatpush.bf16.msra.mxu0 %v2787
    %3364 = vmatpush.bf16.msra.mxu0 %v2779
    %3365 = vmatpush.bf16.msra.mxu0 %v2771
    %3366 = vmatpush.bf16.msra.mxu0 %v2763
    %3367 = vmatpush.bf16.msra.mxu0 %v2755
    %3368 = vmatpush.bf16.msra.mxu0 %v2747
    %3369 = vmatmul.bf16.gmra.mxu0 %v1956
    %v3370 = vpop.f32.mrf.mxu0
    %v3371 = vadd.f32 %v1963, %v3370
    %v3372 = vpop.f32.mrf.mxu0
    %3373 = vdwg.mxu0
    %3374 = vmatpush.bf16.msra.mxu0 %v2867
    %3375 = vmatpush.bf16.msra.mxu0 %v2859
    %3376 = vmatpush.bf16.msra.mxu0 %v2851
    %3377 = vmatpush.bf16.msra.mxu0 %v2843
    %3378 = vmatpush.bf16.msra.mxu0 %v2835
    %3379 = vmatpush.bf16.msra.mxu0 %v2827
    %3380 = vmatpush.bf16.msra.mxu0 %v2819
    %3381 = vmatpush.bf16.msra.mxu0 %v2811
    %3382 = vmatmul.bf16.gmra.mxu0 %v1957
    %v3383 = vpop.f32.mrf.mxu0
    %v3384 = vadd.f32 %v3371, %v3383
    %v3385 = vpop.f32.mrf.mxu0
    %3386 = vdwg.mxu0
    %3387 = vmatpush.bf16.msra.mxu0 %v2931
    %3388 = vmatpush.bf16.msra.mxu0 %v2923
    %3389 = vmatpush.bf16.msra.mxu0 %v2915
    %3390 = vmatpush.bf16.msra.mxu0 %v2907
    %3391 = vmatpush.bf16.msra.mxu0 %v2899
    %3392 = vmatpush.bf16.msra.mxu0 %v2891
    %3393 = vmatpush.bf16.msra.mxu0 %v2883
    %3394 = vmatpush.bf16.msra.mxu0 %v2875
    %3395 = vmatmul.bf16.gmra.mxu0 %v1958
    %v3396 = vpop.f32.mrf.mxu0
    %v3397 = vadd.f32 %v3384, %v3396
    %v3398 = vpop.f32.mrf.mxu0
    %3399 = vdwg.mxu0
    %3400 = vmatpush.bf16.msra.mxu0 %v2995
    %3401 = vmatpush.bf16.msra.mxu0 %v2987
    %3402 = vmatpush.bf16.msra.mxu0 %v2979
    %3403 = vmatpush.bf16.msra.mxu0 %v2971
    %3404 = vmatpush.bf16.msra.mxu0 %v2963
    %3405 = vmatpush.bf16.msra.mxu0 %v2955
    %3406 = vmatpush.bf16.msra.mxu0 %v2947
    %3407 = vmatpush.bf16.msra.mxu0 %v2939
    %3408 = vmatmul.bf16.gmra.mxu0 %v1959
    %v3409 = vpop.f32.mrf.mxu0
    %v3410 = vadd.f32 %v3397, %v3409
    %v3411 = vpop.f32.mrf.mxu0
    %3412 = vdwg.mxu0
    %3413 = vmatpush.bf16.msra.mxu0 %v2804
    %3414 = vmatpush.bf16.msra.mxu0 %v2796
    %3415 = vmatpush.bf16.msra.mxu0 %v2788
    %3416 = vmatpush.bf16.msra.mxu0 %v2780
    %3417 = vmatpush.bf16.msra.mxu0 %v2772
    %3418 = vmatpush.bf16.msra.mxu0 %v2764
    %3419 = vmatpush.bf16.msra.mxu0 %v2756
    %3420 = vmatpush.bf16.msra.mxu0 %v2748
    %3421 = vmatmul.bf16.gmra.mxu0 %v1956
    %v3422 = vpop.f32.mrf.mxu0
    %v3423 = vadd.f32 %v1964, %v3422
    %v3424 = vpop.f32.mrf.mxu0
    %3425 = vdwg.mxu0
    %3426 = vmatpush.bf16.msra.mxu0 %v2868
    %3427 = vmatpush.bf16.msra.mxu0 %v2860
    %3428 = vmatpush.bf16.msra.mxu0 %v2852
    %3429 = vmatpush.bf16.msra.mxu0 %v2844
    %3430 = vmatpush.bf16.msra.mxu0 %v2836
    %3431 = vmatpush.bf16.msra.mxu0 %v2828
    %3432 = vmatpush.bf16.msra.mxu0 %v2820
    %3433 = vmatpush.bf16.msra.mxu0 %v2812
    %3434 = vmatmul.bf16.gmra.mxu0 %v1957
    %v3435 = vpop.f32.mrf.mxu0
    %v3436 = vadd.f32 %v3423, %v3435
    %v3437 = vpop.f32.mrf.mxu0
    %3438 = vdwg.mxu0
    %3439 = vmatpush.bf16.msra.mxu0 %v2932
    %3440 = vmatpush.bf16.msra.mxu0 %v2924
    %3441 = vmatpush.bf16.msra.mxu0 %v2916
    %3442 = vmatpush.bf16.msra.mxu0 %v2908
    %3443 = vmatpush.bf16.msra.mxu0 %v2900
    %3444 = vmatpush.bf16.msra.mxu0 %v2892
    %3445 = vmatpush.bf16.msra.mxu0 %v2884
    %3446 = vmatpush.bf16.msra.mxu0 %v2876
    %3447 = vmatmul.bf16.gmra.mxu0 %v1958
    %v3448 = vpop.f32.mrf.mxu0
    %v3449 = vadd.f32 %v3436, %v3448
    %v3450 = vpop.f32.mrf.mxu0
    %3451 = vdwg.mxu0
    %3452 = vmatpush.bf16.msra.mxu0 %v2996
    %3453 = vmatpush.bf16.msra.mxu0 %v2988
    %3454 = vmatpush.bf16.msra.mxu0 %v2980
    %3455 = vmatpush.bf16.msra.mxu0 %v2972
    %3456 = vmatpush.bf16.msra.mxu0 %v2964
    %3457 = vmatpush.bf16.msra.mxu0 %v2956
    %3458 = vmatpush.bf16.msra.mxu0 %v2948
    %3459 = vmatpush.bf16.msra.mxu0 %v2940
    %3460 = vmatmul.bf16.gmra.mxu0 %v1959
    %v3461 = vpop.f32.mrf.mxu0
    %v3462 = vadd.f32 %v3449, %v3461
    %v3463 = vpop.f32.mrf.mxu0
    %3464 = vdwg.mxu0
    %3465 = vmatpush.bf16.msra.mxu0 %v2805
    %3466 = vmatpush.bf16.msra.mxu0 %v2797
    %3467 = vmatpush.bf16.msra.mxu0 %v2789
    %3468 = vmatpush.bf16.msra.mxu0 %v2781
    %3469 = vmatpush.bf16.msra.mxu0 %v2773
    %3470 = vmatpush.bf16.msra.mxu0 %v2765
    %3471 = vmatpush.bf16.msra.mxu0 %v2757
    %3472 = vmatpush.bf16.msra.mxu0 %v2749
    %3473 = vmatmul.bf16.gmra.mxu0 %v1956
    %v3474 = vpop.f32.mrf.mxu0
    %v3475 = vadd.f32 %v1965, %v3474
    %v3476 = vpop.f32.mrf.mxu0
    %3477 = vdwg.mxu0
    %3478 = vmatpush.bf16.msra.mxu0 %v2869
    %3479 = vmatpush.bf16.msra.mxu0 %v2861
    %3480 = vmatpush.bf16.msra.mxu0 %v2853
    %3481 = vmatpush.bf16.msra.mxu0 %v2845
    %3482 = vmatpush.bf16.msra.mxu0 %v2837
    %3483 = vmatpush.bf16.msra.mxu0 %v2829
    %3484 = vmatpush.bf16.msra.mxu0 %v2821
    %3485 = vmatpush.bf16.msra.mxu0 %v2813
    %3486 = vmatmul.bf16.gmra.mxu0 %v1957
    %v3487 = vpop.f32.mrf.mxu0
    %v3488 = vadd.f32 %v3475, %v3487
    %v3489 = vpop.f32.mrf.mxu0
    %3490 = vdwg.mxu0
    %3491 = vmatpush.bf16.msra.mxu0 %v2933
    %3492 = vmatpush.bf16.msra.mxu0 %v2925
    %3493 = vmatpush.bf16.msra.mxu0 %v2917
    %3494 = vmatpush.bf16.msra.mxu0 %v2909
    %3495 = vmatpush.bf16.msra.mxu0 %v2901
    %3496 = vmatpush.bf16.msra.mxu0 %v2893
    %3497 = vmatpush.bf16.msra.mxu0 %v2885
    %3498 = vmatpush.bf16.msra.mxu0 %v2877
    %3499 = vmatmul.bf16.gmra.mxu0 %v1958
    %v3500 = vpop.f32.mrf.mxu0
    %v3501 = vadd.f32 %v3488, %v3500
    %v3502 = vpop.f32.mrf.mxu0
    %3503 = vdwg.mxu0
    %3504 = vmatpush.bf16.msra.mxu0 %v2997
    %3505 = vmatpush.bf16.msra.mxu0 %v2989
    %3506 = vmatpush.bf16.msra.mxu0 %v2981
    %3507 = vmatpush.bf16.msra.mxu0 %v2973
    %3508 = vmatpush.bf16.msra.mxu0 %v2965
    %3509 = vmatpush.bf16.msra.mxu0 %v2957
    %3510 = vmatpush.bf16.msra.mxu0 %v2949
    %3511 = vmatpush.bf16.msra.mxu0 %v2941
    %3512 = vmatmul.bf16.gmra.mxu0 %v1959
    %v3513 = vpop.f32.mrf.mxu0
    %v3514 = vadd.f32 %v3501, %v3513
    %v3515 = vpop.f32.mrf.mxu0
    %3516 = vdwg.mxu0
    %3517 = vmatpush.bf16.msra.mxu0 %v2806
    %3518 = vmatpush.bf16.msra.mxu0 %v2798
    %3519 = vmatpush.bf16.msra.mxu0 %v2790
    %3520 = vmatpush.bf16.msra.mxu0 %v2782
    %3521 = vmatpush.bf16.msra.mxu0 %v2774
    %3522 = vmatpush.bf16.msra.mxu0 %v2766
    %3523 = vmatpush.bf16.msra.mxu0 %v2758
    %3524 = vmatpush.bf16.msra.mxu0 %v2750
    %3525 = vmatmul.bf16.gmra.mxu0 %v1956
    %v3526 = vpop.f32.mrf.mxu0
    %v3527 = vadd.f32 %v1966, %v3526
    %v3528 = vpop.f32.mrf.mxu0
    %3529 = vdwg.mxu0
    %3530 = vmatpush.bf16.msra.mxu0 %v2870
    %3531 = vmatpush.bf16.msra.mxu0 %v2862
    %3532 = vmatpush.bf16.msra.mxu0 %v2854
    %3533 = vmatpush.bf16.msra.mxu0 %v2846
    %3534 = vmatpush.bf16.msra.mxu0 %v2838
    %3535 = vmatpush.bf16.msra.mxu0 %v2830
    %3536 = vmatpush.bf16.msra.mxu0 %v2822
    %3537 = vmatpush.bf16.msra.mxu0 %v2814
    %3538 = vmatmul.bf16.gmra.mxu0 %v1957
    %v3539 = vpop.f32.mrf.mxu0
    %v3540 = vadd.f32 %v3527, %v3539
    %v3541 = vpop.f32.mrf.mxu0
    %3542 = vdwg.mxu0
    %3543 = vmatpush.bf16.msra.mxu0 %v2934
    %3544 = vmatpush.bf16.msra.mxu0 %v2926
    %3545 = vmatpush.bf16.msra.mxu0 %v2918
    %3546 = vmatpush.bf16.msra.mxu0 %v2910
    %3547 = vmatpush.bf16.msra.mxu0 %v2902
    %3548 = vmatpush.bf16.msra.mxu0 %v2894
    %3549 = vmatpush.bf16.msra.mxu0 %v2886
    %3550 = vmatpush.bf16.msra.mxu0 %v2878
    %3551 = vmatmul.bf16.gmra.mxu0 %v1958
    %v3552 = vpop.f32.mrf.mxu0
    %v3553 = vadd.f32 %v3540, %v3552
    %v3554 = vpop.f32.mrf.mxu0
    %3555 = vdwg.mxu0
    %3556 = vmatpush.bf16.msra.mxu0 %v2998
    %3557 = vmatpush.bf16.msra.mxu0 %v2990
    %3558 = vmatpush.bf16.msra.mxu0 %v2982
    %3559 = vmatpush.bf16.msra.mxu0 %v2974
    %3560 = vmatpush.bf16.msra.mxu0 %v2966
    %3561 = vmatpush.bf16.msra.mxu0 %v2958
    %3562 = vmatpush.bf16.msra.mxu0 %v2950
    %3563 = vmatpush.bf16.msra.mxu0 %v2942
    %3564 = vmatmul.bf16.gmra.mxu0 %v1959
    %v3565 = vpop.f32.mrf.mxu0
    %v3566 = vadd.f32 %v3553, %v3565
    %v3567 = vpop.f32.mrf.mxu0
    %3568 = vdwg.mxu0
    %3569 = vmatpush.bf16.msra.mxu0 %v2807
    %3570 = vmatpush.bf16.msra.mxu0 %v2799
    %3571 = vmatpush.bf16.msra.mxu0 %v2791
    %3572 = vmatpush.bf16.msra.mxu0 %v2783
    %3573 = vmatpush.bf16.msra.mxu0 %v2775
    %3574 = vmatpush.bf16.msra.mxu0 %v2767
    %3575 = vmatpush.bf16.msra.mxu0 %v2759
    %3576 = vmatpush.bf16.msra.mxu0 %v2751
    %3577 = vmatmul.bf16.gmra.mxu0 %v1956
    %v3578 = vpop.f32.mrf.mxu0
    %v3579 = vadd.f32 %v1967, %v3578
    %v3580 = vpop.f32.mrf.mxu0
    %3581 = vdwg.mxu0
    %3582 = vmatpush.bf16.msra.mxu0 %v2871
    %3583 = vmatpush.bf16.msra.mxu0 %v2863
    %3584 = vmatpush.bf16.msra.mxu0 %v2855
    %3585 = vmatpush.bf16.msra.mxu0 %v2847
    %3586 = vmatpush.bf16.msra.mxu0 %v2839
    %3587 = vmatpush.bf16.msra.mxu0 %v2831
    %3588 = vmatpush.bf16.msra.mxu0 %v2823
    %3589 = vmatpush.bf16.msra.mxu0 %v2815
    %3590 = vmatmul.bf16.gmra.mxu0 %v1957
    %v3591 = vpop.f32.mrf.mxu0
    %v3592 = vadd.f32 %v3579, %v3591
    %v3593 = vpop.f32.mrf.mxu0
    %3594 = vdwg.mxu0
    %3595 = vmatpush.bf16.msra.mxu0 %v2935
    %3596 = vmatpush.bf16.msra.mxu0 %v2927
    %3597 = vmatpush.bf16.msra.mxu0 %v2919
    %3598 = vmatpush.bf16.msra.mxu0 %v2911
    %3599 = vmatpush.bf16.msra.mxu0 %v2903
    %3600 = vmatpush.bf16.msra.mxu0 %v2895
    %3601 = vmatpush.bf16.msra.mxu0 %v2887
    %3602 = vmatpush.bf16.msra.mxu0 %v2879
    %3603 = vmatmul.bf16.gmra.mxu0 %v1958
    %v3604 = vpop.f32.mrf.mxu0
    %v3605 = vadd.f32 %v3592, %v3604
    %v3606 = vpop.f32.mrf.mxu0
    %3607 = vdwg.mxu0
    %3608 = vmatpush.bf16.msra.mxu0 %v2999
    %3609 = vmatpush.bf16.msra.mxu0 %v2991
    %3610 = vmatpush.bf16.msra.mxu0 %v2983
    %3611 = vmatpush.bf16.msra.mxu0 %v2975
    %3612 = vmatpush.bf16.msra.mxu0 %v2967
    %3613 = vmatpush.bf16.msra.mxu0 %v2959
    %3614 = vmatpush.bf16.msra.mxu0 %v2951
    %3615 = vmatpush.bf16.msra.mxu0 %v2943
    %3616 = vmatmul.bf16.gmra.mxu0 %v1959
    %v3617 = vpop.f32.mrf.mxu0
    %v3618 = vadd.f32 %v3605, %v3617
    %v3619 = vpop.f32.mrf.mxu0
    %3620 = vdwg.mxu0
    %3621 = vmatpush.bf16.msra.mxu0 %v2808
    %3622 = vmatpush.bf16.msra.mxu0 %v2800
    %3623 = vmatpush.bf16.msra.mxu0 %v2792
    %3624 = vmatpush.bf16.msra.mxu0 %v2784
    %3625 = vmatpush.bf16.msra.mxu0 %v2776
    %3626 = vmatpush.bf16.msra.mxu0 %v2768
    %3627 = vmatpush.bf16.msra.mxu0 %v2760
    %3628 = vmatpush.bf16.msra.mxu0 %v2752
    %3629 = vmatmul.bf16.gmra.mxu0 %v1956
    %v3630 = vpop.f32.mrf.mxu0
    %v3631 = vadd.f32 %v1968, %v3630
    %v3632 = vpop.f32.mrf.mxu0
    %3633 = vdwg.mxu0
    %3634 = vmatpush.bf16.msra.mxu0 %v2872
    %3635 = vmatpush.bf16.msra.mxu0 %v2864
    %3636 = vmatpush.bf16.msra.mxu0 %v2856
    %3637 = vmatpush.bf16.msra.mxu0 %v2848
    %3638 = vmatpush.bf16.msra.mxu0 %v2840
    %3639 = vmatpush.bf16.msra.mxu0 %v2832
    %3640 = vmatpush.bf16.msra.mxu0 %v2824
    %3641 = vmatpush.bf16.msra.mxu0 %v2816
    %3642 = vmatmul.bf16.gmra.mxu0 %v1957
    %v3643 = vpop.f32.mrf.mxu0
    %v3644 = vadd.f32 %v3631, %v3643
    %v3645 = vpop.f32.mrf.mxu0
    %3646 = vdwg.mxu0
    %3647 = vmatpush.bf16.msra.mxu0 %v2936
    %3648 = vmatpush.bf16.msra.mxu0 %v2928
    %3649 = vmatpush.bf16.msra.mxu0 %v2920
    %3650 = vmatpush.bf16.msra.mxu0 %v2912
    %3651 = vmatpush.bf16.msra.mxu0 %v2904
    %3652 = vmatpush.bf16.msra.mxu0 %v2896
    %3653 = vmatpush.bf16.msra.mxu0 %v2888
    %3654 = vmatpush.bf16.msra.mxu0 %v2880
    %3655 = vmatmul.bf16.gmra.mxu0 %v1958
    %v3656 = vpop.f32.mrf.mxu0
    %v3657 = vadd.f32 %v3644, %v3656
    %v3658 = vpop.f32.mrf.mxu0
    %3659 = vdwg.mxu0
    %3660 = vmatpush.bf16.msra.mxu0 %v3000
    %3661 = vmatpush.bf16.msra.mxu0 %v2992
    %3662 = vmatpush.bf16.msra.mxu0 %v2984
    %3663 = vmatpush.bf16.msra.mxu0 %v2976
    %3664 = vmatpush.bf16.msra.mxu0 %v2968
    %3665 = vmatpush.bf16.msra.mxu0 %v2960
    %3666 = vmatpush.bf16.msra.mxu0 %v2952
    %3667 = vmatpush.bf16.msra.mxu0 %v2944
    %3668 = vmatmul.bf16.gmra.mxu0 %v1959
    %v3669 = vpop.f32.mrf.mxu0
    %v3670 = vadd.f32 %v3657, %v3669
    %v3671 = vpop.f32.mrf.mxu0
    %3672 = vdwg.mxu0
    %v3673 = vxor.u32 %v3306, 2147483648
    %v3674 = vxor.u32 %v3358, 2147483648
    %v3675 = vmul.f32 %v3673, 1.442695
    %v3676 = vpow.pop %v3675
    %v3677 = vmul.f32 %v3674, 1.442695
    %v3678 = vpow.pop %v3677
    %v3679 = vadd.f32 %v3676, 1.0
    %v3680 = vadd.f32 %v3678, 1.0
    %v3681 = vrcp.pop %v3679
    %v3682 = vmul.f32 %v3679, %v3681
    %v3683 = vsub.f32 1.0, %v3682
    %v3684 = vmul.f32 %v3681, %v3683
    %v3685 = vadd.f32 %v3681, %v3684
    %vm3686 = vweird.f32 %v3679
    %vm3687 = vweird.f32 %v3681
    %vm3688 = vmor %vm3686, %vm3687
    %v3689 = vsel %vm3688, %v3681, %v3685
    %v3690 = vand.u32 2147483647, %v3679
    %vm3691 = vcmp.eq.f32.partialorder %v3690, 8.507059e+37
    %v3692 = vand.u32 %v3679, 2147483648
    %v3693 = vor.u32 1.1754944e-38, %v3692
    %v3694 = vsel %vm3691, %v3693, %v3689
    %v3695 = vmul.f32 1.0, %v3694
    %v3696 = vrcp.pop %v3680
    %v3697 = vmul.f32 %v3680, %v3696
    %v3698 = vsub.f32 1.0, %v3697
    %v3699 = vmul.f32 %v3696, %v3698
    %v3700 = vadd.f32 %v3696, %v3699
    %vm3701 = vweird.f32 %v3680
    %vm3702 = vweird.f32 %v3696
    %vm3703 = vmor %vm3701, %vm3702
    %v3704 = vsel %vm3703, %v3696, %v3700
    %v3705 = vand.u32 2147483647, %v3680
    %vm3706 = vcmp.eq.f32.partialorder %v3705, 8.507059e+37
    %v3707 = vand.u32 %v3680, 2147483648
    %v3708 = vor.u32 1.1754944e-38, %v3707
    %v3709 = vsel %vm3706, %v3708, %v3704
    %v3710 = vmul.f32 1.0, %v3709
    %v3711 = vxor.u32 %v3410, 2147483648
    %v3712 = vxor.u32 %v3462, 2147483648
    %v3713 = vmul.f32 %v3711, 1.442695
    %v3714 = vpow.pop %v3713
    %v3715 = vmul.f32 %v3712, 1.442695
    %v3716 = vpow.pop %v3715
    %v3717 = vadd.f32 %v3714, 1.0
    %v3718 = vadd.f32 %v3716, 1.0
    %v3719 = vrcp.pop %v3717
    %v3720 = vmul.f32 %v3717, %v3719
    %v3721 = vsub.f32 1.0, %v3720
    %v3722 = vmul.f32 %v3719, %v3721
    %v3723 = vadd.f32 %v3719, %v3722
    %vm3724 = vweird.f32 %v3717
    %vm3725 = vweird.f32 %v3719
    %vm3726 = vmor %vm3724, %vm3725
    %v3727 = vsel %vm3726, %v3719, %v3723
    %v3728 = vand.u32 2147483647, %v3717
    %vm3729 = vcmp.eq.f32.partialorder %v3728, 8.507059e+37
    %v3730 = vand.u32 %v3717, 2147483648
    %v3731 = vor.u32 1.1754944e-38, %v3730
    %v3732 = vsel %vm3729, %v3731, %v3727
    %v3733 = vmul.f32 1.0, %v3732
    %v3734 = vrcp.pop %v3718
    %v3735 = vmul.f32 %v3718, %v3734
    %v3736 = vsub.f32 1.0, %v3735
    %v3737 = vmul.f32 %v3734, %v3736
    %v3738 = vadd.f32 %v3734, %v3737
    %vm3739 = vweird.f32 %v3718
    %vm3740 = vweird.f32 %v3734
    %vm3741 = vmor %vm3739, %vm3740
    %v3742 = vsel %vm3741, %v3734, %v3738
    %v3743 = vand.u32 2147483647, %v3718
    %vm3744 = vcmp.eq.f32.partialorder %v3743, 8.507059e+37
    %v3745 = vand.u32 %v3718, 2147483648
    %v3746 = vor.u32 1.1754944e-38, %v3745
    %v3747 = vsel %vm3744, %v3746, %v3742
    %v3748 = vmul.f32 1.0, %v3747
    %v3749 = vtanh.pop %v3514
    %v3750 = vtanh.pop %v3566
    %v3751 = vxor.u32 %v3618, 2147483648
    %v3752 = vxor.u32 %v3670, 2147483648
    %v3753 = vmul.f32 %v3751, 1.442695
    %v3754 = vpow.pop %v3753
    %v3755 = vmul.f32 %v3752, 1.442695
    %v3756 = vpow.pop %v3755
    %v3757 = vadd.f32 %v3754, 1.0
    %v3758 = vadd.f32 %v3756, 1.0
    %v3759 = vrcp.pop %v3757
    %v3760 = vmul.f32 %v3757, %v3759
    %v3761 = vsub.f32 1.0, %v3760
    %v3762 = vmul.f32 %v3759, %v3761
    %v3763 = vadd.f32 %v3759, %v3762
    %vm3764 = vweird.f32 %v3757
    %vm3765 = vweird.f32 %v3759
    %vm3766 = vmor %vm3764, %vm3765
    %v3767 = vsel %vm3766, %v3759, %v3763
    %v3768 = vand.u32 2147483647, %v3757
    %vm3769 = vcmp.eq.f32.partialorder %v3768, 8.507059e+37
    %v3770 = vand.u32 %v3757, 2147483648
    %v3771 = vor.u32 1.1754944e-38, %v3770
    %v3772 = vsel %vm3769, %v3771, %v3767
    %v3773 = vmul.f32 1.0, %v3772
    %v3774 = vrcp.pop %v3758
    %v3775 = vmul.f32 %v3758, %v3774
    %v3776 = vsub.f32 1.0, %v3775
    %v3777 = vmul.f32 %v3774, %v3776
    %v3778 = vadd.f32 %v3774, %v3777
    %vm3779 = vweird.f32 %v3758
    %vm3780 = vweird.f32 %v3774
    %vm3781 = vmor %vm3779, %vm3780
    %v3782 = vsel %vm3781, %v3774, %v3778
    %v3783 = vand.u32 2147483647, %v3758
    %vm3784 = vcmp.eq.f32.partialorder %v3783, 8.507059e+37
    %v3785 = vand.u32 %v3758, 2147483648
    %v3786 = vor.u32 1.1754944e-38, %v3785
    %v3787 = vsel %vm3784, %v3786, %v3782
    %v3788 = vmul.f32 1.0, %v3787
    %v3789 = vmul.f32 %v3733, %v959
    %v3790 = vmul.f32 %v3748, %v960
    %v3791 = vmul.f32 %v3695, %v3749
    %v3792 = vmul.f32 %v3710, %v3750
    %v3793 = vadd.f32 %v3789, %v3791
    %v3794 = vadd.f32 %v3790, %v3792
    %v3795 = vtanh.pop %v3793
    %v3796 = vtanh.pop %v3794
    %v3797 = vmul.f32 %v3773, %v3795
    %v3798 = vmul.f32 %v3788, %v3796
    %s3799 = smul.u32 1, 8
    %s3800 = smul.addr %s3799, 8
    %s3801 = scalar_lea.vmem [#allocation2], %s3800
    %v3802 = vld [vmem:[%s3801] sm:$0xff]
    %v3803 = vld [vmem:[%s3801 + $0x8] sm:$0xff]
    %v3804 = vld [vmem:[%s3801 + $0x10] sm:$0xff]
    %v3805 = vld [vmem:[%s3801 + $0x18] sm:$0xff]
    %v3806 = vld [vmem:[%s3801 + $0x20] sm:$0xff]
    %v3807 = vld [vmem:[%s3801 + $0x28] sm:$0xff]
    %v3808 = vld [vmem:[%s3801 + $0x30] sm:$0xff]
    %v3809 = vld [vmem:[%s3801 + $0x38] sm:$0xff]
    %3810 = vmatpush.bf16.msra.mxu0 %v1414
    %3811 = vmatpush.bf16.msra.mxu0 %v1406
    %3812 = vmatpush.bf16.msra.mxu0 %v1398
    %3813 = vmatpush.bf16.msra.mxu0 %v1390
    %3814 = vmatpush.bf16.msra.mxu0 %v1382
    %3815 = vmatpush.bf16.msra.mxu0 %v1374
    %3816 = vmatpush.bf16.msra.mxu0 %v1366
    %3817 = vmatpush.bf16.msra.mxu0 %v1358
    %3818 = vmatmul.bf16.gmra.mxu0 %v1956
    %v3819 = vpop.f32.mrf.mxu0
    %v3820 = vadd.f32 0.0, %v3819
    %v3821 = vpop.f32.mrf.mxu0
    %3822 = vdwg.mxu0
    %3823 = vmatpush.bf16.msra.mxu0 %v1478
    %3824 = vmatpush.bf16.msra.mxu0 %v1470
    %3825 = vmatpush.bf16.msra.mxu0 %v1462
    %3826 = vmatpush.bf16.msra.mxu0 %v1454
    %3827 = vmatpush.bf16.msra.mxu0 %v1446
    %3828 = vmatpush.bf16.msra.mxu0 %v1438
    %3829 = vmatpush.bf16.msra.mxu0 %v1430
    %3830 = vmatpush.bf16.msra.mxu0 %v1422
    %3831 = vmatmul.bf16.gmra.mxu0 %v1957
    %v3832 = vpop.f32.mrf.mxu0
    %v3833 = vadd.f32 %v3820, %v3832
    %v3834 = vpop.f32.mrf.mxu0
    %3835 = vdwg.mxu0
    %3836 = vmatpush.bf16.msra.mxu0 %v1415
    %3837 = vmatpush.bf16.msra.mxu0 %v1407
    %3838 = vmatpush.bf16.msra.mxu0 %v1399
    %3839 = vmatpush.bf16.msra.mxu0 %v1391
    %3840 = vmatpush.bf16.msra.mxu0 %v1383
    %3841 = vmatpush.bf16.msra.mxu0 %v1375
    %3842 = vmatpush.bf16.msra.mxu0 %v1367
    %3843 = vmatpush.bf16.msra.mxu0 %v1359
    %3844 = vmatmul.bf16.gmra.mxu0 %v1956
    %v3845 = vpop.f32.mrf.mxu0
    %v3846 = vadd.f32 0.0, %v3845
    %v3847 = vpop.f32.mrf.mxu0
    %3848 = vdwg.mxu0
    %3849 = vmatpush.bf16.msra.mxu0 %v1479
    %3850 = vmatpush.bf16.msra.mxu0 %v1471
    %3851 = vmatpush.bf16.msra.mxu0 %v1463
    %3852 = vmatpush.bf16.msra.mxu0 %v1455
    %3853 = vmatpush.bf16.msra.mxu0 %v1447
    %3854 = vmatpush.bf16.msra.mxu0 %v1439
    %3855 = vmatpush.bf16.msra.mxu0 %v1431
    %3856 = vmatpush.bf16.msra.mxu0 %v1423
    %3857 = vmatmul.bf16.gmra.mxu0 %v1957
    %v3858 = vpop.f32.mrf.mxu0
    %v3859 = vadd.f32 %v3846, %v3858
    %v3860 = vpop.f32.mrf.mxu0
    %3861 = vdwg.mxu0
    %3862 = vmatpush.bf16.msra.mxu0 %v1416
    %3863 = vmatpush.bf16.msra.mxu0 %v1408
    %3864 = vmatpush.bf16.msra.mxu0 %v1400
    %3865 = vmatpush.bf16.msra.mxu0 %v1392
    %3866 = vmatpush.bf16.msra.mxu0 %v1384
    %3867 = vmatpush.bf16.msra.mxu0 %v1376
    %3868 = vmatpush.bf16.msra.mxu0 %v1368
    %3869 = vmatpush.bf16.msra.mxu0 %v1360
    %3870 = vmatmul.bf16.gmra.mxu0 %v1956
    %v3871 = vpop.f32.mrf.mxu0
    %v3872 = vadd.f32 0.0, %v3871
    %v3873 = vpop.f32.mrf.mxu0
    %3874 = vdwg.mxu0
    %3875 = vmatpush.bf16.msra.mxu0 %v1480
    %3876 = vmatpush.bf16.msra.mxu0 %v1472
    %3877 = vmatpush.bf16.msra.mxu0 %v1464
    %3878 = vmatpush.bf16.msra.mxu0 %v1456
    %3879 = vmatpush.bf16.msra.mxu0 %v1448
    %3880 = vmatpush.bf16.msra.mxu0 %v1440
    %3881 = vmatpush.bf16.msra.mxu0 %v1432
    %3882 = vmatpush.bf16.msra.mxu0 %v1424
    %3883 = vmatmul.bf16.gmra.mxu0 %v1957
    %v3884 = vpop.f32.mrf.mxu0
    %v3885 = vadd.f32 %v3872, %v3884
    %v3886 = vpop.f32.mrf.mxu0
    %3887 = vdwg.mxu0
    %3888 = vmatpush.bf16.msra.mxu0 %v1417
    %3889 = vmatpush.bf16.msra.mxu0 %v1409
    %3890 = vmatpush.bf16.msra.mxu0 %v1401
    %3891 = vmatpush.bf16.msra.mxu0 %v1393
    %3892 = vmatpush.bf16.msra.mxu0 %v1385
    %3893 = vmatpush.bf16.msra.mxu0 %v1377
    %3894 = vmatpush.bf16.msra.mxu0 %v1369
    %3895 = vmatpush.bf16.msra.mxu0 %v1361
    %3896 = vmatmul.bf16.gmra.mxu0 %v1956
    %v3897 = vpop.f32.mrf.mxu0
    %v3898 = vadd.f32 0.0, %v3897
    %v3899 = vpop.f32.mrf.mxu0
    %3900 = vdwg.mxu0
    %3901 = vmatpush.bf16.msra.mxu0 %v1481
    %3902 = vmatpush.bf16.msra.mxu0 %v1473
    %3903 = vmatpush.bf16.msra.mxu0 %v1465
    %3904 = vmatpush.bf16.msra.mxu0 %v1457
    %3905 = vmatpush.bf16.msra.mxu0 %v1449
    %3906 = vmatpush.bf16.msra.mxu0 %v1441
    %3907 = vmatpush.bf16.msra.mxu0 %v1433
    %3908 = vmatpush.bf16.msra.mxu0 %v1425
    %3909 = vmatmul.bf16.gmra.mxu0 %v1957
    %v3910 = vpop.f32.mrf.mxu0
    %v3911 = vadd.f32 %v3898, %v3910
    %v3912 = vpop.f32.mrf.mxu0
    %3913 = vdwg.mxu0
    %3914 = vmatpush.bf16.msra.mxu0 %v1418
    %3915 = vmatpush.bf16.msra.mxu0 %v1410
    %3916 = vmatpush.bf16.msra.mxu0 %v1402
    %3917 = vmatpush.bf16.msra.mxu0 %v1394
    %3918 = vmatpush.bf16.msra.mxu0 %v1386
    %3919 = vmatpush.bf16.msra.mxu0 %v1378
    %3920 = vmatpush.bf16.msra.mxu0 %v1370
    %3921 = vmatpush.bf16.msra.mxu0 %v1362
    %3922 = vmatmul.bf16.gmra.mxu0 %v1956
    %v3923 = vpop.f32.mrf.mxu0
    %v3924 = vadd.f32 0.0, %v3923
    %v3925 = vpop.f32.mrf.mxu0
    %3926 = vdwg.mxu0
    %3927 = vmatpush.bf16.msra.mxu0 %v1482
    %3928 = vmatpush.bf16.msra.mxu0 %v1474
    %3929 = vmatpush.bf16.msra.mxu0 %v1466
    %3930 = vmatpush.bf16.msra.mxu0 %v1458
    %3931 = vmatpush.bf16.msra.mxu0 %v1450
    %3932 = vmatpush.bf16.msra.mxu0 %v1442
    %3933 = vmatpush.bf16.msra.mxu0 %v1434
    %3934 = vmatpush.bf16.msra.mxu0 %v1426
    %3935 = vmatmul.bf16.gmra.mxu0 %v1957
    %v3936 = vpop.f32.mrf.mxu0
    %v3937 = vadd.f32 %v3924, %v3936
    %v3938 = vpop.f32.mrf.mxu0
    %3939 = vdwg.mxu0
    %3940 = vmatpush.bf16.msra.mxu0 %v1419
    %3941 = vmatpush.bf16.msra.mxu0 %v1411
    %3942 = vmatpush.bf16.msra.mxu0 %v1403
    %3943 = vmatpush.bf16.msra.mxu0 %v1395
    %3944 = vmatpush.bf16.msra.mxu0 %v1387
    %3945 = vmatpush.bf16.msra.mxu0 %v1379
    %3946 = vmatpush.bf16.msra.mxu0 %v1371
    %3947 = vmatpush.bf16.msra.mxu0 %v1363
    %3948 = vmatmul.bf16.gmra.mxu0 %v1956
    %v3949 = vpop.f32.mrf.mxu0
    %v3950 = vadd.f32 0.0, %v3949
    %v3951 = vpop.f32.mrf.mxu0
    %3952 = vdwg.mxu0
    %3953 = vmatpush.bf16.msra.mxu0 %v1483
    %3954 = vmatpush.bf16.msra.mxu0 %v1475
    %3955 = vmatpush.bf16.msra.mxu0 %v1467
    %3956 = vmatpush.bf16.msra.mxu0 %v1459
    %3957 = vmatpush.bf16.msra.mxu0 %v1451
    %3958 = vmatpush.bf16.msra.mxu0 %v1443
    %3959 = vmatpush.bf16.msra.mxu0 %v1435
    %3960 = vmatpush.bf16.msra.mxu0 %v1427
    %3961 = vmatmul.bf16.gmra.mxu0 %v1957
    %v3962 = vpop.f32.mrf.mxu0
    %v3963 = vadd.f32 %v3950, %v3962
    %v3964 = vpop.f32.mrf.mxu0
    %3965 = vdwg.mxu0
    %3966 = vmatpush.bf16.msra.mxu0 %v1420
    %3967 = vmatpush.bf16.msra.mxu0 %v1412
    %3968 = vmatpush.bf16.msra.mxu0 %v1404
    %3969 = vmatpush.bf16.msra.mxu0 %v1396
    %3970 = vmatpush.bf16.msra.mxu0 %v1388
    %3971 = vmatpush.bf16.msra.mxu0 %v1380
    %3972 = vmatpush.bf16.msra.mxu0 %v1372
    %3973 = vmatpush.bf16.msra.mxu0 %v1364
    %3974 = vmatmul.bf16.gmra.mxu0 %v1956
    %v3975 = vpop.f32.mrf.mxu0
    %v3976 = vadd.f32 0.0, %v3975
    %v3977 = vpop.f32.mrf.mxu0
    %3978 = vdwg.mxu0
    %3979 = vmatpush.bf16.msra.mxu0 %v1484
    %3980 = vmatpush.bf16.msra.mxu0 %v1476
    %3981 = vmatpush.bf16.msra.mxu0 %v1468
    %3982 = vmatpush.bf16.msra.mxu0 %v1460
    %3983 = vmatpush.bf16.msra.mxu0 %v1452
    %3984 = vmatpush.bf16.msra.mxu0 %v1444
    %3985 = vmatpush.bf16.msra.mxu0 %v1436
    %3986 = vmatpush.bf16.msra.mxu0 %v1428
    %3987 = vmatmul.bf16.gmra.mxu0 %v1957
    %v3988 = vpop.f32.mrf.mxu0
    %v3989 = vadd.f32 %v3976, %v3988
    %v3990 = vpop.f32.mrf.mxu0
    %3991 = vdwg.mxu0
    %3992 = vmatpush.bf16.msra.mxu0 %v1421
    %3993 = vmatpush.bf16.msra.mxu0 %v1413
    %3994 = vmatpush.bf16.msra.mxu0 %v1405
    %3995 = vmatpush.bf16.msra.mxu0 %v1397
    %3996 = vmatpush.bf16.msra.mxu0 %v1389
    %3997 = vmatpush.bf16.msra.mxu0 %v1381
    %3998 = vmatpush.bf16.msra.mxu0 %v1373
    %3999 = vmatpush.bf16.msra.mxu0 %v1365
    %4000 = vmatmul.bf16.gmra.mxu0 %v1956
    %v4001 = vpop.f32.mrf.mxu0
    %v4002 = vadd.f32 0.0, %v4001
    %v4003 = vpop.f32.mrf.mxu0
    %4004 = vdwg.mxu0
    %4005 = vmatpush.bf16.msra.mxu0 %v1485
    %4006 = vmatpush.bf16.msra.mxu0 %v1477
    %4007 = vmatpush.bf16.msra.mxu0 %v1469
    %4008 = vmatpush.bf16.msra.mxu0 %v1461
    %4009 = vmatpush.bf16.msra.mxu0 %v1453
    %4010 = vmatpush.bf16.msra.mxu0 %v1445
    %4011 = vmatpush.bf16.msra.mxu0 %v1437
    %4012 = vmatpush.bf16.msra.mxu0 %v1429
    %4013 = vmatmul.bf16.gmra.mxu0 %v1957
    %v4014 = vpop.f32.mrf.mxu0
    %v4015 = vadd.f32 %v4002, %v4014
    %v4016 = vpop.f32.mrf.mxu0
    %4017 = vdwg.mxu0
    %v4018 = vadd.f32 %v3802, %v3833
    %v4019 = vadd.f32 %v3803, %v3859
    %v4020 = vadd.f32 %v3804, %v3885
    %v4021 = vadd.f32 %v3805, %v3911
    %v4022 = vadd.f32 %v3806, %v3937
    %v4023 = vadd.f32 %v3807, %v3963
    %v4024 = vadd.f32 %v3808, %v3989
    %v4025 = vadd.f32 %v3809, %v4015
    %v4026 = vxor.u32 %v4018, 2147483648
    %v4027 = vxor.u32 %v4019, 2147483648
    %v4028 = vmul.f32 %v4026, 1.442695
    %v4029 = vpow.pop %v4028
    %v4030 = vmul.f32 %v4027, 1.442695
    %v4031 = vpow.pop %v4030
    %v4032 = vadd.f32 %v4029, 1.0
    %v4033 = vadd.f32 %v4031, 1.0
    %v4034 = vrcp.pop %v4032
    %v4035 = vmul.f32 %v4032, %v4034
    %v4036 = vsub.f32 1.0, %v4035
    %v4037 = vmul.f32 %v4034, %v4036
    %v4038 = vadd.f32 %v4034, %v4037
    %vm4039 = vweird.f32 %v4032
    %vm4040 = vweird.f32 %v4034
    %vm4041 = vmor %vm4039, %vm4040
    %v4042 = vsel %vm4041, %v4034, %v4038
    %v4043 = vand.u32 2147483647, %v4032
    %vm4044 = vcmp.eq.f32.partialorder %v4043, 8.507059e+37
    %v4045 = vand.u32 %v4032, 2147483648
    %v4046 = vor.u32 1.1754944e-38, %v4045
    %v4047 = vsel %vm4044, %v4046, %v4042
    %v4048 = vmul.f32 1.0, %v4047
    %v4049 = vrcp.pop %v4033
    %v4050 = vmul.f32 %v4033, %v4049
    %v4051 = vsub.f32 1.0, %v4050
    %v4052 = vmul.f32 %v4049, %v4051
    %v4053 = vadd.f32 %v4049, %v4052
    %vm4054 = vweird.f32 %v4033
    %vm4055 = vweird.f32 %v4049
    %vm4056 = vmor %vm4054, %vm4055
    %v4057 = vsel %vm4056, %v4049, %v4053
    %v4058 = vand.u32 2147483647, %v4033
    %vm4059 = vcmp.eq.f32.partialorder %v4058, 8.507059e+37
    %v4060 = vand.u32 %v4033, 2147483648
    %v4061 = vor.u32 1.1754944e-38, %v4060
    %v4062 = vsel %vm4059, %v4061, %v4057
    %v4063 = vmul.f32 1.0, %v4062
    %v4064 = vxor.u32 %v4020, 2147483648
    %v4065 = vxor.u32 %v4021, 2147483648
    %v4066 = vmul.f32 %v4064, 1.442695
    %v4067 = vpow.pop %v4066
    %v4068 = vmul.f32 %v4065, 1.442695
    %v4069 = vpow.pop %v4068
    %v4070 = vadd.f32 %v4067, 1.0
    %v4071 = vadd.f32 %v4069, 1.0
    %v4072 = vrcp.pop %v4070
    %v4073 = vmul.f32 %v4070, %v4072
    %v4074 = vsub.f32 1.0, %v4073
    %v4075 = vmul.f32 %v4072, %v4074
    %v4076 = vadd.f32 %v4072, %v4075
    %vm4077 = vweird.f32 %v4070
    %vm4078 = vweird.f32 %v4072
    %vm4079 = vmor %vm4077, %vm4078
    %v4080 = vsel %vm4079, %v4072, %v4076
    %v4081 = vand.u32 2147483647, %v4070
    %vm4082 = vcmp.eq.f32.partialorder %v4081, 8.507059e+37
    %v4083 = vand.u32 %v4070, 2147483648
    %v4084 = vor.u32 1.1754944e-38, %v4083
    %v4085 = vsel %vm4082, %v4084, %v4080
    %v4086 = vmul.f32 1.0, %v4085
    %v4087 = vrcp.pop %v4071
    %v4088 = vmul.f32 %v4071, %v4087
    %v4089 = vsub.f32 1.0, %v4088
    %v4090 = vmul.f32 %v4087, %v4089
    %v4091 = vadd.f32 %v4087, %v4090
    %vm4092 = vweird.f32 %v4071
    %vm4093 = vweird.f32 %v4087
    %vm4094 = vmor %vm4092, %vm4093
    %v4095 = vsel %vm4094, %v4087, %v4091
    %v4096 = vand.u32 2147483647, %v4071
    %vm4097 = vcmp.eq.f32.partialorder %v4096, 8.507059e+37
    %v4098 = vand.u32 %v4071, 2147483648
    %v4099 = vor.u32 1.1754944e-38, %v4098
    %v4100 = vsel %vm4097, %v4099, %v4095
    %v4101 = vmul.f32 1.0, %v4100
    %v4102 = vtanh.pop %v4022
    %v4103 = vtanh.pop %v4023
    %v4104 = vxor.u32 %v4024, 2147483648
    %v4105 = vxor.u32 %v4025, 2147483648
    %v4106 = vmul.f32 %v4104, 1.442695
    %v4107 = vpow.pop %v4106
    %v4108 = vmul.f32 %v4105, 1.442695
    %v4109 = vpow.pop %v4108
    %v4110 = vadd.f32 %v4107, 1.0
    %v4111 = vadd.f32 %v4109, 1.0
    %v4112 = vrcp.pop %v4110
    %v4113 = vmul.f32 %v4110, %v4112
    %v4114 = vsub.f32 1.0, %v4113
    %v4115 = vmul.f32 %v4112, %v4114
    %v4116 = vadd.f32 %v4112, %v4115
    %vm4117 = vweird.f32 %v4110
    %vm4118 = vweird.f32 %v4112
    %vm4119 = vmor %vm4117, %vm4118
    %v4120 = vsel %vm4119, %v4112, %v4116
    %v4121 = vand.u32 2147483647, %v4110
    %vm4122 = vcmp.eq.f32.partialorder %v4121, 8.507059e+37
    %v4123 = vand.u32 %v4110, 2147483648
    %v4124 = vor.u32 1.1754944e-38, %v4123
    %v4125 = vsel %vm4122, %v4124, %v4120
    %v4126 = vmul.f32 1.0, %v4125
    %v4127 = vrcp.pop %v4111
    %v4128 = vmul.f32 %v4111, %v4127
    %v4129 = vsub.f32 1.0, %v4128
    %v4130 = vmul.f32 %v4127, %v4129
    %v4131 = vadd.f32 %v4127, %v4130
    %vm4132 = vweird.f32 %v4111
    %vm4133 = vweird.f32 %v4127
    %vm4134 = vmor %vm4132, %vm4133
    %v4135 = vsel %vm4134, %v4127, %v4131
    %v4136 = vand.u32 2147483647, %v4111
    %vm4137 = vcmp.eq.f32.partialorder %v4136, 8.507059e+37
    %v4138 = vand.u32 %v4111, 2147483648
    %v4139 = vor.u32 1.1754944e-38, %v4138
    %v4140 = vsel %vm4137, %v4139, %v4135
    %v4141 = vmul.f32 1.0, %v4140
    %v4142 = vmul.f32 %v4086, %v1950
    %v4143 = vmul.f32 %v4101, %v1951
    %v4144 = vmul.f32 %v4048, %v4102
    %v4145 = vmul.f32 %v4063, %v4103
    %v4146 = vadd.f32 %v4142, %v4144
    %v4147 = vadd.f32 %v4143, %v4145
    %v4148 = vtanh.pop %v4146
    %v4149 = vtanh.pop %v4147
    %v4150 = vmul.f32 %v4126, %v4148
    %v4151 = vmul.f32 %v4141, %v4149
    %v4152 = vpack.c.bf16 %v4150, %v4150
    %v4153 = vpack.c.bf16 %v4151, %v4151
    %v4154 = vpack.c.bf16 %v3797, %v3797
    %v4155 = vpack.c.bf16 %v3798, %v3798
    %4156 = vmatpush.bf16.msra.mxu0 %v2801
    %4157 = vmatpush.bf16.msra.mxu0 %v2793
    %4158 = vmatpush.bf16.msra.mxu0 %v2785
    %4159 = vmatpush.bf16.msra.mxu0 %v2777
    %4160 = vmatpush.bf16.msra.mxu0 %v2769
    %4161 = vmatpush.bf16.msra.mxu0 %v2761
    %4162 = vmatpush.bf16.msra.mxu0 %v2753
    %4163 = vmatpush.bf16.msra.mxu0 %v2745
    %4164 = vmatmul.bf16.gmra.mxu0 %v4152
    %v4165 = vpop.f32.mrf.mxu0
    %v4166 = vadd.f32 %v1961, %v4165
    %v4167 = vpop.f32.mrf.mxu0
    %4168 = vdwg.mxu0
    %4169 = vmatpush.bf16.msra.mxu0 %v2865
    %4170 = vmatpush.bf16.msra.mxu0 %v2857
    %4171 = vmatpush.bf16.msra.mxu0 %v2849
    %4172 = vmatpush.bf16.msra.mxu0 %v2841
    %4173 = vmatpush.bf16.msra.mxu0 %v2833
    %4174 = vmatpush.bf16.msra.mxu0 %v2825
    %4175 = vmatpush.bf16.msra.mxu0 %v2817
    %4176 = vmatpush.bf16.msra.mxu0 %v2809
    %4177 = vmatmul.bf16.gmra.mxu0 %v4153
    %v4178 = vpop.f32.mrf.mxu0
    %v4179 = vadd.f32 %v4166, %v4178
    %v4180 = vpop.f32.mrf.mxu0
    %4181 = vdwg.mxu0
    %4182 = vmatpush.bf16.msra.mxu0 %v2929
    %4183 = vmatpush.bf16.msra.mxu0 %v2921
    %4184 = vmatpush.bf16.msra.mxu0 %v2913
    %4185 = vmatpush.bf16.msra.mxu0 %v2905
    %4186 = vmatpush.bf16.msra.mxu0 %v2897
    %4187 = vmatpush.bf16.msra.mxu0 %v2889
    %4188 = vmatpush.bf16.msra.mxu0 %v2881
    %4189 = vmatpush.bf16.msra.mxu0 %v2873
    %4190 = vmatmul.bf16.gmra.mxu0 %v4154
    %v4191 = vpop.f32.mrf.mxu0
    %v4192 = vadd.f32 %v4179, %v4191
    %v4193 = vpop.f32.mrf.mxu0
    %4194 = vdwg.mxu0
    %4195 = vmatpush.bf16.msra.mxu0 %v2993
    %4196 = vmatpush.bf16.msra.mxu0 %v2985
    %4197 = vmatpush.bf16.msra.mxu0 %v2977
    %4198 = vmatpush.bf16.msra.mxu0 %v2969
    %4199 = vmatpush.bf16.msra.mxu0 %v2961
    %4200 = vmatpush.bf16.msra.mxu0 %v2953
    %4201 = vmatpush.bf16.msra.mxu0 %v2945
    %4202 = vmatpush.bf16.msra.mxu0 %v2937
    %4203 = vmatmul.bf16.gmra.mxu0 %v4155
    %v4204 = vpop.f32.mrf.mxu0
    %v4205 = vadd.f32 %v4192, %v4204
    %v4206 = vpop.f32.mrf.mxu0
    %4207 = vdwg.mxu0
    %4208 = vmatpush.bf16.msra.mxu0 %v2802
    %4209 = vmatpush.bf16.msra.mxu0 %v2794
    %4210 = vmatpush.bf16.msra.mxu0 %v2786
    %4211 = vmatpush.bf16.msra.mxu0 %v2778
    %4212 = vmatpush.bf16.msra.mxu0 %v2770
    %4213 = vmatpush.bf16.msra.mxu0 %v2762
    %4214 = vmatpush.bf16.msra.mxu0 %v2754
    %4215 = vmatpush.bf16.msra.mxu0 %v2746
    %4216 = vmatmul.bf16.gmra.mxu0 %v4152
    %v4217 = vpop.f32.mrf.mxu0
    %v4218 = vadd.f32 %v1962, %v4217
    %v4219 = vpop.f32.mrf.mxu0
    %4220 = vdwg.mxu0
    %4221 = vmatpush.bf16.msra.mxu0 %v2866
    %4222 = vmatpush.bf16.msra.mxu0 %v2858
    %4223 = vmatpush.bf16.msra.mxu0 %v2850
    %4224 = vmatpush.bf16.msra.mxu0 %v2842
    %4225 = vmatpush.bf16.msra.mxu0 %v2834
    %4226 = vmatpush.bf16.msra.mxu0 %v2826
    %4227 = vmatpush.bf16.msra.mxu0 %v2818
    %4228 = vmatpush.bf16.msra.mxu0 %v2810
    %4229 = vmatmul.bf16.gmra.mxu0 %v4153
    %v4230 = vpop.f32.mrf.mxu0
    %v4231 = vadd.f32 %v4218, %v4230
    %v4232 = vpop.f32.mrf.mxu0
    %4233 = vdwg.mxu0
    %4234 = vmatpush.bf16.msra.mxu0 %v2930
    %4235 = vmatpush.bf16.msra.mxu0 %v2922
    %4236 = vmatpush.bf16.msra.mxu0 %v2914
    %4237 = vmatpush.bf16.msra.mxu0 %v2906
    %4238 = vmatpush.bf16.msra.mxu0 %v2898
    %4239 = vmatpush.bf16.msra.mxu0 %v2890
    %4240 = vmatpush.bf16.msra.mxu0 %v2882
    %4241 = vmatpush.bf16.msra.mxu0 %v2874
    %4242 = vmatmul.bf16.gmra.mxu0 %v4154
    %v4243 = vpop.f32.mrf.mxu0
    %v4244 = vadd.f32 %v4231, %v4243
    %v4245 = vpop.f32.mrf.mxu0
    %4246 = vdwg.mxu0
    %4247 = vmatpush.bf16.msra.mxu0 %v2994
    %4248 = vmatpush.bf16.msra.mxu0 %v2986
    %4249 = vmatpush.bf16.msra.mxu0 %v2978
    %4250 = vmatpush.bf16.msra.mxu0 %v2970
    %4251 = vmatpush.bf16.msra.mxu0 %v2962
    %4252 = vmatpush.bf16.msra.mxu0 %v2954
    %4253 = vmatpush.bf16.msra.mxu0 %v2946
    %4254 = vmatpush.bf16.msra.mxu0 %v2938
    %4255 = vmatmul.bf16.gmra.mxu0 %v4155
    %v4256 = vpop.f32.mrf.mxu0
    %v4257 = vadd.f32 %v4244, %v4256
    %v4258 = vpop.f32.mrf.mxu0
    %4259 = vdwg.mxu0
    %4260 = vmatpush.bf16.msra.mxu0 %v2803
    %4261 = vmatpush.bf16.msra.mxu0 %v2795
    %4262 = vmatpush.bf16.msra.mxu0 %v2787
    %4263 = vmatpush.bf16.msra.mxu0 %v2779
    %4264 = vmatpush.bf16.msra.mxu0 %v2771
    %4265 = vmatpush.bf16.msra.mxu0 %v2763
    %4266 = vmatpush.bf16.msra.mxu0 %v2755
    %4267 = vmatpush.bf16.msra.mxu0 %v2747
    %4268 = vmatmul.bf16.gmra.mxu0 %v4152
    %v4269 = vpop.f32.mrf.mxu0
    %v4270 = vadd.f32 %v1963, %v4269
    %v4271 = vpop.f32.mrf.mxu0
    %4272 = vdwg.mxu0
    %4273 = vmatpush.bf16.msra.mxu0 %v2867
    %4274 = vmatpush.bf16.msra.mxu0 %v2859
    %4275 = vmatpush.bf16.msra.mxu0 %v2851
    %4276 = vmatpush.bf16.msra.mxu0 %v2843
    %4277 = vmatpush.bf16.msra.mxu0 %v2835
    %4278 = vmatpush.bf16.msra.mxu0 %v2827
    %4279 = vmatpush.bf16.msra.mxu0 %v2819
    %4280 = vmatpush.bf16.msra.mxu0 %v2811
    %4281 = vmatmul.bf16.gmra.mxu0 %v4153
    %v4282 = vpop.f32.mrf.mxu0
    %v4283 = vadd.f32 %v4270, %v4282
    %v4284 = vpop.f32.mrf.mxu0
    %4285 = vdwg.mxu0
    %4286 = vmatpush.bf16.msra.mxu0 %v2931
    %4287 = vmatpush.bf16.msra.mxu0 %v2923
    %4288 = vmatpush.bf16.msra.mxu0 %v2915
    %4289 = vmatpush.bf16.msra.mxu0 %v2907
    %4290 = vmatpush.bf16.msra.mxu0 %v2899
    %4291 = vmatpush.bf16.msra.mxu0 %v2891
    %4292 = vmatpush.bf16.msra.mxu0 %v2883
    %4293 = vmatpush.bf16.msra.mxu0 %v2875
    %4294 = vmatmul.bf16.gmra.mxu0 %v4154
    %v4295 = vpop.f32.mrf.mxu0
    %v4296 = vadd.f32 %v4283, %v4295
    %v4297 = vpop.f32.mrf.mxu0
    %4298 = vdwg.mxu0
    %4299 = vmatpush.bf16.msra.mxu0 %v2995
    %4300 = vmatpush.bf16.msra.mxu0 %v2987
    %4301 = vmatpush.bf16.msra.mxu0 %v2979
    %4302 = vmatpush.bf16.msra.mxu0 %v2971
    %4303 = vmatpush.bf16.msra.mxu0 %v2963
    %4304 = vmatpush.bf16.msra.mxu0 %v2955
    %4305 = vmatpush.bf16.msra.mxu0 %v2947
    %4306 = vmatpush.bf16.msra.mxu0 %v2939
    %4307 = vmatmul.bf16.gmra.mxu0 %v4155
    %v4308 = vpop.f32.mrf.mxu0
    %v4309 = vadd.f32 %v4296, %v4308
    %v4310 = vpop.f32.mrf.mxu0
    %4311 = vdwg.mxu0
    %4312 = vmatpush.bf16.msra.mxu0 %v2804
    %4313 = vmatpush.bf16.msra.mxu0 %v2796
    %4314 = vmatpush.bf16.msra.mxu0 %v2788
    %4315 = vmatpush.bf16.msra.mxu0 %v2780
    %4316 = vmatpush.bf16.msra.mxu0 %v2772
    %4317 = vmatpush.bf16.msra.mxu0 %v2764
    %4318 = vmatpush.bf16.msra.mxu0 %v2756
    %4319 = vmatpush.bf16.msra.mxu0 %v2748
    %4320 = vmatmul.bf16.gmra.mxu0 %v4152
    %v4321 = vpop.f32.mrf.mxu0
    %v4322 = vadd.f32 %v1964, %v4321
    %v4323 = vpop.f32.mrf.mxu0
    %4324 = vdwg.mxu0
    %4325 = vmatpush.bf16.msra.mxu0 %v2868
    %4326 = vmatpush.bf16.msra.mxu0 %v2860
    %4327 = vmatpush.bf16.msra.mxu0 %v2852
    %4328 = vmatpush.bf16.msra.mxu0 %v2844
    %4329 = vmatpush.bf16.msra.mxu0 %v2836
    %4330 = vmatpush.bf16.msra.mxu0 %v2828
    %4331 = vmatpush.bf16.msra.mxu0 %v2820
    %4332 = vmatpush.bf16.msra.mxu0 %v2812
    %4333 = vmatmul.bf16.gmra.mxu0 %v4153
    %v4334 = vpop.f32.mrf.mxu0
    %v4335 = vadd.f32 %v4322, %v4334
    %v4336 = vpop.f32.mrf.mxu0
    %4337 = vdwg.mxu0
    %4338 = vmatpush.bf16.msra.mxu0 %v2932
    %4339 = vmatpush.bf16.msra.mxu0 %v2924
    %4340 = vmatpush.bf16.msra.mxu0 %v2916
    %4341 = vmatpush.bf16.msra.mxu0 %v2908
    %4342 = vmatpush.bf16.msra.mxu0 %v2900
    %4343 = vmatpush.bf16.msra.mxu0 %v2892
    %4344 = vmatpush.bf16.msra.mxu0 %v2884
    %4345 = vmatpush.bf16.msra.mxu0 %v2876
    %4346 = vmatmul.bf16.gmra.mxu0 %v4154
    %v4347 = vpop.f32.mrf.mxu0
    %v4348 = vadd.f32 %v4335, %v4347
    %v4349 = vpop.f32.mrf.mxu0
    %4350 = vdwg.mxu0
    %4351 = vmatpush.bf16.msra.mxu0 %v2996
    %4352 = vmatpush.bf16.msra.mxu0 %v2988
    %4353 = vmatpush.bf16.msra.mxu0 %v2980
    %4354 = vmatpush.bf16.msra.mxu0 %v2972
    %4355 = vmatpush.bf16.msra.mxu0 %v2964
    %4356 = vmatpush.bf16.msra.mxu0 %v2956
    %4357 = vmatpush.bf16.msra.mxu0 %v2948
    %4358 = vmatpush.bf16.msra.mxu0 %v2940
    %4359 = vmatmul.bf16.gmra.mxu0 %v4155
    %v4360 = vpop.f32.mrf.mxu0
    %v4361 = vadd.f32 %v4348, %v4360
    %v4362 = vpop.f32.mrf.mxu0
    %4363 = vdwg.mxu0
    %4364 = vmatpush.bf16.msra.mxu0 %v2805
    %4365 = vmatpush.bf16.msra.mxu0 %v2797
    %4366 = vmatpush.bf16.msra.mxu0 %v2789
    %4367 = vmatpush.bf16.msra.mxu0 %v2781
    %4368 = vmatpush.bf16.msra.mxu0 %v2773
    %4369 = vmatpush.bf16.msra.mxu0 %v2765
    %4370 = vmatpush.bf16.msra.mxu0 %v2757
    %4371 = vmatpush.bf16.msra.mxu0 %v2749
    %4372 = vmatmul.bf16.gmra.mxu0 %v4152
    %v4373 = vpop.f32.mrf.mxu0
    %v4374 = vadd.f32 %v1965, %v4373
    %v4375 = vpop.f32.mrf.mxu0
    %4376 = vdwg.mxu0
    %4377 = vmatpush.bf16.msra.mxu0 %v2869
    %4378 = vmatpush.bf16.msra.mxu0 %v2861
    %4379 = vmatpush.bf16.msra.mxu0 %v2853
    %4380 = vmatpush.bf16.msra.mxu0 %v2845
    %4381 = vmatpush.bf16.msra.mxu0 %v2837
    %4382 = vmatpush.bf16.msra.mxu0 %v2829
    %4383 = vmatpush.bf16.msra.mxu0 %v2821
    %4384 = vmatpush.bf16.msra.mxu0 %v2813
    %4385 = vmatmul.bf16.gmra.mxu0 %v4153
    %v4386 = vpop.f32.mrf.mxu0
    %v4387 = vadd.f32 %v4374, %v4386
    %v4388 = vpop.f32.mrf.mxu0
    %4389 = vdwg.mxu0
    %4390 = vmatpush.bf16.msra.mxu0 %v2933
    %4391 = vmatpush.bf16.msra.mxu0 %v2925
    %4392 = vmatpush.bf16.msra.mxu0 %v2917
    %4393 = vmatpush.bf16.msra.mxu0 %v2909
    %4394 = vmatpush.bf16.msra.mxu0 %v2901
    %4395 = vmatpush.bf16.msra.mxu0 %v2893
    %4396 = vmatpush.bf16.msra.mxu0 %v2885
    %4397 = vmatpush.bf16.msra.mxu0 %v2877
    %4398 = vmatmul.bf16.gmra.mxu0 %v4154
    %v4399 = vpop.f32.mrf.mxu0
    %v4400 = vadd.f32 %v4387, %v4399
    %v4401 = vpop.f32.mrf.mxu0
    %4402 = vdwg.mxu0
    %4403 = vmatpush.bf16.msra.mxu0 %v2997
    %4404 = vmatpush.bf16.msra.mxu0 %v2989
    %4405 = vmatpush.bf16.msra.mxu0 %v2981
    %4406 = vmatpush.bf16.msra.mxu0 %v2973
    %4407 = vmatpush.bf16.msra.mxu0 %v2965
    %4408 = vmatpush.bf16.msra.mxu0 %v2957
    %4409 = vmatpush.bf16.msra.mxu0 %v2949
    %4410 = vmatpush.bf16.msra.mxu0 %v2941
    %4411 = vmatmul.bf16.gmra.mxu0 %v4155
    %v4412 = vpop.f32.mrf.mxu0
    %v4413 = vadd.f32 %v4400, %v4412
    %v4414 = vpop.f32.mrf.mxu0
    %4415 = vdwg.mxu0
    %4416 = vmatpush.bf16.msra.mxu0 %v2806
    %4417 = vmatpush.bf16.msra.mxu0 %v2798
    %4418 = vmatpush.bf16.msra.mxu0 %v2790
    %4419 = vmatpush.bf16.msra.mxu0 %v2782
    %4420 = vmatpush.bf16.msra.mxu0 %v2774
    %4421 = vmatpush.bf16.msra.mxu0 %v2766
    %4422 = vmatpush.bf16.msra.mxu0 %v2758
    %4423 = vmatpush.bf16.msra.mxu0 %v2750
    %4424 = vmatmul.bf16.gmra.mxu0 %v4152
    %v4425 = vpop.f32.mrf.mxu0
    %v4426 = vadd.f32 %v1966, %v4425
    %v4427 = vpop.f32.mrf.mxu0
    %4428 = vdwg.mxu0
    %4429 = vmatpush.bf16.msra.mxu0 %v2870
    %4430 = vmatpush.bf16.msra.mxu0 %v2862
    %4431 = vmatpush.bf16.msra.mxu0 %v2854
    %4432 = vmatpush.bf16.msra.mxu0 %v2846
    %4433 = vmatpush.bf16.msra.mxu0 %v2838
    %4434 = vmatpush.bf16.msra.mxu0 %v2830
    %4435 = vmatpush.bf16.msra.mxu0 %v2822
    %4436 = vmatpush.bf16.msra.mxu0 %v2814
    %4437 = vmatmul.bf16.gmra.mxu0 %v4153
    %v4438 = vpop.f32.mrf.mxu0
    %v4439 = vadd.f32 %v4426, %v4438
    %v4440 = vpop.f32.mrf.mxu0
    %4441 = vdwg.mxu0
    %4442 = vmatpush.bf16.msra.mxu0 %v2934
    %4443 = vmatpush.bf16.msra.mxu0 %v2926
    %4444 = vmatpush.bf16.msra.mxu0 %v2918
    %4445 = vmatpush.bf16.msra.mxu0 %v2910
    %4446 = vmatpush.bf16.msra.mxu0 %v2902
    %4447 = vmatpush.bf16.msra.mxu0 %v2894
    %4448 = vmatpush.bf16.msra.mxu0 %v2886
    %4449 = vmatpush.bf16.msra.mxu0 %v2878
    %4450 = vmatmul.bf16.gmra.mxu0 %v4154
    %v4451 = vpop.f32.mrf.mxu0
    %v4452 = vadd.f32 %v4439, %v4451
    %v4453 = vpop.f32.mrf.mxu0
    %4454 = vdwg.mxu0
    %4455 = vmatpush.bf16.msra.mxu0 %v2998
    %4456 = vmatpush.bf16.msra.mxu0 %v2990
    %4457 = vmatpush.bf16.msra.mxu0 %v2982
    %4458 = vmatpush.bf16.msra.mxu0 %v2974
    %4459 = vmatpush.bf16.msra.mxu0 %v2966
    %4460 = vmatpush.bf16.msra.mxu0 %v2958
    %4461 = vmatpush.bf16.msra.mxu0 %v2950
    %4462 = vmatpush.bf16.msra.mxu0 %v2942
    %4463 = vmatmul.bf16.gmra.mxu0 %v4155
    %v4464 = vpop.f32.mrf.mxu0
    %v4465 = vadd.f32 %v4452, %v4464
    %v4466 = vpop.f32.mrf.mxu0
    %4467 = vdwg.mxu0
    %4468 = vmatpush.bf16.msra.mxu0 %v2807
    %4469 = vmatpush.bf16.msra.mxu0 %v2799
    %4470 = vmatpush.bf16.msra.mxu0 %v2791
    %4471 = vmatpush.bf16.msra.mxu0 %v2783
    %4472 = vmatpush.bf16.msra.mxu0 %v2775
    %4473 = vmatpush.bf16.msra.mxu0 %v2767
    %4474 = vmatpush.bf16.msra.mxu0 %v2759
    %4475 = vmatpush.bf16.msra.mxu0 %v2751
    %4476 = vmatmul.bf16.gmra.mxu0 %v4152
    %v4477 = vpop.f32.mrf.mxu0
    %v4478 = vadd.f32 %v1967, %v4477
    %v4479 = vpop.f32.mrf.mxu0
    %4480 = vdwg.mxu0
    %4481 = vmatpush.bf16.msra.mxu0 %v2871
    %4482 = vmatpush.bf16.msra.mxu0 %v2863
    %4483 = vmatpush.bf16.msra.mxu0 %v2855
    %4484 = vmatpush.bf16.msra.mxu0 %v2847
    %4485 = vmatpush.bf16.msra.mxu0 %v2839
    %4486 = vmatpush.bf16.msra.mxu0 %v2831
    %4487 = vmatpush.bf16.msra.mxu0 %v2823
    %4488 = vmatpush.bf16.msra.mxu0 %v2815
    %4489 = vmatmul.bf16.gmra.mxu0 %v4153
    %v4490 = vpop.f32.mrf.mxu0
    %v4491 = vadd.f32 %v4478, %v4490
    %v4492 = vpop.f32.mrf.mxu0
    %4493 = vdwg.mxu0
    %4494 = vmatpush.bf16.msra.mxu0 %v2935
    %4495 = vmatpush.bf16.msra.mxu0 %v2927
    %4496 = vmatpush.bf16.msra.mxu0 %v2919
    %4497 = vmatpush.bf16.msra.mxu0 %v2911
    %4498 = vmatpush.bf16.msra.mxu0 %v2903
    %4499 = vmatpush.bf16.msra.mxu0 %v2895
    %4500 = vmatpush.bf16.msra.mxu0 %v2887
    %4501 = vmatpush.bf16.msra.mxu0 %v2879
    %4502 = vmatmul.bf16.gmra.mxu0 %v4154
    %v4503 = vpop.f32.mrf.mxu0
    %v4504 = vadd.f32 %v4491, %v4503
    %v4505 = vpop.f32.mrf.mxu0
    %4506 = vdwg.mxu0
    %4507 = vmatpush.bf16.msra.mxu0 %v2999
    %4508 = vmatpush.bf16.msra.mxu0 %v2991
    %4509 = vmatpush.bf16.msra.mxu0 %v2983
    %4510 = vmatpush.bf16.msra.mxu0 %v2975
    %4511 = vmatpush.bf16.msra.mxu0 %v2967
    %4512 = vmatpush.bf16.msra.mxu0 %v2959
    %4513 = vmatpush.bf16.msra.mxu0 %v2951
    %4514 = vmatpush.bf16.msra.mxu0 %v2943
    %4515 = vmatmul.bf16.gmra.mxu0 %v4155
    %v4516 = vpop.f32.mrf.mxu0
    %v4517 = vadd.f32 %v4504, %v4516
    %v4518 = vpop.f32.mrf.mxu0
    %4519 = vdwg.mxu0
    %4520 = vmatpush.bf16.msra.mxu0 %v2808
    %4521 = vmatpush.bf16.msra.mxu0 %v2800
    %4522 = vmatpush.bf16.msra.mxu0 %v2792
    %4523 = vmatpush.bf16.msra.mxu0 %v2784
    %4524 = vmatpush.bf16.msra.mxu0 %v2776
    %4525 = vmatpush.bf16.msra.mxu0 %v2768
    %4526 = vmatpush.bf16.msra.mxu0 %v2760
    %4527 = vmatpush.bf16.msra.mxu0 %v2752
    %4528 = vmatmul.bf16.gmra.mxu0 %v4152
    %v4529 = vpop.f32.mrf.mxu0
    %v4530 = vadd.f32 %v1968, %v4529
    %v4531 = vpop.f32.mrf.mxu0
    %4532 = vdwg.mxu0
    %4533 = vmatpush.bf16.msra.mxu0 %v2872
    %4534 = vmatpush.bf16.msra.mxu0 %v2864
    %4535 = vmatpush.bf16.msra.mxu0 %v2856
    %4536 = vmatpush.bf16.msra.mxu0 %v2848
    %4537 = vmatpush.bf16.msra.mxu0 %v2840
    %4538 = vmatpush.bf16.msra.mxu0 %v2832
    %4539 = vmatpush.bf16.msra.mxu0 %v2824
    %4540 = vmatpush.bf16.msra.mxu0 %v2816
    %4541 = vmatmul.bf16.gmra.mxu0 %v4153
    %v4542 = vpop.f32.mrf.mxu0
    %v4543 = vadd.f32 %v4530, %v4542
    %v4544 = vpop.f32.mrf.mxu0
    %4545 = vdwg.mxu0
    %4546 = vmatpush.bf16.msra.mxu0 %v2936
    %4547 = vmatpush.bf16.msra.mxu0 %v2928
    %4548 = vmatpush.bf16.msra.mxu0 %v2920
    %4549 = vmatpush.bf16.msra.mxu0 %v2912
    %4550 = vmatpush.bf16.msra.mxu0 %v2904
    %4551 = vmatpush.bf16.msra.mxu0 %v2896
    %4552 = vmatpush.bf16.msra.mxu0 %v2888
    %4553 = vmatpush.bf16.msra.mxu0 %v2880
    %4554 = vmatmul.bf16.gmra.mxu0 %v4154
    %v4555 = vpop.f32.mrf.mxu0
    %v4556 = vadd.f32 %v4543, %v4555
    %v4557 = vpop.f32.mrf.mxu0
    %4558 = vdwg.mxu0
    %4559 = vmatpush.bf16.msra.mxu0 %v3000
    %4560 = vmatpush.bf16.msra.mxu0 %v2992
    %4561 = vmatpush.bf16.msra.mxu0 %v2984
    %4562 = vmatpush.bf16.msra.mxu0 %v2976
    %4563 = vmatpush.bf16.msra.mxu0 %v2968
    %4564 = vmatpush.bf16.msra.mxu0 %v2960
    %4565 = vmatpush.bf16.msra.mxu0 %v2952
    %4566 = vmatpush.bf16.msra.mxu0 %v2944
    %4567 = vmatmul.bf16.gmra.mxu0 %v4155
    %v4568 = vpop.f32.mrf.mxu0
    %v4569 = vadd.f32 %v4556, %v4568
    %v4570 = vpop.f32.mrf.mxu0
    %4571 = vdwg.mxu0
    %v4572 = vxor.u32 %v4205, 2147483648
    %v4573 = vxor.u32 %v4257, 2147483648
    %v4574 = vmul.f32 %v4572, 1.442695
    %v4575 = vpow.pop %v4574
    %v4576 = vmul.f32 %v4573, 1.442695
    %v4577 = vpow.pop %v4576
    %v4578 = vadd.f32 %v4575, 1.0
    %v4579 = vadd.f32 %v4577, 1.0
    %v4580 = vrcp.pop %v4578
    %v4581 = vmul.f32 %v4578, %v4580
    %v4582 = vsub.f32 1.0, %v4581
    %v4583 = vmul.f32 %v4580, %v4582
    %v4584 = vadd.f32 %v4580, %v4583
    %vm4585 = vweird.f32 %v4578
    %vm4586 = vweird.f32 %v4580
    %vm4587 = vmor %vm4585, %vm4586
    %v4588 = vsel %vm4587, %v4580, %v4584
    %v4589 = vand.u32 2147483647, %v4578
    %vm4590 = vcmp.eq.f32.partialorder %v4589, 8.507059e+37
    %v4591 = vand.u32 %v4578, 2147483648
    %v4592 = vor.u32 1.1754944e-38, %v4591
    %v4593 = vsel %vm4590, %v4592, %v4588
    %v4594 = vmul.f32 1.0, %v4593
    %v4595 = vrcp.pop %v4579
    %v4596 = vmul.f32 %v4579, %v4595
    %v4597 = vsub.f32 1.0, %v4596
    %v4598 = vmul.f32 %v4595, %v4597
    %v4599 = vadd.f32 %v4595, %v4598
    %vm4600 = vweird.f32 %v4579
    %vm4601 = vweird.f32 %v4595
    %vm4602 = vmor %vm4600, %vm4601
    %v4603 = vsel %vm4602, %v4595, %v4599
    %v4604 = vand.u32 2147483647, %v4579
    %vm4605 = vcmp.eq.f32.partialorder %v4604, 8.507059e+37
    %v4606 = vand.u32 %v4579, 2147483648
    %v4607 = vor.u32 1.1754944e-38, %v4606
    %v4608 = vsel %vm4605, %v4607, %v4603
    %v4609 = vmul.f32 1.0, %v4608
    %v4610 = vxor.u32 %v4309, 2147483648
    %v4611 = vxor.u32 %v4361, 2147483648
    %v4612 = vmul.f32 %v4610, 1.442695
    %v4613 = vpow.pop %v4612
    %v4614 = vmul.f32 %v4611, 1.442695
    %v4615 = vpow.pop %v4614
    %v4616 = vadd.f32 %v4613, 1.0
    %v4617 = vadd.f32 %v4615, 1.0
    %v4618 = vrcp.pop %v4616
    %v4619 = vmul.f32 %v4616, %v4618
    %v4620 = vsub.f32 1.0, %v4619
    %v4621 = vmul.f32 %v4618, %v4620
    %v4622 = vadd.f32 %v4618, %v4621
    %vm4623 = vweird.f32 %v4616
    %vm4624 = vweird.f32 %v4618
    %vm4625 = vmor %vm4623, %vm4624
    %v4626 = vsel %vm4625, %v4618, %v4622
    %v4627 = vand.u32 2147483647, %v4616
    %vm4628 = vcmp.eq.f32.partialorder %v4627, 8.507059e+37
    %v4629 = vand.u32 %v4616, 2147483648
    %v4630 = vor.u32 1.1754944e-38, %v4629
    %v4631 = vsel %vm4628, %v4630, %v4626
    %v4632 = vmul.f32 1.0, %v4631
    %v4633 = vrcp.pop %v4617
    %v4634 = vmul.f32 %v4617, %v4633
    %v4635 = vsub.f32 1.0, %v4634
    %v4636 = vmul.f32 %v4633, %v4635
    %v4637 = vadd.f32 %v4633, %v4636
    %vm4638 = vweird.f32 %v4617
    %vm4639 = vweird.f32 %v4633
    %vm4640 = vmor %vm4638, %vm4639
    %v4641 = vsel %vm4640, %v4633, %v4637
    %v4642 = vand.u32 2147483647, %v4617
    %vm4643 = vcmp.eq.f32.partialorder %v4642, 8.507059e+37
    %v4644 = vand.u32 %v4617, 2147483648
    %v4645 = vor.u32 1.1754944e-38, %v4644
    %v4646 = vsel %vm4643, %v4645, %v4641
    %v4647 = vmul.f32 1.0, %v4646
    %v4648 = vtanh.pop %v4413
    %v4649 = vtanh.pop %v4465
    %v4650 = vxor.u32 %v4517, 2147483648
    %v4651 = vxor.u32 %v4569, 2147483648
    %v4652 = vmul.f32 %v4650, 1.442695
    %v4653 = vpow.pop %v4652
    %v4654 = vmul.f32 %v4651, 1.442695
    %v4655 = vpow.pop %v4654
    %v4656 = vadd.f32 %v4653, 1.0
    %v4657 = vadd.f32 %v4655, 1.0
    %v4658 = vrcp.pop %v4656
    %v4659 = vmul.f32 %v4656, %v4658
    %v4660 = vsub.f32 1.0, %v4659
    %v4661 = vmul.f32 %v4658, %v4660
    %v4662 = vadd.f32 %v4658, %v4661
    %vm4663 = vweird.f32 %v4656
    %vm4664 = vweird.f32 %v4658
    %vm4665 = vmor %vm4663, %vm4664
    %v4666 = vsel %vm4665, %v4658, %v4662
    %v4667 = vand.u32 2147483647, %v4656
    %vm4668 = vcmp.eq.f32.partialorder %v4667, 8.507059e+37
    %v4669 = vand.u32 %v4656, 2147483648
    %v4670 = vor.u32 1.1754944e-38, %v4669
    %v4671 = vsel %vm4668, %v4670, %v4666
    %v4672 = vmul.f32 1.0, %v4671
    %v4673 = vrcp.pop %v4657
    %v4674 = vmul.f32 %v4657, %v4673
    %v4675 = vsub.f32 1.0, %v4674
    %v4676 = vmul.f32 %v4673, %v4675
    %v4677 = vadd.f32 %v4673, %v4676
    %vm4678 = vweird.f32 %v4657
    %vm4679 = vweird.f32 %v4673
    %vm4680 = vmor %vm4678, %vm4679
    %v4681 = vsel %vm4680, %v4673, %v4677
    %v4682 = vand.u32 2147483647, %v4657
    %vm4683 = vcmp.eq.f32.partialorder %v4682, 8.507059e+37
    %v4684 = vand.u32 %v4657, 2147483648
    %v4685 = vor.u32 1.1754944e-38, %v4684
    %v4686 = vsel %vm4683, %v4685, %v4681
    %v4687 = vmul.f32 1.0, %v4686
    %v4688 = vmul.f32 %v4632, %v3793
    %v4689 = vmul.f32 %v4647, %v3794
    %v4690 = vmul.f32 %v4594, %v4648
    %v4691 = vmul.f32 %v4609, %v4649
    %v4692 = vadd.f32 %v4688, %v4690
    %v4693 = vadd.f32 %v4689, %v4691
    %v4694 = vtanh.pop %v4692
    %v4695 = vtanh.pop %v4693
    %v4696 = vmul.f32 %v4672, %v4694
    %v4697 = vmul.f32 %v4687, %v4695
    %s4698 = smul.u32 2, 8
    %s4699 = smul.addr %s4698, 8
    %s4700 = scalar_lea.vmem [#allocation2], %s4699
    %v4701 = vld [vmem:[%s4700] sm:$0xff]
    %v4702 = vld [vmem:[%s4700 + $0x8] sm:$0xff]
    %v4703 = vld [vmem:[%s4700 + $0x10] sm:$0xff]
    %v4704 = vld [vmem:[%s4700 + $0x18] sm:$0xff]
    %v4705 = vld [vmem:[%s4700 + $0x20] sm:$0xff]
    %v4706 = vld [vmem:[%s4700 + $0x28] sm:$0xff]
    %v4707 = vld [vmem:[%s4700 + $0x30] sm:$0xff]
    %v4708 = vld [vmem:[%s4700 + $0x38] sm:$0xff]
    %4709 = vmatpush.bf16.msra.mxu0 %v1414
    %4710 = vmatpush.bf16.msra.mxu0 %v1406
    %4711 = vmatpush.bf16.msra.mxu0 %v1398
    %4712 = vmatpush.bf16.msra.mxu0 %v1390
    %4713 = vmatpush.bf16.msra.mxu0 %v1382
    %4714 = vmatpush.bf16.msra.mxu0 %v1374
    %4715 = vmatpush.bf16.msra.mxu0 %v1366
    %4716 = vmatpush.bf16.msra.mxu0 %v1358
    %4717 = vmatmul.bf16.gmra.mxu0 %v4152
    %v4718 = vpop.f32.mrf.mxu0
    %v4719 = vadd.f32 0.0, %v4718
    %v4720 = vpop.f32.mrf.mxu0
    %4721 = vdwg.mxu0
    %4722 = vmatpush.bf16.msra.mxu0 %v1478
    %4723 = vmatpush.bf16.msra.mxu0 %v1470
    %4724 = vmatpush.bf16.msra.mxu0 %v1462
    %4725 = vmatpush.bf16.msra.mxu0 %v1454
    %4726 = vmatpush.bf16.msra.mxu0 %v1446
    %4727 = vmatpush.bf16.msra.mxu0 %v1438
    %4728 = vmatpush.bf16.msra.mxu0 %v1430
    %4729 = vmatpush.bf16.msra.mxu0 %v1422
    %4730 = vmatmul.bf16.gmra.mxu0 %v4153
    %v4731 = vpop.f32.mrf.mxu0
    %v4732 = vadd.f32 %v4719, %v4731
    %v4733 = vpop.f32.mrf.mxu0
    %4734 = vdwg.mxu0
    %4735 = vmatpush.bf16.msra.mxu0 %v1415
    %4736 = vmatpush.bf16.msra.mxu0 %v1407
    %4737 = vmatpush.bf16.msra.mxu0 %v1399
    %4738 = vmatpush.bf16.msra.mxu0 %v1391
    %4739 = vmatpush.bf16.msra.mxu0 %v1383
    %4740 = vmatpush.bf16.msra.mxu0 %v1375
    %4741 = vmatpush.bf16.msra.mxu0 %v1367
    %4742 = vmatpush.bf16.msra.mxu0 %v1359
    %4743 = vmatmul.bf16.gmra.mxu0 %v4152
    %v4744 = vpop.f32.mrf.mxu0
    %v4745 = vadd.f32 0.0, %v4744
    %v4746 = vpop.f32.mrf.mxu0
    %4747 = vdwg.mxu0
    %4748 = vmatpush.bf16.msra.mxu0 %v1479
    %4749 = vmatpush.bf16.msra.mxu0 %v1471
    %4750 = vmatpush.bf16.msra.mxu0 %v1463
    %4751 = vmatpush.bf16.msra.mxu0 %v1455
    %4752 = vmatpush.bf16.msra.mxu0 %v1447
    %4753 = vmatpush.bf16.msra.mxu0 %v1439
    %4754 = vmatpush.bf16.msra.mxu0 %v1431
    %4755 = vmatpush.bf16.msra.mxu0 %v1423
    %4756 = vmatmul.bf16.gmra.mxu0 %v4153
    %v4757 = vpop.f32.mrf.mxu0
    %v4758 = vadd.f32 %v4745, %v4757
    %v4759 = vpop.f32.mrf.mxu0
    %4760 = vdwg.mxu0
    %4761 = vmatpush.bf16.msra.mxu0 %v1416
    %4762 = vmatpush.bf16.msra.mxu0 %v1408
    %4763 = vmatpush.bf16.msra.mxu0 %v1400
    %4764 = vmatpush.bf16.msra.mxu0 %v1392
    %4765 = vmatpush.bf16.msra.mxu0 %v1384
    %4766 = vmatpush.bf16.msra.mxu0 %v1376
    %4767 = vmatpush.bf16.msra.mxu0 %v1368
    %4768 = vmatpush.bf16.msra.mxu0 %v1360
    %4769 = vmatmul.bf16.gmra.mxu0 %v4152
    %v4770 = vpop.f32.mrf.mxu0
    %v4771 = vadd.f32 0.0, %v4770
    %v4772 = vpop.f32.mrf.mxu0
    %4773 = vdwg.mxu0
    %4774 = vmatpush.bf16.msra.mxu0 %v1480
    %4775 = vmatpush.bf16.msra.mxu0 %v1472
    %4776 = vmatpush.bf16.msra.mxu0 %v1464
    %4777 = vmatpush.bf16.msra.mxu0 %v1456
    %4778 = vmatpush.bf16.msra.mxu0 %v1448
    %4779 = vmatpush.bf16.msra.mxu0 %v1440
    %4780 = vmatpush.bf16.msra.mxu0 %v1432
    %4781 = vmatpush.bf16.msra.mxu0 %v1424
    %4782 = vmatmul.bf16.gmra.mxu0 %v4153
    %v4783 = vpop.f32.mrf.mxu0
    %v4784 = vadd.f32 %v4771, %v4783
    %v4785 = vpop.f32.mrf.mxu0
    %4786 = vdwg.mxu0
    %4787 = vmatpush.bf16.msra.mxu0 %v1417
    %4788 = vmatpush.bf16.msra.mxu0 %v1409
    %4789 = vmatpush.bf16.msra.mxu0 %v1401
    %4790 = vmatpush.bf16.msra.mxu0 %v1393
    %4791 = vmatpush.bf16.msra.mxu0 %v1385
    %4792 = vmatpush.bf16.msra.mxu0 %v1377
    %4793 = vmatpush.bf16.msra.mxu0 %v1369
    %4794 = vmatpush.bf16.msra.mxu0 %v1361
    %4795 = vmatmul.bf16.gmra.mxu0 %v4152
    %v4796 = vpop.f32.mrf.mxu0
    %v4797 = vadd.f32 0.0, %v4796
    %v4798 = vpop.f32.mrf.mxu0
    %4799 = vdwg.mxu0
    %4800 = vmatpush.bf16.msra.mxu0 %v1481
    %4801 = vmatpush.bf16.msra.mxu0 %v1473
    %4802 = vmatpush.bf16.msra.mxu0 %v1465
    %4803 = vmatpush.bf16.msra.mxu0 %v1457
    %4804 = vmatpush.bf16.msra.mxu0 %v1449
    %4805 = vmatpush.bf16.msra.mxu0 %v1441
    %4806 = vmatpush.bf16.msra.mxu0 %v1433
    %4807 = vmatpush.bf16.msra.mxu0 %v1425
    %4808 = vmatmul.bf16.gmra.mxu0 %v4153
    %v4809 = vpop.f32.mrf.mxu0
    %v4810 = vadd.f32 %v4797, %v4809
    %v4811 = vpop.f32.mrf.mxu0
    %4812 = vdwg.mxu0
    %4813 = vmatpush.bf16.msra.mxu0 %v1418
    %4814 = vmatpush.bf16.msra.mxu0 %v1410
    %4815 = vmatpush.bf16.msra.mxu0 %v1402
    %4816 = vmatpush.bf16.msra.mxu0 %v1394
    %4817 = vmatpush.bf16.msra.mxu0 %v1386
    %4818 = vmatpush.bf16.msra.mxu0 %v1378
    %4819 = vmatpush.bf16.msra.mxu0 %v1370
    %4820 = vmatpush.bf16.msra.mxu0 %v1362
    %4821 = vmatmul.bf16.gmra.mxu0 %v4152
    %v4822 = vpop.f32.mrf.mxu0
    %v4823 = vadd.f32 0.0, %v4822
    %v4824 = vpop.f32.mrf.mxu0
    %4825 = vdwg.mxu0
    %4826 = vmatpush.bf16.msra.mxu0 %v1482
    %4827 = vmatpush.bf16.msra.mxu0 %v1474
    %4828 = vmatpush.bf16.msra.mxu0 %v1466
    %4829 = vmatpush.bf16.msra.mxu0 %v1458
    %4830 = vmatpush.bf16.msra.mxu0 %v1450
    %4831 = vmatpush.bf16.msra.mxu0 %v1442
    %4832 = vmatpush.bf16.msra.mxu0 %v1434
    %4833 = vmatpush.bf16.msra.mxu0 %v1426
    %4834 = vmatmul.bf16.gmra.mxu0 %v4153
    %v4835 = vpop.f32.mrf.mxu0
    %v4836 = vadd.f32 %v4823, %v4835
    %v4837 = vpop.f32.mrf.mxu0
    %4838 = vdwg.mxu0
    %4839 = vmatpush.bf16.msra.mxu0 %v1419
    %4840 = vmatpush.bf16.msra.mxu0 %v1411
    %4841 = vmatpush.bf16.msra.mxu0 %v1403
    %4842 = vmatpush.bf16.msra.mxu0 %v1395
    %4843 = vmatpush.bf16.msra.mxu0 %v1387
    %4844 = vmatpush.bf16.msra.mxu0 %v1379
    %4845 = vmatpush.bf16.msra.mxu0 %v1371
    %4846 = vmatpush.bf16.msra.mxu0 %v1363
    %4847 = vmatmul.bf16.gmra.mxu0 %v4152
    %v4848 = vpop.f32.mrf.mxu0
    %v4849 = vadd.f32 0.0, %v4848
    %v4850 = vpop.f32.mrf.mxu0
    %4851 = vdwg.mxu0
    %4852 = vmatpush.bf16.msra.mxu0 %v1483
    %4853 = vmatpush.bf16.msra.mxu0 %v1475
    %4854 = vmatpush.bf16.msra.mxu0 %v1467
    %4855 = vmatpush.bf16.msra.mxu0 %v1459
    %4856 = vmatpush.bf16.msra.mxu0 %v1451
    %4857 = vmatpush.bf16.msra.mxu0 %v1443
    %4858 = vmatpush.bf16.msra.mxu0 %v1435
    %4859 = vmatpush.bf16.msra.mxu0 %v1427
    %4860 = vmatmul.bf16.gmra.mxu0 %v4153
    %v4861 = vpop.f32.mrf.mxu0
    %v4862 = vadd.f32 %v4849, %v4861
    %v4863 = vpop.f32.mrf.mxu0
    %4864 = vdwg.mxu0
    %4865 = vmatpush.bf16.msra.mxu0 %v1420
    %4866 = vmatpush.bf16.msra.mxu0 %v1412
    %4867 = vmatpush.bf16.msra.mxu0 %v1404
    %4868 = vmatpush.bf16.msra.mxu0 %v1396
    %4869 = vmatpush.bf16.msra.mxu0 %v1388
    %4870 = vmatpush.bf16.msra.mxu0 %v1380
    %4871 = vmatpush.bf16.msra.mxu0 %v1372
    %4872 = vmatpush.bf16.msra.mxu0 %v1364
    %4873 = vmatmul.bf16.gmra.mxu0 %v4152
    %v4874 = vpop.f32.mrf.mxu0
    %v4875 = vadd.f32 0.0, %v4874
    %v4876 = vpop.f32.mrf.mxu0
    %4877 = vdwg.mxu0
    %4878 = vmatpush.bf16.msra.mxu0 %v1484
    %4879 = vmatpush.bf16.msra.mxu0 %v1476
    %4880 = vmatpush.bf16.msra.mxu0 %v1468
    %4881 = vmatpush.bf16.msra.mxu0 %v1460
    %4882 = vmatpush.bf16.msra.mxu0 %v1452
    %4883 = vmatpush.bf16.msra.mxu0 %v1444
    %4884 = vmatpush.bf16.msra.mxu0 %v1436
    %4885 = vmatpush.bf16.msra.mxu0 %v1428
    %4886 = vmatmul.bf16.gmra.mxu0 %v4153
    %v4887 = vpop.f32.mrf.mxu0
    %v4888 = vadd.f32 %v4875, %v4887
    %v4889 = vpop.f32.mrf.mxu0
    %4890 = vdwg.mxu0
    %4891 = vmatpush.bf16.msra.mxu0 %v1421
    %4892 = vmatpush.bf16.msra.mxu0 %v1413
    %4893 = vmatpush.bf16.msra.mxu0 %v1405
    %4894 = vmatpush.bf16.msra.mxu0 %v1397
    %4895 = vmatpush.bf16.msra.mxu0 %v1389
    %4896 = vmatpush.bf16.msra.mxu0 %v1381
    %4897 = vmatpush.bf16.msra.mxu0 %v1373
    %4898 = vmatpush.bf16.msra.mxu0 %v1365
    %4899 = vmatmul.bf16.gmra.mxu0 %v4152
    %v4900 = vpop.f32.mrf.mxu0
    %v4901 = vadd.f32 0.0, %v4900
    %v4902 = vpop.f32.mrf.mxu0
    %4903 = vdwg.mxu0
    %4904 = vmatpush.bf16.msra.mxu0 %v1485
    %4905 = vmatpush.bf16.msra.mxu0 %v1477
    %4906 = vmatpush.bf16.msra.mxu0 %v1469
    %4907 = vmatpush.bf16.msra.mxu0 %v1461
    %4908 = vmatpush.bf16.msra.mxu0 %v1453
    %4909 = vmatpush.bf16.msra.mxu0 %v1445
    %4910 = vmatpush.bf16.msra.mxu0 %v1437
    %4911 = vmatpush.bf16.msra.mxu0 %v1429
    %4912 = vmatmul.bf16.gmra.mxu0 %v4153
    %v4913 = vpop.f32.mrf.mxu0
    %v4914 = vadd.f32 %v4901, %v4913
    %v4915 = vpop.f32.mrf.mxu0
    %4916 = vdwg.mxu0
    %v4917 = vadd.f32 %v4701, %v4732
    %v4918 = vadd.f32 %v4702, %v4758
    %v4919 = vadd.f32 %v4703, %v4784
    %v4920 = vadd.f32 %v4704, %v4810
    %v4921 = vadd.f32 %v4705, %v4836
    %v4922 = vadd.f32 %v4706, %v4862
    %v4923 = vadd.f32 %v4707, %v4888
    %v4924 = vadd.f32 %v4708, %v4914
    %v4925 = vxor.u32 %v4917, 2147483648
    %v4926 = vxor.u32 %v4918, 2147483648
    %v4927 = vmul.f32 %v4925, 1.442695
    %v4928 = vpow.pop %v4927
    %v4929 = vmul.f32 %v4926, 1.442695
    %v4930 = vpow.pop %v4929
    %v4931 = vadd.f32 %v4928, 1.0
    %v4932 = vadd.f32 %v4930, 1.0
    %v4933 = vrcp.pop %v4931
    %v4934 = vmul.f32 %v4931, %v4933
    %v4935 = vsub.f32 1.0, %v4934
    %v4936 = vmul.f32 %v4933, %v4935
    %v4937 = vadd.f32 %v4933, %v4936
    %vm4938 = vweird.f32 %v4931
    %vm4939 = vweird.f32 %v4933
    %vm4940 = vmor %vm4938, %vm4939
    %v4941 = vsel %vm4940, %v4933, %v4937
    %v4942 = vand.u32 2147483647, %v4931
    %vm4943 = vcmp.eq.f32.partialorder %v4942, 8.507059e+37
    %v4944 = vand.u32 %v4931, 2147483648
    %v4945 = vor.u32 1.1754944e-38, %v4944
    %v4946 = vsel %vm4943, %v4945, %v4941
    %v4947 = vmul.f32 1.0, %v4946
    %v4948 = vrcp.pop %v4932
    %v4949 = vmul.f32 %v4932, %v4948
    %v4950 = vsub.f32 1.0, %v4949
    %v4951 = vmul.f32 %v4948, %v4950
    %v4952 = vadd.f32 %v4948, %v4951
    %vm4953 = vweird.f32 %v4932
    %vm4954 = vweird.f32 %v4948
    %vm4955 = vmor %vm4953, %vm4954
    %v4956 = vsel %vm4955, %v4948, %v4952
    %v4957 = vand.u32 2147483647, %v4932
    %vm4958 = vcmp.eq.f32.partialorder %v4957, 8.507059e+37
    %v4959 = vand.u32 %v4932, 2147483648
    %v4960 = vor.u32 1.1754944e-38, %v4959
    %v4961 = vsel %vm4958, %v4960, %v4956
    %v4962 = vmul.f32 1.0, %v4961
    %v4963 = vxor.u32 %v4919, 2147483648
    %v4964 = vxor.u32 %v4920, 2147483648
    %v4965 = vmul.f32 %v4963, 1.442695
    %v4966 = vpow.pop %v4965
    %v4967 = vmul.f32 %v4964, 1.442695
    %v4968 = vpow.pop %v4967
    %v4969 = vadd.f32 %v4966, 1.0
    %v4970 = vadd.f32 %v4968, 1.0
    %v4971 = vrcp.pop %v4969
    %v4972 = vmul.f32 %v4969, %v4971
    %v4973 = vsub.f32 1.0, %v4972
    %v4974 = vmul.f32 %v4971, %v4973
    %v4975 = vadd.f32 %v4971, %v4974
    %vm4976 = vweird.f32 %v4969
    %vm4977 = vweird.f32 %v4971
    %vm4978 = vmor %vm4976, %vm4977
    %v4979 = vsel %vm4978, %v4971, %v4975
    %v4980 = vand.u32 2147483647, %v4969
    %vm4981 = vcmp.eq.f32.partialorder %v4980, 8.507059e+37
    %v4982 = vand.u32 %v4969, 2147483648
    %v4983 = vor.u32 1.1754944e-38, %v4982
    %v4984 = vsel %vm4981, %v4983, %v4979
    %v4985 = vmul.f32 1.0, %v4984
    %v4986 = vrcp.pop %v4970
    %v4987 = vmul.f32 %v4970, %v4986
    %v4988 = vsub.f32 1.0, %v4987
    %v4989 = vmul.f32 %v4986, %v4988
    %v4990 = vadd.f32 %v4986, %v4989
    %vm4991 = vweird.f32 %v4970
    %vm4992 = vweird.f32 %v4986
    %vm4993 = vmor %vm4991, %vm4992
    %v4994 = vsel %vm4993, %v4986, %v4990
    %v4995 = vand.u32 2147483647, %v4970
    %vm4996 = vcmp.eq.f32.partialorder %v4995, 8.507059e+37
    %v4997 = vand.u32 %v4970, 2147483648
    %v4998 = vor.u32 1.1754944e-38, %v4997
    %v4999 = vsel %vm4996, %v4998, %v4994
    %v5000 = vmul.f32 1.0, %v4999
    %v5001 = vtanh.pop %v4921
    %v5002 = vtanh.pop %v4922
    %v5003 = vxor.u32 %v4923, 2147483648
    %v5004 = vxor.u32 %v4924, 2147483648
    %v5005 = vmul.f32 %v5003, 1.442695
    %v5006 = vpow.pop %v5005
    %v5007 = vmul.f32 %v5004, 1.442695
    %v5008 = vpow.pop %v5007
    %v5009 = vadd.f32 %v5006, 1.0
    %v5010 = vadd.f32 %v5008, 1.0
    %v5011 = vrcp.pop %v5009
    %v5012 = vmul.f32 %v5009, %v5011
    %v5013 = vsub.f32 1.0, %v5012
    %v5014 = vmul.f32 %v5011, %v5013
    %v5015 = vadd.f32 %v5011, %v5014
    %vm5016 = vweird.f32 %v5009
    %vm5017 = vweird.f32 %v5011
    %vm5018 = vmor %vm5016, %vm5017
    %v5019 = vsel %vm5018, %v5011, %v5015
    %v5020 = vand.u32 2147483647, %v5009
    %vm5021 = vcmp.eq.f32.partialorder %v5020, 8.507059e+37
    %v5022 = vand.u32 %v5009, 2147483648
    %v5023 = vor.u32 1.1754944e-38, %v5022
    %v5024 = vsel %vm5021, %v5023, %v5019
    %v5025 = vmul.f32 1.0, %v5024
    %v5026 = vrcp.pop %v5010
    %v5027 = vmul.f32 %v5010, %v5026
    %v5028 = vsub.f32 1.0, %v5027
    %v5029 = vmul.f32 %v5026, %v5028
    %v5030 = vadd.f32 %v5026, %v5029
    %vm5031 = vweird.f32 %v5010
    %vm5032 = vweird.f32 %v5026
    %vm5033 = vmor %vm5031, %vm5032
    %v5034 = vsel %vm5033, %v5026, %v5030
    %v5035 = vand.u32 2147483647, %v5010
    %vm5036 = vcmp.eq.f32.partialorder %v5035, 8.507059e+37
    %v5037 = vand.u32 %v5010, 2147483648
    %v5038 = vor.u32 1.1754944e-38, %v5037
    %v5039 = vsel %vm5036, %v5038, %v5034
    %v5040 = vmul.f32 1.0, %v5039
    %v5041 = vmul.f32 %v4985, %v4146
    %v5042 = vmul.f32 %v5000, %v4147
    %v5043 = vmul.f32 %v4947, %v5001
    %v5044 = vmul.f32 %v4962, %v5002
    %v5045 = vadd.f32 %v5041, %v5043
    %v5046 = vadd.f32 %v5042, %v5044
    %v5047 = vtanh.pop %v5045
    %v5048 = vtanh.pop %v5046
    %v5049 = vmul.f32 %v5025, %v5047
    %v5050 = vmul.f32 %v5040, %v5048
    %v5051 = vpack.c.bf16 %v5049, %v5049
    %v5052 = vpack.c.bf16 %v5050, %v5050
    %v5053 = vpack.c.bf16 %v4696, %v4696
    %v5054 = vpack.c.bf16 %v4697, %v4697
    %5055 = vmatpush.bf16.msra.mxu0 %v2801
    %5056 = vmatpush.bf16.msra.mxu0 %v2793
    %5057 = vmatpush.bf16.msra.mxu0 %v2785
    %5058 = vmatpush.bf16.msra.mxu0 %v2777
    %5059 = vmatpush.bf16.msra.mxu0 %v2769
    %5060 = vmatpush.bf16.msra.mxu0 %v2761
    %5061 = vmatpush.bf16.msra.mxu0 %v2753
    %5062 = vmatpush.bf16.msra.mxu0 %v2745
    %5063 = vmatmul.bf16.gmra.mxu0 %v5051
    %v5064 = vpop.f32.mrf.mxu0
    %v5065 = vadd.f32 %v1961, %v5064
    %v5066 = vpop.f32.mrf.mxu0
    %5067 = vdwg.mxu0
    %5068 = vmatpush.bf16.msra.mxu0 %v2865
    %5069 = vmatpush.bf16.msra.mxu0 %v2857
    %5070 = vmatpush.bf16.msra.mxu0 %v2849
    %5071 = vmatpush.bf16.msra.mxu0 %v2841
    %5072 = vmatpush.bf16.msra.mxu0 %v2833
    %5073 = vmatpush.bf16.msra.mxu0 %v2825
    %5074 = vmatpush.bf16.msra.mxu0 %v2817
    %5075 = vmatpush.bf16.msra.mxu0 %v2809
    %5076 = vmatmul.bf16.gmra.mxu0 %v5052
    %v5077 = vpop.f32.mrf.mxu0
    %v5078 = vadd.f32 %v5065, %v5077
    %v5079 = vpop.f32.mrf.mxu0
    %5080 = vdwg.mxu0
    %5081 = vmatpush.bf16.msra.mxu0 %v2929
    %5082 = vmatpush.bf16.msra.mxu0 %v2921
    %5083 = vmatpush.bf16.msra.mxu0 %v2913
    %5084 = vmatpush.bf16.msra.mxu0 %v2905
    %5085 = vmatpush.bf16.msra.mxu0 %v2897
    %5086 = vmatpush.bf16.msra.mxu0 %v2889
    %5087 = vmatpush.bf16.msra.mxu0 %v2881
    %5088 = vmatpush.bf16.msra.mxu0 %v2873
    %5089 = vmatmul.bf16.gmra.mxu0 %v5053
    %v5090 = vpop.f32.mrf.mxu0
    %v5091 = vadd.f32 %v5078, %v5090
    %v5092 = vpop.f32.mrf.mxu0
    %5093 = vdwg.mxu0
    %5094 = vmatpush.bf16.msra.mxu0 %v2993
    %5095 = vmatpush.bf16.msra.mxu0 %v2985
    %5096 = vmatpush.bf16.msra.mxu0 %v2977
    %5097 = vmatpush.bf16.msra.mxu0 %v2969
    %5098 = vmatpush.bf16.msra.mxu0 %v2961
    %5099 = vmatpush.bf16.msra.mxu0 %v2953
    %5100 = vmatpush.bf16.msra.mxu0 %v2945
    %5101 = vmatpush.bf16.msra.mxu0 %v2937
    %5102 = vmatmul.bf16.gmra.mxu0 %v5054
    %v5103 = vpop.f32.mrf.mxu0
    %v5104 = vadd.f32 %v5091, %v5103
    %v5105 = vpop.f32.mrf.mxu0
    %5106 = vdwg.mxu0
    %5107 = vmatpush.bf16.msra.mxu0 %v2802
    %5108 = vmatpush.bf16.msra.mxu0 %v2794
    %5109 = vmatpush.bf16.msra.mxu0 %v2786
    %5110 = vmatpush.bf16.msra.mxu0 %v2778
    %5111 = vmatpush.bf16.msra.mxu0 %v2770
    %5112 = vmatpush.bf16.msra.mxu0 %v2762
    %5113 = vmatpush.bf16.msra.mxu0 %v2754
    %5114 = vmatpush.bf16.msra.mxu0 %v2746
    %5115 = vmatmul.bf16.gmra.mxu0 %v5051
    %v5116 = vpop.f32.mrf.mxu0
    %v5117 = vadd.f32 %v1962, %v5116
    %v5118 = vpop.f32.mrf.mxu0
    %5119 = vdwg.mxu0
    %5120 = vmatpush.bf16.msra.mxu0 %v2866
    %5121 = vmatpush.bf16.msra.mxu0 %v2858
    %5122 = vmatpush.bf16.msra.mxu0 %v2850
    %5123 = vmatpush.bf16.msra.mxu0 %v2842
    %5124 = vmatpush.bf16.msra.mxu0 %v2834
    %5125 = vmatpush.bf16.msra.mxu0 %v2826
    %5126 = vmatpush.bf16.msra.mxu0 %v2818
    %5127 = vmatpush.bf16.msra.mxu0 %v2810
    %5128 = vmatmul.bf16.gmra.mxu0 %v5052
    %v5129 = vpop.f32.mrf.mxu0
    %v5130 = vadd.f32 %v5117, %v5129
    %v5131 = vpop.f32.mrf.mxu0
    %5132 = vdwg.mxu0
    %5133 = vmatpush.bf16.msra.mxu0 %v2930
    %5134 = vmatpush.bf16.msra.mxu0 %v2922
    %5135 = vmatpush.bf16.msra.mxu0 %v2914
    %5136 = vmatpush.bf16.msra.mxu0 %v2906
    %5137 = vmatpush.bf16.msra.mxu0 %v2898
    %5138 = vmatpush.bf16.msra.mxu0 %v2890
    %5139 = vmatpush.bf16.msra.mxu0 %v2882
    %5140 = vmatpush.bf16.msra.mxu0 %v2874
    %5141 = vmatmul.bf16.gmra.mxu0 %v5053
    %v5142 = vpop.f32.mrf.mxu0
    %v5143 = vadd.f32 %v5130, %v5142
    %v5144 = vpop.f32.mrf.mxu0
    %5145 = vdwg.mxu0
    %5146 = vmatpush.bf16.msra.mxu0 %v2994
    %5147 = vmatpush.bf16.msra.mxu0 %v2986
    %5148 = vmatpush.bf16.msra.mxu0 %v2978
    %5149 = vmatpush.bf16.msra.mxu0 %v2970
    %5150 = vmatpush.bf16.msra.mxu0 %v2962
    %5151 = vmatpush.bf16.msra.mxu0 %v2954
    %5152 = vmatpush.bf16.msra.mxu0 %v2946
    %5153 = vmatpush.bf16.msra.mxu0 %v2938
    %5154 = vmatmul.bf16.gmra.mxu0 %v5054
    %v5155 = vpop.f32.mrf.mxu0
    %v5156 = vadd.f32 %v5143, %v5155
    %v5157 = vpop.f32.mrf.mxu0
    %5158 = vdwg.mxu0
    %5159 = vmatpush.bf16.msra.mxu0 %v2803
    %5160 = vmatpush.bf16.msra.mxu0 %v2795
    %5161 = vmatpush.bf16.msra.mxu0 %v2787
    %5162 = vmatpush.bf16.msra.mxu0 %v2779
    %5163 = vmatpush.bf16.msra.mxu0 %v2771
    %5164 = vmatpush.bf16.msra.mxu0 %v2763
    %5165 = vmatpush.bf16.msra.mxu0 %v2755
    %5166 = vmatpush.bf16.msra.mxu0 %v2747
    %5167 = vmatmul.bf16.gmra.mxu0 %v5051
    %v5168 = vpop.f32.mrf.mxu0
    %v5169 = vadd.f32 %v1963, %v5168
    %v5170 = vpop.f32.mrf.mxu0
    %5171 = vdwg.mxu0
    %5172 = vmatpush.bf16.msra.mxu0 %v2867
    %5173 = vmatpush.bf16.msra.mxu0 %v2859
    %5174 = vmatpush.bf16.msra.mxu0 %v2851
    %5175 = vmatpush.bf16.msra.mxu0 %v2843
    %5176 = vmatpush.bf16.msra.mxu0 %v2835
    %5177 = vmatpush.bf16.msra.mxu0 %v2827
    %5178 = vmatpush.bf16.msra.mxu0 %v2819
    %5179 = vmatpush.bf16.msra.mxu0 %v2811
    %5180 = vmatmul.bf16.gmra.mxu0 %v5052
    %v5181 = vpop.f32.mrf.mxu0
    %v5182 = vadd.f32 %v5169, %v5181
    %v5183 = vpop.f32.mrf.mxu0
    %5184 = vdwg.mxu0
    %5185 = vmatpush.bf16.msra.mxu0 %v2931
    %5186 = vmatpush.bf16.msra.mxu0 %v2923
    %5187 = vmatpush.bf16.msra.mxu0 %v2915
    %5188 = vmatpush.bf16.msra.mxu0 %v2907
    %5189 = vmatpush.bf16.msra.mxu0 %v2899
    %5190 = vmatpush.bf16.msra.mxu0 %v2891
    %5191 = vmatpush.bf16.msra.mxu0 %v2883
    %5192 = vmatpush.bf16.msra.mxu0 %v2875
    %5193 = vmatmul.bf16.gmra.mxu0 %v5053
    %v5194 = vpop.f32.mrf.mxu0
    %v5195 = vadd.f32 %v5182, %v5194
    %v5196 = vpop.f32.mrf.mxu0
    %5197 = vdwg.mxu0
    %5198 = vmatpush.bf16.msra.mxu0 %v2995
    %5199 = vmatpush.bf16.msra.mxu0 %v2987
    %5200 = vmatpush.bf16.msra.mxu0 %v2979
    %5201 = vmatpush.bf16.msra.mxu0 %v2971
    %5202 = vmatpush.bf16.msra.mxu0 %v2963
    %5203 = vmatpush.bf16.msra.mxu0 %v2955
    %5204 = vmatpush.bf16.msra.mxu0 %v2947
    %5205 = vmatpush.bf16.msra.mxu0 %v2939
    %5206 = vmatmul.bf16.gmra.mxu0 %v5054
    %v5207 = vpop.f32.mrf.mxu0
    %v5208 = vadd.f32 %v5195, %v5207
    %v5209 = vpop.f32.mrf.mxu0
    %5210 = vdwg.mxu0
    %5211 = vmatpush.bf16.msra.mxu0 %v2804
    %5212 = vmatpush.bf16.msra.mxu0 %v2796
    %5213 = vmatpush.bf16.msra.mxu0 %v2788
    %5214 = vmatpush.bf16.msra.mxu0 %v2780
    %5215 = vmatpush.bf16.msra.mxu0 %v2772
    %5216 = vmatpush.bf16.msra.mxu0 %v2764
    %5217 = vmatpush.bf16.msra.mxu0 %v2756
    %5218 = vmatpush.bf16.msra.mxu0 %v2748
    %5219 = vmatmul.bf16.gmra.mxu0 %v5051
    %v5220 = vpop.f32.mrf.mxu0
    %v5221 = vadd.f32 %v1964, %v5220
    %v5222 = vpop.f32.mrf.mxu0
    %5223 = vdwg.mxu0
    %5224 = vmatpush.bf16.msra.mxu0 %v2868
    %5225 = vmatpush.bf16.msra.mxu0 %v2860
    %5226 = vmatpush.bf16.msra.mxu0 %v2852
    %5227 = vmatpush.bf16.msra.mxu0 %v2844
    %5228 = vmatpush.bf16.msra.mxu0 %v2836
    %5229 = vmatpush.bf16.msra.mxu0 %v2828
    %5230 = vmatpush.bf16.msra.mxu0 %v2820
    %5231 = vmatpush.bf16.msra.mxu0 %v2812
    %5232 = vmatmul.bf16.gmra.mxu0 %v5052
    %v5233 = vpop.f32.mrf.mxu0
    %v5234 = vadd.f32 %v5221, %v5233
    %v5235 = vpop.f32.mrf.mxu0
    %5236 = vdwg.mxu0
    %5237 = vmatpush.bf16.msra.mxu0 %v2932
    %5238 = vmatpush.bf16.msra.mxu0 %v2924
    %5239 = vmatpush.bf16.msra.mxu0 %v2916
    %5240 = vmatpush.bf16.msra.mxu0 %v2908
    %5241 = vmatpush.bf16.msra.mxu0 %v2900
    %5242 = vmatpush.bf16.msra.mxu0 %v2892
    %5243 = vmatpush.bf16.msra.mxu0 %v2884
    %5244 = vmatpush.bf16.msra.mxu0 %v2876
    %5245 = vmatmul.bf16.gmra.mxu0 %v5053
    %v5246 = vpop.f32.mrf.mxu0
    %v5247 = vadd.f32 %v5234, %v5246
    %v5248 = vpop.f32.mrf.mxu0
    %5249 = vdwg.mxu0
    %5250 = vmatpush.bf16.msra.mxu0 %v2996
    %5251 = vmatpush.bf16.msra.mxu0 %v2988
    %5252 = vmatpush.bf16.msra.mxu0 %v2980
    %5253 = vmatpush.bf16.msra.mxu0 %v2972
    %5254 = vmatpush.bf16.msra.mxu0 %v2964
    %5255 = vmatpush.bf16.msra.mxu0 %v2956
    %5256 = vmatpush.bf16.msra.mxu0 %v2948
    %5257 = vmatpush.bf16.msra.mxu0 %v2940
    %5258 = vmatmul.bf16.gmra.mxu0 %v5054
    %v5259 = vpop.f32.mrf.mxu0
    %v5260 = vadd.f32 %v5247, %v5259
    %v5261 = vpop.f32.mrf.mxu0
    %5262 = vdwg.mxu0
    %5263 = vmatpush.bf16.msra.mxu0 %v2805
    %5264 = vmatpush.bf16.msra.mxu0 %v2797
    %5265 = vmatpush.bf16.msra.mxu0 %v2789
    %5266 = vmatpush.bf16.msra.mxu0 %v2781
    %5267 = vmatpush.bf16.msra.mxu0 %v2773
    %5268 = vmatpush.bf16.msra.mxu0 %v2765
    %5269 = vmatpush.bf16.msra.mxu0 %v2757
    %5270 = vmatpush.bf16.msra.mxu0 %v2749
    %5271 = vmatmul.bf16.gmra.mxu0 %v5051
    %v5272 = vpop.f32.mrf.mxu0
    %v5273 = vadd.f32 %v1965, %v5272
    %v5274 = vpop.f32.mrf.mxu0
    %5275 = vdwg.mxu0
    %5276 = vmatpush.bf16.msra.mxu0 %v2869
    %5277 = vmatpush.bf16.msra.mxu0 %v2861
    %5278 = vmatpush.bf16.msra.mxu0 %v2853
    %5279 = vmatpush.bf16.msra.mxu0 %v2845
    %5280 = vmatpush.bf16.msra.mxu0 %v2837
    %5281 = vmatpush.bf16.msra.mxu0 %v2829
    %5282 = vmatpush.bf16.msra.mxu0 %v2821
    %5283 = vmatpush.bf16.msra.mxu0 %v2813
    %5284 = vmatmul.bf16.gmra.mxu0 %v5052
    %v5285 = vpop.f32.mrf.mxu0
    %v5286 = vadd.f32 %v5273, %v5285
    %v5287 = vpop.f32.mrf.mxu0
    %5288 = vdwg.mxu0
    %5289 = vmatpush.bf16.msra.mxu0 %v2933
    %5290 = vmatpush.bf16.msra.mxu0 %v2925
    %5291 = vmatpush.bf16.msra.mxu0 %v2917
    %5292 = vmatpush.bf16.msra.mxu0 %v2909
    %5293 = vmatpush.bf16.msra.mxu0 %v2901
    %5294 = vmatpush.bf16.msra.mxu0 %v2893
    %5295 = vmatpush.bf16.msra.mxu0 %v2885
    %5296 = vmatpush.bf16.msra.mxu0 %v2877
    %5297 = vmatmul.bf16.gmra.mxu0 %v5053
    %v5298 = vpop.f32.mrf.mxu0
    %v5299 = vadd.f32 %v5286, %v5298
    %v5300 = vpop.f32.mrf.mxu0
    %5301 = vdwg.mxu0
    %5302 = vmatpush.bf16.msra.mxu0 %v2997
    %5303 = vmatpush.bf16.msra.mxu0 %v2989
    %5304 = vmatpush.bf16.msra.mxu0 %v2981
    %5305 = vmatpush.bf16.msra.mxu0 %v2973
    %5306 = vmatpush.bf16.msra.mxu0 %v2965
    %5307 = vmatpush.bf16.msra.mxu0 %v2957
    %5308 = vmatpush.bf16.msra.mxu0 %v2949
    %5309 = vmatpush.bf16.msra.mxu0 %v2941
    %5310 = vmatmul.bf16.gmra.mxu0 %v5054
    %v5311 = vpop.f32.mrf.mxu0
    %v5312 = vadd.f32 %v5299, %v5311
    %v5313 = vpop.f32.mrf.mxu0
    %5314 = vdwg.mxu0
    %5315 = vmatpush.bf16.msra.mxu0 %v2806
    %5316 = vmatpush.bf16.msra.mxu0 %v2798
    %5317 = vmatpush.bf16.msra.mxu0 %v2790
    %5318 = vmatpush.bf16.msra.mxu0 %v2782
    %5319 = vmatpush.bf16.msra.mxu0 %v2774
    %5320 = vmatpush.bf16.msra.mxu0 %v2766
    %5321 = vmatpush.bf16.msra.mxu0 %v2758
    %5322 = vmatpush.bf16.msra.mxu0 %v2750
    %5323 = vmatmul.bf16.gmra.mxu0 %v5051
    %v5324 = vpop.f32.mrf.mxu0
    %v5325 = vadd.f32 %v1966, %v5324
    %v5326 = vpop.f32.mrf.mxu0
    %5327 = vdwg.mxu0
    %5328 = vmatpush.bf16.msra.mxu0 %v2870
    %5329 = vmatpush.bf16.msra.mxu0 %v2862
    %5330 = vmatpush.bf16.msra.mxu0 %v2854
    %5331 = vmatpush.bf16.msra.mxu0 %v2846
    %5332 = vmatpush.bf16.msra.mxu0 %v2838
    %5333 = vmatpush.bf16.msra.mxu0 %v2830
    %5334 = vmatpush.bf16.msra.mxu0 %v2822
    %5335 = vmatpush.bf16.msra.mxu0 %v2814
    %5336 = vmatmul.bf16.gmra.mxu0 %v5052
    %v5337 = vpop.f32.mrf.mxu0
    %v5338 = vadd.f32 %v5325, %v5337
    %v5339 = vpop.f32.mrf.mxu0
    %5340 = vdwg.mxu0
    %5341 = vmatpush.bf16.msra.mxu0 %v2934
    %5342 = vmatpush.bf16.msra.mxu0 %v2926
    %5343 = vmatpush.bf16.msra.mxu0 %v2918
    %5344 = vmatpush.bf16.msra.mxu0 %v2910
    %5345 = vmatpush.bf16.msra.mxu0 %v2902
    %5346 = vmatpush.bf16.msra.mxu0 %v2894
    %5347 = vmatpush.bf16.msra.mxu0 %v2886
    %5348 = vmatpush.bf16.msra.mxu0 %v2878
    %5349 = vmatmul.bf16.gmra.mxu0 %v5053
    %v5350 = vpop.f32.mrf.mxu0
    %v5351 = vadd.f32 %v5338, %v5350
    %v5352 = vpop.f32.mrf.mxu0
    %5353 = vdwg.mxu0
    %5354 = vmatpush.bf16.msra.mxu0 %v2998
    %5355 = vmatpush.bf16.msra.mxu0 %v2990
    %5356 = vmatpush.bf16.msra.mxu0 %v2982
    %5357 = vmatpush.bf16.msra.mxu0 %v2974
    %5358 = vmatpush.bf16.msra.mxu0 %v2966
    %5359 = vmatpush.bf16.msra.mxu0 %v2958
    %5360 = vmatpush.bf16.msra.mxu0 %v2950
    %5361 = vmatpush.bf16.msra.mxu0 %v2942
    %5362 = vmatmul.bf16.gmra.mxu0 %v5054
    %v5363 = vpop.f32.mrf.mxu0
    %v5364 = vadd.f32 %v5351, %v5363
    %v5365 = vpop.f32.mrf.mxu0
    %5366 = vdwg.mxu0
    %5367 = vmatpush.bf16.msra.mxu0 %v2807
    %5368 = vmatpush.bf16.msra.mxu0 %v2799
    %5369 = vmatpush.bf16.msra.mxu0 %v2791
    %5370 = vmatpush.bf16.msra.mxu0 %v2783
    %5371 = vmatpush.bf16.msra.mxu0 %v2775
    %5372 = vmatpush.bf16.msra.mxu0 %v2767
    %5373 = vmatpush.bf16.msra.mxu0 %v2759
    %5374 = vmatpush.bf16.msra.mxu0 %v2751
    %5375 = vmatmul.bf16.gmra.mxu0 %v5051
    %v5376 = vpop.f32.mrf.mxu0
    %v5377 = vadd.f32 %v1967, %v5376
    %v5378 = vpop.f32.mrf.mxu0
    %5379 = vdwg.mxu0
    %5380 = vmatpush.bf16.msra.mxu0 %v2871
    %5381 = vmatpush.bf16.msra.mxu0 %v2863
    %5382 = vmatpush.bf16.msra.mxu0 %v2855
    %5383 = vmatpush.bf16.msra.mxu0 %v2847
    %5384 = vmatpush.bf16.msra.mxu0 %v2839
    %5385 = vmatpush.bf16.msra.mxu0 %v2831
    %5386 = vmatpush.bf16.msra.mxu0 %v2823
    %5387 = vmatpush.bf16.msra.mxu0 %v2815
    %5388 = vmatmul.bf16.gmra.mxu0 %v5052
    %v5389 = vpop.f32.mrf.mxu0
    %v5390 = vadd.f32 %v5377, %v5389
    %v5391 = vpop.f32.mrf.mxu0
    %5392 = vdwg.mxu0
    %5393 = vmatpush.bf16.msra.mxu0 %v2935
    %5394 = vmatpush.bf16.msra.mxu0 %v2927
    %5395 = vmatpush.bf16.msra.mxu0 %v2919
    %5396 = vmatpush.bf16.msra.mxu0 %v2911
    %5397 = vmatpush.bf16.msra.mxu0 %v2903
    %5398 = vmatpush.bf16.msra.mxu0 %v2895
    %5399 = vmatpush.bf16.msra.mxu0 %v2887
    %5400 = vmatpush.bf16.msra.mxu0 %v2879
    %5401 = vmatmul.bf16.gmra.mxu0 %v5053
    %v5402 = vpop.f32.mrf.mxu0
    %v5403 = vadd.f32 %v5390, %v5402
    %v5404 = vpop.f32.mrf.mxu0
    %5405 = vdwg.mxu0
    %5406 = vmatpush.bf16.msra.mxu0 %v2999
    %5407 = vmatpush.bf16.msra.mxu0 %v2991
    %5408 = vmatpush.bf16.msra.mxu0 %v2983
    %5409 = vmatpush.bf16.msra.mxu0 %v2975
    %5410 = vmatpush.bf16.msra.mxu0 %v2967
    %5411 = vmatpush.bf16.msra.mxu0 %v2959
    %5412 = vmatpush.bf16.msra.mxu0 %v2951
    %5413 = vmatpush.bf16.msra.mxu0 %v2943
    %5414 = vmatmul.bf16.gmra.mxu0 %v5054
    %v5415 = vpop.f32.mrf.mxu0
    %v5416 = vadd.f32 %v5403, %v5415
    %v5417 = vpop.f32.mrf.mxu0
    %5418 = vdwg.mxu0
    %5419 = vmatpush.bf16.msra.mxu0 %v2808
    %5420 = vmatpush.bf16.msra.mxu0 %v2800
    %5421 = vmatpush.bf16.msra.mxu0 %v2792
    %5422 = vmatpush.bf16.msra.mxu0 %v2784
    %5423 = vmatpush.bf16.msra.mxu0 %v2776
    %5424 = vmatpush.bf16.msra.mxu0 %v2768
    %5425 = vmatpush.bf16.msra.mxu0 %v2760
    %5426 = vmatpush.bf16.msra.mxu0 %v2752
    %5427 = vmatmul.bf16.gmra.mxu0 %v5051
    %v5428 = vpop.f32.mrf.mxu0
    %v5429 = vadd.f32 %v1968, %v5428
    %v5430 = vpop.f32.mrf.mxu0
    %5431 = vdwg.mxu0
    %5432 = vmatpush.bf16.msra.mxu0 %v2872
    %5433 = vmatpush.bf16.msra.mxu0 %v2864
    %5434 = vmatpush.bf16.msra.mxu0 %v2856
    %5435 = vmatpush.bf16.msra.mxu0 %v2848
    %5436 = vmatpush.bf16.msra.mxu0 %v2840
    %5437 = vmatpush.bf16.msra.mxu0 %v2832
    %5438 = vmatpush.bf16.msra.mxu0 %v2824
    %5439 = vmatpush.bf16.msra.mxu0 %v2816
    %5440 = vmatmul.bf16.gmra.mxu0 %v5052
    %v5441 = vpop.f32.mrf.mxu0
    %v5442 = vadd.f32 %v5429, %v5441
    %v5443 = vpop.f32.mrf.mxu0
    %5444 = vdwg.mxu0
    %5445 = vmatpush.bf16.msra.mxu0 %v2936
    %5446 = vmatpush.bf16.msra.mxu0 %v2928
    %5447 = vmatpush.bf16.msra.mxu0 %v2920
    %5448 = vmatpush.bf16.msra.mxu0 %v2912
    %5449 = vmatpush.bf16.msra.mxu0 %v2904
    %5450 = vmatpush.bf16.msra.mxu0 %v2896
    %5451 = vmatpush.bf16.msra.mxu0 %v2888
    %5452 = vmatpush.bf16.msra.mxu0 %v2880
    %5453 = vmatmul.bf16.gmra.mxu0 %v5053
    %v5454 = vpop.f32.mrf.mxu0
    %v5455 = vadd.f32 %v5442, %v5454
    %v5456 = vpop.f32.mrf.mxu0
    %5457 = vdwg.mxu0
    %5458 = vmatpush.bf16.msra.mxu0 %v3000
    %5459 = vmatpush.bf16.msra.mxu0 %v2992
    %5460 = vmatpush.bf16.msra.mxu0 %v2984
    %5461 = vmatpush.bf16.msra.mxu0 %v2976
    %5462 = vmatpush.bf16.msra.mxu0 %v2968
    %5463 = vmatpush.bf16.msra.mxu0 %v2960
    %5464 = vmatpush.bf16.msra.mxu0 %v2952
    %5465 = vmatpush.bf16.msra.mxu0 %v2944
    %5466 = vmatmul.bf16.gmra.mxu0 %v5054
    %v5467 = vpop.f32.mrf.mxu0
    %v5468 = vadd.f32 %v5455, %v5467
    %v5469 = vpop.f32.mrf.mxu0
    %5470 = vdwg.mxu0
    %v5471 = vxor.u32 %v5104, 2147483648
    %v5472 = vxor.u32 %v5156, 2147483648
    %v5473 = vmul.f32 %v5471, 1.442695
    %v5474 = vpow.pop %v5473
    %v5475 = vmul.f32 %v5472, 1.442695
    %v5476 = vpow.pop %v5475
    %v5477 = vadd.f32 %v5474, 1.0
    %v5478 = vadd.f32 %v5476, 1.0
    %v5479 = vrcp.pop %v5477
    %v5480 = vmul.f32 %v5477, %v5479
    %v5481 = vsub.f32 1.0, %v5480
    %v5482 = vmul.f32 %v5479, %v5481
    %v5483 = vadd.f32 %v5479, %v5482
    %vm5484 = vweird.f32 %v5477
    %vm5485 = vweird.f32 %v5479
    %vm5486 = vmor %vm5484, %vm5485
    %v5487 = vsel %vm5486, %v5479, %v5483
    %v5488 = vand.u32 2147483647, %v5477
    %vm5489 = vcmp.eq.f32.partialorder %v5488, 8.507059e+37
    %v5490 = vand.u32 %v5477, 2147483648
    %v5491 = vor.u32 1.1754944e-38, %v5490
    %v5492 = vsel %vm5489, %v5491, %v5487
    %v5493 = vmul.f32 1.0, %v5492
    %v5494 = vrcp.pop %v5478
    %v5495 = vmul.f32 %v5478, %v5494
    %v5496 = vsub.f32 1.0, %v5495
    %v5497 = vmul.f32 %v5494, %v5496
    %v5498 = vadd.f32 %v5494, %v5497
    %vm5499 = vweird.f32 %v5478
    %vm5500 = vweird.f32 %v5494
    %vm5501 = vmor %vm5499, %vm5500
    %v5502 = vsel %vm5501, %v5494, %v5498
    %v5503 = vand.u32 2147483647, %v5478
    %vm5504 = vcmp.eq.f32.partialorder %v5503, 8.507059e+37
    %v5505 = vand.u32 %v5478, 2147483648
    %v5506 = vor.u32 1.1754944e-38, %v5505
    %v5507 = vsel %vm5504, %v5506, %v5502
    %v5508 = vmul.f32 1.0, %v5507
    %v5509 = vxor.u32 %v5208, 2147483648
    %v5510 = vxor.u32 %v5260, 2147483648
    %v5511 = vmul.f32 %v5509, 1.442695
    %v5512 = vpow.pop %v5511
    %v5513 = vmul.f32 %v5510, 1.442695
    %v5514 = vpow.pop %v5513
    %v5515 = vadd.f32 %v5512, 1.0
    %v5516 = vadd.f32 %v5514, 1.0
    %v5517 = vrcp.pop %v5515
    %v5518 = vmul.f32 %v5515, %v5517
    %v5519 = vsub.f32 1.0, %v5518
    %v5520 = vmul.f32 %v5517, %v5519
    %v5521 = vadd.f32 %v5517, %v5520
    %vm5522 = vweird.f32 %v5515
    %vm5523 = vweird.f32 %v5517
    %vm5524 = vmor %vm5522, %vm5523
    %v5525 = vsel %vm5524, %v5517, %v5521
    %v5526 = vand.u32 2147483647, %v5515
    %vm5527 = vcmp.eq.f32.partialorder %v5526, 8.507059e+37
    %v5528 = vand.u32 %v5515, 2147483648
    %v5529 = vor.u32 1.1754944e-38, %v5528
    %v5530 = vsel %vm5527, %v5529, %v5525
    %v5531 = vmul.f32 1.0, %v5530
    %v5532 = vrcp.pop %v5516
    %v5533 = vmul.f32 %v5516, %v5532
    %v5534 = vsub.f32 1.0, %v5533
    %v5535 = vmul.f32 %v5532, %v5534
    %v5536 = vadd.f32 %v5532, %v5535
    %vm5537 = vweird.f32 %v5516
    %vm5538 = vweird.f32 %v5532
    %vm5539 = vmor %vm5537, %vm5538
    %v5540 = vsel %vm5539, %v5532, %v5536
    %v5541 = vand.u32 2147483647, %v5516
    %vm5542 = vcmp.eq.f32.partialorder %v5541, 8.507059e+37
    %v5543 = vand.u32 %v5516, 2147483648
    %v5544 = vor.u32 1.1754944e-38, %v5543
    %v5545 = vsel %vm5542, %v5544, %v5540
    %v5546 = vmul.f32 1.0, %v5545
    %v5547 = vtanh.pop %v5312
    %v5548 = vtanh.pop %v5364
    %v5549 = vxor.u32 %v5416, 2147483648
    %v5550 = vxor.u32 %v5468, 2147483648
    %v5551 = vmul.f32 %v5549, 1.442695
    %v5552 = vpow.pop %v5551
    %v5553 = vmul.f32 %v5550, 1.442695
    %v5554 = vpow.pop %v5553
    %v5555 = vadd.f32 %v5552, 1.0
    %v5556 = vadd.f32 %v5554, 1.0
    %v5557 = vrcp.pop %v5555
    %v5558 = vmul.f32 %v5555, %v5557
    %v5559 = vsub.f32 1.0, %v5558
    %v5560 = vmul.f32 %v5557, %v5559
    %v5561 = vadd.f32 %v5557, %v5560
    %vm5562 = vweird.f32 %v5555
    %vm5563 = vweird.f32 %v5557
    %vm5564 = vmor %vm5562, %vm5563
    %v5565 = vsel %vm5564, %v5557, %v5561
    %v5566 = vand.u32 2147483647, %v5555
    %vm5567 = vcmp.eq.f32.partialorder %v5566, 8.507059e+37
    %v5568 = vand.u32 %v5555, 2147483648
    %v5569 = vor.u32 1.1754944e-38, %v5568
    %v5570 = vsel %vm5567, %v5569, %v5565
    %v5571 = vmul.f32 1.0, %v5570
    %v5572 = vrcp.pop %v5556
    %v5573 = vmul.f32 %v5556, %v5572
    %v5574 = vsub.f32 1.0, %v5573
    %v5575 = vmul.f32 %v5572, %v5574
    %v5576 = vadd.f32 %v5572, %v5575
    %vm5577 = vweird.f32 %v5556
    %vm5578 = vweird.f32 %v5572
    %vm5579 = vmor %vm5577, %vm5578
    %v5580 = vsel %vm5579, %v5572, %v5576
    %v5581 = vand.u32 2147483647, %v5556
    %vm5582 = vcmp.eq.f32.partialorder %v5581, 8.507059e+37
    %v5583 = vand.u32 %v5556, 2147483648
    %v5584 = vor.u32 1.1754944e-38, %v5583
    %v5585 = vsel %vm5582, %v5584, %v5580
    %v5586 = vmul.f32 1.0, %v5585
    %v5587 = vmul.f32 %v5531, %v4692
    %v5588 = vmul.f32 %v5546, %v4693
    %v5589 = vmul.f32 %v5493, %v5547
    %v5590 = vmul.f32 %v5508, %v5548
    %v5591 = vadd.f32 %v5587, %v5589
    %v5592 = vadd.f32 %v5588, %v5590
    %v5593 = vtanh.pop %v5591
    %v5594 = vtanh.pop %v5592
    %v5595 = vmul.f32 %v5571, %v5593
    %v5596 = vmul.f32 %v5586, %v5594
    %s5597 = smul.u32 3, 8
    %s5598 = smul.addr %s5597, 8
    %s5599 = scalar_lea.vmem [#allocation2], %s5598
    %v5600 = vld [vmem:[%s5599] sm:$0xff]
    %v5601 = vld [vmem:[%s5599 + $0x8] sm:$0xff]
    %v5602 = vld [vmem:[%s5599 + $0x10] sm:$0xff]
    %v5603 = vld [vmem:[%s5599 + $0x18] sm:$0xff]
    %v5604 = vld [vmem:[%s5599 + $0x20] sm:$0xff]
    %v5605 = vld [vmem:[%s5599 + $0x28] sm:$0xff]
    %v5606 = vld [vmem:[%s5599 + $0x30] sm:$0xff]
    %v5607 = vld [vmem:[%s5599 + $0x38] sm:$0xff]
    %5608 = vmatpush.bf16.msra.mxu0 %v1414
    %5609 = vmatpush.bf16.msra.mxu0 %v1406
    %5610 = vmatpush.bf16.msra.mxu0 %v1398
    %5611 = vmatpush.bf16.msra.mxu0 %v1390
    %5612 = vmatpush.bf16.msra.mxu0 %v1382
    %5613 = vmatpush.bf16.msra.mxu0 %v1374
    %5614 = vmatpush.bf16.msra.mxu0 %v1366
    %5615 = vmatpush.bf16.msra.mxu0 %v1358
    %5616 = vmatmul.bf16.gmra.mxu0 %v5051
    %v5617 = vpop.f32.mrf.mxu0
    %v5618 = vadd.f32 0.0, %v5617
    %v5619 = vpop.f32.mrf.mxu0
    %5620 = vdwg.mxu0
    %5621 = vmatpush.bf16.msra.mxu0 %v1478
    %5622 = vmatpush.bf16.msra.mxu0 %v1470
    %5623 = vmatpush.bf16.msra.mxu0 %v1462
    %5624 = vmatpush.bf16.msra.mxu0 %v1454
    %5625 = vmatpush.bf16.msra.mxu0 %v1446
    %5626 = vmatpush.bf16.msra.mxu0 %v1438
    %5627 = vmatpush.bf16.msra.mxu0 %v1430
    %5628 = vmatpush.bf16.msra.mxu0 %v1422
    %5629 = vmatmul.bf16.gmra.mxu0 %v5052
    %v5630 = vpop.f32.mrf.mxu0
    %v5631 = vadd.f32 %v5618, %v5630
    %v5632 = vpop.f32.mrf.mxu0
    %5633 = vdwg.mxu0
    %5634 = vmatpush.bf16.msra.mxu0 %v1415
    %5635 = vmatpush.bf16.msra.mxu0 %v1407
    %5636 = vmatpush.bf16.msra.mxu0 %v1399
    %5637 = vmatpush.bf16.msra.mxu0 %v1391
    %5638 = vmatpush.bf16.msra.mxu0 %v1383
    %5639 = vmatpush.bf16.msra.mxu0 %v1375
    %5640 = vmatpush.bf16.msra.mxu0 %v1367
    %5641 = vmatpush.bf16.msra.mxu0 %v1359
    %5642 = vmatmul.bf16.gmra.mxu0 %v5051
    %v5643 = vpop.f32.mrf.mxu0
    %v5644 = vadd.f32 0.0, %v5643
    %v5645 = vpop.f32.mrf.mxu0
    %5646 = vdwg.mxu0
    %5647 = vmatpush.bf16.msra.mxu0 %v1479
    %5648 = vmatpush.bf16.msra.mxu0 %v1471
    %5649 = vmatpush.bf16.msra.mxu0 %v1463
    %5650 = vmatpush.bf16.msra.mxu0 %v1455
    %5651 = vmatpush.bf16.msra.mxu0 %v1447
    %5652 = vmatpush.bf16.msra.mxu0 %v1439
    %5653 = vmatpush.bf16.msra.mxu0 %v1431
    %5654 = vmatpush.bf16.msra.mxu0 %v1423
    %5655 = vmatmul.bf16.gmra.mxu0 %v5052
    %v5656 = vpop.f32.mrf.mxu0
    %v5657 = vadd.f32 %v5644, %v5656
    %v5658 = vpop.f32.mrf.mxu0
    %5659 = vdwg.mxu0
    %5660 = vmatpush.bf16.msra.mxu0 %v1416
    %5661 = vmatpush.bf16.msra.mxu0 %v1408
    %5662 = vmatpush.bf16.msra.mxu0 %v1400
    %5663 = vmatpush.bf16.msra.mxu0 %v1392
    %5664 = vmatpush.bf16.msra.mxu0 %v1384
    %5665 = vmatpush.bf16.msra.mxu0 %v1376
    %5666 = vmatpush.bf16.msra.mxu0 %v1368
    %5667 = vmatpush.bf16.msra.mxu0 %v1360
    %5668 = vmatmul.bf16.gmra.mxu0 %v5051
    %v5669 = vpop.f32.mrf.mxu0
    %v5670 = vadd.f32 0.0, %v5669
    %v5671 = vpop.f32.mrf.mxu0
    %5672 = vdwg.mxu0
    %5673 = vmatpush.bf16.msra.mxu0 %v1480
    %5674 = vmatpush.bf16.msra.mxu0 %v1472
    %5675 = vmatpush.bf16.msra.mxu0 %v1464
    %5676 = vmatpush.bf16.msra.mxu0 %v1456
    %5677 = vmatpush.bf16.msra.mxu0 %v1448
    %5678 = vmatpush.bf16.msra.mxu0 %v1440
    %5679 = vmatpush.bf16.msra.mxu0 %v1432
    %5680 = vmatpush.bf16.msra.mxu0 %v1424
    %5681 = vmatmul.bf16.gmra.mxu0 %v5052
    %v5682 = vpop.f32.mrf.mxu0
    %v5683 = vadd.f32 %v5670, %v5682
    %v5684 = vpop.f32.mrf.mxu0
    %5685 = vdwg.mxu0
    %5686 = vmatpush.bf16.msra.mxu0 %v1417
    %5687 = vmatpush.bf16.msra.mxu0 %v1409
    %5688 = vmatpush.bf16.msra.mxu0 %v1401
    %5689 = vmatpush.bf16.msra.mxu0 %v1393
    %5690 = vmatpush.bf16.msra.mxu0 %v1385
    %5691 = vmatpush.bf16.msra.mxu0 %v1377
    %5692 = vmatpush.bf16.msra.mxu0 %v1369
    %5693 = vmatpush.bf16.msra.mxu0 %v1361
    %5694 = vmatmul.bf16.gmra.mxu0 %v5051
    %v5695 = vpop.f32.mrf.mxu0
    %v5696 = vadd.f32 0.0, %v5695
    %v5697 = vpop.f32.mrf.mxu0
    %5698 = vdwg.mxu0
    %5699 = vmatpush.bf16.msra.mxu0 %v1481
    %5700 = vmatpush.bf16.msra.mxu0 %v1473
    %5701 = vmatpush.bf16.msra.mxu0 %v1465
    %5702 = vmatpush.bf16.msra.mxu0 %v1457
    %5703 = vmatpush.bf16.msra.mxu0 %v1449
    %5704 = vmatpush.bf16.msra.mxu0 %v1441
    %5705 = vmatpush.bf16.msra.mxu0 %v1433
    %5706 = vmatpush.bf16.msra.mxu0 %v1425
    %5707 = vmatmul.bf16.gmra.mxu0 %v5052
    %v5708 = vpop.f32.mrf.mxu0
    %v5709 = vadd.f32 %v5696, %v5708
    %v5710 = vpop.f32.mrf.mxu0
    %5711 = vdwg.mxu0
    %5712 = vmatpush.bf16.msra.mxu0 %v1418
    %5713 = vmatpush.bf16.msra.mxu0 %v1410
    %5714 = vmatpush.bf16.msra.mxu0 %v1402
    %5715 = vmatpush.bf16.msra.mxu0 %v1394
    %5716 = vmatpush.bf16.msra.mxu0 %v1386
    %5717 = vmatpush.bf16.msra.mxu0 %v1378
    %5718 = vmatpush.bf16.msra.mxu0 %v1370
    %5719 = vmatpush.bf16.msra.mxu0 %v1362
    %5720 = vmatmul.bf16.gmra.mxu0 %v5051
    %v5721 = vpop.f32.mrf.mxu0
    %v5722 = vadd.f32 0.0, %v5721
    %v5723 = vpop.f32.mrf.mxu0
    %5724 = vdwg.mxu0
    %5725 = vmatpush.bf16.msra.mxu0 %v1482
    %5726 = vmatpush.bf16.msra.mxu0 %v1474
    %5727 = vmatpush.bf16.msra.mxu0 %v1466
    %5728 = vmatpush.bf16.msra.mxu0 %v1458
    %5729 = vmatpush.bf16.msra.mxu0 %v1450
    %5730 = vmatpush.bf16.msra.mxu0 %v1442
    %5731 = vmatpush.bf16.msra.mxu0 %v1434
    %5732 = vmatpush.bf16.msra.mxu0 %v1426
    %5733 = vmatmul.bf16.gmra.mxu0 %v5052
    %v5734 = vpop.f32.mrf.mxu0
    %v5735 = vadd.f32 %v5722, %v5734
    %v5736 = vpop.f32.mrf.mxu0
    %5737 = vdwg.mxu0
    %5738 = vmatpush.bf16.msra.mxu0 %v1419
    %5739 = vmatpush.bf16.msra.mxu0 %v1411
    %5740 = vmatpush.bf16.msra.mxu0 %v1403
    %5741 = vmatpush.bf16.msra.mxu0 %v1395
    %5742 = vmatpush.bf16.msra.mxu0 %v1387
    %5743 = vmatpush.bf16.msra.mxu0 %v1379
    %5744 = vmatpush.bf16.msra.mxu0 %v1371
    %5745 = vmatpush.bf16.msra.mxu0 %v1363
    %5746 = vmatmul.bf16.gmra.mxu0 %v5051
    %v5747 = vpop.f32.mrf.mxu0
    %v5748 = vadd.f32 0.0, %v5747
    %v5749 = vpop.f32.mrf.mxu0
    %5750 = vdwg.mxu0
    %5751 = vmatpush.bf16.msra.mxu0 %v1483
    %5752 = vmatpush.bf16.msra.mxu0 %v1475
    %5753 = vmatpush.bf16.msra.mxu0 %v1467
    %5754 = vmatpush.bf16.msra.mxu0 %v1459
    %5755 = vmatpush.bf16.msra.mxu0 %v1451
    %5756 = vmatpush.bf16.msra.mxu0 %v1443
    %5757 = vmatpush.bf16.msra.mxu0 %v1435
    %5758 = vmatpush.bf16.msra.mxu0 %v1427
    %5759 = vmatmul.bf16.gmra.mxu0 %v5052
    %v5760 = vpop.f32.mrf.mxu0
    %v5761 = vadd.f32 %v5748, %v5760
    %v5762 = vpop.f32.mrf.mxu0
    %5763 = vdwg.mxu0
    %5764 = vmatpush.bf16.msra.mxu0 %v1420
    %5765 = vmatpush.bf16.msra.mxu0 %v1412
    %5766 = vmatpush.bf16.msra.mxu0 %v1404
    %5767 = vmatpush.bf16.msra.mxu0 %v1396
    %5768 = vmatpush.bf16.msra.mxu0 %v1388
    %5769 = vmatpush.bf16.msra.mxu0 %v1380
    %5770 = vmatpush.bf16.msra.mxu0 %v1372
    %5771 = vmatpush.bf16.msra.mxu0 %v1364
    %5772 = vmatmul.bf16.gmra.mxu0 %v5051
    %v5773 = vpop.f32.mrf.mxu0
    %v5774 = vadd.f32 0.0, %v5773
    %v5775 = vpop.f32.mrf.mxu0
    %5776 = vdwg.mxu0
    %5777 = vmatpush.bf16.msra.mxu0 %v1484
    %5778 = vmatpush.bf16.msra.mxu0 %v1476
    %5779 = vmatpush.bf16.msra.mxu0 %v1468
    %5780 = vmatpush.bf16.msra.mxu0 %v1460
    %5781 = vmatpush.bf16.msra.mxu0 %v1452
    %5782 = vmatpush.bf16.msra.mxu0 %v1444
    %5783 = vmatpush.bf16.msra.mxu0 %v1436
    %5784 = vmatpush.bf16.msra.mxu0 %v1428
    %5785 = vmatmul.bf16.gmra.mxu0 %v5052
    %v5786 = vpop.f32.mrf.mxu0
    %v5787 = vadd.f32 %v5774, %v5786
    %v5788 = vpop.f32.mrf.mxu0
    %5789 = vdwg.mxu0
    %5790 = vmatpush.bf16.msra.mxu0 %v1421
    %5791 = vmatpush.bf16.msra.mxu0 %v1413
    %5792 = vmatpush.bf16.msra.mxu0 %v1405
    %5793 = vmatpush.bf16.msra.mxu0 %v1397
    %5794 = vmatpush.bf16.msra.mxu0 %v1389
    %5795 = vmatpush.bf16.msra.mxu0 %v1381
    %5796 = vmatpush.bf16.msra.mxu0 %v1373
    %5797 = vmatpush.bf16.msra.mxu0 %v1365
    %5798 = vmatmul.bf16.gmra.mxu0 %v5051
    %v5799 = vpop.f32.mrf.mxu0
    %v5800 = vadd.f32 0.0, %v5799
    %v5801 = vpop.f32.mrf.mxu0
    %5802 = vdwg.mxu0
    %5803 = vmatpush.bf16.msra.mxu0 %v1485
    %5804 = vmatpush.bf16.msra.mxu0 %v1477
    %5805 = vmatpush.bf16.msra.mxu0 %v1469
    %5806 = vmatpush.bf16.msra.mxu0 %v1461
    %5807 = vmatpush.bf16.msra.mxu0 %v1453
    %5808 = vmatpush.bf16.msra.mxu0 %v1445
    %5809 = vmatpush.bf16.msra.mxu0 %v1437
    %5810 = vmatpush.bf16.msra.mxu0 %v1429
    %5811 = vmatmul.bf16.gmra.mxu0 %v5052
    %v5812 = vpop.f32.mrf.mxu0
    %v5813 = vadd.f32 %v5800, %v5812
    %v5814 = vpop.f32.mrf.mxu0
    %5815 = vdwg.mxu0
    %v5816 = vadd.f32 %v5600, %v5631
    %v5817 = vadd.f32 %v5601, %v5657
    %v5818 = vadd.f32 %v5602, %v5683
    %v5819 = vadd.f32 %v5603, %v5709
    %v5820 = vadd.f32 %v5604, %v5735
    %v5821 = vadd.f32 %v5605, %v5761
    %v5822 = vadd.f32 %v5606, %v5787
    %v5823 = vadd.f32 %v5607, %v5813
    %v5824 = vxor.u32 %v5816, 2147483648
    %v5825 = vxor.u32 %v5817, 2147483648
    %v5826 = vmul.f32 %v5824, 1.442695
    %v5827 = vpow.pop %v5826
    %v5828 = vmul.f32 %v5825, 1.442695
    %v5829 = vpow.pop %v5828
    %v5830 = vadd.f32 %v5827, 1.0
    %v5831 = vadd.f32 %v5829, 1.0
    %v5832 = vrcp.pop %v5830
    %v5833 = vmul.f32 %v5830, %v5832
    %v5834 = vsub.f32 1.0, %v5833
    %v5835 = vmul.f32 %v5832, %v5834
    %v5836 = vadd.f32 %v5832, %v5835
    %vm5837 = vweird.f32 %v5830
    %vm5838 = vweird.f32 %v5832
    %vm5839 = vmor %vm5837, %vm5838
    %v5840 = vsel %vm5839, %v5832, %v5836
    %v5841 = vand.u32 2147483647, %v5830
    %vm5842 = vcmp.eq.f32.partialorder %v5841, 8.507059e+37
    %v5843 = vand.u32 %v5830, 2147483648
    %v5844 = vor.u32 1.1754944e-38, %v5843
    %v5845 = vsel %vm5842, %v5844, %v5840
    %v5846 = vmul.f32 1.0, %v5845
    %v5847 = vrcp.pop %v5831
    %v5848 = vmul.f32 %v5831, %v5847
    %v5849 = vsub.f32 1.0, %v5848
    %v5850 = vmul.f32 %v5847, %v5849
    %v5851 = vadd.f32 %v5847, %v5850
    %vm5852 = vweird.f32 %v5831
    %vm5853 = vweird.f32 %v5847
    %vm5854 = vmor %vm5852, %vm5853
    %v5855 = vsel %vm5854, %v5847, %v5851
    %v5856 = vand.u32 2147483647, %v5831
    %vm5857 = vcmp.eq.f32.partialorder %v5856, 8.507059e+37
    %v5858 = vand.u32 %v5831, 2147483648
    %v5859 = vor.u32 1.1754944e-38, %v5858
    %v5860 = vsel %vm5857, %v5859, %v5855
    %v5861 = vmul.f32 1.0, %v5860
    %v5862 = vxor.u32 %v5818, 2147483648
    %v5863 = vxor.u32 %v5819, 2147483648
    %v5864 = vmul.f32 %v5862, 1.442695
    %v5865 = vpow.pop %v5864
    %v5866 = vmul.f32 %v5863, 1.442695
    %v5867 = vpow.pop %v5866
    %v5868 = vadd.f32 %v5865, 1.0
    %v5869 = vadd.f32 %v5867, 1.0
    %v5870 = vrcp.pop %v5868
    %v5871 = vmul.f32 %v5868, %v5870
    %v5872 = vsub.f32 1.0, %v5871
    %v5873 = vmul.f32 %v5870, %v5872
    %v5874 = vadd.f32 %v5870, %v5873
    %vm5875 = vweird.f32 %v5868
    %vm5876 = vweird.f32 %v5870
    %vm5877 = vmor %vm5875, %vm5876
    %v5878 = vsel %vm5877, %v5870, %v5874
    %v5879 = vand.u32 2147483647, %v5868
    %vm5880 = vcmp.eq.f32.partialorder %v5879, 8.507059e+37
    %v5881 = vand.u32 %v5868, 2147483648
    %v5882 = vor.u32 1.1754944e-38, %v5881
    %v5883 = vsel %vm5880, %v5882, %v5878
    %v5884 = vmul.f32 1.0, %v5883
    %v5885 = vrcp.pop %v5869
    %v5886 = vmul.f32 %v5869, %v5885
    %v5887 = vsub.f32 1.0, %v5886
    %v5888 = vmul.f32 %v5885, %v5887
    %v5889 = vadd.f32 %v5885, %v5888
    %vm5890 = vweird.f32 %v5869
    %vm5891 = vweird.f32 %v5885
    %vm5892 = vmor %vm5890, %vm5891
    %v5893 = vsel %vm5892, %v5885, %v5889
    %v5894 = vand.u32 2147483647, %v5869
    %vm5895 = vcmp.eq.f32.partialorder %v5894, 8.507059e+37
    %v5896 = vand.u32 %v5869, 2147483648
    %v5897 = vor.u32 1.1754944e-38, %v5896
    %v5898 = vsel %vm5895, %v5897, %v5893
    %v5899 = vmul.f32 1.0, %v5898
    %v5900 = vtanh.pop %v5820
    %v5901 = vtanh.pop %v5821
    %v5902 = vxor.u32 %v5822, 2147483648
    %v5903 = vxor.u32 %v5823, 2147483648
    %v5904 = vmul.f32 %v5902, 1.442695
    %v5905 = vpow.pop %v5904
    %v5906 = vmul.f32 %v5903, 1.442695
    %v5907 = vpow.pop %v5906
    %v5908 = vadd.f32 %v5905, 1.0
    %v5909 = vadd.f32 %v5907, 1.0
    %v5910 = vrcp.pop %v5908
    %v5911 = vmul.f32 %v5908, %v5910
    %v5912 = vsub.f32 1.0, %v5911
    %v5913 = vmul.f32 %v5910, %v5912
    %v5914 = vadd.f32 %v5910, %v5913
    %vm5915 = vweird.f32 %v5908
    %vm5916 = vweird.f32 %v5910
    %vm5917 = vmor %vm5915, %vm5916
    %v5918 = vsel %vm5917, %v5910, %v5914
    %v5919 = vand.u32 2147483647, %v5908
    %vm5920 = vcmp.eq.f32.partialorder %v5919, 8.507059e+37
    %v5921 = vand.u32 %v5908, 2147483648
    %v5922 = vor.u32 1.1754944e-38, %v5921
    %v5923 = vsel %vm5920, %v5922, %v5918
    %v5924 = vmul.f32 1.0, %v5923
    %v5925 = vrcp.pop %v5909
    %v5926 = vmul.f32 %v5909, %v5925
    %v5927 = vsub.f32 1.0, %v5926
    %v5928 = vmul.f32 %v5925, %v5927
    %v5929 = vadd.f32 %v5925, %v5928
    %vm5930 = vweird.f32 %v5909
    %vm5931 = vweird.f32 %v5925
    %vm5932 = vmor %vm5930, %vm5931
    %v5933 = vsel %vm5932, %v5925, %v5929
    %v5934 = vand.u32 2147483647, %v5909
    %vm5935 = vcmp.eq.f32.partialorder %v5934, 8.507059e+37
    %v5936 = vand.u32 %v5909, 2147483648
    %v5937 = vor.u32 1.1754944e-38, %v5936
    %v5938 = vsel %vm5935, %v5937, %v5933
    %v5939 = vmul.f32 1.0, %v5938
    %v5940 = vmul.f32 %v5884, %v5045
    %v5941 = vmul.f32 %v5899, %v5046
    %v5942 = vmul.f32 %v5846, %v5900
    %v5943 = vmul.f32 %v5861, %v5901
    %v5944 = vadd.f32 %v5940, %v5942
    %v5945 = vadd.f32 %v5941, %v5943
    %v5946 = vtanh.pop %v5944
    %v5947 = vtanh.pop %v5945
    %v5948 = vmul.f32 %v5924, %v5946
    %v5949 = vmul.f32 %v5939, %v5947
    %v5950 = vpack.c.bf16 %v5948, %v5948
    %v5951 = vpack.c.bf16 %v5949, %v5949
    %v5952 = vpack.c.bf16 %v5595, %v5595
    %v5953 = vpack.c.bf16 %v5596, %v5596
    %5954 = vmatpush.bf16.msra.mxu0 %v2801
    %5955 = vmatpush.bf16.msra.mxu0 %v2793
    %5956 = vmatpush.bf16.msra.mxu0 %v2785
    %5957 = vmatpush.bf16.msra.mxu0 %v2777
    %5958 = vmatpush.bf16.msra.mxu0 %v2769
    %5959 = vmatpush.bf16.msra.mxu0 %v2761
    %5960 = vmatpush.bf16.msra.mxu0 %v2753
    %5961 = vmatpush.bf16.msra.mxu0 %v2745
    %5962 = vmatmul.bf16.gmra.mxu0 %v5950
    %v5963 = vpop.f32.mrf.mxu0
    %v5964 = vadd.f32 %v1961, %v5963
    %v5965 = vpop.f32.mrf.mxu0
    %5966 = vdwg.mxu0
    %5967 = vmatpush.bf16.msra.mxu0 %v2865
    %5968 = vmatpush.bf16.msra.mxu0 %v2857
    %5969 = vmatpush.bf16.msra.mxu0 %v2849
    %5970 = vmatpush.bf16.msra.mxu0 %v2841
    %5971 = vmatpush.bf16.msra.mxu0 %v2833
    %5972 = vmatpush.bf16.msra.mxu0 %v2825
    %5973 = vmatpush.bf16.msra.mxu0 %v2817
    %5974 = vmatpush.bf16.msra.mxu0 %v2809
    %5975 = vmatmul.bf16.gmra.mxu0 %v5951
    %v5976 = vpop.f32.mrf.mxu0
    %v5977 = vadd.f32 %v5964, %v5976
    %v5978 = vpop.f32.mrf.mxu0
    %5979 = vdwg.mxu0
    %5980 = vmatpush.bf16.msra.mxu0 %v2929
    %5981 = vmatpush.bf16.msra.mxu0 %v2921
    %5982 = vmatpush.bf16.msra.mxu0 %v2913
    %5983 = vmatpush.bf16.msra.mxu0 %v2905
    %5984 = vmatpush.bf16.msra.mxu0 %v2897
    %5985 = vmatpush.bf16.msra.mxu0 %v2889
    %5986 = vmatpush.bf16.msra.mxu0 %v2881
    %5987 = vmatpush.bf16.msra.mxu0 %v2873
    %5988 = vmatmul.bf16.gmra.mxu0 %v5952
    %v5989 = vpop.f32.mrf.mxu0
    %v5990 = vadd.f32 %v5977, %v5989
    %v5991 = vpop.f32.mrf.mxu0
    %5992 = vdwg.mxu0
    %5993 = vmatpush.bf16.msra.mxu0 %v2993
    %5994 = vmatpush.bf16.msra.mxu0 %v2985
    %5995 = vmatpush.bf16.msra.mxu0 %v2977
    %5996 = vmatpush.bf16.msra.mxu0 %v2969
    %5997 = vmatpush.bf16.msra.mxu0 %v2961
    %5998 = vmatpush.bf16.msra.mxu0 %v2953
    %5999 = vmatpush.bf16.msra.mxu0 %v2945
    %6000 = vmatpush.bf16.msra.mxu0 %v2937
    %6001 = vmatmul.bf16.gmra.mxu0 %v5953
    %v6002 = vpop.f32.mrf.mxu0
    %v6003 = vadd.f32 %v5990, %v6002
    %v6004 = vpop.f32.mrf.mxu0
    %6005 = vdwg.mxu0
    %6006 = vmatpush.bf16.msra.mxu0 %v2802
    %6007 = vmatpush.bf16.msra.mxu0 %v2794
    %6008 = vmatpush.bf16.msra.mxu0 %v2786
    %6009 = vmatpush.bf16.msra.mxu0 %v2778
    %6010 = vmatpush.bf16.msra.mxu0 %v2770
    %6011 = vmatpush.bf16.msra.mxu0 %v2762
    %6012 = vmatpush.bf16.msra.mxu0 %v2754
    %6013 = vmatpush.bf16.msra.mxu0 %v2746
    %6014 = vmatmul.bf16.gmra.mxu0 %v5950
    %v6015 = vpop.f32.mrf.mxu0
    %v6016 = vadd.f32 %v1962, %v6015
    %v6017 = vpop.f32.mrf.mxu0
    %6018 = vdwg.mxu0
    %6019 = vmatpush.bf16.msra.mxu0 %v2866
    %6020 = vmatpush.bf16.msra.mxu0 %v2858
    %6021 = vmatpush.bf16.msra.mxu0 %v2850
    %6022 = vmatpush.bf16.msra.mxu0 %v2842
    %6023 = vmatpush.bf16.msra.mxu0 %v2834
    %6024 = vmatpush.bf16.msra.mxu0 %v2826
    %6025 = vmatpush.bf16.msra.mxu0 %v2818
    %6026 = vmatpush.bf16.msra.mxu0 %v2810
    %6027 = vmatmul.bf16.gmra.mxu0 %v5951
    %v6028 = vpop.f32.mrf.mxu0
    %v6029 = vadd.f32 %v6016, %v6028
    %v6030 = vpop.f32.mrf.mxu0
    %6031 = vdwg.mxu0
    %6032 = vmatpush.bf16.msra.mxu0 %v2930
    %6033 = vmatpush.bf16.msra.mxu0 %v2922
    %6034 = vmatpush.bf16.msra.mxu0 %v2914
    %6035 = vmatpush.bf16.msra.mxu0 %v2906
    %6036 = vmatpush.bf16.msra.mxu0 %v2898
    %6037 = vmatpush.bf16.msra.mxu0 %v2890
    %6038 = vmatpush.bf16.msra.mxu0 %v2882
    %6039 = vmatpush.bf16.msra.mxu0 %v2874
    %6040 = vmatmul.bf16.gmra.mxu0 %v5952
    %v6041 = vpop.f32.mrf.mxu0
    %v6042 = vadd.f32 %v6029, %v6041
    %v6043 = vpop.f32.mrf.mxu0
    %6044 = vdwg.mxu0
    %6045 = vmatpush.bf16.msra.mxu0 %v2994
    %6046 = vmatpush.bf16.msra.mxu0 %v2986
    %6047 = vmatpush.bf16.msra.mxu0 %v2978
    %6048 = vmatpush.bf16.msra.mxu0 %v2970
    %6049 = vmatpush.bf16.msra.mxu0 %v2962
    %6050 = vmatpush.bf16.msra.mxu0 %v2954
    %6051 = vmatpush.bf16.msra.mxu0 %v2946
    %6052 = vmatpush.bf16.msra.mxu0 %v2938
    %6053 = vmatmul.bf16.gmra.mxu0 %v5953
    %v6054 = vpop.f32.mrf.mxu0
    %v6055 = vadd.f32 %v6042, %v6054
    %v6056 = vpop.f32.mrf.mxu0
    %6057 = vdwg.mxu0
    %6058 = vmatpush.bf16.msra.mxu0 %v2803
    %6059 = vmatpush.bf16.msra.mxu0 %v2795
    %6060 = vmatpush.bf16.msra.mxu0 %v2787
    %6061 = vmatpush.bf16.msra.mxu0 %v2779
    %6062 = vmatpush.bf16.msra.mxu0 %v2771
    %6063 = vmatpush.bf16.msra.mxu0 %v2763
    %6064 = vmatpush.bf16.msra.mxu0 %v2755
    %6065 = vmatpush.bf16.msra.mxu0 %v2747
    %6066 = vmatmul.bf16.gmra.mxu0 %v5950
    %v6067 = vpop.f32.mrf.mxu0
    %v6068 = vadd.f32 %v1963, %v6067
    %v6069 = vpop.f32.mrf.mxu0
    %6070 = vdwg.mxu0
    %6071 = vmatpush.bf16.msra.mxu0 %v2867
    %6072 = vmatpush.bf16.msra.mxu0 %v2859
    %6073 = vmatpush.bf16.msra.mxu0 %v2851
    %6074 = vmatpush.bf16.msra.mxu0 %v2843
    %6075 = vmatpush.bf16.msra.mxu0 %v2835
    %6076 = vmatpush.bf16.msra.mxu0 %v2827
    %6077 = vmatpush.bf16.msra.mxu0 %v2819
    %6078 = vmatpush.bf16.msra.mxu0 %v2811
    %6079 = vmatmul.bf16.gmra.mxu0 %v5951
    %v6080 = vpop.f32.mrf.mxu0
    %v6081 = vadd.f32 %v6068, %v6080
    %v6082 = vpop.f32.mrf.mxu0
    %6083 = vdwg.mxu0
    %6084 = vmatpush.bf16.msra.mxu0 %v2931
    %6085 = vmatpush.bf16.msra.mxu0 %v2923
    %6086 = vmatpush.bf16.msra.mxu0 %v2915
    %6087 = vmatpush.bf16.msra.mxu0 %v2907
    %6088 = vmatpush.bf16.msra.mxu0 %v2899
    %6089 = vmatpush.bf16.msra.mxu0 %v2891
    %6090 = vmatpush.bf16.msra.mxu0 %v2883
    %6091 = vmatpush.bf16.msra.mxu0 %v2875
    %6092 = vmatmul.bf16.gmra.mxu0 %v5952
    %v6093 = vpop.f32.mrf.mxu0
    %v6094 = vadd.f32 %v6081, %v6093
    %v6095 = vpop.f32.mrf.mxu0
    %6096 = vdwg.mxu0
    %6097 = vmatpush.bf16.msra.mxu0 %v2995
    %6098 = vmatpush.bf16.msra.mxu0 %v2987
    %6099 = vmatpush.bf16.msra.mxu0 %v2979
    %6100 = vmatpush.bf16.msra.mxu0 %v2971
    %6101 = vmatpush.bf16.msra.mxu0 %v2963
    %6102 = vmatpush.bf16.msra.mxu0 %v2955
    %6103 = vmatpush.bf16.msra.mxu0 %v2947
    %6104 = vmatpush.bf16.msra.mxu0 %v2939
    %6105 = vmatmul.bf16.gmra.mxu0 %v5953
    %v6106 = vpop.f32.mrf.mxu0
    %v6107 = vadd.f32 %v6094, %v6106
    %v6108 = vpop.f32.mrf.mxu0
    %6109 = vdwg.mxu0
    %6110 = vmatpush.bf16.msra.mxu0 %v2804
    %6111 = vmatpush.bf16.msra.mxu0 %v2796
    %6112 = vmatpush.bf16.msra.mxu0 %v2788
    %6113 = vmatpush.bf16.msra.mxu0 %v2780
    %6114 = vmatpush.bf16.msra.mxu0 %v2772
    %6115 = vmatpush.bf16.msra.mxu0 %v2764
    %6116 = vmatpush.bf16.msra.mxu0 %v2756
    %6117 = vmatpush.bf16.msra.mxu0 %v2748
    %6118 = vmatmul.bf16.gmra.mxu0 %v5950
    %v6119 = vpop.f32.mrf.mxu0
    %v6120 = vadd.f32 %v1964, %v6119
    %v6121 = vpop.f32.mrf.mxu0
    %6122 = vdwg.mxu0
    %6123 = vmatpush.bf16.msra.mxu0 %v2868
    %6124 = vmatpush.bf16.msra.mxu0 %v2860
    %6125 = vmatpush.bf16.msra.mxu0 %v2852
    %6126 = vmatpush.bf16.msra.mxu0 %v2844
    %6127 = vmatpush.bf16.msra.mxu0 %v2836
    %6128 = vmatpush.bf16.msra.mxu0 %v2828
    %6129 = vmatpush.bf16.msra.mxu0 %v2820
    %6130 = vmatpush.bf16.msra.mxu0 %v2812
    %6131 = vmatmul.bf16.gmra.mxu0 %v5951
    %v6132 = vpop.f32.mrf.mxu0
    %v6133 = vadd.f32 %v6120, %v6132
    %v6134 = vpop.f32.mrf.mxu0
    %6135 = vdwg.mxu0
    %6136 = vmatpush.bf16.msra.mxu0 %v2932
    %6137 = vmatpush.bf16.msra.mxu0 %v2924
    %6138 = vmatpush.bf16.msra.mxu0 %v2916
    %6139 = vmatpush.bf16.msra.mxu0 %v2908
    %6140 = vmatpush.bf16.msra.mxu0 %v2900
    %6141 = vmatpush.bf16.msra.mxu0 %v2892
    %6142 = vmatpush.bf16.msra.mxu0 %v2884
    %6143 = vmatpush.bf16.msra.mxu0 %v2876
    %6144 = vmatmul.bf16.gmra.mxu0 %v5952
    %v6145 = vpop.f32.mrf.mxu0
    %v6146 = vadd.f32 %v6133, %v6145
    %v6147 = vpop.f32.mrf.mxu0
    %6148 = vdwg.mxu0
    %6149 = vmatpush.bf16.msra.mxu0 %v2996
    %6150 = vmatpush.bf16.msra.mxu0 %v2988
    %6151 = vmatpush.bf16.msra.mxu0 %v2980
    %6152 = vmatpush.bf16.msra.mxu0 %v2972
    %6153 = vmatpush.bf16.msra.mxu0 %v2964
    %6154 = vmatpush.bf16.msra.mxu0 %v2956
    %6155 = vmatpush.bf16.msra.mxu0 %v2948
    %6156 = vmatpush.bf16.msra.mxu0 %v2940
    %6157 = vmatmul.bf16.gmra.mxu0 %v5953
    %v6158 = vpop.f32.mrf.mxu0
    %v6159 = vadd.f32 %v6146, %v6158
    %v6160 = vpop.f32.mrf.mxu0
    %6161 = vdwg.mxu0
    %6162 = vmatpush.bf16.msra.mxu0 %v2805
    %6163 = vmatpush.bf16.msra.mxu0 %v2797
    %6164 = vmatpush.bf16.msra.mxu0 %v2789
    %6165 = vmatpush.bf16.msra.mxu0 %v2781
    %6166 = vmatpush.bf16.msra.mxu0 %v2773
    %6167 = vmatpush.bf16.msra.mxu0 %v2765
    %6168 = vmatpush.bf16.msra.mxu0 %v2757
    %6169 = vmatpush.bf16.msra.mxu0 %v2749
    %6170 = vmatmul.bf16.gmra.mxu0 %v5950
    %v6171 = vpop.f32.mrf.mxu0
    %v6172 = vadd.f32 %v1965, %v6171
    %v6173 = vpop.f32.mrf.mxu0
    %6174 = vdwg.mxu0
    %6175 = vmatpush.bf16.msra.mxu0 %v2869
    %6176 = vmatpush.bf16.msra.mxu0 %v2861
    %6177 = vmatpush.bf16.msra.mxu0 %v2853
    %6178 = vmatpush.bf16.msra.mxu0 %v2845
    %6179 = vmatpush.bf16.msra.mxu0 %v2837
    %6180 = vmatpush.bf16.msra.mxu0 %v2829
    %6181 = vmatpush.bf16.msra.mxu0 %v2821
    %6182 = vmatpush.bf16.msra.mxu0 %v2813
    %6183 = vmatmul.bf16.gmra.mxu0 %v5951
    %v6184 = vpop.f32.mrf.mxu0
    %v6185 = vadd.f32 %v6172, %v6184
    %v6186 = vpop.f32.mrf.mxu0
    %6187 = vdwg.mxu0
    %6188 = vmatpush.bf16.msra.mxu0 %v2933
    %6189 = vmatpush.bf16.msra.mxu0 %v2925
    %6190 = vmatpush.bf16.msra.mxu0 %v2917
    %6191 = vmatpush.bf16.msra.mxu0 %v2909
    %6192 = vmatpush.bf16.msra.mxu0 %v2901
    %6193 = vmatpush.bf16.msra.mxu0 %v2893
    %6194 = vmatpush.bf16.msra.mxu0 %v2885
    %6195 = vmatpush.bf16.msra.mxu0 %v2877
    %6196 = vmatmul.bf16.gmra.mxu0 %v5952
    %v6197 = vpop.f32.mrf.mxu0
    %v6198 = vadd.f32 %v6185, %v6197
    %v6199 = vpop.f32.mrf.mxu0
    %6200 = vdwg.mxu0
    %6201 = vmatpush.bf16.msra.mxu0 %v2997
    %6202 = vmatpush.bf16.msra.mxu0 %v2989
    %6203 = vmatpush.bf16.msra.mxu0 %v2981
    %6204 = vmatpush.bf16.msra.mxu0 %v2973
    %6205 = vmatpush.bf16.msra.mxu0 %v2965
    %6206 = vmatpush.bf16.msra.mxu0 %v2957
    %6207 = vmatpush.bf16.msra.mxu0 %v2949
    %6208 = vmatpush.bf16.msra.mxu0 %v2941
    %6209 = vmatmul.bf16.gmra.mxu0 %v5953
    %v6210 = vpop.f32.mrf.mxu0
    %v6211 = vadd.f32 %v6198, %v6210
    %v6212 = vpop.f32.mrf.mxu0
    %6213 = vdwg.mxu0
    %6214 = vmatpush.bf16.msra.mxu0 %v2806
    %6215 = vmatpush.bf16.msra.mxu0 %v2798
    %6216 = vmatpush.bf16.msra.mxu0 %v2790
    %6217 = vmatpush.bf16.msra.mxu0 %v2782
    %6218 = vmatpush.bf16.msra.mxu0 %v2774
    %6219 = vmatpush.bf16.msra.mxu0 %v2766
    %6220 = vmatpush.bf16.msra.mxu0 %v2758
    %6221 = vmatpush.bf16.msra.mxu0 %v2750
    %6222 = vmatmul.bf16.gmra.mxu0 %v5950
    %v6223 = vpop.f32.mrf.mxu0
    %v6224 = vadd.f32 %v1966, %v6223
    %v6225 = vpop.f32.mrf.mxu0
    %6226 = vdwg.mxu0
    %6227 = vmatpush.bf16.msra.mxu0 %v2870
    %6228 = vmatpush.bf16.msra.mxu0 %v2862
    %6229 = vmatpush.bf16.msra.mxu0 %v2854
    %6230 = vmatpush.bf16.msra.mxu0 %v2846
    %6231 = vmatpush.bf16.msra.mxu0 %v2838
    %6232 = vmatpush.bf16.msra.mxu0 %v2830
    %6233 = vmatpush.bf16.msra.mxu0 %v2822
    %6234 = vmatpush.bf16.msra.mxu0 %v2814
    %6235 = vmatmul.bf16.gmra.mxu0 %v5951
    %v6236 = vpop.f32.mrf.mxu0
    %v6237 = vadd.f32 %v6224, %v6236
    %v6238 = vpop.f32.mrf.mxu0
    %6239 = vdwg.mxu0
    %6240 = vmatpush.bf16.msra.mxu0 %v2934
    %6241 = vmatpush.bf16.msra.mxu0 %v2926
    %6242 = vmatpush.bf16.msra.mxu0 %v2918
    %6243 = vmatpush.bf16.msra.mxu0 %v2910
    %6244 = vmatpush.bf16.msra.mxu0 %v2902
    %6245 = vmatpush.bf16.msra.mxu0 %v2894
    %6246 = vmatpush.bf16.msra.mxu0 %v2886
    %6247 = vmatpush.bf16.msra.mxu0 %v2878
    %6248 = vmatmul.bf16.gmra.mxu0 %v5952
    %v6249 = vpop.f32.mrf.mxu0
    %v6250 = vadd.f32 %v6237, %v6249
    %v6251 = vpop.f32.mrf.mxu0
    %6252 = vdwg.mxu0
    %6253 = vmatpush.bf16.msra.mxu0 %v2998
    %6254 = vmatpush.bf16.msra.mxu0 %v2990
    %6255 = vmatpush.bf16.msra.mxu0 %v2982
    %6256 = vmatpush.bf16.msra.mxu0 %v2974
    %6257 = vmatpush.bf16.msra.mxu0 %v2966
    %6258 = vmatpush.bf16.msra.mxu0 %v2958
    %6259 = vmatpush.bf16.msra.mxu0 %v2950
    %6260 = vmatpush.bf16.msra.mxu0 %v2942
    %6261 = vmatmul.bf16.gmra.mxu0 %v5953
    %v6262 = vpop.f32.mrf.mxu0
    %v6263 = vadd.f32 %v6250, %v6262
    %v6264 = vpop.f32.mrf.mxu0
    %6265 = vdwg.mxu0
    %6266 = vmatpush.bf16.msra.mxu0 %v2807
    %6267 = vmatpush.bf16.msra.mxu0 %v2799
    %6268 = vmatpush.bf16.msra.mxu0 %v2791
    %6269 = vmatpush.bf16.msra.mxu0 %v2783
    %6270 = vmatpush.bf16.msra.mxu0 %v2775
    %6271 = vmatpush.bf16.msra.mxu0 %v2767
    %6272 = vmatpush.bf16.msra.mxu0 %v2759
    %6273 = vmatpush.bf16.msra.mxu0 %v2751
    %6274 = vmatmul.bf16.gmra.mxu0 %v5950
    %v6275 = vpop.f32.mrf.mxu0
    %v6276 = vadd.f32 %v1967, %v6275
    %v6277 = vpop.f32.mrf.mxu0
    %6278 = vdwg.mxu0
    %6279 = vmatpush.bf16.msra.mxu0 %v2871
    %6280 = vmatpush.bf16.msra.mxu0 %v2863
    %6281 = vmatpush.bf16.msra.mxu0 %v2855
    %6282 = vmatpush.bf16.msra.mxu0 %v2847
    %6283 = vmatpush.bf16.msra.mxu0 %v2839
    %6284 = vmatpush.bf16.msra.mxu0 %v2831
    %6285 = vmatpush.bf16.msra.mxu0 %v2823
    %6286 = vmatpush.bf16.msra.mxu0 %v2815
    %6287 = vmatmul.bf16.gmra.mxu0 %v5951
    %v6288 = vpop.f32.mrf.mxu0
    %v6289 = vadd.f32 %v6276, %v6288
    %v6290 = vpop.f32.mrf.mxu0
    %6291 = vdwg.mxu0
    %6292 = vmatpush.bf16.msra.mxu0 %v2935
    %6293 = vmatpush.bf16.msra.mxu0 %v2927
    %6294 = vmatpush.bf16.msra.mxu0 %v2919
    %6295 = vmatpush.bf16.msra.mxu0 %v2911
    %6296 = vmatpush.bf16.msra.mxu0 %v2903
    %6297 = vmatpush.bf16.msra.mxu0 %v2895
    %6298 = vmatpush.bf16.msra.mxu0 %v2887
    %6299 = vmatpush.bf16.msra.mxu0 %v2879
    %6300 = vmatmul.bf16.gmra.mxu0 %v5952
    %v6301 = vpop.f32.mrf.mxu0
    %v6302 = vadd.f32 %v6289, %v6301
    %v6303 = vpop.f32.mrf.mxu0
    %6304 = vdwg.mxu0
    %6305 = vmatpush.bf16.msra.mxu0 %v2999
    %6306 = vmatpush.bf16.msra.mxu0 %v2991
    %6307 = vmatpush.bf16.msra.mxu0 %v2983
    %6308 = vmatpush.bf16.msra.mxu0 %v2975
    %6309 = vmatpush.bf16.msra.mxu0 %v2967
    %6310 = vmatpush.bf16.msra.mxu0 %v2959
    %6311 = vmatpush.bf16.msra.mxu0 %v2951
    %6312 = vmatpush.bf16.msra.mxu0 %v2943
    %6313 = vmatmul.bf16.gmra.mxu0 %v5953
    %v6314 = vpop.f32.mrf.mxu0
    %v6315 = vadd.f32 %v6302, %v6314
    %v6316 = vpop.f32.mrf.mxu0
    %6317 = vdwg.mxu0
    %6318 = vmatpush.bf16.msra.mxu0 %v2808
    %6319 = vmatpush.bf16.msra.mxu0 %v2800
    %6320 = vmatpush.bf16.msra.mxu0 %v2792
    %6321 = vmatpush.bf16.msra.mxu0 %v2784
    %6322 = vmatpush.bf16.msra.mxu0 %v2776
    %6323 = vmatpush.bf16.msra.mxu0 %v2768
    %6324 = vmatpush.bf16.msra.mxu0 %v2760
    %6325 = vmatpush.bf16.msra.mxu0 %v2752
    %6326 = vmatmul.bf16.gmra.mxu0 %v5950
    %v6327 = vpop.f32.mrf.mxu0
    %v6328 = vadd.f32 %v1968, %v6327
    %v6329 = vpop.f32.mrf.mxu0
    %6330 = vdwg.mxu0
    %6331 = vmatpush.bf16.msra.mxu0 %v2872
    %6332 = vmatpush.bf16.msra.mxu0 %v2864
    %6333 = vmatpush.bf16.msra.mxu0 %v2856
    %6334 = vmatpush.bf16.msra.mxu0 %v2848
    %6335 = vmatpush.bf16.msra.mxu0 %v2840
    %6336 = vmatpush.bf16.msra.mxu0 %v2832
    %6337 = vmatpush.bf16.msra.mxu0 %v2824
    %6338 = vmatpush.bf16.msra.mxu0 %v2816
    %6339 = vmatmul.bf16.gmra.mxu0 %v5951
    %v6340 = vpop.f32.mrf.mxu0
    %v6341 = vadd.f32 %v6328, %v6340
    %v6342 = vpop.f32.mrf.mxu0
    %6343 = vdwg.mxu0
    %6344 = vmatpush.bf16.msra.mxu0 %v2936
    %6345 = vmatpush.bf16.msra.mxu0 %v2928
    %6346 = vmatpush.bf16.msra.mxu0 %v2920
    %6347 = vmatpush.bf16.msra.mxu0 %v2912
    %6348 = vmatpush.bf16.msra.mxu0 %v2904
    %6349 = vmatpush.bf16.msra.mxu0 %v2896
    %6350 = vmatpush.bf16.msra.mxu0 %v2888
    %6351 = vmatpush.bf16.msra.mxu0 %v2880
    %6352 = vmatmul.bf16.gmra.mxu0 %v5952
    %v6353 = vpop.f32.mrf.mxu0
    %v6354 = vadd.f32 %v6341, %v6353
    %v6355 = vpop.f32.mrf.mxu0
    %6356 = vdwg.mxu0
    %6357 = vmatpush.bf16.msra.mxu0 %v3000
    %6358 = vmatpush.bf16.msra.mxu0 %v2992
    %6359 = vmatpush.bf16.msra.mxu0 %v2984
    %6360 = vmatpush.bf16.msra.mxu0 %v2976
    %6361 = vmatpush.bf16.msra.mxu0 %v2968
    %6362 = vmatpush.bf16.msra.mxu0 %v2960
    %6363 = vmatpush.bf16.msra.mxu0 %v2952
    %6364 = vmatpush.bf16.msra.mxu0 %v2944
    %6365 = vmatmul.bf16.gmra.mxu0 %v5953
    %v6366 = vpop.f32.mrf.mxu0
    %v6367 = vadd.f32 %v6354, %v6366
    %v6368 = vpop.f32.mrf.mxu0
    %6369 = vdwg.mxu0
    %v6370 = vxor.u32 %v6003, 2147483648
    %v6371 = vxor.u32 %v6055, 2147483648
    %v6372 = vmul.f32 %v6370, 1.442695
    %v6373 = vpow.pop %v6372
    %v6374 = vmul.f32 %v6371, 1.442695
    %v6375 = vpow.pop %v6374
    %v6376 = vadd.f32 %v6373, 1.0
    %v6377 = vadd.f32 %v6375, 1.0
    %v6378 = vrcp.pop %v6376
    %v6379 = vmul.f32 %v6376, %v6378
    %v6380 = vsub.f32 1.0, %v6379
    %v6381 = vmul.f32 %v6378, %v6380
    %v6382 = vadd.f32 %v6378, %v6381
    %vm6383 = vweird.f32 %v6376
    %vm6384 = vweird.f32 %v6378
    %vm6385 = vmor %vm6383, %vm6384
    %v6386 = vsel %vm6385, %v6378, %v6382
    %v6387 = vand.u32 2147483647, %v6376
    %vm6388 = vcmp.eq.f32.partialorder %v6387, 8.507059e+37
    %v6389 = vand.u32 %v6376, 2147483648
    %v6390 = vor.u32 1.1754944e-38, %v6389
    %v6391 = vsel %vm6388, %v6390, %v6386
    %v6392 = vmul.f32 1.0, %v6391
    %v6393 = vrcp.pop %v6377
    %v6394 = vmul.f32 %v6377, %v6393
    %v6395 = vsub.f32 1.0, %v6394
    %v6396 = vmul.f32 %v6393, %v6395
    %v6397 = vadd.f32 %v6393, %v6396
    %vm6398 = vweird.f32 %v6377
    %vm6399 = vweird.f32 %v6393
    %vm6400 = vmor %vm6398, %vm6399
    %v6401 = vsel %vm6400, %v6393, %v6397
    %v6402 = vand.u32 2147483647, %v6377
    %vm6403 = vcmp.eq.f32.partialorder %v6402, 8.507059e+37
    %v6404 = vand.u32 %v6377, 2147483648
    %v6405 = vor.u32 1.1754944e-38, %v6404
    %v6406 = vsel %vm6403, %v6405, %v6401
    %v6407 = vmul.f32 1.0, %v6406
    %v6408 = vxor.u32 %v6107, 2147483648
    %v6409 = vxor.u32 %v6159, 2147483648
    %v6410 = vmul.f32 %v6408, 1.442695
    %v6411 = vpow.pop %v6410
    %v6412 = vmul.f32 %v6409, 1.442695
    %v6413 = vpow.pop %v6412
    %v6414 = vadd.f32 %v6411, 1.0
    %v6415 = vadd.f32 %v6413, 1.0
    %v6416 = vrcp.pop %v6414
    %v6417 = vmul.f32 %v6414, %v6416
    %v6418 = vsub.f32 1.0, %v6417
    %v6419 = vmul.f32 %v6416, %v6418
    %v6420 = vadd.f32 %v6416, %v6419
    %vm6421 = vweird.f32 %v6414
    %vm6422 = vweird.f32 %v6416
    %vm6423 = vmor %vm6421, %vm6422
    %v6424 = vsel %vm6423, %v6416, %v6420
    %v6425 = vand.u32 2147483647, %v6414
    %vm6426 = vcmp.eq.f32.partialorder %v6425, 8.507059e+37
    %v6427 = vand.u32 %v6414, 2147483648
    %v6428 = vor.u32 1.1754944e-38, %v6427
    %v6429 = vsel %vm6426, %v6428, %v6424
    %v6430 = vmul.f32 1.0, %v6429
    %v6431 = vrcp.pop %v6415
    %v6432 = vmul.f32 %v6415, %v6431
    %v6433 = vsub.f32 1.0, %v6432
    %v6434 = vmul.f32 %v6431, %v6433
    %v6435 = vadd.f32 %v6431, %v6434
    %vm6436 = vweird.f32 %v6415
    %vm6437 = vweird.f32 %v6431
    %vm6438 = vmor %vm6436, %vm6437
    %v6439 = vsel %vm6438, %v6431, %v6435
    %v6440 = vand.u32 2147483647, %v6415
    %vm6441 = vcmp.eq.f32.partialorder %v6440, 8.507059e+37
    %v6442 = vand.u32 %v6415, 2147483648
    %v6443 = vor.u32 1.1754944e-38, %v6442
    %v6444 = vsel %vm6441, %v6443, %v6439
    %v6445 = vmul.f32 1.0, %v6444
    %v6446 = vtanh.pop %v6211
    %v6447 = vtanh.pop %v6263
    %v6448 = vxor.u32 %v6315, 2147483648
    %v6449 = vxor.u32 %v6367, 2147483648
    %v6450 = vmul.f32 %v6448, 1.442695
    %v6451 = vpow.pop %v6450
    %v6452 = vmul.f32 %v6449, 1.442695
    %v6453 = vpow.pop %v6452
    %v6454 = vadd.f32 %v6451, 1.0
    %v6455 = vadd.f32 %v6453, 1.0
    %v6456 = vrcp.pop %v6454
    %v6457 = vmul.f32 %v6454, %v6456
    %v6458 = vsub.f32 1.0, %v6457
    %v6459 = vmul.f32 %v6456, %v6458
    %v6460 = vadd.f32 %v6456, %v6459
    %vm6461 = vweird.f32 %v6454
    %vm6462 = vweird.f32 %v6456
    %vm6463 = vmor %vm6461, %vm6462
    %v6464 = vsel %vm6463, %v6456, %v6460
    %v6465 = vand.u32 2147483647, %v6454
    %vm6466 = vcmp.eq.f32.partialorder %v6465, 8.507059e+37
    %v6467 = vand.u32 %v6454, 2147483648
    %v6468 = vor.u32 1.1754944e-38, %v6467
    %v6469 = vsel %vm6466, %v6468, %v6464
    %v6470 = vmul.f32 1.0, %v6469
    %v6471 = vrcp.pop %v6455
    %v6472 = vmul.f32 %v6455, %v6471
    %v6473 = vsub.f32 1.0, %v6472
    %v6474 = vmul.f32 %v6471, %v6473
    %v6475 = vadd.f32 %v6471, %v6474
    %vm6476 = vweird.f32 %v6455
    %vm6477 = vweird.f32 %v6471
    %vm6478 = vmor %vm6476, %vm6477
    %v6479 = vsel %vm6478, %v6471, %v6475
    %v6480 = vand.u32 2147483647, %v6455
    %vm6481 = vcmp.eq.f32.partialorder %v6480, 8.507059e+37
    %v6482 = vand.u32 %v6455, 2147483648
    %v6483 = vor.u32 1.1754944e-38, %v6482
    %v6484 = vsel %vm6481, %v6483, %v6479
    %v6485 = vmul.f32 1.0, %v6484
    %v6486 = vmul.f32 %v6430, %v5591
    %v6487 = vmul.f32 %v6445, %v5592
    %v6488 = vmul.f32 %v6392, %v6446
    %v6489 = vmul.f32 %v6407, %v6447
    %v6490 = vadd.f32 %v6486, %v6488
    %v6491 = vadd.f32 %v6487, %v6489
    %v6492 = vtanh.pop %v6490
    %v6493 = vtanh.pop %v6491
    %v6494 = vmul.f32 %v6470, %v6492
    %v6495 = vmul.f32 %v6485, %v6493
    %s6496 = smul.u32 4, 8
    %s6497 = smul.addr %s6496, 8
    %s6498 = scalar_lea.vmem [#allocation2], %s6497
    %v6499 = vld [vmem:[%s6498] sm:$0xff]
    %v6500 = vld [vmem:[%s6498 + $0x8] sm:$0xff]
    %v6501 = vld [vmem:[%s6498 + $0x10] sm:$0xff]
    %v6502 = vld [vmem:[%s6498 + $0x18] sm:$0xff]
    %v6503 = vld [vmem:[%s6498 + $0x20] sm:$0xff]
    %v6504 = vld [vmem:[%s6498 + $0x28] sm:$0xff]
    %v6505 = vld [vmem:[%s6498 + $0x30] sm:$0xff]
    %v6506 = vld [vmem:[%s6498 + $0x38] sm:$0xff]
    %6507 = vmatpush.bf16.msra.mxu0 %v1414
    %6508 = vmatpush.bf16.msra.mxu0 %v1406
    %6509 = vmatpush.bf16.msra.mxu0 %v1398
    %6510 = vmatpush.bf16.msra.mxu0 %v1390
    %6511 = vmatpush.bf16.msra.mxu0 %v1382
    %6512 = vmatpush.bf16.msra.mxu0 %v1374
    %6513 = vmatpush.bf16.msra.mxu0 %v1366
    %6514 = vmatpush.bf16.msra.mxu0 %v1358
    %6515 = vmatmul.bf16.gmra.mxu0 %v5950
    %v6516 = vpop.f32.mrf.mxu0
    %v6517 = vadd.f32 0.0, %v6516
    %v6518 = vpop.f32.mrf.mxu0
    %6519 = vdwg.mxu0
    %6520 = vmatpush.bf16.msra.mxu0 %v1478
    %6521 = vmatpush.bf16.msra.mxu0 %v1470
    %6522 = vmatpush.bf16.msra.mxu0 %v1462
    %6523 = vmatpush.bf16.msra.mxu0 %v1454
    %6524 = vmatpush.bf16.msra.mxu0 %v1446
    %6525 = vmatpush.bf16.msra.mxu0 %v1438
    %6526 = vmatpush.bf16.msra.mxu0 %v1430
    %6527 = vmatpush.bf16.msra.mxu0 %v1422
    %6528 = vmatmul.bf16.gmra.mxu0 %v5951
    %v6529 = vpop.f32.mrf.mxu0
    %v6530 = vadd.f32 %v6517, %v6529
    %v6531 = vpop.f32.mrf.mxu0
    %6532 = vdwg.mxu0
    %6533 = vmatpush.bf16.msra.mxu0 %v1415
    %6534 = vmatpush.bf16.msra.mxu0 %v1407
    %6535 = vmatpush.bf16.msra.mxu0 %v1399
    %6536 = vmatpush.bf16.msra.mxu0 %v1391
    %6537 = vmatpush.bf16.msra.mxu0 %v1383
    %6538 = vmatpush.bf16.msra.mxu0 %v1375
    %6539 = vmatpush.bf16.msra.mxu0 %v1367
    %6540 = vmatpush.bf16.msra.mxu0 %v1359
    %6541 = vmatmul.bf16.gmra.mxu0 %v5950
    %v6542 = vpop.f32.mrf.mxu0
    %v6543 = vadd.f32 0.0, %v6542
    %v6544 = vpop.f32.mrf.mxu0
    %6545 = vdwg.mxu0
    %6546 = vmatpush.bf16.msra.mxu0 %v1479
    %6547 = vmatpush.bf16.msra.mxu0 %v1471
    %6548 = vmatpush.bf16.msra.mxu0 %v1463
    %6549 = vmatpush.bf16.msra.mxu0 %v1455
    %6550 = vmatpush.bf16.msra.mxu0 %v1447
    %6551 = vmatpush.bf16.msra.mxu0 %v1439
    %6552 = vmatpush.bf16.msra.mxu0 %v1431
    %6553 = vmatpush.bf16.msra.mxu0 %v1423
    %6554 = vmatmul.bf16.gmra.mxu0 %v5951
    %v6555 = vpop.f32.mrf.mxu0
    %v6556 = vadd.f32 %v6543, %v6555
    %v6557 = vpop.f32.mrf.mxu0
    %6558 = vdwg.mxu0
    %6559 = vmatpush.bf16.msra.mxu0 %v1416
    %6560 = vmatpush.bf16.msra.mxu0 %v1408
    %6561 = vmatpush.bf16.msra.mxu0 %v1400
    %6562 = vmatpush.bf16.msra.mxu0 %v1392
    %6563 = vmatpush.bf16.msra.mxu0 %v1384
    %6564 = vmatpush.bf16.msra.mxu0 %v1376
    %6565 = vmatpush.bf16.msra.mxu0 %v1368
    %6566 = vmatpush.bf16.msra.mxu0 %v1360
    %6567 = vmatmul.bf16.gmra.mxu0 %v5950
    %v6568 = vpop.f32.mrf.mxu0
    %v6569 = vadd.f32 0.0, %v6568
    %v6570 = vpop.f32.mrf.mxu0
    %6571 = vdwg.mxu0
    %6572 = vmatpush.bf16.msra.mxu0 %v1480
    %6573 = vmatpush.bf16.msra.mxu0 %v1472
    %6574 = vmatpush.bf16.msra.mxu0 %v1464
    %6575 = vmatpush.bf16.msra.mxu0 %v1456
    %6576 = vmatpush.bf16.msra.mxu0 %v1448
    %6577 = vmatpush.bf16.msra.mxu0 %v1440
    %6578 = vmatpush.bf16.msra.mxu0 %v1432
    %6579 = vmatpush.bf16.msra.mxu0 %v1424
    %6580 = vmatmul.bf16.gmra.mxu0 %v5951
    %v6581 = vpop.f32.mrf.mxu0
    %v6582 = vadd.f32 %v6569, %v6581
    %v6583 = vpop.f32.mrf.mxu0
    %6584 = vdwg.mxu0
    %6585 = vmatpush.bf16.msra.mxu0 %v1417
    %6586 = vmatpush.bf16.msra.mxu0 %v1409
    %6587 = vmatpush.bf16.msra.mxu0 %v1401
    %6588 = vmatpush.bf16.msra.mxu0 %v1393
    %6589 = vmatpush.bf16.msra.mxu0 %v1385
    %6590 = vmatpush.bf16.msra.mxu0 %v1377
    %6591 = vmatpush.bf16.msra.mxu0 %v1369
    %6592 = vmatpush.bf16.msra.mxu0 %v1361
    %6593 = vmatmul.bf16.gmra.mxu0 %v5950
    %v6594 = vpop.f32.mrf.mxu0
    %v6595 = vadd.f32 0.0, %v6594
    %v6596 = vpop.f32.mrf.mxu0
    %6597 = vdwg.mxu0
    %6598 = vmatpush.bf16.msra.mxu0 %v1481
    %6599 = vmatpush.bf16.msra.mxu0 %v1473
    %6600 = vmatpush.bf16.msra.mxu0 %v1465
    %6601 = vmatpush.bf16.msra.mxu0 %v1457
    %6602 = vmatpush.bf16.msra.mxu0 %v1449
    %6603 = vmatpush.bf16.msra.mxu0 %v1441
    %6604 = vmatpush.bf16.msra.mxu0 %v1433
    %6605 = vmatpush.bf16.msra.mxu0 %v1425
    %6606 = vmatmul.bf16.gmra.mxu0 %v5951
    %v6607 = vpop.f32.mrf.mxu0
    %v6608 = vadd.f32 %v6595, %v6607
    %v6609 = vpop.f32.mrf.mxu0
    %6610 = vdwg.mxu0
    %6611 = vmatpush.bf16.msra.mxu0 %v1418
    %6612 = vmatpush.bf16.msra.mxu0 %v1410
    %6613 = vmatpush.bf16.msra.mxu0 %v1402
    %6614 = vmatpush.bf16.msra.mxu0 %v1394
    %6615 = vmatpush.bf16.msra.mxu0 %v1386
    %6616 = vmatpush.bf16.msra.mxu0 %v1378
    %6617 = vmatpush.bf16.msra.mxu0 %v1370
    %6618 = vmatpush.bf16.msra.mxu0 %v1362
    %6619 = vmatmul.bf16.gmra.mxu0 %v5950
    %v6620 = vpop.f32.mrf.mxu0
    %v6621 = vadd.f32 0.0, %v6620
    %v6622 = vpop.f32.mrf.mxu0
    %6623 = vdwg.mxu0
    %6624 = vmatpush.bf16.msra.mxu0 %v1482
    %6625 = vmatpush.bf16.msra.mxu0 %v1474
    %6626 = vmatpush.bf16.msra.mxu0 %v1466
    %6627 = vmatpush.bf16.msra.mxu0 %v1458
    %6628 = vmatpush.bf16.msra.mxu0 %v1450
    %6629 = vmatpush.bf16.msra.mxu0 %v1442
    %6630 = vmatpush.bf16.msra.mxu0 %v1434
    %6631 = vmatpush.bf16.msra.mxu0 %v1426
    %6632 = vmatmul.bf16.gmra.mxu0 %v5951
    %v6633 = vpop.f32.mrf.mxu0
    %v6634 = vadd.f32 %v6621, %v6633
    %v6635 = vpop.f32.mrf.mxu0
    %6636 = vdwg.mxu0
    %6637 = vmatpush.bf16.msra.mxu0 %v1419
    %6638 = vmatpush.bf16.msra.mxu0 %v1411
    %6639 = vmatpush.bf16.msra.mxu0 %v1403
    %6640 = vmatpush.bf16.msra.mxu0 %v1395
    %6641 = vmatpush.bf16.msra.mxu0 %v1387
    %6642 = vmatpush.bf16.msra.mxu0 %v1379
    %6643 = vmatpush.bf16.msra.mxu0 %v1371
    %6644 = vmatpush.bf16.msra.mxu0 %v1363
    %6645 = vmatmul.bf16.gmra.mxu0 %v5950
    %v6646 = vpop.f32.mrf.mxu0
    %v6647 = vadd.f32 0.0, %v6646
    %v6648 = vpop.f32.mrf.mxu0
    %6649 = vdwg.mxu0
    %6650 = vmatpush.bf16.msra.mxu0 %v1483
    %6651 = vmatpush.bf16.msra.mxu0 %v1475
    %6652 = vmatpush.bf16.msra.mxu0 %v1467
    %6653 = vmatpush.bf16.msra.mxu0 %v1459
    %6654 = vmatpush.bf16.msra.mxu0 %v1451
    %6655 = vmatpush.bf16.msra.mxu0 %v1443
    %6656 = vmatpush.bf16.msra.mxu0 %v1435
    %6657 = vmatpush.bf16.msra.mxu0 %v1427
    %6658 = vmatmul.bf16.gmra.mxu0 %v5951
    %v6659 = vpop.f32.mrf.mxu0
    %v6660 = vadd.f32 %v6647, %v6659
    %v6661 = vpop.f32.mrf.mxu0
    %6662 = vdwg.mxu0
    %6663 = vmatpush.bf16.msra.mxu0 %v1420
    %6664 = vmatpush.bf16.msra.mxu0 %v1412
    %6665 = vmatpush.bf16.msra.mxu0 %v1404
    %6666 = vmatpush.bf16.msra.mxu0 %v1396
    %6667 = vmatpush.bf16.msra.mxu0 %v1388
    %6668 = vmatpush.bf16.msra.mxu0 %v1380
    %6669 = vmatpush.bf16.msra.mxu0 %v1372
    %6670 = vmatpush.bf16.msra.mxu0 %v1364
    %6671 = vmatmul.bf16.gmra.mxu0 %v5950
    %v6672 = vpop.f32.mrf.mxu0
    %v6673 = vadd.f32 0.0, %v6672
    %v6674 = vpop.f32.mrf.mxu0
    %6675 = vdwg.mxu0
    %6676 = vmatpush.bf16.msra.mxu0 %v1484
    %6677 = vmatpush.bf16.msra.mxu0 %v1476
    %6678 = vmatpush.bf16.msra.mxu0 %v1468
    %6679 = vmatpush.bf16.msra.mxu0 %v1460
    %6680 = vmatpush.bf16.msra.mxu0 %v1452
    %6681 = vmatpush.bf16.msra.mxu0 %v1444
    %6682 = vmatpush.bf16.msra.mxu0 %v1436
    %6683 = vmatpush.bf16.msra.mxu0 %v1428
    %6684 = vmatmul.bf16.gmra.mxu0 %v5951
    %v6685 = vpop.f32.mrf.mxu0
    %v6686 = vadd.f32 %v6673, %v6685
    %v6687 = vpop.f32.mrf.mxu0
    %6688 = vdwg.mxu0
    %6689 = vmatpush.bf16.msra.mxu0 %v1421
    %6690 = vmatpush.bf16.msra.mxu0 %v1413
    %6691 = vmatpush.bf16.msra.mxu0 %v1405
    %6692 = vmatpush.bf16.msra.mxu0 %v1397
    %6693 = vmatpush.bf16.msra.mxu0 %v1389
    %6694 = vmatpush.bf16.msra.mxu0 %v1381
    %6695 = vmatpush.bf16.msra.mxu0 %v1373
    %6696 = vmatpush.bf16.msra.mxu0 %v1365
    %6697 = vmatmul.bf16.gmra.mxu0 %v5950
    %v6698 = vpop.f32.mrf.mxu0
    %v6699 = vadd.f32 0.0, %v6698
    %v6700 = vpop.f32.mrf.mxu0
    %6701 = vdwg.mxu0
    %6702 = vmatpush.bf16.msra.mxu0 %v1485
    %6703 = vmatpush.bf16.msra.mxu0 %v1477
    %6704 = vmatpush.bf16.msra.mxu0 %v1469
    %6705 = vmatpush.bf16.msra.mxu0 %v1461
    %6706 = vmatpush.bf16.msra.mxu0 %v1453
    %6707 = vmatpush.bf16.msra.mxu0 %v1445
    %6708 = vmatpush.bf16.msra.mxu0 %v1437
    %6709 = vmatpush.bf16.msra.mxu0 %v1429
    %6710 = vmatmul.bf16.gmra.mxu0 %v5951
    %v6711 = vpop.f32.mrf.mxu0
    %v6712 = vadd.f32 %v6699, %v6711
    %v6713 = vpop.f32.mrf.mxu0
    %6714 = vdwg.mxu0
    %v6715 = vadd.f32 %v6499, %v6530
    %v6716 = vadd.f32 %v6500, %v6556
    %v6717 = vadd.f32 %v6501, %v6582
    %v6718 = vadd.f32 %v6502, %v6608
    %v6719 = vadd.f32 %v6503, %v6634
    %v6720 = vadd.f32 %v6504, %v6660
    %v6721 = vadd.f32 %v6505, %v6686
    %v6722 = vadd.f32 %v6506, %v6712
    %v6723 = vxor.u32 %v6715, 2147483648
    %v6724 = vxor.u32 %v6716, 2147483648
    %v6725 = vmul.f32 %v6723, 1.442695
    %v6726 = vpow.pop %v6725
    %v6727 = vmul.f32 %v6724, 1.442695
    %v6728 = vpow.pop %v6727
    %v6729 = vadd.f32 %v6726, 1.0
    %v6730 = vadd.f32 %v6728, 1.0
    %v6731 = vrcp.pop %v6729
    %v6732 = vmul.f32 %v6729, %v6731
    %v6733 = vsub.f32 1.0, %v6732
    %v6734 = vmul.f32 %v6731, %v6733
    %v6735 = vadd.f32 %v6731, %v6734
    %vm6736 = vweird.f32 %v6729
    %vm6737 = vweird.f32 %v6731
    %vm6738 = vmor %vm6736, %vm6737
    %v6739 = vsel %vm6738, %v6731, %v6735
    %v6740 = vand.u32 2147483647, %v6729
    %vm6741 = vcmp.eq.f32.partialorder %v6740, 8.507059e+37
    %v6742 = vand.u32 %v6729, 2147483648
    %v6743 = vor.u32 1.1754944e-38, %v6742
    %v6744 = vsel %vm6741, %v6743, %v6739
    %v6745 = vmul.f32 1.0, %v6744
    %v6746 = vrcp.pop %v6730
    %v6747 = vmul.f32 %v6730, %v6746
    %v6748 = vsub.f32 1.0, %v6747
    %v6749 = vmul.f32 %v6746, %v6748
    %v6750 = vadd.f32 %v6746, %v6749
    %vm6751 = vweird.f32 %v6730
    %vm6752 = vweird.f32 %v6746
    %vm6753 = vmor %vm6751, %vm6752
    %v6754 = vsel %vm6753, %v6746, %v6750
    %v6755 = vand.u32 2147483647, %v6730
    %vm6756 = vcmp.eq.f32.partialorder %v6755, 8.507059e+37
    %v6757 = vand.u32 %v6730, 2147483648
    %v6758 = vor.u32 1.1754944e-38, %v6757
    %v6759 = vsel %vm6756, %v6758, %v6754
    %v6760 = vmul.f32 1.0, %v6759
    %v6761 = vxor.u32 %v6717, 2147483648
    %v6762 = vxor.u32 %v6718, 2147483648
    %v6763 = vmul.f32 %v6761, 1.442695
    %v6764 = vpow.pop %v6763
    %v6765 = vmul.f32 %v6762, 1.442695
    %v6766 = vpow.pop %v6765
    %v6767 = vadd.f32 %v6764, 1.0
    %v6768 = vadd.f32 %v6766, 1.0
    %v6769 = vrcp.pop %v6767
    %v6770 = vmul.f32 %v6767, %v6769
    %v6771 = vsub.f32 1.0, %v6770
    %v6772 = vmul.f32 %v6769, %v6771
    %v6773 = vadd.f32 %v6769, %v6772
    %vm6774 = vweird.f32 %v6767
    %vm6775 = vweird.f32 %v6769
    %vm6776 = vmor %vm6774, %vm6775
    %v6777 = vsel %vm6776, %v6769, %v6773
    %v6778 = vand.u32 2147483647, %v6767
    %vm6779 = vcmp.eq.f32.partialorder %v6778, 8.507059e+37
    %v6780 = vand.u32 %v6767, 2147483648
    %v6781 = vor.u32 1.1754944e-38, %v6780
    %v6782 = vsel %vm6779, %v6781, %v6777
    %v6783 = vmul.f32 1.0, %v6782
    %v6784 = vrcp.pop %v6768
    %v6785 = vmul.f32 %v6768, %v6784
    %v6786 = vsub.f32 1.0, %v6785
    %v6787 = vmul.f32 %v6784, %v6786
    %v6788 = vadd.f32 %v6784, %v6787
    %vm6789 = vweird.f32 %v6768
    %vm6790 = vweird.f32 %v6784
    %vm6791 = vmor %vm6789, %vm6790
    %v6792 = vsel %vm6791, %v6784, %v6788
    %v6793 = vand.u32 2147483647, %v6768
    %vm6794 = vcmp.eq.f32.partialorder %v6793, 8.507059e+37
    %v6795 = vand.u32 %v6768, 2147483648
    %v6796 = vor.u32 1.1754944e-38, %v6795
    %v6797 = vsel %vm6794, %v6796, %v6792
    %v6798 = vmul.f32 1.0, %v6797
    %v6799 = vtanh.pop %v6719
    %v6800 = vtanh.pop %v6720
    %v6801 = vxor.u32 %v6721, 2147483648
    %v6802 = vxor.u32 %v6722, 2147483648
    %v6803 = vmul.f32 %v6801, 1.442695
    %v6804 = vpow.pop %v6803
    %v6805 = vmul.f32 %v6802, 1.442695
    %v6806 = vpow.pop %v6805
    %v6807 = vadd.f32 %v6804, 1.0
    %v6808 = vadd.f32 %v6806, 1.0
    %v6809 = vrcp.pop %v6807
    %v6810 = vmul.f32 %v6807, %v6809
    %v6811 = vsub.f32 1.0, %v6810
    %v6812 = vmul.f32 %v6809, %v6811
    %v6813 = vadd.f32 %v6809, %v6812
    %vm6814 = vweird.f32 %v6807
    %vm6815 = vweird.f32 %v6809
    %vm6816 = vmor %vm6814, %vm6815
    %v6817 = vsel %vm6816, %v6809, %v6813
    %v6818 = vand.u32 2147483647, %v6807
    %vm6819 = vcmp.eq.f32.partialorder %v6818, 8.507059e+37
    %v6820 = vand.u32 %v6807, 2147483648
    %v6821 = vor.u32 1.1754944e-38, %v6820
    %v6822 = vsel %vm6819, %v6821, %v6817
    %v6823 = vmul.f32 1.0, %v6822
    %v6824 = vrcp.pop %v6808
    %v6825 = vmul.f32 %v6808, %v6824
    %v6826 = vsub.f32 1.0, %v6825
    %v6827 = vmul.f32 %v6824, %v6826
    %v6828 = vadd.f32 %v6824, %v6827
    %vm6829 = vweird.f32 %v6808
    %vm6830 = vweird.f32 %v6824
    %vm6831 = vmor %vm6829, %vm6830
    %v6832 = vsel %vm6831, %v6824, %v6828
    %v6833 = vand.u32 2147483647, %v6808
    %vm6834 = vcmp.eq.f32.partialorder %v6833, 8.507059e+37
    %v6835 = vand.u32 %v6808, 2147483648
    %v6836 = vor.u32 1.1754944e-38, %v6835
    %v6837 = vsel %vm6834, %v6836, %v6832
    %v6838 = vmul.f32 1.0, %v6837
    %v6839 = vmul.f32 %v6783, %v5944
    %v6840 = vmul.f32 %v6798, %v5945
    %v6841 = vmul.f32 %v6745, %v6799
    %v6842 = vmul.f32 %v6760, %v6800
    %v6843 = vadd.f32 %v6839, %v6841
    %v6844 = vadd.f32 %v6840, %v6842
    %v6845 = vtanh.pop %v6843
    %v6846 = vtanh.pop %v6844
    %v6847 = vmul.f32 %v6823, %v6845
    %v6848 = vmul.f32 %v6838, %v6846
    %v6849 = vpack.c.bf16 %v6847, %v6847
    %v6850 = vpack.c.bf16 %v6848, %v6848
    %v6851 = vpack.c.bf16 %v6494, %v6494
    %v6852 = vpack.c.bf16 %v6495, %v6495
    %6853 = vmatpush.bf16.msra.mxu0 %v2801
    %6854 = vmatpush.bf16.msra.mxu0 %v2793
    %6855 = vmatpush.bf16.msra.mxu0 %v2785
    %6856 = vmatpush.bf16.msra.mxu0 %v2777
    %6857 = vmatpush.bf16.msra.mxu0 %v2769
    %6858 = vmatpush.bf16.msra.mxu0 %v2761
    %6859 = vmatpush.bf16.msra.mxu0 %v2753
    %6860 = vmatpush.bf16.msra.mxu0 %v2745
    %6861 = vmatmul.bf16.gmra.mxu0 %v6849
    %v6862 = vpop.f32.mrf.mxu0
    %v6863 = vadd.f32 %v1961, %v6862
    %v6864 = vpop.f32.mrf.mxu0
    %6865 = vdwg.mxu0
    %6866 = vmatpush.bf16.msra.mxu0 %v2865
    %6867 = vmatpush.bf16.msra.mxu0 %v2857
    %6868 = vmatpush.bf16.msra.mxu0 %v2849
    %6869 = vmatpush.bf16.msra.mxu0 %v2841
    %6870 = vmatpush.bf16.msra.mxu0 %v2833
    %6871 = vmatpush.bf16.msra.mxu0 %v2825
    %6872 = vmatpush.bf16.msra.mxu0 %v2817
    %6873 = vmatpush.bf16.msra.mxu0 %v2809
    %6874 = vmatmul.bf16.gmra.mxu0 %v6850
    %v6875 = vpop.f32.mrf.mxu0
    %v6876 = vadd.f32 %v6863, %v6875
    %v6877 = vpop.f32.mrf.mxu0
    %6878 = vdwg.mxu0
    %6879 = vmatpush.bf16.msra.mxu0 %v2929
    %6880 = vmatpush.bf16.msra.mxu0 %v2921
    %6881 = vmatpush.bf16.msra.mxu0 %v2913
    %6882 = vmatpush.bf16.msra.mxu0 %v2905
    %6883 = vmatpush.bf16.msra.mxu0 %v2897
    %6884 = vmatpush.bf16.msra.mxu0 %v2889
    %6885 = vmatpush.bf16.msra.mxu0 %v2881
    %6886 = vmatpush.bf16.msra.mxu0 %v2873
    %6887 = vmatmul.bf16.gmra.mxu0 %v6851
    %v6888 = vpop.f32.mrf.mxu0
    %v6889 = vadd.f32 %v6876, %v6888
    %v6890 = vpop.f32.mrf.mxu0
    %6891 = vdwg.mxu0
    %6892 = vmatpush.bf16.msra.mxu0 %v2993
    %6893 = vmatpush.bf16.msra.mxu0 %v2985
    %6894 = vmatpush.bf16.msra.mxu0 %v2977
    %6895 = vmatpush.bf16.msra.mxu0 %v2969
    %6896 = vmatpush.bf16.msra.mxu0 %v2961
    %6897 = vmatpush.bf16.msra.mxu0 %v2953
    %6898 = vmatpush.bf16.msra.mxu0 %v2945
    %6899 = vmatpush.bf16.msra.mxu0 %v2937
    %6900 = vmatmul.bf16.gmra.mxu0 %v6852
    %v6901 = vpop.f32.mrf.mxu0
    %v6902 = vadd.f32 %v6889, %v6901
    %v6903 = vpop.f32.mrf.mxu0
    %6904 = vdwg.mxu0
    %6905 = vmatpush.bf16.msra.mxu0 %v2802
    %6906 = vmatpush.bf16.msra.mxu0 %v2794
    %6907 = vmatpush.bf16.msra.mxu0 %v2786
    %6908 = vmatpush.bf16.msra.mxu0 %v2778
    %6909 = vmatpush.bf16.msra.mxu0 %v2770
    %6910 = vmatpush.bf16.msra.mxu0 %v2762
    %6911 = vmatpush.bf16.msra.mxu0 %v2754
    %6912 = vmatpush.bf16.msra.mxu0 %v2746
    %6913 = vmatmul.bf16.gmra.mxu0 %v6849
    %v6914 = vpop.f32.mrf.mxu0
    %v6915 = vadd.f32 %v1962, %v6914
    %v6916 = vpop.f32.mrf.mxu0
    %6917 = vdwg.mxu0
    %6918 = vmatpush.bf16.msra.mxu0 %v2866
    %6919 = vmatpush.bf16.msra.mxu0 %v2858
    %6920 = vmatpush.bf16.msra.mxu0 %v2850
    %6921 = vmatpush.bf16.msra.mxu0 %v2842
    %6922 = vmatpush.bf16.msra.mxu0 %v2834
    %6923 = vmatpush.bf16.msra.mxu0 %v2826
    %6924 = vmatpush.bf16.msra.mxu0 %v2818
    %6925 = vmatpush.bf16.msra.mxu0 %v2810
    %6926 = vmatmul.bf16.gmra.mxu0 %v6850
    %v6927 = vpop.f32.mrf.mxu0
    %v6928 = vadd.f32 %v6915, %v6927
    %v6929 = vpop.f32.mrf.mxu0
    %6930 = vdwg.mxu0
    %6931 = vmatpush.bf16.msra.mxu0 %v2930
    %6932 = vmatpush.bf16.msra.mxu0 %v2922
    %6933 = vmatpush.bf16.msra.mxu0 %v2914
    %6934 = vmatpush.bf16.msra.mxu0 %v2906
    %6935 = vmatpush.bf16.msra.mxu0 %v2898
    %6936 = vmatpush.bf16.msra.mxu0 %v2890
    %6937 = vmatpush.bf16.msra.mxu0 %v2882
    %6938 = vmatpush.bf16.msra.mxu0 %v2874
    %6939 = vmatmul.bf16.gmra.mxu0 %v6851
    %v6940 = vpop.f32.mrf.mxu0
    %v6941 = vadd.f32 %v6928, %v6940
    %v6942 = vpop.f32.mrf.mxu0
    %6943 = vdwg.mxu0
    %6944 = vmatpush.bf16.msra.mxu0 %v2994
    %6945 = vmatpush.bf16.msra.mxu0 %v2986
    %6946 = vmatpush.bf16.msra.mxu0 %v2978
    %6947 = vmatpush.bf16.msra.mxu0 %v2970
    %6948 = vmatpush.bf16.msra.mxu0 %v2962
    %6949 = vmatpush.bf16.msra.mxu0 %v2954
    %6950 = vmatpush.bf16.msra.mxu0 %v2946
    %6951 = vmatpush.bf16.msra.mxu0 %v2938
    %6952 = vmatmul.bf16.gmra.mxu0 %v6852
    %v6953 = vpop.f32.mrf.mxu0
    %v6954 = vadd.f32 %v6941, %v6953
    %v6955 = vpop.f32.mrf.mxu0
    %6956 = vdwg.mxu0
    %6957 = vmatpush.bf16.msra.mxu0 %v2803
    %6958 = vmatpush.bf16.msra.mxu0 %v2795
    %6959 = vmatpush.bf16.msra.mxu0 %v2787
    %6960 = vmatpush.bf16.msra.mxu0 %v2779
    %6961 = vmatpush.bf16.msra.mxu0 %v2771
    %6962 = vmatpush.bf16.msra.mxu0 %v2763
    %6963 = vmatpush.bf16.msra.mxu0 %v2755
    %6964 = vmatpush.bf16.msra.mxu0 %v2747
    %6965 = vmatmul.bf16.gmra.mxu0 %v6849
    %v6966 = vpop.f32.mrf.mxu0
    %v6967 = vadd.f32 %v1963, %v6966
    %v6968 = vpop.f32.mrf.mxu0
    %6969 = vdwg.mxu0
    %6970 = vmatpush.bf16.msra.mxu0 %v2867
    %6971 = vmatpush.bf16.msra.mxu0 %v2859
    %6972 = vmatpush.bf16.msra.mxu0 %v2851
    %6973 = vmatpush.bf16.msra.mxu0 %v2843
    %6974 = vmatpush.bf16.msra.mxu0 %v2835
    %6975 = vmatpush.bf16.msra.mxu0 %v2827
    %6976 = vmatpush.bf16.msra.mxu0 %v2819
    %6977 = vmatpush.bf16.msra.mxu0 %v2811
    %6978 = vmatmul.bf16.gmra.mxu0 %v6850
    %v6979 = vpop.f32.mrf.mxu0
    %v6980 = vadd.f32 %v6967, %v6979
    %v6981 = vpop.f32.mrf.mxu0
    %6982 = vdwg.mxu0
    %6983 = vmatpush.bf16.msra.mxu0 %v2931
    %6984 = vmatpush.bf16.msra.mxu0 %v2923
    %6985 = vmatpush.bf16.msra.mxu0 %v2915
    %6986 = vmatpush.bf16.msra.mxu0 %v2907
    %6987 = vmatpush.bf16.msra.mxu0 %v2899
    %6988 = vmatpush.bf16.msra.mxu0 %v2891
    %6989 = vmatpush.bf16.msra.mxu0 %v2883
    %6990 = vmatpush.bf16.msra.mxu0 %v2875
    %6991 = vmatmul.bf16.gmra.mxu0 %v6851
    %v6992 = vpop.f32.mrf.mxu0
    %v6993 = vadd.f32 %v6980, %v6992
    %v6994 = vpop.f32.mrf.mxu0
    %6995 = vdwg.mxu0
    %6996 = vmatpush.bf16.msra.mxu0 %v2995
    %6997 = vmatpush.bf16.msra.mxu0 %v2987
    %6998 = vmatpush.bf16.msra.mxu0 %v2979
    %6999 = vmatpush.bf16.msra.mxu0 %v2971
    %7000 = vmatpush.bf16.msra.mxu0 %v2963
    %7001 = vmatpush.bf16.msra.mxu0 %v2955
    %7002 = vmatpush.bf16.msra.mxu0 %v2947
    %7003 = vmatpush.bf16.msra.mxu0 %v2939
    %7004 = vmatmul.bf16.gmra.mxu0 %v6852
    %v7005 = vpop.f32.mrf.mxu0
    %v7006 = vadd.f32 %v6993, %v7005
    %v7007 = vpop.f32.mrf.mxu0
    %7008 = vdwg.mxu0
    %7009 = vmatpush.bf16.msra.mxu0 %v2804
    %7010 = vmatpush.bf16.msra.mxu0 %v2796
    %7011 = vmatpush.bf16.msra.mxu0 %v2788
    %7012 = vmatpush.bf16.msra.mxu0 %v2780
    %7013 = vmatpush.bf16.msra.mxu0 %v2772
    %7014 = vmatpush.bf16.msra.mxu0 %v2764
    %7015 = vmatpush.bf16.msra.mxu0 %v2756
    %7016 = vmatpush.bf16.msra.mxu0 %v2748
    %7017 = vmatmul.bf16.gmra.mxu0 %v6849
    %v7018 = vpop.f32.mrf.mxu0
    %v7019 = vadd.f32 %v1964, %v7018
    %v7020 = vpop.f32.mrf.mxu0
    %7021 = vdwg.mxu0
    %7022 = vmatpush.bf16.msra.mxu0 %v2868
    %7023 = vmatpush.bf16.msra.mxu0 %v2860
    %7024 = vmatpush.bf16.msra.mxu0 %v2852
    %7025 = vmatpush.bf16.msra.mxu0 %v2844
    %7026 = vmatpush.bf16.msra.mxu0 %v2836
    %7027 = vmatpush.bf16.msra.mxu0 %v2828
    %7028 = vmatpush.bf16.msra.mxu0 %v2820
    %7029 = vmatpush.bf16.msra.mxu0 %v2812
    %7030 = vmatmul.bf16.gmra.mxu0 %v6850
    %v7031 = vpop.f32.mrf.mxu0
    %v7032 = vadd.f32 %v7019, %v7031
    %v7033 = vpop.f32.mrf.mxu0
    %7034 = vdwg.mxu0
    %7035 = vmatpush.bf16.msra.mxu0 %v2932
    %7036 = vmatpush.bf16.msra.mxu0 %v2924
    %7037 = vmatpush.bf16.msra.mxu0 %v2916
    %7038 = vmatpush.bf16.msra.mxu0 %v2908
    %7039 = vmatpush.bf16.msra.mxu0 %v2900
    %7040 = vmatpush.bf16.msra.mxu0 %v2892
    %7041 = vmatpush.bf16.msra.mxu0 %v2884
    %7042 = vmatpush.bf16.msra.mxu0 %v2876
    %7043 = vmatmul.bf16.gmra.mxu0 %v6851
    %v7044 = vpop.f32.mrf.mxu0
    %v7045 = vadd.f32 %v7032, %v7044
    %v7046 = vpop.f32.mrf.mxu0
    %7047 = vdwg.mxu0
    %7048 = vmatpush.bf16.msra.mxu0 %v2996
    %7049 = vmatpush.bf16.msra.mxu0 %v2988
    %7050 = vmatpush.bf16.msra.mxu0 %v2980
    %7051 = vmatpush.bf16.msra.mxu0 %v2972
    %7052 = vmatpush.bf16.msra.mxu0 %v2964
    %7053 = vmatpush.bf16.msra.mxu0 %v2956
    %7054 = vmatpush.bf16.msra.mxu0 %v2948
    %7055 = vmatpush.bf16.msra.mxu0 %v2940
    %7056 = vmatmul.bf16.gmra.mxu0 %v6852
    %v7057 = vpop.f32.mrf.mxu0
    %v7058 = vadd.f32 %v7045, %v7057
    %v7059 = vpop.f32.mrf.mxu0
    %7060 = vdwg.mxu0
    %7061 = vmatpush.bf16.msra.mxu0 %v2805
    %7062 = vmatpush.bf16.msra.mxu0 %v2797
    %7063 = vmatpush.bf16.msra.mxu0 %v2789
    %7064 = vmatpush.bf16.msra.mxu0 %v2781
    %7065 = vmatpush.bf16.msra.mxu0 %v2773
    %7066 = vmatpush.bf16.msra.mxu0 %v2765
    %7067 = vmatpush.bf16.msra.mxu0 %v2757
    %7068 = vmatpush.bf16.msra.mxu0 %v2749
    %7069 = vmatmul.bf16.gmra.mxu0 %v6849
    %v7070 = vpop.f32.mrf.mxu0
    %v7071 = vadd.f32 %v1965, %v7070
    %v7072 = vpop.f32.mrf.mxu0
    %7073 = vdwg.mxu0
    %7074 = vmatpush.bf16.msra.mxu0 %v2869
    %7075 = vmatpush.bf16.msra.mxu0 %v2861
    %7076 = vmatpush.bf16.msra.mxu0 %v2853
    %7077 = vmatpush.bf16.msra.mxu0 %v2845
    %7078 = vmatpush.bf16.msra.mxu0 %v2837
    %7079 = vmatpush.bf16.msra.mxu0 %v2829
    %7080 = vmatpush.bf16.msra.mxu0 %v2821
    %7081 = vmatpush.bf16.msra.mxu0 %v2813
    %7082 = vmatmul.bf16.gmra.mxu0 %v6850
    %v7083 = vpop.f32.mrf.mxu0
    %v7084 = vadd.f32 %v7071, %v7083
    %v7085 = vpop.f32.mrf.mxu0
    %7086 = vdwg.mxu0
    %7087 = vmatpush.bf16.msra.mxu0 %v2933
    %7088 = vmatpush.bf16.msra.mxu0 %v2925
    %7089 = vmatpush.bf16.msra.mxu0 %v2917
    %7090 = vmatpush.bf16.msra.mxu0 %v2909
    %7091 = vmatpush.bf16.msra.mxu0 %v2901
    %7092 = vmatpush.bf16.msra.mxu0 %v2893
    %7093 = vmatpush.bf16.msra.mxu0 %v2885
    %7094 = vmatpush.bf16.msra.mxu0 %v2877
    %7095 = vmatmul.bf16.gmra.mxu0 %v6851
    %v7096 = vpop.f32.mrf.mxu0
    %v7097 = vadd.f32 %v7084, %v7096
    %v7098 = vpop.f32.mrf.mxu0
    %7099 = vdwg.mxu0
    %7100 = vmatpush.bf16.msra.mxu0 %v2997
    %7101 = vmatpush.bf16.msra.mxu0 %v2989
    %7102 = vmatpush.bf16.msra.mxu0 %v2981
    %7103 = vmatpush.bf16.msra.mxu0 %v2973
    %7104 = vmatpush.bf16.msra.mxu0 %v2965
    %7105 = vmatpush.bf16.msra.mxu0 %v2957
    %7106 = vmatpush.bf16.msra.mxu0 %v2949
    %7107 = vmatpush.bf16.msra.mxu0 %v2941
    %7108 = vmatmul.bf16.gmra.mxu0 %v6852
    %v7109 = vpop.f32.mrf.mxu0
    %v7110 = vadd.f32 %v7097, %v7109
    %v7111 = vpop.f32.mrf.mxu0
    %7112 = vdwg.mxu0
    %7113 = vmatpush.bf16.msra.mxu0 %v2806
    %7114 = vmatpush.bf16.msra.mxu0 %v2798
    %7115 = vmatpush.bf16.msra.mxu0 %v2790
    %7116 = vmatpush.bf16.msra.mxu0 %v2782
    %7117 = vmatpush.bf16.msra.mxu0 %v2774
    %7118 = vmatpush.bf16.msra.mxu0 %v2766
    %7119 = vmatpush.bf16.msra.mxu0 %v2758
    %7120 = vmatpush.bf16.msra.mxu0 %v2750
    %7121 = vmatmul.bf16.gmra.mxu0 %v6849
    %v7122 = vpop.f32.mrf.mxu0
    %v7123 = vadd.f32 %v1966, %v7122
    %v7124 = vpop.f32.mrf.mxu0
    %7125 = vdwg.mxu0
    %7126 = vmatpush.bf16.msra.mxu0 %v2870
    %7127 = vmatpush.bf16.msra.mxu0 %v2862
    %7128 = vmatpush.bf16.msra.mxu0 %v2854
    %7129 = vmatpush.bf16.msra.mxu0 %v2846
    %7130 = vmatpush.bf16.msra.mxu0 %v2838
    %7131 = vmatpush.bf16.msra.mxu0 %v2830
    %7132 = vmatpush.bf16.msra.mxu0 %v2822
    %7133 = vmatpush.bf16.msra.mxu0 %v2814
    %7134 = vmatmul.bf16.gmra.mxu0 %v6850
    %v7135 = vpop.f32.mrf.mxu0
    %v7136 = vadd.f32 %v7123, %v7135
    %v7137 = vpop.f32.mrf.mxu0
    %7138 = vdwg.mxu0
    %7139 = vmatpush.bf16.msra.mxu0 %v2934
    %7140 = vmatpush.bf16.msra.mxu0 %v2926
    %7141 = vmatpush.bf16.msra.mxu0 %v2918
    %7142 = vmatpush.bf16.msra.mxu0 %v2910
    %7143 = vmatpush.bf16.msra.mxu0 %v2902
    %7144 = vmatpush.bf16.msra.mxu0 %v2894
    %7145 = vmatpush.bf16.msra.mxu0 %v2886
    %7146 = vmatpush.bf16.msra.mxu0 %v2878
    %7147 = vmatmul.bf16.gmra.mxu0 %v6851
    %v7148 = vpop.f32.mrf.mxu0
    %v7149 = vadd.f32 %v7136, %v7148
    %v7150 = vpop.f32.mrf.mxu0
    %7151 = vdwg.mxu0
    %7152 = vmatpush.bf16.msra.mxu0 %v2998
    %7153 = vmatpush.bf16.msra.mxu0 %v2990
    %7154 = vmatpush.bf16.msra.mxu0 %v2982
    %7155 = vmatpush.bf16.msra.mxu0 %v2974
    %7156 = vmatpush.bf16.msra.mxu0 %v2966
    %7157 = vmatpush.bf16.msra.mxu0 %v2958
    %7158 = vmatpush.bf16.msra.mxu0 %v2950
    %7159 = vmatpush.bf16.msra.mxu0 %v2942
    %7160 = vmatmul.bf16.gmra.mxu0 %v6852
    %v7161 = vpop.f32.mrf.mxu0
    %v7162 = vadd.f32 %v7149, %v7161
    %v7163 = vpop.f32.mrf.mxu0
    %7164 = vdwg.mxu0
    %7165 = vmatpush.bf16.msra.mxu0 %v2807
    %7166 = vmatpush.bf16.msra.mxu0 %v2799
    %7167 = vmatpush.bf16.msra.mxu0 %v2791
    %7168 = vmatpush.bf16.msra.mxu0 %v2783
    %7169 = vmatpush.bf16.msra.mxu0 %v2775
    %7170 = vmatpush.bf16.msra.mxu0 %v2767
    %7171 = vmatpush.bf16.msra.mxu0 %v2759
    %7172 = vmatpush.bf16.msra.mxu0 %v2751
    %7173 = vmatmul.bf16.gmra.mxu0 %v6849
    %v7174 = vpop.f32.mrf.mxu0
    %v7175 = vadd.f32 %v1967, %v7174
    %v7176 = vpop.f32.mrf.mxu0
    %7177 = vdwg.mxu0
    %7178 = vmatpush.bf16.msra.mxu0 %v2871
    %7179 = vmatpush.bf16.msra.mxu0 %v2863
    %7180 = vmatpush.bf16.msra.mxu0 %v2855
    %7181 = vmatpush.bf16.msra.mxu0 %v2847
    %7182 = vmatpush.bf16.msra.mxu0 %v2839
    %7183 = vmatpush.bf16.msra.mxu0 %v2831
    %7184 = vmatpush.bf16.msra.mxu0 %v2823
    %7185 = vmatpush.bf16.msra.mxu0 %v2815
    %7186 = vmatmul.bf16.gmra.mxu0 %v6850
    %v7187 = vpop.f32.mrf.mxu0
    %v7188 = vadd.f32 %v7175, %v7187
    %v7189 = vpop.f32.mrf.mxu0
    %7190 = vdwg.mxu0
    %7191 = vmatpush.bf16.msra.mxu0 %v2935
    %7192 = vmatpush.bf16.msra.mxu0 %v2927
    %7193 = vmatpush.bf16.msra.mxu0 %v2919
    %7194 = vmatpush.bf16.msra.mxu0 %v2911
    %7195 = vmatpush.bf16.msra.mxu0 %v2903
    %7196 = vmatpush.bf16.msra.mxu0 %v2895
    %7197 = vmatpush.bf16.msra.mxu0 %v2887
    %7198 = vmatpush.bf16.msra.mxu0 %v2879
    %7199 = vmatmul.bf16.gmra.mxu0 %v6851
    %v7200 = vpop.f32.mrf.mxu0
    %v7201 = vadd.f32 %v7188, %v7200
    %v7202 = vpop.f32.mrf.mxu0
    %7203 = vdwg.mxu0
    %7204 = vmatpush.bf16.msra.mxu0 %v2999
    %7205 = vmatpush.bf16.msra.mxu0 %v2991
    %7206 = vmatpush.bf16.msra.mxu0 %v2983
    %7207 = vmatpush.bf16.msra.mxu0 %v2975
    %7208 = vmatpush.bf16.msra.mxu0 %v2967
    %7209 = vmatpush.bf16.msra.mxu0 %v2959
    %7210 = vmatpush.bf16.msra.mxu0 %v2951
    %7211 = vmatpush.bf16.msra.mxu0 %v2943
    %7212 = vmatmul.bf16.gmra.mxu0 %v6852
    %v7213 = vpop.f32.mrf.mxu0
    %v7214 = vadd.f32 %v7201, %v7213
    %v7215 = vpop.f32.mrf.mxu0
    %7216 = vdwg.mxu0
    %7217 = vmatpush.bf16.msra.mxu0 %v2808
    %7218 = vmatpush.bf16.msra.mxu0 %v2800
    %7219 = vmatpush.bf16.msra.mxu0 %v2792
    %7220 = vmatpush.bf16.msra.mxu0 %v2784
    %7221 = vmatpush.bf16.msra.mxu0 %v2776
    %7222 = vmatpush.bf16.msra.mxu0 %v2768
    %7223 = vmatpush.bf16.msra.mxu0 %v2760
    %7224 = vmatpush.bf16.msra.mxu0 %v2752
    %7225 = vmatmul.bf16.gmra.mxu0 %v6849
    %v7226 = vpop.f32.mrf.mxu0
    %v7227 = vadd.f32 %v1968, %v7226
    %v7228 = vpop.f32.mrf.mxu0
    %7229 = vdwg.mxu0
    %7230 = vmatpush.bf16.msra.mxu0 %v2872
    %7231 = vmatpush.bf16.msra.mxu0 %v2864
    %7232 = vmatpush.bf16.msra.mxu0 %v2856
    %7233 = vmatpush.bf16.msra.mxu0 %v2848
    %7234 = vmatpush.bf16.msra.mxu0 %v2840
    %7235 = vmatpush.bf16.msra.mxu0 %v2832
    %7236 = vmatpush.bf16.msra.mxu0 %v2824
    %7237 = vmatpush.bf16.msra.mxu0 %v2816
    %7238 = vmatmul.bf16.gmra.mxu0 %v6850
    %v7239 = vpop.f32.mrf.mxu0
    %v7240 = vadd.f32 %v7227, %v7239
    %v7241 = vpop.f32.mrf.mxu0
    %7242 = vdwg.mxu0
    %7243 = vmatpush.bf16.msra.mxu0 %v2936
    %7244 = vmatpush.bf16.msra.mxu0 %v2928
    %7245 = vmatpush.bf16.msra.mxu0 %v2920
    %7246 = vmatpush.bf16.msra.mxu0 %v2912
    %7247 = vmatpush.bf16.msra.mxu0 %v2904
    %7248 = vmatpush.bf16.msra.mxu0 %v2896
    %7249 = vmatpush.bf16.msra.mxu0 %v2888
    %7250 = vmatpush.bf16.msra.mxu0 %v2880
    %7251 = vmatmul.bf16.gmra.mxu0 %v6851
    %v7252 = vpop.f32.mrf.mxu0
    %v7253 = vadd.f32 %v7240, %v7252
    %v7254 = vpop.f32.mrf.mxu0
    %7255 = vdwg.mxu0
    %7256 = vmatpush.bf16.msra.mxu0 %v3000
    %7257 = vmatpush.bf16.msra.mxu0 %v2992
    %7258 = vmatpush.bf16.msra.mxu0 %v2984
    %7259 = vmatpush.bf16.msra.mxu0 %v2976
    %7260 = vmatpush.bf16.msra.mxu0 %v2968
    %7261 = vmatpush.bf16.msra.mxu0 %v2960
    %7262 = vmatpush.bf16.msra.mxu0 %v2952
    %7263 = vmatpush.bf16.msra.mxu0 %v2944
    %7264 = vmatmul.bf16.gmra.mxu0 %v6852
    %v7265 = vpop.f32.mrf.mxu0
    %v7266 = vadd.f32 %v7253, %v7265
    %v7267 = vpop.f32.mrf.mxu0
    %7268 = vdwg.mxu0
    %v7269 = vxor.u32 %v6902, 2147483648
    %v7270 = vxor.u32 %v6954, 2147483648
    %v7271 = vmul.f32 %v7269, 1.442695
    %v7272 = vpow.pop %v7271
    %v7273 = vmul.f32 %v7270, 1.442695
    %v7274 = vpow.pop %v7273
    %v7275 = vadd.f32 %v7272, 1.0
    %v7276 = vadd.f32 %v7274, 1.0
    %v7277 = vrcp.pop %v7275
    %v7278 = vmul.f32 %v7275, %v7277
    %v7279 = vsub.f32 1.0, %v7278
    %v7280 = vmul.f32 %v7277, %v7279
    %v7281 = vadd.f32 %v7277, %v7280
    %vm7282 = vweird.f32 %v7275
    %vm7283 = vweird.f32 %v7277
    %vm7284 = vmor %vm7282, %vm7283
    %v7285 = vsel %vm7284, %v7277, %v7281
    %v7286 = vand.u32 2147483647, %v7275
    %vm7287 = vcmp.eq.f32.partialorder %v7286, 8.507059e+37
    %v7288 = vand.u32 %v7275, 2147483648
    %v7289 = vor.u32 1.1754944e-38, %v7288
    %v7290 = vsel %vm7287, %v7289, %v7285
    %v7291 = vmul.f32 1.0, %v7290
    %v7292 = vrcp.pop %v7276
    %v7293 = vmul.f32 %v7276, %v7292
    %v7294 = vsub.f32 1.0, %v7293
    %v7295 = vmul.f32 %v7292, %v7294
    %v7296 = vadd.f32 %v7292, %v7295
    %vm7297 = vweird.f32 %v7276
    %vm7298 = vweird.f32 %v7292
    %vm7299 = vmor %vm7297, %vm7298
    %v7300 = vsel %vm7299, %v7292, %v7296
    %v7301 = vand.u32 2147483647, %v7276
    %vm7302 = vcmp.eq.f32.partialorder %v7301, 8.507059e+37
    %v7303 = vand.u32 %v7276, 2147483648
    %v7304 = vor.u32 1.1754944e-38, %v7303
    %v7305 = vsel %vm7302, %v7304, %v7300
    %v7306 = vmul.f32 1.0, %v7305
    %v7307 = vxor.u32 %v7006, 2147483648
    %v7308 = vxor.u32 %v7058, 2147483648
    %v7309 = vmul.f32 %v7307, 1.442695
    %v7310 = vpow.pop %v7309
    %v7311 = vmul.f32 %v7308, 1.442695
    %v7312 = vpow.pop %v7311
    %v7313 = vadd.f32 %v7310, 1.0
    %v7314 = vadd.f32 %v7312, 1.0
    %v7315 = vrcp.pop %v7313
    %v7316 = vmul.f32 %v7313, %v7315
    %v7317 = vsub.f32 1.0, %v7316
    %v7318 = vmul.f32 %v7315, %v7317
    %v7319 = vadd.f32 %v7315, %v7318
    %vm7320 = vweird.f32 %v7313
    %vm7321 = vweird.f32 %v7315
    %vm7322 = vmor %vm7320, %vm7321
    %v7323 = vsel %vm7322, %v7315, %v7319
    %v7324 = vand.u32 2147483647, %v7313
    %vm7325 = vcmp.eq.f32.partialorder %v7324, 8.507059e+37
    %v7326 = vand.u32 %v7313, 2147483648
    %v7327 = vor.u32 1.1754944e-38, %v7326
    %v7328 = vsel %vm7325, %v7327, %v7323
    %v7329 = vmul.f32 1.0, %v7328
    %v7330 = vrcp.pop %v7314
    %v7331 = vmul.f32 %v7314, %v7330
    %v7332 = vsub.f32 1.0, %v7331
    %v7333 = vmul.f32 %v7330, %v7332
    %v7334 = vadd.f32 %v7330, %v7333
    %vm7335 = vweird.f32 %v7314
    %vm7336 = vweird.f32 %v7330
    %vm7337 = vmor %vm7335, %vm7336
    %v7338 = vsel %vm7337, %v7330, %v7334
    %v7339 = vand.u32 2147483647, %v7314
    %vm7340 = vcmp.eq.f32.partialorder %v7339, 8.507059e+37
    %v7341 = vand.u32 %v7314, 2147483648
    %v7342 = vor.u32 1.1754944e-38, %v7341
    %v7343 = vsel %vm7340, %v7342, %v7338
    %v7344 = vmul.f32 1.0, %v7343
    %v7345 = vtanh.pop %v7110
    %v7346 = vtanh.pop %v7162
    %v7347 = vxor.u32 %v7214, 2147483648
    %v7348 = vxor.u32 %v7266, 2147483648
    %v7349 = vmul.f32 %v7347, 1.442695
    %v7350 = vpow.pop %v7349
    %v7351 = vmul.f32 %v7348, 1.442695
    %v7352 = vpow.pop %v7351
    %v7353 = vadd.f32 %v7350, 1.0
    %v7354 = vadd.f32 %v7352, 1.0
    %v7355 = vrcp.pop %v7353
    %v7356 = vmul.f32 %v7353, %v7355
    %v7357 = vsub.f32 1.0, %v7356
    %v7358 = vmul.f32 %v7355, %v7357
    %v7359 = vadd.f32 %v7355, %v7358
    %vm7360 = vweird.f32 %v7353
    %vm7361 = vweird.f32 %v7355
    %vm7362 = vmor %vm7360, %vm7361
    %v7363 = vsel %vm7362, %v7355, %v7359
    %v7364 = vand.u32 2147483647, %v7353
    %vm7365 = vcmp.eq.f32.partialorder %v7364, 8.507059e+37
    %v7366 = vand.u32 %v7353, 2147483648
    %v7367 = vor.u32 1.1754944e-38, %v7366
    %v7368 = vsel %vm7365, %v7367, %v7363
    %v7369 = vmul.f32 1.0, %v7368
    %v7370 = vrcp.pop %v7354
    %v7371 = vmul.f32 %v7354, %v7370
    %v7372 = vsub.f32 1.0, %v7371
    %v7373 = vmul.f32 %v7370, %v7372
    %v7374 = vadd.f32 %v7370, %v7373
    %vm7375 = vweird.f32 %v7354
    %vm7376 = vweird.f32 %v7370
    %vm7377 = vmor %vm7375, %vm7376
    %v7378 = vsel %vm7377, %v7370, %v7374
    %v7379 = vand.u32 2147483647, %v7354
    %vm7380 = vcmp.eq.f32.partialorder %v7379, 8.507059e+37
    %v7381 = vand.u32 %v7354, 2147483648
    %v7382 = vor.u32 1.1754944e-38, %v7381
    %v7383 = vsel %vm7380, %v7382, %v7378
    %v7384 = vmul.f32 1.0, %v7383
    %v7385 = vmul.f32 %v7329, %v6490
    %v7386 = vmul.f32 %v7344, %v6491
    %v7387 = vmul.f32 %v7291, %v7345
    %v7388 = vmul.f32 %v7306, %v7346
    %v7389 = vadd.f32 %v7385, %v7387
    %v7390 = vadd.f32 %v7386, %v7388
    %v7391 = vtanh.pop %v7389
    %v7392 = vtanh.pop %v7390
    %v7393 = vmul.f32 %v7369, %v7391
    %v7394 = vmul.f32 %v7384, %v7392
    %s7395 = smul.u32 5, 8
    %s7396 = smul.addr %s7395, 8
    %s7397 = scalar_lea.vmem [#allocation2], %s7396
    %v7398 = vld [vmem:[%s7397] sm:$0xff]
    %v7399 = vld [vmem:[%s7397 + $0x8] sm:$0xff]
    %v7400 = vld [vmem:[%s7397 + $0x10] sm:$0xff]
    %v7401 = vld [vmem:[%s7397 + $0x18] sm:$0xff]
    %v7402 = vld [vmem:[%s7397 + $0x20] sm:$0xff]
    %v7403 = vld [vmem:[%s7397 + $0x28] sm:$0xff]
    %v7404 = vld [vmem:[%s7397 + $0x30] sm:$0xff]
    %v7405 = vld [vmem:[%s7397 + $0x38] sm:$0xff]
    %7406 = vmatpush.bf16.msra.mxu0 %v1414
    %7407 = vmatpush.bf16.msra.mxu0 %v1406
    %7408 = vmatpush.bf16.msra.mxu0 %v1398
    %7409 = vmatpush.bf16.msra.mxu0 %v1390
    %7410 = vmatpush.bf16.msra.mxu0 %v1382
    %7411 = vmatpush.bf16.msra.mxu0 %v1374
    %7412 = vmatpush.bf16.msra.mxu0 %v1366
    %7413 = vmatpush.bf16.msra.mxu0 %v1358
    %7414 = vmatmul.bf16.gmra.mxu0 %v6849
    %v7415 = vpop.f32.mrf.mxu0
    %v7416 = vadd.f32 0.0, %v7415
    %v7417 = vpop.f32.mrf.mxu0
    %7418 = vdwg.mxu0
    %7419 = vmatpush.bf16.msra.mxu0 %v1478
    %7420 = vmatpush.bf16.msra.mxu0 %v1470
    %7421 = vmatpush.bf16.msra.mxu0 %v1462
    %7422 = vmatpush.bf16.msra.mxu0 %v1454
    %7423 = vmatpush.bf16.msra.mxu0 %v1446
    %7424 = vmatpush.bf16.msra.mxu0 %v1438
    %7425 = vmatpush.bf16.msra.mxu0 %v1430
    %7426 = vmatpush.bf16.msra.mxu0 %v1422
    %7427 = vmatmul.bf16.gmra.mxu0 %v6850
    %v7428 = vpop.f32.mrf.mxu0
    %v7429 = vadd.f32 %v7416, %v7428
    %v7430 = vpop.f32.mrf.mxu0
    %7431 = vdwg.mxu0
    %7432 = vmatpush.bf16.msra.mxu0 %v1415
    %7433 = vmatpush.bf16.msra.mxu0 %v1407
    %7434 = vmatpush.bf16.msra.mxu0 %v1399
    %7435 = vmatpush.bf16.msra.mxu0 %v1391
    %7436 = vmatpush.bf16.msra.mxu0 %v1383
    %7437 = vmatpush.bf16.msra.mxu0 %v1375
    %7438 = vmatpush.bf16.msra.mxu0 %v1367
    %7439 = vmatpush.bf16.msra.mxu0 %v1359
    %7440 = vmatmul.bf16.gmra.mxu0 %v6849
    %v7441 = vpop.f32.mrf.mxu0
    %v7442 = vadd.f32 0.0, %v7441
    %v7443 = vpop.f32.mrf.mxu0
    %7444 = vdwg.mxu0
    %7445 = vmatpush.bf16.msra.mxu0 %v1479
    %7446 = vmatpush.bf16.msra.mxu0 %v1471
    %7447 = vmatpush.bf16.msra.mxu0 %v1463
    %7448 = vmatpush.bf16.msra.mxu0 %v1455
    %7449 = vmatpush.bf16.msra.mxu0 %v1447
    %7450 = vmatpush.bf16.msra.mxu0 %v1439
    %7451 = vmatpush.bf16.msra.mxu0 %v1431
    %7452 = vmatpush.bf16.msra.mxu0 %v1423
    %7453 = vmatmul.bf16.gmra.mxu0 %v6850
    %v7454 = vpop.f32.mrf.mxu0
    %v7455 = vadd.f32 %v7442, %v7454
    %v7456 = vpop.f32.mrf.mxu0
    %7457 = vdwg.mxu0
    %7458 = vmatpush.bf16.msra.mxu0 %v1416
    %7459 = vmatpush.bf16.msra.mxu0 %v1408
    %7460 = vmatpush.bf16.msra.mxu0 %v1400
    %7461 = vmatpush.bf16.msra.mxu0 %v1392
    %7462 = vmatpush.bf16.msra.mxu0 %v1384
    %7463 = vmatpush.bf16.msra.mxu0 %v1376
    %7464 = vmatpush.bf16.msra.mxu0 %v1368
    %7465 = vmatpush.bf16.msra.mxu0 %v1360
    %7466 = vmatmul.bf16.gmra.mxu0 %v6849
    %v7467 = vpop.f32.mrf.mxu0
    %v7468 = vadd.f32 0.0, %v7467
    %v7469 = vpop.f32.mrf.mxu0
    %7470 = vdwg.mxu0
    %7471 = vmatpush.bf16.msra.mxu0 %v1480
    %7472 = vmatpush.bf16.msra.mxu0 %v1472
    %7473 = vmatpush.bf16.msra.mxu0 %v1464
    %7474 = vmatpush.bf16.msra.mxu0 %v1456
    %7475 = vmatpush.bf16.msra.mxu0 %v1448
    %7476 = vmatpush.bf16.msra.mxu0 %v1440
    %7477 = vmatpush.bf16.msra.mxu0 %v1432
    %7478 = vmatpush.bf16.msra.mxu0 %v1424
    %7479 = vmatmul.bf16.gmra.mxu0 %v6850
    %v7480 = vpop.f32.mrf.mxu0
    %v7481 = vadd.f32 %v7468, %v7480
    %v7482 = vpop.f32.mrf.mxu0
    %7483 = vdwg.mxu0
    %7484 = vmatpush.bf16.msra.mxu0 %v1417
    %7485 = vmatpush.bf16.msra.mxu0 %v1409
    %7486 = vmatpush.bf16.msra.mxu0 %v1401
    %7487 = vmatpush.bf16.msra.mxu0 %v1393
    %7488 = vmatpush.bf16.msra.mxu0 %v1385
    %7489 = vmatpush.bf16.msra.mxu0 %v1377
    %7490 = vmatpush.bf16.msra.mxu0 %v1369
    %7491 = vmatpush.bf16.msra.mxu0 %v1361
    %7492 = vmatmul.bf16.gmra.mxu0 %v6849
    %v7493 = vpop.f32.mrf.mxu0
    %v7494 = vadd.f32 0.0, %v7493
    %v7495 = vpop.f32.mrf.mxu0
    %7496 = vdwg.mxu0
    %7497 = vmatpush.bf16.msra.mxu0 %v1481
    %7498 = vmatpush.bf16.msra.mxu0 %v1473
    %7499 = vmatpush.bf16.msra.mxu0 %v1465
    %7500 = vmatpush.bf16.msra.mxu0 %v1457
    %7501 = vmatpush.bf16.msra.mxu0 %v1449
    %7502 = vmatpush.bf16.msra.mxu0 %v1441
    %7503 = vmatpush.bf16.msra.mxu0 %v1433
    %7504 = vmatpush.bf16.msra.mxu0 %v1425
    %7505 = vmatmul.bf16.gmra.mxu0 %v6850
    %v7506 = vpop.f32.mrf.mxu0
    %v7507 = vadd.f32 %v7494, %v7506
    %v7508 = vpop.f32.mrf.mxu0
    %7509 = vdwg.mxu0
    %7510 = vmatpush.bf16.msra.mxu0 %v1418
    %7511 = vmatpush.bf16.msra.mxu0 %v1410
    %7512 = vmatpush.bf16.msra.mxu0 %v1402
    %7513 = vmatpush.bf16.msra.mxu0 %v1394
    %7514 = vmatpush.bf16.msra.mxu0 %v1386
    %7515 = vmatpush.bf16.msra.mxu0 %v1378
    %7516 = vmatpush.bf16.msra.mxu0 %v1370
    %7517 = vmatpush.bf16.msra.mxu0 %v1362
    %7518 = vmatmul.bf16.gmra.mxu0 %v6849
    %v7519 = vpop.f32.mrf.mxu0
    %v7520 = vadd.f32 0.0, %v7519
    %v7521 = vpop.f32.mrf.mxu0
    %7522 = vdwg.mxu0
    %7523 = vmatpush.bf16.msra.mxu0 %v1482
    %7524 = vmatpush.bf16.msra.mxu0 %v1474
    %7525 = vmatpush.bf16.msra.mxu0 %v1466
    %7526 = vmatpush.bf16.msra.mxu0 %v1458
    %7527 = vmatpush.bf16.msra.mxu0 %v1450
    %7528 = vmatpush.bf16.msra.mxu0 %v1442
    %7529 = vmatpush.bf16.msra.mxu0 %v1434
    %7530 = vmatpush.bf16.msra.mxu0 %v1426
    %7531 = vmatmul.bf16.gmra.mxu0 %v6850
    %v7532 = vpop.f32.mrf.mxu0
    %v7533 = vadd.f32 %v7520, %v7532
    %v7534 = vpop.f32.mrf.mxu0
    %7535 = vdwg.mxu0
    %7536 = vmatpush.bf16.msra.mxu0 %v1419
    %7537 = vmatpush.bf16.msra.mxu0 %v1411
    %7538 = vmatpush.bf16.msra.mxu0 %v1403
    %7539 = vmatpush.bf16.msra.mxu0 %v1395
    %7540 = vmatpush.bf16.msra.mxu0 %v1387
    %7541 = vmatpush.bf16.msra.mxu0 %v1379
    %7542 = vmatpush.bf16.msra.mxu0 %v1371
    %7543 = vmatpush.bf16.msra.mxu0 %v1363
    %7544 = vmatmul.bf16.gmra.mxu0 %v6849
    %v7545 = vpop.f32.mrf.mxu0
    %v7546 = vadd.f32 0.0, %v7545
    %v7547 = vpop.f32.mrf.mxu0
    %7548 = vdwg.mxu0
    %7549 = vmatpush.bf16.msra.mxu0 %v1483
    %7550 = vmatpush.bf16.msra.mxu0 %v1475
    %7551 = vmatpush.bf16.msra.mxu0 %v1467
    %7552 = vmatpush.bf16.msra.mxu0 %v1459
    %7553 = vmatpush.bf16.msra.mxu0 %v1451
    %7554 = vmatpush.bf16.msra.mxu0 %v1443
    %7555 = vmatpush.bf16.msra.mxu0 %v1435
    %7556 = vmatpush.bf16.msra.mxu0 %v1427
    %7557 = vmatmul.bf16.gmra.mxu0 %v6850
    %v7558 = vpop.f32.mrf.mxu0
    %v7559 = vadd.f32 %v7546, %v7558
    %v7560 = vpop.f32.mrf.mxu0
    %7561 = vdwg.mxu0
    %7562 = vmatpush.bf16.msra.mxu0 %v1420
    %7563 = vmatpush.bf16.msra.mxu0 %v1412
    %7564 = vmatpush.bf16.msra.mxu0 %v1404
    %7565 = vmatpush.bf16.msra.mxu0 %v1396
    %7566 = vmatpush.bf16.msra.mxu0 %v1388
    %7567 = vmatpush.bf16.msra.mxu0 %v1380
    %7568 = vmatpush.bf16.msra.mxu0 %v1372
    %7569 = vmatpush.bf16.msra.mxu0 %v1364
    %7570 = vmatmul.bf16.gmra.mxu0 %v6849
    %v7571 = vpop.f32.mrf.mxu0
    %v7572 = vadd.f32 0.0, %v7571
    %v7573 = vpop.f32.mrf.mxu0
    %7574 = vdwg.mxu0
    %7575 = vmatpush.bf16.msra.mxu0 %v1484
    %7576 = vmatpush.bf16.msra.mxu0 %v1476
    %7577 = vmatpush.bf16.msra.mxu0 %v1468
    %7578 = vmatpush.bf16.msra.mxu0 %v1460
    %7579 = vmatpush.bf16.msra.mxu0 %v1452
    %7580 = vmatpush.bf16.msra.mxu0 %v1444
    %7581 = vmatpush.bf16.msra.mxu0 %v1436
    %7582 = vmatpush.bf16.msra.mxu0 %v1428
    %7583 = vmatmul.bf16.gmra.mxu0 %v6850
    %v7584 = vpop.f32.mrf.mxu0
    %v7585 = vadd.f32 %v7572, %v7584
    %v7586 = vpop.f32.mrf.mxu0
    %7587 = vdwg.mxu0
    %7588 = vmatpush.bf16.msra.mxu0 %v1421
    %7589 = vmatpush.bf16.msra.mxu0 %v1413
    %7590 = vmatpush.bf16.msra.mxu0 %v1405
    %7591 = vmatpush.bf16.msra.mxu0 %v1397
    %7592 = vmatpush.bf16.msra.mxu0 %v1389
    %7593 = vmatpush.bf16.msra.mxu0 %v1381
    %7594 = vmatpush.bf16.msra.mxu0 %v1373
    %7595 = vmatpush.bf16.msra.mxu0 %v1365
    %7596 = vmatmul.bf16.gmra.mxu0 %v6849
    %v7597 = vpop.f32.mrf.mxu0
    %v7598 = vadd.f32 0.0, %v7597
    %v7599 = vpop.f32.mrf.mxu0
    %7600 = vdwg.mxu0
    %7601 = vmatpush.bf16.msra.mxu0 %v1485
    %7602 = vmatpush.bf16.msra.mxu0 %v1477
    %7603 = vmatpush.bf16.msra.mxu0 %v1469
    %7604 = vmatpush.bf16.msra.mxu0 %v1461
    %7605 = vmatpush.bf16.msra.mxu0 %v1453
    %7606 = vmatpush.bf16.msra.mxu0 %v1445
    %7607 = vmatpush.bf16.msra.mxu0 %v1437
    %7608 = vmatpush.bf16.msra.mxu0 %v1429
    %7609 = vmatmul.bf16.gmra.mxu0 %v6850
    %v7610 = vpop.f32.mrf.mxu0
    %v7611 = vadd.f32 %v7598, %v7610
    %v7612 = vpop.f32.mrf.mxu0
    %7613 = vdwg.mxu0
    %v7614 = vadd.f32 %v7398, %v7429
    %v7615 = vadd.f32 %v7399, %v7455
    %v7616 = vadd.f32 %v7400, %v7481
    %v7617 = vadd.f32 %v7401, %v7507
    %v7618 = vadd.f32 %v7402, %v7533
    %v7619 = vadd.f32 %v7403, %v7559
    %v7620 = vadd.f32 %v7404, %v7585
    %v7621 = vadd.f32 %v7405, %v7611
    %v7622 = vxor.u32 %v7614, 2147483648
    %v7623 = vxor.u32 %v7615, 2147483648
    %v7624 = vmul.f32 %v7622, 1.442695
    %v7625 = vpow.pop %v7624
    %v7626 = vmul.f32 %v7623, 1.442695
    %v7627 = vpow.pop %v7626
    %v7628 = vadd.f32 %v7625, 1.0
    %v7629 = vadd.f32 %v7627, 1.0
    %v7630 = vrcp.pop %v7628
    %v7631 = vmul.f32 %v7628, %v7630
    %v7632 = vsub.f32 1.0, %v7631
    %v7633 = vmul.f32 %v7630, %v7632
    %v7634 = vadd.f32 %v7630, %v7633
    %vm7635 = vweird.f32 %v7628
    %vm7636 = vweird.f32 %v7630
    %vm7637 = vmor %vm7635, %vm7636
    %v7638 = vsel %vm7637, %v7630, %v7634
    %v7639 = vand.u32 2147483647, %v7628
    %vm7640 = vcmp.eq.f32.partialorder %v7639, 8.507059e+37
    %v7641 = vand.u32 %v7628, 2147483648
    %v7642 = vor.u32 1.1754944e-38, %v7641
    %v7643 = vsel %vm7640, %v7642, %v7638
    %v7644 = vmul.f32 1.0, %v7643
    %v7645 = vrcp.pop %v7629
    %v7646 = vmul.f32 %v7629, %v7645
    %v7647 = vsub.f32 1.0, %v7646
    %v7648 = vmul.f32 %v7645, %v7647
    %v7649 = vadd.f32 %v7645, %v7648
    %vm7650 = vweird.f32 %v7629
    %vm7651 = vweird.f32 %v7645
    %vm7652 = vmor %vm7650, %vm7651
    %v7653 = vsel %vm7652, %v7645, %v7649
    %v7654 = vand.u32 2147483647, %v7629
    %vm7655 = vcmp.eq.f32.partialorder %v7654, 8.507059e+37
    %v7656 = vand.u32 %v7629, 2147483648
    %v7657 = vor.u32 1.1754944e-38, %v7656
    %v7658 = vsel %vm7655, %v7657, %v7653
    %v7659 = vmul.f32 1.0, %v7658
    %v7660 = vxor.u32 %v7616, 2147483648
    %v7661 = vxor.u32 %v7617, 2147483648
    %v7662 = vmul.f32 %v7660, 1.442695
    %v7663 = vpow.pop %v7662
    %v7664 = vmul.f32 %v7661, 1.442695
    %v7665 = vpow.pop %v7664
    %v7666 = vadd.f32 %v7663, 1.0
    %v7667 = vadd.f32 %v7665, 1.0
    %v7668 = vrcp.pop %v7666
    %v7669 = vmul.f32 %v7666, %v7668
    %v7670 = vsub.f32 1.0, %v7669
    %v7671 = vmul.f32 %v7668, %v7670
    %v7672 = vadd.f32 %v7668, %v7671
    %vm7673 = vweird.f32 %v7666
    %vm7674 = vweird.f32 %v7668
    %vm7675 = vmor %vm7673, %vm7674
    %v7676 = vsel %vm7675, %v7668, %v7672
    %v7677 = vand.u32 2147483647, %v7666
    %vm7678 = vcmp.eq.f32.partialorder %v7677, 8.507059e+37
    %v7679 = vand.u32 %v7666, 2147483648
    %v7680 = vor.u32 1.1754944e-38, %v7679
    %v7681 = vsel %vm7678, %v7680, %v7676
    %v7682 = vmul.f32 1.0, %v7681
    %v7683 = vrcp.pop %v7667
    %v7684 = vmul.f32 %v7667, %v7683
    %v7685 = vsub.f32 1.0, %v7684
    %v7686 = vmul.f32 %v7683, %v7685
    %v7687 = vadd.f32 %v7683, %v7686
    %vm7688 = vweird.f32 %v7667
    %vm7689 = vweird.f32 %v7683
    %vm7690 = vmor %vm7688, %vm7689
    %v7691 = vsel %vm7690, %v7683, %v7687
    %v7692 = vand.u32 2147483647, %v7667
    %vm7693 = vcmp.eq.f32.partialorder %v7692, 8.507059e+37
    %v7694 = vand.u32 %v7667, 2147483648
    %v7695 = vor.u32 1.1754944e-38, %v7694
    %v7696 = vsel %vm7693, %v7695, %v7691
    %v7697 = vmul.f32 1.0, %v7696
    %v7698 = vtanh.pop %v7618
    %v7699 = vtanh.pop %v7619
    %v7700 = vxor.u32 %v7620, 2147483648
    %v7701 = vxor.u32 %v7621, 2147483648
    %v7702 = vmul.f32 %v7700, 1.442695
    %v7703 = vpow.pop %v7702
    %v7704 = vmul.f32 %v7701, 1.442695
    %v7705 = vpow.pop %v7704
    %v7706 = vadd.f32 %v7703, 1.0
    %v7707 = vadd.f32 %v7705, 1.0
    %v7708 = vrcp.pop %v7706
    %v7709 = vmul.f32 %v7706, %v7708
    %v7710 = vsub.f32 1.0, %v7709
    %v7711 = vmul.f32 %v7708, %v7710
    %v7712 = vadd.f32 %v7708, %v7711
    %vm7713 = vweird.f32 %v7706
    %vm7714 = vweird.f32 %v7708
    %vm7715 = vmor %vm7713, %vm7714
    %v7716 = vsel %vm7715, %v7708, %v7712
    %v7717 = vand.u32 2147483647, %v7706
    %vm7718 = vcmp.eq.f32.partialorder %v7717, 8.507059e+37
    %v7719 = vand.u32 %v7706, 2147483648
    %v7720 = vor.u32 1.1754944e-38, %v7719
    %v7721 = vsel %vm7718, %v7720, %v7716
    %v7722 = vmul.f32 1.0, %v7721
    %v7723 = vrcp.pop %v7707
    %v7724 = vmul.f32 %v7707, %v7723
    %v7725 = vsub.f32 1.0, %v7724
    %v7726 = vmul.f32 %v7723, %v7725
    %v7727 = vadd.f32 %v7723, %v7726
    %vm7728 = vweird.f32 %v7707
    %vm7729 = vweird.f32 %v7723
    %vm7730 = vmor %vm7728, %vm7729
    %v7731 = vsel %vm7730, %v7723, %v7727
    %v7732 = vand.u32 2147483647, %v7707
    %vm7733 = vcmp.eq.f32.partialorder %v7732, 8.507059e+37
    %v7734 = vand.u32 %v7707, 2147483648
    %v7735 = vor.u32 1.1754944e-38, %v7734
    %v7736 = vsel %vm7733, %v7735, %v7731
    %v7737 = vmul.f32 1.0, %v7736
    %v7738 = vmul.f32 %v7682, %v6843
    %v7739 = vmul.f32 %v7697, %v6844
    %v7740 = vmul.f32 %v7644, %v7698
    %v7741 = vmul.f32 %v7659, %v7699
    %v7742 = vadd.f32 %v7738, %v7740
    %v7743 = vadd.f32 %v7739, %v7741
    %v7744 = vtanh.pop %v7742
    %v7745 = vtanh.pop %v7743
    %v7746 = vmul.f32 %v7722, %v7744
    %v7747 = vmul.f32 %v7737, %v7745
    %v7748 = vpack.c.bf16 %v7746, %v7746
    %v7749 = vpack.c.bf16 %v7747, %v7747
    %v7750 = vpack.c.bf16 %v7393, %v7393
    %v7751 = vpack.c.bf16 %v7394, %v7394
    %7752 = vmatpush.bf16.msra.mxu0 %v2801
    %7753 = vmatpush.bf16.msra.mxu0 %v2793
    %7754 = vmatpush.bf16.msra.mxu0 %v2785
    %7755 = vmatpush.bf16.msra.mxu0 %v2777
    %7756 = vmatpush.bf16.msra.mxu0 %v2769
    %7757 = vmatpush.bf16.msra.mxu0 %v2761
    %7758 = vmatpush.bf16.msra.mxu0 %v2753
    %7759 = vmatpush.bf16.msra.mxu0 %v2745
    %7760 = vmatmul.bf16.gmra.mxu0 %v7748
    %v7761 = vpop.f32.mrf.mxu0
    %v7762 = vadd.f32 %v1961, %v7761
    %v7763 = vpop.f32.mrf.mxu0
    %7764 = vdwg.mxu0
    %7765 = vmatpush.bf16.msra.mxu0 %v2865
    %7766 = vmatpush.bf16.msra.mxu0 %v2857
    %7767 = vmatpush.bf16.msra.mxu0 %v2849
    %7768 = vmatpush.bf16.msra.mxu0 %v2841
    %7769 = vmatpush.bf16.msra.mxu0 %v2833
    %7770 = vmatpush.bf16.msra.mxu0 %v2825
    %7771 = vmatpush.bf16.msra.mxu0 %v2817
    %7772 = vmatpush.bf16.msra.mxu0 %v2809
    %7773 = vmatmul.bf16.gmra.mxu0 %v7749
    %v7774 = vpop.f32.mrf.mxu0
    %v7775 = vadd.f32 %v7762, %v7774
    %v7776 = vpop.f32.mrf.mxu0
    %7777 = vdwg.mxu0
    %7778 = vmatpush.bf16.msra.mxu0 %v2929
    %7779 = vmatpush.bf16.msra.mxu0 %v2921
    %7780 = vmatpush.bf16.msra.mxu0 %v2913
    %7781 = vmatpush.bf16.msra.mxu0 %v2905
    %7782 = vmatpush.bf16.msra.mxu0 %v2897
    %7783 = vmatpush.bf16.msra.mxu0 %v2889
    %7784 = vmatpush.bf16.msra.mxu0 %v2881
    %7785 = vmatpush.bf16.msra.mxu0 %v2873
    %7786 = vmatmul.bf16.gmra.mxu0 %v7750
    %v7787 = vpop.f32.mrf.mxu0
    %v7788 = vadd.f32 %v7775, %v7787
    %v7789 = vpop.f32.mrf.mxu0
    %7790 = vdwg.mxu0
    %7791 = vmatpush.bf16.msra.mxu0 %v2993
    %7792 = vmatpush.bf16.msra.mxu0 %v2985
    %7793 = vmatpush.bf16.msra.mxu0 %v2977
    %7794 = vmatpush.bf16.msra.mxu0 %v2969
    %7795 = vmatpush.bf16.msra.mxu0 %v2961
    %7796 = vmatpush.bf16.msra.mxu0 %v2953
    %7797 = vmatpush.bf16.msra.mxu0 %v2945
    %7798 = vmatpush.bf16.msra.mxu0 %v2937
    %7799 = vmatmul.bf16.gmra.mxu0 %v7751
    %v7800 = vpop.f32.mrf.mxu0
    %v7801 = vadd.f32 %v7788, %v7800
    %v7802 = vpop.f32.mrf.mxu0
    %7803 = vdwg.mxu0
    %7804 = vmatpush.bf16.msra.mxu0 %v2802
    %7805 = vmatpush.bf16.msra.mxu0 %v2794
    %7806 = vmatpush.bf16.msra.mxu0 %v2786
    %7807 = vmatpush.bf16.msra.mxu0 %v2778
    %7808 = vmatpush.bf16.msra.mxu0 %v2770
    %7809 = vmatpush.bf16.msra.mxu0 %v2762
    %7810 = vmatpush.bf16.msra.mxu0 %v2754
    %7811 = vmatpush.bf16.msra.mxu0 %v2746
    %7812 = vmatmul.bf16.gmra.mxu0 %v7748
    %v7813 = vpop.f32.mrf.mxu0
    %v7814 = vadd.f32 %v1962, %v7813
    %v7815 = vpop.f32.mrf.mxu0
    %7816 = vdwg.mxu0
    %7817 = vmatpush.bf16.msra.mxu0 %v2866
    %7818 = vmatpush.bf16.msra.mxu0 %v2858
    %7819 = vmatpush.bf16.msra.mxu0 %v2850
    %7820 = vmatpush.bf16.msra.mxu0 %v2842
    %7821 = vmatpush.bf16.msra.mxu0 %v2834
    %7822 = vmatpush.bf16.msra.mxu0 %v2826
    %7823 = vmatpush.bf16.msra.mxu0 %v2818
    %7824 = vmatpush.bf16.msra.mxu0 %v2810
    %7825 = vmatmul.bf16.gmra.mxu0 %v7749
    %v7826 = vpop.f32.mrf.mxu0
    %v7827 = vadd.f32 %v7814, %v7826
    %v7828 = vpop.f32.mrf.mxu0
    %7829 = vdwg.mxu0
    %7830 = vmatpush.bf16.msra.mxu0 %v2930
    %7831 = vmatpush.bf16.msra.mxu0 %v2922
    %7832 = vmatpush.bf16.msra.mxu0 %v2914
    %7833 = vmatpush.bf16.msra.mxu0 %v2906
    %7834 = vmatpush.bf16.msra.mxu0 %v2898
    %7835 = vmatpush.bf16.msra.mxu0 %v2890
    %7836 = vmatpush.bf16.msra.mxu0 %v2882
    %7837 = vmatpush.bf16.msra.mxu0 %v2874
    %7838 = vmatmul.bf16.gmra.mxu0 %v7750
    %v7839 = vpop.f32.mrf.mxu0
    %v7840 = vadd.f32 %v7827, %v7839
    %v7841 = vpop.f32.mrf.mxu0
    %7842 = vdwg.mxu0
    %7843 = vmatpush.bf16.msra.mxu0 %v2994
    %7844 = vmatpush.bf16.msra.mxu0 %v2986
    %7845 = vmatpush.bf16.msra.mxu0 %v2978
    %7846 = vmatpush.bf16.msra.mxu0 %v2970
    %7847 = vmatpush.bf16.msra.mxu0 %v2962
    %7848 = vmatpush.bf16.msra.mxu0 %v2954
    %7849 = vmatpush.bf16.msra.mxu0 %v2946
    %7850 = vmatpush.bf16.msra.mxu0 %v2938
    %7851 = vmatmul.bf16.gmra.mxu0 %v7751
    %v7852 = vpop.f32.mrf.mxu0
    %v7853 = vadd.f32 %v7840, %v7852
    %v7854 = vpop.f32.mrf.mxu0
    %7855 = vdwg.mxu0
    %7856 = vmatpush.bf16.msra.mxu0 %v2803
    %7857 = vmatpush.bf16.msra.mxu0 %v2795
    %7858 = vmatpush.bf16.msra.mxu0 %v2787
    %7859 = vmatpush.bf16.msra.mxu0 %v2779
    %7860 = vmatpush.bf16.msra.mxu0 %v2771
    %7861 = vmatpush.bf16.msra.mxu0 %v2763
    %7862 = vmatpush.bf16.msra.mxu0 %v2755
    %7863 = vmatpush.bf16.msra.mxu0 %v2747
    %7864 = vmatmul.bf16.gmra.mxu0 %v7748
    %v7865 = vpop.f32.mrf.mxu0
    %v7866 = vadd.f32 %v1963, %v7865
    %v7867 = vpop.f32.mrf.mxu0
    %7868 = vdwg.mxu0
    %7869 = vmatpush.bf16.msra.mxu0 %v2867
    %7870 = vmatpush.bf16.msra.mxu0 %v2859
    %7871 = vmatpush.bf16.msra.mxu0 %v2851
    %7872 = vmatpush.bf16.msra.mxu0 %v2843
    %7873 = vmatpush.bf16.msra.mxu0 %v2835
    %7874 = vmatpush.bf16.msra.mxu0 %v2827
    %7875 = vmatpush.bf16.msra.mxu0 %v2819
    %7876 = vmatpush.bf16.msra.mxu0 %v2811
    %7877 = vmatmul.bf16.gmra.mxu0 %v7749
    %v7878 = vpop.f32.mrf.mxu0
    %v7879 = vadd.f32 %v7866, %v7878
    %v7880 = vpop.f32.mrf.mxu0
    %7881 = vdwg.mxu0
    %7882 = vmatpush.bf16.msra.mxu0 %v2931
    %7883 = vmatpush.bf16.msra.mxu0 %v2923
    %7884 = vmatpush.bf16.msra.mxu0 %v2915
    %7885 = vmatpush.bf16.msra.mxu0 %v2907
    %7886 = vmatpush.bf16.msra.mxu0 %v2899
    %7887 = vmatpush.bf16.msra.mxu0 %v2891
    %7888 = vmatpush.bf16.msra.mxu0 %v2883
    %7889 = vmatpush.bf16.msra.mxu0 %v2875
    %7890 = vmatmul.bf16.gmra.mxu0 %v7750
    %v7891 = vpop.f32.mrf.mxu0
    %v7892 = vadd.f32 %v7879, %v7891
    %v7893 = vpop.f32.mrf.mxu0
    %7894 = vdwg.mxu0
    %7895 = vmatpush.bf16.msra.mxu0 %v2995
    %7896 = vmatpush.bf16.msra.mxu0 %v2987
    %7897 = vmatpush.bf16.msra.mxu0 %v2979
    %7898 = vmatpush.bf16.msra.mxu0 %v2971
    %7899 = vmatpush.bf16.msra.mxu0 %v2963
    %7900 = vmatpush.bf16.msra.mxu0 %v2955
    %7901 = vmatpush.bf16.msra.mxu0 %v2947
    %7902 = vmatpush.bf16.msra.mxu0 %v2939
    %7903 = vmatmul.bf16.gmra.mxu0 %v7751
    %v7904 = vpop.f32.mrf.mxu0
    %v7905 = vadd.f32 %v7892, %v7904
    %v7906 = vpop.f32.mrf.mxu0
    %7907 = vdwg.mxu0
    %7908 = vmatpush.bf16.msra.mxu0 %v2804
    %7909 = vmatpush.bf16.msra.mxu0 %v2796
    %7910 = vmatpush.bf16.msra.mxu0 %v2788
    %7911 = vmatpush.bf16.msra.mxu0 %v2780
    %7912 = vmatpush.bf16.msra.mxu0 %v2772
    %7913 = vmatpush.bf16.msra.mxu0 %v2764
    %7914 = vmatpush.bf16.msra.mxu0 %v2756
    %7915 = vmatpush.bf16.msra.mxu0 %v2748
    %7916 = vmatmul.bf16.gmra.mxu0 %v7748
    %v7917 = vpop.f32.mrf.mxu0
    %v7918 = vadd.f32 %v1964, %v7917
    %v7919 = vpop.f32.mrf.mxu0
    %7920 = vdwg.mxu0
    %7921 = vmatpush.bf16.msra.mxu0 %v2868
    %7922 = vmatpush.bf16.msra.mxu0 %v2860
    %7923 = vmatpush.bf16.msra.mxu0 %v2852
    %7924 = vmatpush.bf16.msra.mxu0 %v2844
    %7925 = vmatpush.bf16.msra.mxu0 %v2836
    %7926 = vmatpush.bf16.msra.mxu0 %v2828
    %7927 = vmatpush.bf16.msra.mxu0 %v2820
    %7928 = vmatpush.bf16.msra.mxu0 %v2812
    %7929 = vmatmul.bf16.gmra.mxu0 %v7749
    %v7930 = vpop.f32.mrf.mxu0
    %v7931 = vadd.f32 %v7918, %v7930
    %v7932 = vpop.f32.mrf.mxu0
    %7933 = vdwg.mxu0
    %7934 = vmatpush.bf16.msra.mxu0 %v2932
    %7935 = vmatpush.bf16.msra.mxu0 %v2924
    %7936 = vmatpush.bf16.msra.mxu0 %v2916
    %7937 = vmatpush.bf16.msra.mxu0 %v2908
    %7938 = vmatpush.bf16.msra.mxu0 %v2900
    %7939 = vmatpush.bf16.msra.mxu0 %v2892
    %7940 = vmatpush.bf16.msra.mxu0 %v2884
    %7941 = vmatpush.bf16.msra.mxu0 %v2876
    %7942 = vmatmul.bf16.gmra.mxu0 %v7750
    %v7943 = vpop.f32.mrf.mxu0
    %v7944 = vadd.f32 %v7931, %v7943
    %v7945 = vpop.f32.mrf.mxu0
    %7946 = vdwg.mxu0
    %7947 = vmatpush.bf16.msra.mxu0 %v2996
    %7948 = vmatpush.bf16.msra.mxu0 %v2988
    %7949 = vmatpush.bf16.msra.mxu0 %v2980
    %7950 = vmatpush.bf16.msra.mxu0 %v2972
    %7951 = vmatpush.bf16.msra.mxu0 %v2964
    %7952 = vmatpush.bf16.msra.mxu0 %v2956
    %7953 = vmatpush.bf16.msra.mxu0 %v2948
    %7954 = vmatpush.bf16.msra.mxu0 %v2940
    %7955 = vmatmul.bf16.gmra.mxu0 %v7751
    %v7956 = vpop.f32.mrf.mxu0
    %v7957 = vadd.f32 %v7944, %v7956
    %v7958 = vpop.f32.mrf.mxu0
    %7959 = vdwg.mxu0
    %7960 = vmatpush.bf16.msra.mxu0 %v2805
    %7961 = vmatpush.bf16.msra.mxu0 %v2797
    %7962 = vmatpush.bf16.msra.mxu0 %v2789
    %7963 = vmatpush.bf16.msra.mxu0 %v2781
    %7964 = vmatpush.bf16.msra.mxu0 %v2773
    %7965 = vmatpush.bf16.msra.mxu0 %v2765
    %7966 = vmatpush.bf16.msra.mxu0 %v2757
    %7967 = vmatpush.bf16.msra.mxu0 %v2749
    %7968 = vmatmul.bf16.gmra.mxu0 %v7748
    %v7969 = vpop.f32.mrf.mxu0
    %v7970 = vadd.f32 %v1965, %v7969
    %v7971 = vpop.f32.mrf.mxu0
    %7972 = vdwg.mxu0
    %7973 = vmatpush.bf16.msra.mxu0 %v2869
    %7974 = vmatpush.bf16.msra.mxu0 %v2861
    %7975 = vmatpush.bf16.msra.mxu0 %v2853
    %7976 = vmatpush.bf16.msra.mxu0 %v2845
    %7977 = vmatpush.bf16.msra.mxu0 %v2837
    %7978 = vmatpush.bf16.msra.mxu0 %v2829
    %7979 = vmatpush.bf16.msra.mxu0 %v2821
    %7980 = vmatpush.bf16.msra.mxu0 %v2813
    %7981 = vmatmul.bf16.gmra.mxu0 %v7749
    %v7982 = vpop.f32.mrf.mxu0
    %v7983 = vadd.f32 %v7970, %v7982
    %v7984 = vpop.f32.mrf.mxu0
    %7985 = vdwg.mxu0
    %7986 = vmatpush.bf16.msra.mxu0 %v2933
    %7987 = vmatpush.bf16.msra.mxu0 %v2925
    %7988 = vmatpush.bf16.msra.mxu0 %v2917
    %7989 = vmatpush.bf16.msra.mxu0 %v2909
    %7990 = vmatpush.bf16.msra.mxu0 %v2901
    %7991 = vmatpush.bf16.msra.mxu0 %v2893
    %7992 = vmatpush.bf16.msra.mxu0 %v2885
    %7993 = vmatpush.bf16.msra.mxu0 %v2877
    %7994 = vmatmul.bf16.gmra.mxu0 %v7750
    %v7995 = vpop.f32.mrf.mxu0
    %v7996 = vadd.f32 %v7983, %v7995
    %v7997 = vpop.f32.mrf.mxu0
    %7998 = vdwg.mxu0
    %7999 = vmatpush.bf16.msra.mxu0 %v2997
    %8000 = vmatpush.bf16.msra.mxu0 %v2989
    %8001 = vmatpush.bf16.msra.mxu0 %v2981
    %8002 = vmatpush.bf16.msra.mxu0 %v2973
    %8003 = vmatpush.bf16.msra.mxu0 %v2965
    %8004 = vmatpush.bf16.msra.mxu0 %v2957
    %8005 = vmatpush.bf16.msra.mxu0 %v2949
    %8006 = vmatpush.bf16.msra.mxu0 %v2941
    %8007 = vmatmul.bf16.gmra.mxu0 %v7751
    %v8008 = vpop.f32.mrf.mxu0
    %v8009 = vadd.f32 %v7996, %v8008
    %v8010 = vpop.f32.mrf.mxu0
    %8011 = vdwg.mxu0
    %8012 = vmatpush.bf16.msra.mxu0 %v2806
    %8013 = vmatpush.bf16.msra.mxu0 %v2798
    %8014 = vmatpush.bf16.msra.mxu0 %v2790
    %8015 = vmatpush.bf16.msra.mxu0 %v2782
    %8016 = vmatpush.bf16.msra.mxu0 %v2774
    %8017 = vmatpush.bf16.msra.mxu0 %v2766
    %8018 = vmatpush.bf16.msra.mxu0 %v2758
    %8019 = vmatpush.bf16.msra.mxu0 %v2750
    %8020 = vmatmul.bf16.gmra.mxu0 %v7748
    %v8021 = vpop.f32.mrf.mxu0
    %v8022 = vadd.f32 %v1966, %v8021
    %v8023 = vpop.f32.mrf.mxu0
    %8024 = vdwg.mxu0
    %8025 = vmatpush.bf16.msra.mxu0 %v2870
    %8026 = vmatpush.bf16.msra.mxu0 %v2862
    %8027 = vmatpush.bf16.msra.mxu0 %v2854
    %8028 = vmatpush.bf16.msra.mxu0 %v2846
    %8029 = vmatpush.bf16.msra.mxu0 %v2838
    %8030 = vmatpush.bf16.msra.mxu0 %v2830
    %8031 = vmatpush.bf16.msra.mxu0 %v2822
    %8032 = vmatpush.bf16.msra.mxu0 %v2814
    %8033 = vmatmul.bf16.gmra.mxu0 %v7749
    %v8034 = vpop.f32.mrf.mxu0
    %v8035 = vadd.f32 %v8022, %v8034
    %v8036 = vpop.f32.mrf.mxu0
    %8037 = vdwg.mxu0
    %8038 = vmatpush.bf16.msra.mxu0 %v2934
    %8039 = vmatpush.bf16.msra.mxu0 %v2926
    %8040 = vmatpush.bf16.msra.mxu0 %v2918
    %8041 = vmatpush.bf16.msra.mxu0 %v2910
    %8042 = vmatpush.bf16.msra.mxu0 %v2902
    %8043 = vmatpush.bf16.msra.mxu0 %v2894
    %8044 = vmatpush.bf16.msra.mxu0 %v2886
    %8045 = vmatpush.bf16.msra.mxu0 %v2878
    %8046 = vmatmul.bf16.gmra.mxu0 %v7750
    %v8047 = vpop.f32.mrf.mxu0
    %v8048 = vadd.f32 %v8035, %v8047
    %v8049 = vpop.f32.mrf.mxu0
    %8050 = vdwg.mxu0
    %8051 = vmatpush.bf16.msra.mxu0 %v2998
    %8052 = vmatpush.bf16.msra.mxu0 %v2990
    %8053 = vmatpush.bf16.msra.mxu0 %v2982
    %8054 = vmatpush.bf16.msra.mxu0 %v2974
    %8055 = vmatpush.bf16.msra.mxu0 %v2966
    %8056 = vmatpush.bf16.msra.mxu0 %v2958
    %8057 = vmatpush.bf16.msra.mxu0 %v2950
    %8058 = vmatpush.bf16.msra.mxu0 %v2942
    %8059 = vmatmul.bf16.gmra.mxu0 %v7751
    %v8060 = vpop.f32.mrf.mxu0
    %v8061 = vadd.f32 %v8048, %v8060
    %v8062 = vpop.f32.mrf.mxu0
    %8063 = vdwg.mxu0
    %8064 = vmatpush.bf16.msra.mxu0 %v2807
    %8065 = vmatpush.bf16.msra.mxu0 %v2799
    %8066 = vmatpush.bf16.msra.mxu0 %v2791
    %8067 = vmatpush.bf16.msra.mxu0 %v2783
    %8068 = vmatpush.bf16.msra.mxu0 %v2775
    %8069 = vmatpush.bf16.msra.mxu0 %v2767
    %8070 = vmatpush.bf16.msra.mxu0 %v2759
    %8071 = vmatpush.bf16.msra.mxu0 %v2751
    %8072 = vmatmul.bf16.gmra.mxu0 %v7748
    %v8073 = vpop.f32.mrf.mxu0
    %v8074 = vadd.f32 %v1967, %v8073
    %v8075 = vpop.f32.mrf.mxu0
    %8076 = vdwg.mxu0
    %8077 = vmatpush.bf16.msra.mxu0 %v2871
    %8078 = vmatpush.bf16.msra.mxu0 %v2863
    %8079 = vmatpush.bf16.msra.mxu0 %v2855
    %8080 = vmatpush.bf16.msra.mxu0 %v2847
    %8081 = vmatpush.bf16.msra.mxu0 %v2839
    %8082 = vmatpush.bf16.msra.mxu0 %v2831
    %8083 = vmatpush.bf16.msra.mxu0 %v2823
    %8084 = vmatpush.bf16.msra.mxu0 %v2815
    %8085 = vmatmul.bf16.gmra.mxu0 %v7749
    %v8086 = vpop.f32.mrf.mxu0
    %v8087 = vadd.f32 %v8074, %v8086
    %v8088 = vpop.f32.mrf.mxu0
    %8089 = vdwg.mxu0
    %8090 = vmatpush.bf16.msra.mxu0 %v2935
    %8091 = vmatpush.bf16.msra.mxu0 %v2927
    %8092 = vmatpush.bf16.msra.mxu0 %v2919
    %8093 = vmatpush.bf16.msra.mxu0 %v2911
    %8094 = vmatpush.bf16.msra.mxu0 %v2903
    %8095 = vmatpush.bf16.msra.mxu0 %v2895
    %8096 = vmatpush.bf16.msra.mxu0 %v2887
    %8097 = vmatpush.bf16.msra.mxu0 %v2879
    %8098 = vmatmul.bf16.gmra.mxu0 %v7750
    %v8099 = vpop.f32.mrf.mxu0
    %v8100 = vadd.f32 %v8087, %v8099
    %v8101 = vpop.f32.mrf.mxu0
    %8102 = vdwg.mxu0
    %8103 = vmatpush.bf16.msra.mxu0 %v2999
    %8104 = vmatpush.bf16.msra.mxu0 %v2991
    %8105 = vmatpush.bf16.msra.mxu0 %v2983
    %8106 = vmatpush.bf16.msra.mxu0 %v2975
    %8107 = vmatpush.bf16.msra.mxu0 %v2967
    %8108 = vmatpush.bf16.msra.mxu0 %v2959
    %8109 = vmatpush.bf16.msra.mxu0 %v2951
    %8110 = vmatpush.bf16.msra.mxu0 %v2943
    %8111 = vmatmul.bf16.gmra.mxu0 %v7751
    %v8112 = vpop.f32.mrf.mxu0
    %v8113 = vadd.f32 %v8100, %v8112
    %v8114 = vpop.f32.mrf.mxu0
    %8115 = vdwg.mxu0
    %8116 = vmatpush.bf16.msra.mxu0 %v2808
    %8117 = vmatpush.bf16.msra.mxu0 %v2800
    %8118 = vmatpush.bf16.msra.mxu0 %v2792
    %8119 = vmatpush.bf16.msra.mxu0 %v2784
    %8120 = vmatpush.bf16.msra.mxu0 %v2776
    %8121 = vmatpush.bf16.msra.mxu0 %v2768
    %8122 = vmatpush.bf16.msra.mxu0 %v2760
    %8123 = vmatpush.bf16.msra.mxu0 %v2752
    %8124 = vmatmul.bf16.gmra.mxu0 %v7748
    %v8125 = vpop.f32.mrf.mxu0
    %v8126 = vadd.f32 %v1968, %v8125
    %v8127 = vpop.f32.mrf.mxu0
    %8128 = vdwg.mxu0
    %8129 = vmatpush.bf16.msra.mxu0 %v2872
    %8130 = vmatpush.bf16.msra.mxu0 %v2864
    %8131 = vmatpush.bf16.msra.mxu0 %v2856
    %8132 = vmatpush.bf16.msra.mxu0 %v2848
    %8133 = vmatpush.bf16.msra.mxu0 %v2840
    %8134 = vmatpush.bf16.msra.mxu0 %v2832
    %8135 = vmatpush.bf16.msra.mxu0 %v2824
    %8136 = vmatpush.bf16.msra.mxu0 %v2816
    %8137 = vmatmul.bf16.gmra.mxu0 %v7749
    %v8138 = vpop.f32.mrf.mxu0
    %v8139 = vadd.f32 %v8126, %v8138
    %v8140 = vpop.f32.mrf.mxu0
    %8141 = vdwg.mxu0
    %8142 = vmatpush.bf16.msra.mxu0 %v2936
    %8143 = vmatpush.bf16.msra.mxu0 %v2928
    %8144 = vmatpush.bf16.msra.mxu0 %v2920
    %8145 = vmatpush.bf16.msra.mxu0 %v2912
    %8146 = vmatpush.bf16.msra.mxu0 %v2904
    %8147 = vmatpush.bf16.msra.mxu0 %v2896
    %8148 = vmatpush.bf16.msra.mxu0 %v2888
    %8149 = vmatpush.bf16.msra.mxu0 %v2880
    %8150 = vmatmul.bf16.gmra.mxu0 %v7750
    %v8151 = vpop.f32.mrf.mxu0
    %v8152 = vadd.f32 %v8139, %v8151
    %v8153 = vpop.f32.mrf.mxu0
    %8154 = vdwg.mxu0
    %8155 = vmatpush.bf16.msra.mxu0 %v3000
    %8156 = vmatpush.bf16.msra.mxu0 %v2992
    %8157 = vmatpush.bf16.msra.mxu0 %v2984
    %8158 = vmatpush.bf16.msra.mxu0 %v2976
    %8159 = vmatpush.bf16.msra.mxu0 %v2968
    %8160 = vmatpush.bf16.msra.mxu0 %v2960
    %8161 = vmatpush.bf16.msra.mxu0 %v2952
    %8162 = vmatpush.bf16.msra.mxu0 %v2944
    %8163 = vmatmul.bf16.gmra.mxu0 %v7751
    %v8164 = vpop.f32.mrf.mxu0
    %v8165 = vadd.f32 %v8152, %v8164
    %v8166 = vpop.f32.mrf.mxu0
    %8167 = vdwg.mxu0
    %v8168 = vxor.u32 %v7801, 2147483648
    %v8169 = vxor.u32 %v7853, 2147483648
    %v8170 = vmul.f32 %v8168, 1.442695
    %v8171 = vpow.pop %v8170
    %v8172 = vmul.f32 %v8169, 1.442695
    %v8173 = vpow.pop %v8172
    %v8174 = vadd.f32 %v8171, 1.0
    %v8175 = vadd.f32 %v8173, 1.0
    %v8176 = vrcp.pop %v8174
    %v8177 = vmul.f32 %v8174, %v8176
    %v8178 = vsub.f32 1.0, %v8177
    %v8179 = vmul.f32 %v8176, %v8178
    %v8180 = vadd.f32 %v8176, %v8179
    %vm8181 = vweird.f32 %v8174
    %vm8182 = vweird.f32 %v8176
    %vm8183 = vmor %vm8181, %vm8182
    %v8184 = vsel %vm8183, %v8176, %v8180
    %v8185 = vand.u32 2147483647, %v8174
    %vm8186 = vcmp.eq.f32.partialorder %v8185, 8.507059e+37
    %v8187 = vand.u32 %v8174, 2147483648
    %v8188 = vor.u32 1.1754944e-38, %v8187
    %v8189 = vsel %vm8186, %v8188, %v8184
    %v8190 = vmul.f32 1.0, %v8189
    %v8191 = vrcp.pop %v8175
    %v8192 = vmul.f32 %v8175, %v8191
    %v8193 = vsub.f32 1.0, %v8192
    %v8194 = vmul.f32 %v8191, %v8193
    %v8195 = vadd.f32 %v8191, %v8194
    %vm8196 = vweird.f32 %v8175
    %vm8197 = vweird.f32 %v8191
    %vm8198 = vmor %vm8196, %vm8197
    %v8199 = vsel %vm8198, %v8191, %v8195
    %v8200 = vand.u32 2147483647, %v8175
    %vm8201 = vcmp.eq.f32.partialorder %v8200, 8.507059e+37
    %v8202 = vand.u32 %v8175, 2147483648
    %v8203 = vor.u32 1.1754944e-38, %v8202
    %v8204 = vsel %vm8201, %v8203, %v8199
    %v8205 = vmul.f32 1.0, %v8204
    %v8206 = vxor.u32 %v7905, 2147483648
    %v8207 = vxor.u32 %v7957, 2147483648
    %v8208 = vmul.f32 %v8206, 1.442695
    %v8209 = vpow.pop %v8208
    %v8210 = vmul.f32 %v8207, 1.442695
    %v8211 = vpow.pop %v8210
    %v8212 = vadd.f32 %v8209, 1.0
    %v8213 = vadd.f32 %v8211, 1.0
    %v8214 = vrcp.pop %v8212
    %v8215 = vmul.f32 %v8212, %v8214
    %v8216 = vsub.f32 1.0, %v8215
    %v8217 = vmul.f32 %v8214, %v8216
    %v8218 = vadd.f32 %v8214, %v8217
    %vm8219 = vweird.f32 %v8212
    %vm8220 = vweird.f32 %v8214
    %vm8221 = vmor %vm8219, %vm8220
    %v8222 = vsel %vm8221, %v8214, %v8218
    %v8223 = vand.u32 2147483647, %v8212
    %vm8224 = vcmp.eq.f32.partialorder %v8223, 8.507059e+37
    %v8225 = vand.u32 %v8212, 2147483648
    %v8226 = vor.u32 1.1754944e-38, %v8225
    %v8227 = vsel %vm8224, %v8226, %v8222
    %v8228 = vmul.f32 1.0, %v8227
    %v8229 = vrcp.pop %v8213
    %v8230 = vmul.f32 %v8213, %v8229
    %v8231 = vsub.f32 1.0, %v8230
    %v8232 = vmul.f32 %v8229, %v8231
    %v8233 = vadd.f32 %v8229, %v8232
    %vm8234 = vweird.f32 %v8213
    %vm8235 = vweird.f32 %v8229
    %vm8236 = vmor %vm8234, %vm8235
    %v8237 = vsel %vm8236, %v8229, %v8233
    %v8238 = vand.u32 2147483647, %v8213
    %vm8239 = vcmp.eq.f32.partialorder %v8238, 8.507059e+37
    %v8240 = vand.u32 %v8213, 2147483648
    %v8241 = vor.u32 1.1754944e-38, %v8240
    %v8242 = vsel %vm8239, %v8241, %v8237
    %v8243 = vmul.f32 1.0, %v8242
    %v8244 = vtanh.pop %v8009
    %v8245 = vtanh.pop %v8061
    %v8246 = vxor.u32 %v8113, 2147483648
    %v8247 = vxor.u32 %v8165, 2147483648
    %v8248 = vmul.f32 %v8246, 1.442695
    %v8249 = vpow.pop %v8248
    %v8250 = vmul.f32 %v8247, 1.442695
    %v8251 = vpow.pop %v8250
    %v8252 = vadd.f32 %v8249, 1.0
    %v8253 = vadd.f32 %v8251, 1.0
    %v8254 = vrcp.pop %v8252
    %v8255 = vmul.f32 %v8252, %v8254
    %v8256 = vsub.f32 1.0, %v8255
    %v8257 = vmul.f32 %v8254, %v8256
    %v8258 = vadd.f32 %v8254, %v8257
    %vm8259 = vweird.f32 %v8252
    %vm8260 = vweird.f32 %v8254
    %vm8261 = vmor %vm8259, %vm8260
    %v8262 = vsel %vm8261, %v8254, %v8258
    %v8263 = vand.u32 2147483647, %v8252
    %vm8264 = vcmp.eq.f32.partialorder %v8263, 8.507059e+37
    %v8265 = vand.u32 %v8252, 2147483648
    %v8266 = vor.u32 1.1754944e-38, %v8265
    %v8267 = vsel %vm8264, %v8266, %v8262
    %v8268 = vmul.f32 1.0, %v8267
    %v8269 = vrcp.pop %v8253
    %v8270 = vmul.f32 %v8253, %v8269
    %v8271 = vsub.f32 1.0, %v8270
    %v8272 = vmul.f32 %v8269, %v8271
    %v8273 = vadd.f32 %v8269, %v8272
    %vm8274 = vweird.f32 %v8253
    %vm8275 = vweird.f32 %v8269
    %vm8276 = vmor %vm8274, %vm8275
    %v8277 = vsel %vm8276, %v8269, %v8273
    %v8278 = vand.u32 2147483647, %v8253
    %vm8279 = vcmp.eq.f32.partialorder %v8278, 8.507059e+37
    %v8280 = vand.u32 %v8253, 2147483648
    %v8281 = vor.u32 1.1754944e-38, %v8280
    %v8282 = vsel %vm8279, %v8281, %v8277
    %v8283 = vmul.f32 1.0, %v8282
    %v8284 = vmul.f32 %v8228, %v7389
    %v8285 = vmul.f32 %v8243, %v7390
    %v8286 = vmul.f32 %v8190, %v8244
    %v8287 = vmul.f32 %v8205, %v8245
    %v8288 = vadd.f32 %v8284, %v8286
    %v8289 = vadd.f32 %v8285, %v8287
    %v8290 = vtanh.pop %v8288
    %v8291 = vtanh.pop %v8289
    %v8292 = vmul.f32 %v8268, %v8290
    %v8293 = vmul.f32 %v8283, %v8291
    %s8294 = smul.u32 6, 8
    %s8295 = smul.addr %s8294, 8
    %s8296 = scalar_lea.vmem [#allocation2], %s8295
    %v8297 = vld [vmem:[%s8296] sm:$0xff]
    %v8298 = vld [vmem:[%s8296 + $0x8] sm:$0xff]
    %v8299 = vld [vmem:[%s8296 + $0x10] sm:$0xff]
    %v8300 = vld [vmem:[%s8296 + $0x18] sm:$0xff]
    %v8301 = vld [vmem:[%s8296 + $0x20] sm:$0xff]
    %v8302 = vld [vmem:[%s8296 + $0x28] sm:$0xff]
    %v8303 = vld [vmem:[%s8296 + $0x30] sm:$0xff]
    %v8304 = vld [vmem:[%s8296 + $0x38] sm:$0xff]
    %8305 = vmatpush.bf16.msra.mxu0 %v1414
    %8306 = vmatpush.bf16.msra.mxu0 %v1406
    %8307 = vmatpush.bf16.msra.mxu0 %v1398
    %8308 = vmatpush.bf16.msra.mxu0 %v1390
    %8309 = vmatpush.bf16.msra.mxu0 %v1382
    %8310 = vmatpush.bf16.msra.mxu0 %v1374
    %8311 = vmatpush.bf16.msra.mxu0 %v1366
    %8312 = vmatpush.bf16.msra.mxu0 %v1358
    %8313 = vmatmul.bf16.gmra.mxu0 %v7748
    %v8314 = vpop.f32.mrf.mxu0
    %v8315 = vadd.f32 0.0, %v8314
    %v8316 = vpop.f32.mrf.mxu0
    %8317 = vdwg.mxu0
    %8318 = vmatpush.bf16.msra.mxu0 %v1478
    %8319 = vmatpush.bf16.msra.mxu0 %v1470
    %8320 = vmatpush.bf16.msra.mxu0 %v1462
    %8321 = vmatpush.bf16.msra.mxu0 %v1454
    %8322 = vmatpush.bf16.msra.mxu0 %v1446
    %8323 = vmatpush.bf16.msra.mxu0 %v1438
    %8324 = vmatpush.bf16.msra.mxu0 %v1430
    %8325 = vmatpush.bf16.msra.mxu0 %v1422
    %8326 = vmatmul.bf16.gmra.mxu0 %v7749
    %v8327 = vpop.f32.mrf.mxu0
    %v8328 = vadd.f32 %v8315, %v8327
    %v8329 = vpop.f32.mrf.mxu0
    %8330 = vdwg.mxu0
    %8331 = vmatpush.bf16.msra.mxu0 %v1415
    %8332 = vmatpush.bf16.msra.mxu0 %v1407
    %8333 = vmatpush.bf16.msra.mxu0 %v1399
    %8334 = vmatpush.bf16.msra.mxu0 %v1391
    %8335 = vmatpush.bf16.msra.mxu0 %v1383
    %8336 = vmatpush.bf16.msra.mxu0 %v1375
    %8337 = vmatpush.bf16.msra.mxu0 %v1367
    %8338 = vmatpush.bf16.msra.mxu0 %v1359
    %8339 = vmatmul.bf16.gmra.mxu0 %v7748
    %v8340 = vpop.f32.mrf.mxu0
    %v8341 = vadd.f32 0.0, %v8340
    %v8342 = vpop.f32.mrf.mxu0
    %8343 = vdwg.mxu0
    %8344 = vmatpush.bf16.msra.mxu0 %v1479
    %8345 = vmatpush.bf16.msra.mxu0 %v1471
    %8346 = vmatpush.bf16.msra.mxu0 %v1463
    %8347 = vmatpush.bf16.msra.mxu0 %v1455
    %8348 = vmatpush.bf16.msra.mxu0 %v1447
    %8349 = vmatpush.bf16.msra.mxu0 %v1439
    %8350 = vmatpush.bf16.msra.mxu0 %v1431
    %8351 = vmatpush.bf16.msra.mxu0 %v1423
    %8352 = vmatmul.bf16.gmra.mxu0 %v7749
    %v8353 = vpop.f32.mrf.mxu0
    %v8354 = vadd.f32 %v8341, %v8353
    %v8355 = vpop.f32.mrf.mxu0
    %8356 = vdwg.mxu0
    %8357 = vmatpush.bf16.msra.mxu0 %v1416
    %8358 = vmatpush.bf16.msra.mxu0 %v1408
    %8359 = vmatpush.bf16.msra.mxu0 %v1400
    %8360 = vmatpush.bf16.msra.mxu0 %v1392
    %8361 = vmatpush.bf16.msra.mxu0 %v1384
    %8362 = vmatpush.bf16.msra.mxu0 %v1376
    %8363 = vmatpush.bf16.msra.mxu0 %v1368
    %8364 = vmatpush.bf16.msra.mxu0 %v1360
    %8365 = vmatmul.bf16.gmra.mxu0 %v7748
    %v8366 = vpop.f32.mrf.mxu0
    %v8367 = vadd.f32 0.0, %v8366
    %v8368 = vpop.f32.mrf.mxu0
    %8369 = vdwg.mxu0
    %8370 = vmatpush.bf16.msra.mxu0 %v1480
    %8371 = vmatpush.bf16.msra.mxu0 %v1472
    %8372 = vmatpush.bf16.msra.mxu0 %v1464
    %8373 = vmatpush.bf16.msra.mxu0 %v1456
    %8374 = vmatpush.bf16.msra.mxu0 %v1448
    %8375 = vmatpush.bf16.msra.mxu0 %v1440
    %8376 = vmatpush.bf16.msra.mxu0 %v1432
    %8377 = vmatpush.bf16.msra.mxu0 %v1424
    %8378 = vmatmul.bf16.gmra.mxu0 %v7749
    %v8379 = vpop.f32.mrf.mxu0
    %v8380 = vadd.f32 %v8367, %v8379
    %v8381 = vpop.f32.mrf.mxu0
    %8382 = vdwg.mxu0
    %8383 = vmatpush.bf16.msra.mxu0 %v1417
    %8384 = vmatpush.bf16.msra.mxu0 %v1409
    %8385 = vmatpush.bf16.msra.mxu0 %v1401
    %8386 = vmatpush.bf16.msra.mxu0 %v1393
    %8387 = vmatpush.bf16.msra.mxu0 %v1385
    %8388 = vmatpush.bf16.msra.mxu0 %v1377
    %8389 = vmatpush.bf16.msra.mxu0 %v1369
    %8390 = vmatpush.bf16.msra.mxu0 %v1361
    %8391 = vmatmul.bf16.gmra.mxu0 %v7748
    %v8392 = vpop.f32.mrf.mxu0
    %v8393 = vadd.f32 0.0, %v8392
    %v8394 = vpop.f32.mrf.mxu0
    %8395 = vdwg.mxu0
    %8396 = vmatpush.bf16.msra.mxu0 %v1481
    %8397 = vmatpush.bf16.msra.mxu0 %v1473
    %8398 = vmatpush.bf16.msra.mxu0 %v1465
    %8399 = vmatpush.bf16.msra.mxu0 %v1457
    %8400 = vmatpush.bf16.msra.mxu0 %v1449
    %8401 = vmatpush.bf16.msra.mxu0 %v1441
    %8402 = vmatpush.bf16.msra.mxu0 %v1433
    %8403 = vmatpush.bf16.msra.mxu0 %v1425
    %8404 = vmatmul.bf16.gmra.mxu0 %v7749
    %v8405 = vpop.f32.mrf.mxu0
    %v8406 = vadd.f32 %v8393, %v8405
    %v8407 = vpop.f32.mrf.mxu0
    %8408 = vdwg.mxu0
    %8409 = vmatpush.bf16.msra.mxu0 %v1418
    %8410 = vmatpush.bf16.msra.mxu0 %v1410
    %8411 = vmatpush.bf16.msra.mxu0 %v1402
    %8412 = vmatpush.bf16.msra.mxu0 %v1394
    %8413 = vmatpush.bf16.msra.mxu0 %v1386
    %8414 = vmatpush.bf16.msra.mxu0 %v1378
    %8415 = vmatpush.bf16.msra.mxu0 %v1370
    %8416 = vmatpush.bf16.msra.mxu0 %v1362
    %8417 = vmatmul.bf16.gmra.mxu0 %v7748
    %v8418 = vpop.f32.mrf.mxu0
    %v8419 = vadd.f32 0.0, %v8418
    %v8420 = vpop.f32.mrf.mxu0
    %8421 = vdwg.mxu0
    %8422 = vmatpush.bf16.msra.mxu0 %v1482
    %8423 = vmatpush.bf16.msra.mxu0 %v1474
    %8424 = vmatpush.bf16.msra.mxu0 %v1466
    %8425 = vmatpush.bf16.msra.mxu0 %v1458
    %8426 = vmatpush.bf16.msra.mxu0 %v1450
    %8427 = vmatpush.bf16.msra.mxu0 %v1442
    %8428 = vmatpush.bf16.msra.mxu0 %v1434
    %8429 = vmatpush.bf16.msra.mxu0 %v1426
    %8430 = vmatmul.bf16.gmra.mxu0 %v7749
    %v8431 = vpop.f32.mrf.mxu0
    %v8432 = vadd.f32 %v8419, %v8431
    %v8433 = vpop.f32.mrf.mxu0
    %8434 = vdwg.mxu0
    %8435 = vmatpush.bf16.msra.mxu0 %v1419
    %8436 = vmatpush.bf16.msra.mxu0 %v1411
    %8437 = vmatpush.bf16.msra.mxu0 %v1403
    %8438 = vmatpush.bf16.msra.mxu0 %v1395
    %8439 = vmatpush.bf16.msra.mxu0 %v1387
    %8440 = vmatpush.bf16.msra.mxu0 %v1379
    %8441 = vmatpush.bf16.msra.mxu0 %v1371
    %8442 = vmatpush.bf16.msra.mxu0 %v1363
    %8443 = vmatmul.bf16.gmra.mxu0 %v7748
    %v8444 = vpop.f32.mrf.mxu0
    %v8445 = vadd.f32 0.0, %v8444
    %v8446 = vpop.f32.mrf.mxu0
    %8447 = vdwg.mxu0
    %8448 = vmatpush.bf16.msra.mxu0 %v1483
    %8449 = vmatpush.bf16.msra.mxu0 %v1475
    %8450 = vmatpush.bf16.msra.mxu0 %v1467
    %8451 = vmatpush.bf16.msra.mxu0 %v1459
    %8452 = vmatpush.bf16.msra.mxu0 %v1451
    %8453 = vmatpush.bf16.msra.mxu0 %v1443
    %8454 = vmatpush.bf16.msra.mxu0 %v1435
    %8455 = vmatpush.bf16.msra.mxu0 %v1427
    %8456 = vmatmul.bf16.gmra.mxu0 %v7749
    %v8457 = vpop.f32.mrf.mxu0
    %v8458 = vadd.f32 %v8445, %v8457
    %v8459 = vpop.f32.mrf.mxu0
    %8460 = vdwg.mxu0
    %8461 = vmatpush.bf16.msra.mxu0 %v1420
    %8462 = vmatpush.bf16.msra.mxu0 %v1412
    %8463 = vmatpush.bf16.msra.mxu0 %v1404
    %8464 = vmatpush.bf16.msra.mxu0 %v1396
    %8465 = vmatpush.bf16.msra.mxu0 %v1388
    %8466 = vmatpush.bf16.msra.mxu0 %v1380
    %8467 = vmatpush.bf16.msra.mxu0 %v1372
    %8468 = vmatpush.bf16.msra.mxu0 %v1364
    %8469 = vmatmul.bf16.gmra.mxu0 %v7748
    %v8470 = vpop.f32.mrf.mxu0
    %v8471 = vadd.f32 0.0, %v8470
    %v8472 = vpop.f32.mrf.mxu0
    %8473 = vdwg.mxu0
    %8474 = vmatpush.bf16.msra.mxu0 %v1484
    %8475 = vmatpush.bf16.msra.mxu0 %v1476
    %8476 = vmatpush.bf16.msra.mxu0 %v1468
    %8477 = vmatpush.bf16.msra.mxu0 %v1460
    %8478 = vmatpush.bf16.msra.mxu0 %v1452
    %8479 = vmatpush.bf16.msra.mxu0 %v1444
    %8480 = vmatpush.bf16.msra.mxu0 %v1436
    %8481 = vmatpush.bf16.msra.mxu0 %v1428
    %8482 = vmatmul.bf16.gmra.mxu0 %v7749
    %v8483 = vpop.f32.mrf.mxu0
    %v8484 = vadd.f32 %v8471, %v8483
    %v8485 = vpop.f32.mrf.mxu0
    %8486 = vdwg.mxu0
    %8487 = vmatpush.bf16.msra.mxu0 %v1421
    %8488 = vmatpush.bf16.msra.mxu0 %v1413
    %8489 = vmatpush.bf16.msra.mxu0 %v1405
    %8490 = vmatpush.bf16.msra.mxu0 %v1397
    %8491 = vmatpush.bf16.msra.mxu0 %v1389
    %8492 = vmatpush.bf16.msra.mxu0 %v1381
    %8493 = vmatpush.bf16.msra.mxu0 %v1373
    %8494 = vmatpush.bf16.msra.mxu0 %v1365
    %8495 = vmatmul.bf16.gmra.mxu0 %v7748
    %v8496 = vpop.f32.mrf.mxu0
    %v8497 = vadd.f32 0.0, %v8496
    %v8498 = vpop.f32.mrf.mxu0
    %8499 = vdwg.mxu0
    %8500 = vmatpush.bf16.msra.mxu0 %v1485
    %8501 = vmatpush.bf16.msra.mxu0 %v1477
    %8502 = vmatpush.bf16.msra.mxu0 %v1469
    %8503 = vmatpush.bf16.msra.mxu0 %v1461
    %8504 = vmatpush.bf16.msra.mxu0 %v1453
    %8505 = vmatpush.bf16.msra.mxu0 %v1445
    %8506 = vmatpush.bf16.msra.mxu0 %v1437
    %8507 = vmatpush.bf16.msra.mxu0 %v1429
    %8508 = vmatmul.bf16.gmra.mxu0 %v7749
    %v8509 = vpop.f32.mrf.mxu0
    %v8510 = vadd.f32 %v8497, %v8509
    %v8511 = vpop.f32.mrf.mxu0
    %8512 = vdwg.mxu0
    %v8513 = vadd.f32 %v8297, %v8328
    %v8514 = vadd.f32 %v8298, %v8354
    %v8515 = vadd.f32 %v8299, %v8380
    %v8516 = vadd.f32 %v8300, %v8406
    %v8517 = vadd.f32 %v8301, %v8432
    %v8518 = vadd.f32 %v8302, %v8458
    %v8519 = vadd.f32 %v8303, %v8484
    %v8520 = vadd.f32 %v8304, %v8510
    %v8521 = vxor.u32 %v8513, 2147483648
    %v8522 = vxor.u32 %v8514, 2147483648
    %v8523 = vmul.f32 %v8521, 1.442695
    %v8524 = vpow.pop %v8523
    %v8525 = vmul.f32 %v8522, 1.442695
    %v8526 = vpow.pop %v8525
    %v8527 = vadd.f32 %v8524, 1.0
    %v8528 = vadd.f32 %v8526, 1.0
    %v8529 = vrcp.pop %v8527
    %v8530 = vmul.f32 %v8527, %v8529
    %v8531 = vsub.f32 1.0, %v8530
    %v8532 = vmul.f32 %v8529, %v8531
    %v8533 = vadd.f32 %v8529, %v8532
    %vm8534 = vweird.f32 %v8527
    %vm8535 = vweird.f32 %v8529
    %vm8536 = vmor %vm8534, %vm8535
    %v8537 = vsel %vm8536, %v8529, %v8533
    %v8538 = vand.u32 2147483647, %v8527
    %vm8539 = vcmp.eq.f32.partialorder %v8538, 8.507059e+37
    %v8540 = vand.u32 %v8527, 2147483648
    %v8541 = vor.u32 1.1754944e-38, %v8540
    %v8542 = vsel %vm8539, %v8541, %v8537
    %v8543 = vmul.f32 1.0, %v8542
    %v8544 = vrcp.pop %v8528
    %v8545 = vmul.f32 %v8528, %v8544
    %v8546 = vsub.f32 1.0, %v8545
    %v8547 = vmul.f32 %v8544, %v8546
    %v8548 = vadd.f32 %v8544, %v8547
    %vm8549 = vweird.f32 %v8528
    %vm8550 = vweird.f32 %v8544
    %vm8551 = vmor %vm8549, %vm8550
    %v8552 = vsel %vm8551, %v8544, %v8548
    %v8553 = vand.u32 2147483647, %v8528
    %vm8554 = vcmp.eq.f32.partialorder %v8553, 8.507059e+37
    %v8555 = vand.u32 %v8528, 2147483648
    %v8556 = vor.u32 1.1754944e-38, %v8555
    %v8557 = vsel %vm8554, %v8556, %v8552
    %v8558 = vmul.f32 1.0, %v8557
    %v8559 = vxor.u32 %v8515, 2147483648
    %v8560 = vxor.u32 %v8516, 2147483648
    %v8561 = vmul.f32 %v8559, 1.442695
    %v8562 = vpow.pop %v8561
    %v8563 = vmul.f32 %v8560, 1.442695
    %v8564 = vpow.pop %v8563
    %v8565 = vadd.f32 %v8562, 1.0
    %v8566 = vadd.f32 %v8564, 1.0
    %v8567 = vrcp.pop %v8565
    %v8568 = vmul.f32 %v8565, %v8567
    %v8569 = vsub.f32 1.0, %v8568
    %v8570 = vmul.f32 %v8567, %v8569
    %v8571 = vadd.f32 %v8567, %v8570
    %vm8572 = vweird.f32 %v8565
    %vm8573 = vweird.f32 %v8567
    %vm8574 = vmor %vm8572, %vm8573
    %v8575 = vsel %vm8574, %v8567, %v8571
    %v8576 = vand.u32 2147483647, %v8565
    %vm8577 = vcmp.eq.f32.partialorder %v8576, 8.507059e+37
    %v8578 = vand.u32 %v8565, 2147483648
    %v8579 = vor.u32 1.1754944e-38, %v8578
    %v8580 = vsel %vm8577, %v8579, %v8575
    %v8581 = vmul.f32 1.0, %v8580
    %v8582 = vrcp.pop %v8566
    %v8583 = vmul.f32 %v8566, %v8582
    %v8584 = vsub.f32 1.0, %v8583
    %v8585 = vmul.f32 %v8582, %v8584
    %v8586 = vadd.f32 %v8582, %v8585
    %vm8587 = vweird.f32 %v8566
    %vm8588 = vweird.f32 %v8582
    %vm8589 = vmor %vm8587, %vm8588
    %v8590 = vsel %vm8589, %v8582, %v8586
    %v8591 = vand.u32 2147483647, %v8566
    %vm8592 = vcmp.eq.f32.partialorder %v8591, 8.507059e+37
    %v8593 = vand.u32 %v8566, 2147483648
    %v8594 = vor.u32 1.1754944e-38, %v8593
    %v8595 = vsel %vm8592, %v8594, %v8590
    %v8596 = vmul.f32 1.0, %v8595
    %v8597 = vtanh.pop %v8517
    %v8598 = vtanh.pop %v8518
    %v8599 = vxor.u32 %v8519, 2147483648
    %v8600 = vxor.u32 %v8520, 2147483648
    %v8601 = vmul.f32 %v8599, 1.442695
    %v8602 = vpow.pop %v8601
    %v8603 = vmul.f32 %v8600, 1.442695
    %v8604 = vpow.pop %v8603
    %v8605 = vadd.f32 %v8602, 1.0
    %v8606 = vadd.f32 %v8604, 1.0
    %v8607 = vrcp.pop %v8605
    %v8608 = vmul.f32 %v8605, %v8607
    %v8609 = vsub.f32 1.0, %v8608
    %v8610 = vmul.f32 %v8607, %v8609
    %v8611 = vadd.f32 %v8607, %v8610
    %vm8612 = vweird.f32 %v8605
    %vm8613 = vweird.f32 %v8607
    %vm8614 = vmor %vm8612, %vm8613
    %v8615 = vsel %vm8614, %v8607, %v8611
    %v8616 = vand.u32 2147483647, %v8605
    %vm8617 = vcmp.eq.f32.partialorder %v8616, 8.507059e+37
    %v8618 = vand.u32 %v8605, 2147483648
    %v8619 = vor.u32 1.1754944e-38, %v8618
    %v8620 = vsel %vm8617, %v8619, %v8615
    %v8621 = vmul.f32 1.0, %v8620
    %v8622 = vrcp.pop %v8606
    %v8623 = vmul.f32 %v8606, %v8622
    %v8624 = vsub.f32 1.0, %v8623
    %v8625 = vmul.f32 %v8622, %v8624
    %v8626 = vadd.f32 %v8622, %v8625
    %vm8627 = vweird.f32 %v8606
    %vm8628 = vweird.f32 %v8622
    %vm8629 = vmor %vm8627, %vm8628
    %v8630 = vsel %vm8629, %v8622, %v8626
    %v8631 = vand.u32 2147483647, %v8606
    %vm8632 = vcmp.eq.f32.partialorder %v8631, 8.507059e+37
    %v8633 = vand.u32 %v8606, 2147483648
    %v8634 = vor.u32 1.1754944e-38, %v8633
    %v8635 = vsel %vm8632, %v8634, %v8630
    %v8636 = vmul.f32 1.0, %v8635
    %v8637 = vmul.f32 %v8581, %v7742
    %v8638 = vmul.f32 %v8596, %v7743
    %v8639 = vmul.f32 %v8543, %v8597
    %v8640 = vmul.f32 %v8558, %v8598
    %v8641 = vadd.f32 %v8637, %v8639
    %v8642 = vadd.f32 %v8638, %v8640
    %v8643 = vtanh.pop %v8641
    %v8644 = vtanh.pop %v8642
    %v8645 = vmul.f32 %v8621, %v8643
    %v8646 = vmul.f32 %v8636, %v8644
    %v8647 = vpack.c.bf16 %v8645, %v8645
    %v8648 = vpack.c.bf16 %v8646, %v8646
    %v8649 = vpack.c.bf16 %v8292, %v8292
    %v8650 = vpack.c.bf16 %v8293, %v8293
    %8651 = vmatpush.bf16.msra.mxu0 %v2801
    %8652 = vmatpush.bf16.msra.mxu0 %v2793
    %8653 = vmatpush.bf16.msra.mxu0 %v2785
    %8654 = vmatpush.bf16.msra.mxu0 %v2777
    %8655 = vmatpush.bf16.msra.mxu0 %v2769
    %8656 = vmatpush.bf16.msra.mxu0 %v2761
    %8657 = vmatpush.bf16.msra.mxu0 %v2753
    %8658 = vmatpush.bf16.msra.mxu0 %v2745
    %8659 = vmatmul.bf16.gmra.mxu0 %v8647
    %v8660 = vpop.f32.mrf.mxu0
    %v8661 = vadd.f32 %v1961, %v8660
    %v8662 = vpop.f32.mrf.mxu0
    %8663 = vdwg.mxu0
    %8664 = vmatpush.bf16.msra.mxu0 %v2865
    %8665 = vmatpush.bf16.msra.mxu0 %v2857
    %8666 = vmatpush.bf16.msra.mxu0 %v2849
    %8667 = vmatpush.bf16.msra.mxu0 %v2841
    %8668 = vmatpush.bf16.msra.mxu0 %v2833
    %8669 = vmatpush.bf16.msra.mxu0 %v2825
    %8670 = vmatpush.bf16.msra.mxu0 %v2817
    %8671 = vmatpush.bf16.msra.mxu0 %v2809
    %8672 = vmatmul.bf16.gmra.mxu0 %v8648
    %v8673 = vpop.f32.mrf.mxu0
    %v8674 = vadd.f32 %v8661, %v8673
    %v8675 = vpop.f32.mrf.mxu0
    %8676 = vdwg.mxu0
    %8677 = vmatpush.bf16.msra.mxu0 %v2929
    %8678 = vmatpush.bf16.msra.mxu0 %v2921
    %8679 = vmatpush.bf16.msra.mxu0 %v2913
    %8680 = vmatpush.bf16.msra.mxu0 %v2905
    %8681 = vmatpush.bf16.msra.mxu0 %v2897
    %8682 = vmatpush.bf16.msra.mxu0 %v2889
    %8683 = vmatpush.bf16.msra.mxu0 %v2881
    %8684 = vmatpush.bf16.msra.mxu0 %v2873
    %8685 = vmatmul.bf16.gmra.mxu0 %v8649
    %v8686 = vpop.f32.mrf.mxu0
    %v8687 = vadd.f32 %v8674, %v8686
    %v8688 = vpop.f32.mrf.mxu0
    %8689 = vdwg.mxu0
    %8690 = vmatpush.bf16.msra.mxu0 %v2993
    %8691 = vmatpush.bf16.msra.mxu0 %v2985
    %8692 = vmatpush.bf16.msra.mxu0 %v2977
    %8693 = vmatpush.bf16.msra.mxu0 %v2969
    %8694 = vmatpush.bf16.msra.mxu0 %v2961
    %8695 = vmatpush.bf16.msra.mxu0 %v2953
    %8696 = vmatpush.bf16.msra.mxu0 %v2945
    %8697 = vmatpush.bf16.msra.mxu0 %v2937
    %8698 = vmatmul.bf16.gmra.mxu0 %v8650
    %v8699 = vpop.f32.mrf.mxu0
    %v8700 = vadd.f32 %v8687, %v8699
    %v8701 = vpop.f32.mrf.mxu0
    %8702 = vdwg.mxu0
    %8703 = vmatpush.bf16.msra.mxu0 %v2802
    %8704 = vmatpush.bf16.msra.mxu0 %v2794
    %8705 = vmatpush.bf16.msra.mxu0 %v2786
    %8706 = vmatpush.bf16.msra.mxu0 %v2778
    %8707 = vmatpush.bf16.msra.mxu0 %v2770
    %8708 = vmatpush.bf16.msra.mxu0 %v2762
    %8709 = vmatpush.bf16.msra.mxu0 %v2754
    %8710 = vmatpush.bf16.msra.mxu0 %v2746
    %8711 = vmatmul.bf16.gmra.mxu0 %v8647
    %v8712 = vpop.f32.mrf.mxu0
    %v8713 = vadd.f32 %v1962, %v8712
    %v8714 = vpop.f32.mrf.mxu0
    %8715 = vdwg.mxu0
    %8716 = vmatpush.bf16.msra.mxu0 %v2866
    %8717 = vmatpush.bf16.msra.mxu0 %v2858
    %8718 = vmatpush.bf16.msra.mxu0 %v2850
    %8719 = vmatpush.bf16.msra.mxu0 %v2842
    %8720 = vmatpush.bf16.msra.mxu0 %v2834
    %8721 = vmatpush.bf16.msra.mxu0 %v2826
    %8722 = vmatpush.bf16.msra.mxu0 %v2818
    %8723 = vmatpush.bf16.msra.mxu0 %v2810
    %8724 = vmatmul.bf16.gmra.mxu0 %v8648
    %v8725 = vpop.f32.mrf.mxu0
    %v8726 = vadd.f32 %v8713, %v8725
    %v8727 = vpop.f32.mrf.mxu0
    %8728 = vdwg.mxu0
    %8729 = vmatpush.bf16.msra.mxu0 %v2930
    %8730 = vmatpush.bf16.msra.mxu0 %v2922
    %8731 = vmatpush.bf16.msra.mxu0 %v2914
    %8732 = vmatpush.bf16.msra.mxu0 %v2906
    %8733 = vmatpush.bf16.msra.mxu0 %v2898
    %8734 = vmatpush.bf16.msra.mxu0 %v2890
    %8735 = vmatpush.bf16.msra.mxu0 %v2882
    %8736 = vmatpush.bf16.msra.mxu0 %v2874
    %8737 = vmatmul.bf16.gmra.mxu0 %v8649
    %v8738 = vpop.f32.mrf.mxu0
    %v8739 = vadd.f32 %v8726, %v8738
    %v8740 = vpop.f32.mrf.mxu0
    %8741 = vdwg.mxu0
    %8742 = vmatpush.bf16.msra.mxu0 %v2994
    %8743 = vmatpush.bf16.msra.mxu0 %v2986
    %8744 = vmatpush.bf16.msra.mxu0 %v2978
    %8745 = vmatpush.bf16.msra.mxu0 %v2970
    %8746 = vmatpush.bf16.msra.mxu0 %v2962
    %8747 = vmatpush.bf16.msra.mxu0 %v2954
    %8748 = vmatpush.bf16.msra.mxu0 %v2946
    %8749 = vmatpush.bf16.msra.mxu0 %v2938
    %8750 = vmatmul.bf16.gmra.mxu0 %v8650
    %v8751 = vpop.f32.mrf.mxu0
    %v8752 = vadd.f32 %v8739, %v8751
    %v8753 = vpop.f32.mrf.mxu0
    %8754 = vdwg.mxu0
    %8755 = vmatpush.bf16.msra.mxu0 %v2803
    %8756 = vmatpush.bf16.msra.mxu0 %v2795
    %8757 = vmatpush.bf16.msra.mxu0 %v2787
    %8758 = vmatpush.bf16.msra.mxu0 %v2779
    %8759 = vmatpush.bf16.msra.mxu0 %v2771
    %8760 = vmatpush.bf16.msra.mxu0 %v2763
    %8761 = vmatpush.bf16.msra.mxu0 %v2755
    %8762 = vmatpush.bf16.msra.mxu0 %v2747
    %8763 = vmatmul.bf16.gmra.mxu0 %v8647
    %v8764 = vpop.f32.mrf.mxu0
    %v8765 = vadd.f32 %v1963, %v8764
    %v8766 = vpop.f32.mrf.mxu0
    %8767 = vdwg.mxu0
    %8768 = vmatpush.bf16.msra.mxu0 %v2867
    %8769 = vmatpush.bf16.msra.mxu0 %v2859
    %8770 = vmatpush.bf16.msra.mxu0 %v2851
    %8771 = vmatpush.bf16.msra.mxu0 %v2843
    %8772 = vmatpush.bf16.msra.mxu0 %v2835
    %8773 = vmatpush.bf16.msra.mxu0 %v2827
    %8774 = vmatpush.bf16.msra.mxu0 %v2819
    %8775 = vmatpush.bf16.msra.mxu0 %v2811
    %8776 = vmatmul.bf16.gmra.mxu0 %v8648
    %v8777 = vpop.f32.mrf.mxu0
    %v8778 = vadd.f32 %v8765, %v8777
    %v8779 = vpop.f32.mrf.mxu0
    %8780 = vdwg.mxu0
    %8781 = vmatpush.bf16.msra.mxu0 %v2931
    %8782 = vmatpush.bf16.msra.mxu0 %v2923
    %8783 = vmatpush.bf16.msra.mxu0 %v2915
    %8784 = vmatpush.bf16.msra.mxu0 %v2907
    %8785 = vmatpush.bf16.msra.mxu0 %v2899
    %8786 = vmatpush.bf16.msra.mxu0 %v2891
    %8787 = vmatpush.bf16.msra.mxu0 %v2883
    %8788 = vmatpush.bf16.msra.mxu0 %v2875
    %8789 = vmatmul.bf16.gmra.mxu0 %v8649
    %v8790 = vpop.f32.mrf.mxu0
    %v8791 = vadd.f32 %v8778, %v8790
    %v8792 = vpop.f32.mrf.mxu0
    %8793 = vdwg.mxu0
    %8794 = vmatpush.bf16.msra.mxu0 %v2995
    %8795 = vmatpush.bf16.msra.mxu0 %v2987
    %8796 = vmatpush.bf16.msra.mxu0 %v2979
    %8797 = vmatpush.bf16.msra.mxu0 %v2971
    %8798 = vmatpush.bf16.msra.mxu0 %v2963
    %8799 = vmatpush.bf16.msra.mxu0 %v2955
    %8800 = vmatpush.bf16.msra.mxu0 %v2947
    %8801 = vmatpush.bf16.msra.mxu0 %v2939
    %8802 = vmatmul.bf16.gmra.mxu0 %v8650
    %v8803 = vpop.f32.mrf.mxu0
    %v8804 = vadd.f32 %v8791, %v8803
    %v8805 = vpop.f32.mrf.mxu0
    %8806 = vdwg.mxu0
    %8807 = vmatpush.bf16.msra.mxu0 %v2804
    %8808 = vmatpush.bf16.msra.mxu0 %v2796
    %8809 = vmatpush.bf16.msra.mxu0 %v2788
    %8810 = vmatpush.bf16.msra.mxu0 %v2780
    %8811 = vmatpush.bf16.msra.mxu0 %v2772
    %8812 = vmatpush.bf16.msra.mxu0 %v2764
    %8813 = vmatpush.bf16.msra.mxu0 %v2756
    %8814 = vmatpush.bf16.msra.mxu0 %v2748
    %8815 = vmatmul.bf16.gmra.mxu0 %v8647
    %v8816 = vpop.f32.mrf.mxu0
    %v8817 = vadd.f32 %v1964, %v8816
    %v8818 = vpop.f32.mrf.mxu0
    %8819 = vdwg.mxu0
    %8820 = vmatpush.bf16.msra.mxu0 %v2868
    %8821 = vmatpush.bf16.msra.mxu0 %v2860
    %8822 = vmatpush.bf16.msra.mxu0 %v2852
    %8823 = vmatpush.bf16.msra.mxu0 %v2844
    %8824 = vmatpush.bf16.msra.mxu0 %v2836
    %8825 = vmatpush.bf16.msra.mxu0 %v2828
    %8826 = vmatpush.bf16.msra.mxu0 %v2820
    %8827 = vmatpush.bf16.msra.mxu0 %v2812
    %8828 = vmatmul.bf16.gmra.mxu0 %v8648
    %v8829 = vpop.f32.mrf.mxu0
    %v8830 = vadd.f32 %v8817, %v8829
    %v8831 = vpop.f32.mrf.mxu0
    %8832 = vdwg.mxu0
    %8833 = vmatpush.bf16.msra.mxu0 %v2932
    %8834 = vmatpush.bf16.msra.mxu0 %v2924
    %8835 = vmatpush.bf16.msra.mxu0 %v2916
    %8836 = vmatpush.bf16.msra.mxu0 %v2908
    %8837 = vmatpush.bf16.msra.mxu0 %v2900
    %8838 = vmatpush.bf16.msra.mxu0 %v2892
    %8839 = vmatpush.bf16.msra.mxu0 %v2884
    %8840 = vmatpush.bf16.msra.mxu0 %v2876
    %8841 = vmatmul.bf16.gmra.mxu0 %v8649
    %v8842 = vpop.f32.mrf.mxu0
    %v8843 = vadd.f32 %v8830, %v8842
    %v8844 = vpop.f32.mrf.mxu0
    %8845 = vdwg.mxu0
    %8846 = vmatpush.bf16.msra.mxu0 %v2996
    %8847 = vmatpush.bf16.msra.mxu0 %v2988
    %8848 = vmatpush.bf16.msra.mxu0 %v2980
    %8849 = vmatpush.bf16.msra.mxu0 %v2972
    %8850 = vmatpush.bf16.msra.mxu0 %v2964
    %8851 = vmatpush.bf16.msra.mxu0 %v2956
    %8852 = vmatpush.bf16.msra.mxu0 %v2948
    %8853 = vmatpush.bf16.msra.mxu0 %v2940
    %8854 = vmatmul.bf16.gmra.mxu0 %v8650
    %v8855 = vpop.f32.mrf.mxu0
    %v8856 = vadd.f32 %v8843, %v8855
    %v8857 = vpop.f32.mrf.mxu0
    %8858 = vdwg.mxu0
    %8859 = vmatpush.bf16.msra.mxu0 %v2805
    %8860 = vmatpush.bf16.msra.mxu0 %v2797
    %8861 = vmatpush.bf16.msra.mxu0 %v2789
    %8862 = vmatpush.bf16.msra.mxu0 %v2781
    %8863 = vmatpush.bf16.msra.mxu0 %v2773
    %8864 = vmatpush.bf16.msra.mxu0 %v2765
    %8865 = vmatpush.bf16.msra.mxu0 %v2757
    %8866 = vmatpush.bf16.msra.mxu0 %v2749
    %8867 = vmatmul.bf16.gmra.mxu0 %v8647
    %v8868 = vpop.f32.mrf.mxu0
    %v8869 = vadd.f32 %v1965, %v8868
    %v8870 = vpop.f32.mrf.mxu0
    %8871 = vdwg.mxu0
    %8872 = vmatpush.bf16.msra.mxu0 %v2869
    %8873 = vmatpush.bf16.msra.mxu0 %v2861
    %8874 = vmatpush.bf16.msra.mxu0 %v2853
    %8875 = vmatpush.bf16.msra.mxu0 %v2845
    %8876 = vmatpush.bf16.msra.mxu0 %v2837
    %8877 = vmatpush.bf16.msra.mxu0 %v2829
    %8878 = vmatpush.bf16.msra.mxu0 %v2821
    %8879 = vmatpush.bf16.msra.mxu0 %v2813
    %8880 = vmatmul.bf16.gmra.mxu0 %v8648
    %v8881 = vpop.f32.mrf.mxu0
    %v8882 = vadd.f32 %v8869, %v8881
    %v8883 = vpop.f32.mrf.mxu0
    %8884 = vdwg.mxu0
    %8885 = vmatpush.bf16.msra.mxu0 %v2933
    %8886 = vmatpush.bf16.msra.mxu0 %v2925
    %8887 = vmatpush.bf16.msra.mxu0 %v2917
    %8888 = vmatpush.bf16.msra.mxu0 %v2909
    %8889 = vmatpush.bf16.msra.mxu0 %v2901
    %8890 = vmatpush.bf16.msra.mxu0 %v2893
    %8891 = vmatpush.bf16.msra.mxu0 %v2885
    %8892 = vmatpush.bf16.msra.mxu0 %v2877
    %8893 = vmatmul.bf16.gmra.mxu0 %v8649
    %v8894 = vpop.f32.mrf.mxu0
    %v8895 = vadd.f32 %v8882, %v8894
    %v8896 = vpop.f32.mrf.mxu0
    %8897 = vdwg.mxu0
    %8898 = vmatpush.bf16.msra.mxu0 %v2997
    %8899 = vmatpush.bf16.msra.mxu0 %v2989
    %8900 = vmatpush.bf16.msra.mxu0 %v2981
    %8901 = vmatpush.bf16.msra.mxu0 %v2973
    %8902 = vmatpush.bf16.msra.mxu0 %v2965
    %8903 = vmatpush.bf16.msra.mxu0 %v2957
    %8904 = vmatpush.bf16.msra.mxu0 %v2949
    %8905 = vmatpush.bf16.msra.mxu0 %v2941
    %8906 = vmatmul.bf16.gmra.mxu0 %v8650
    %v8907 = vpop.f32.mrf.mxu0
    %v8908 = vadd.f32 %v8895, %v8907
    %v8909 = vpop.f32.mrf.mxu0
    %8910 = vdwg.mxu0
    %8911 = vmatpush.bf16.msra.mxu0 %v2806
    %8912 = vmatpush.bf16.msra.mxu0 %v2798
    %8913 = vmatpush.bf16.msra.mxu0 %v2790
    %8914 = vmatpush.bf16.msra.mxu0 %v2782
    %8915 = vmatpush.bf16.msra.mxu0 %v2774
    %8916 = vmatpush.bf16.msra.mxu0 %v2766
    %8917 = vmatpush.bf16.msra.mxu0 %v2758
    %8918 = vmatpush.bf16.msra.mxu0 %v2750
    %8919 = vmatmul.bf16.gmra.mxu0 %v8647
    %v8920 = vpop.f32.mrf.mxu0
    %v8921 = vadd.f32 %v1966, %v8920
    %v8922 = vpop.f32.mrf.mxu0
    %8923 = vdwg.mxu0
    %8924 = vmatpush.bf16.msra.mxu0 %v2870
    %8925 = vmatpush.bf16.msra.mxu0 %v2862
    %8926 = vmatpush.bf16.msra.mxu0 %v2854
    %8927 = vmatpush.bf16.msra.mxu0 %v2846
    %8928 = vmatpush.bf16.msra.mxu0 %v2838
    %8929 = vmatpush.bf16.msra.mxu0 %v2830
    %8930 = vmatpush.bf16.msra.mxu0 %v2822
    %8931 = vmatpush.bf16.msra.mxu0 %v2814
    %8932 = vmatmul.bf16.gmra.mxu0 %v8648
    %v8933 = vpop.f32.mrf.mxu0
    %v8934 = vadd.f32 %v8921, %v8933
    %v8935 = vpop.f32.mrf.mxu0
    %8936 = vdwg.mxu0
    %8937 = vmatpush.bf16.msra.mxu0 %v2934
    %8938 = vmatpush.bf16.msra.mxu0 %v2926
    %8939 = vmatpush.bf16.msra.mxu0 %v2918
    %8940 = vmatpush.bf16.msra.mxu0 %v2910
    %8941 = vmatpush.bf16.msra.mxu0 %v2902
    %8942 = vmatpush.bf16.msra.mxu0 %v2894
    %8943 = vmatpush.bf16.msra.mxu0 %v2886
    %8944 = vmatpush.bf16.msra.mxu0 %v2878
    %8945 = vmatmul.bf16.gmra.mxu0 %v8649
    %v8946 = vpop.f32.mrf.mxu0
    %v8947 = vadd.f32 %v8934, %v8946
    %v8948 = vpop.f32.mrf.mxu0
    %8949 = vdwg.mxu0
    %8950 = vmatpush.bf16.msra.mxu0 %v2998
    %8951 = vmatpush.bf16.msra.mxu0 %v2990
    %8952 = vmatpush.bf16.msra.mxu0 %v2982
    %8953 = vmatpush.bf16.msra.mxu0 %v2974
    %8954 = vmatpush.bf16.msra.mxu0 %v2966
    %8955 = vmatpush.bf16.msra.mxu0 %v2958
    %8956 = vmatpush.bf16.msra.mxu0 %v2950
    %8957 = vmatpush.bf16.msra.mxu0 %v2942
    %8958 = vmatmul.bf16.gmra.mxu0 %v8650
    %v8959 = vpop.f32.mrf.mxu0
    %v8960 = vadd.f32 %v8947, %v8959
    %v8961 = vpop.f32.mrf.mxu0
    %8962 = vdwg.mxu0
    %8963 = vmatpush.bf16.msra.mxu0 %v2807
    %8964 = vmatpush.bf16.msra.mxu0 %v2799
    %8965 = vmatpush.bf16.msra.mxu0 %v2791
    %8966 = vmatpush.bf16.msra.mxu0 %v2783
    %8967 = vmatpush.bf16.msra.mxu0 %v2775
    %8968 = vmatpush.bf16.msra.mxu0 %v2767
    %8969 = vmatpush.bf16.msra.mxu0 %v2759
    %8970 = vmatpush.bf16.msra.mxu0 %v2751
    %8971 = vmatmul.bf16.gmra.mxu0 %v8647
    %v8972 = vpop.f32.mrf.mxu0
    %v8973 = vadd.f32 %v1967, %v8972
    %v8974 = vpop.f32.mrf.mxu0
    %8975 = vdwg.mxu0
    %8976 = vmatpush.bf16.msra.mxu0 %v2871
    %8977 = vmatpush.bf16.msra.mxu0 %v2863
    %8978 = vmatpush.bf16.msra.mxu0 %v2855
    %8979 = vmatpush.bf16.msra.mxu0 %v2847
    %8980 = vmatpush.bf16.msra.mxu0 %v2839
    %8981 = vmatpush.bf16.msra.mxu0 %v2831
    %8982 = vmatpush.bf16.msra.mxu0 %v2823
    %8983 = vmatpush.bf16.msra.mxu0 %v2815
    %8984 = vmatmul.bf16.gmra.mxu0 %v8648
    %v8985 = vpop.f32.mrf.mxu0
    %v8986 = vadd.f32 %v8973, %v8985
    %v8987 = vpop.f32.mrf.mxu0
    %8988 = vdwg.mxu0
    %8989 = vmatpush.bf16.msra.mxu0 %v2935
    %8990 = vmatpush.bf16.msra.mxu0 %v2927
    %8991 = vmatpush.bf16.msra.mxu0 %v2919
    %8992 = vmatpush.bf16.msra.mxu0 %v2911
    %8993 = vmatpush.bf16.msra.mxu0 %v2903
    %8994 = vmatpush.bf16.msra.mxu0 %v2895
    %8995 = vmatpush.bf16.msra.mxu0 %v2887
    %8996 = vmatpush.bf16.msra.mxu0 %v2879
    %8997 = vmatmul.bf16.gmra.mxu0 %v8649
    %v8998 = vpop.f32.mrf.mxu0
    %v8999 = vadd.f32 %v8986, %v8998
    %v9000 = vpop.f32.mrf.mxu0
    %9001 = vdwg.mxu0
    %9002 = vmatpush.bf16.msra.mxu0 %v2999
    %9003 = vmatpush.bf16.msra.mxu0 %v2991
    %9004 = vmatpush.bf16.msra.mxu0 %v2983
    %9005 = vmatpush.bf16.msra.mxu0 %v2975
    %9006 = vmatpush.bf16.msra.mxu0 %v2967
    %9007 = vmatpush.bf16.msra.mxu0 %v2959
    %9008 = vmatpush.bf16.msra.mxu0 %v2951
    %9009 = vmatpush.bf16.msra.mxu0 %v2943
    %9010 = vmatmul.bf16.gmra.mxu0 %v8650
    %v9011 = vpop.f32.mrf.mxu0
    %v9012 = vadd.f32 %v8999, %v9011
    %v9013 = vpop.f32.mrf.mxu0
    %9014 = vdwg.mxu0
    %9015 = vmatpush.bf16.msra.mxu0 %v2808
    %9016 = vmatpush.bf16.msra.mxu0 %v2800
    %9017 = vmatpush.bf16.msra.mxu0 %v2792
    %9018 = vmatpush.bf16.msra.mxu0 %v2784
    %9019 = vmatpush.bf16.msra.mxu0 %v2776
    %9020 = vmatpush.bf16.msra.mxu0 %v2768
    %9021 = vmatpush.bf16.msra.mxu0 %v2760
    %9022 = vmatpush.bf16.msra.mxu0 %v2752
    %9023 = vmatmul.bf16.gmra.mxu0 %v8647
    %v9024 = vpop.f32.mrf.mxu0
    %v9025 = vadd.f32 %v1968, %v9024
    %v9026 = vpop.f32.mrf.mxu0
    %9027 = vdwg.mxu0
    %9028 = vmatpush.bf16.msra.mxu0 %v2872
    %9029 = vmatpush.bf16.msra.mxu0 %v2864
    %9030 = vmatpush.bf16.msra.mxu0 %v2856
    %9031 = vmatpush.bf16.msra.mxu0 %v2848
    %9032 = vmatpush.bf16.msra.mxu0 %v2840
    %9033 = vmatpush.bf16.msra.mxu0 %v2832
    %9034 = vmatpush.bf16.msra.mxu0 %v2824
    %9035 = vmatpush.bf16.msra.mxu0 %v2816
    %9036 = vmatmul.bf16.gmra.mxu0 %v8648
    %v9037 = vpop.f32.mrf.mxu0
    %v9038 = vadd.f32 %v9025, %v9037
    %v9039 = vpop.f32.mrf.mxu0
    %9040 = vdwg.mxu0
    %9041 = vmatpush.bf16.msra.mxu0 %v2936
    %9042 = vmatpush.bf16.msra.mxu0 %v2928
    %9043 = vmatpush.bf16.msra.mxu0 %v2920
    %9044 = vmatpush.bf16.msra.mxu0 %v2912
    %9045 = vmatpush.bf16.msra.mxu0 %v2904
    %9046 = vmatpush.bf16.msra.mxu0 %v2896
    %9047 = vmatpush.bf16.msra.mxu0 %v2888
    %9048 = vmatpush.bf16.msra.mxu0 %v2880
    %9049 = vmatmul.bf16.gmra.mxu0 %v8649
    %v9050 = vpop.f32.mrf.mxu0
    %v9051 = vadd.f32 %v9038, %v9050
    %v9052 = vpop.f32.mrf.mxu0
    %9053 = vdwg.mxu0
    %9054 = vmatpush.bf16.msra.mxu0 %v3000
    %9055 = vmatpush.bf16.msra.mxu0 %v2992
    %9056 = vmatpush.bf16.msra.mxu0 %v2984
    %9057 = vmatpush.bf16.msra.mxu0 %v2976
    %9058 = vmatpush.bf16.msra.mxu0 %v2968
    %9059 = vmatpush.bf16.msra.mxu0 %v2960
    %9060 = vmatpush.bf16.msra.mxu0 %v2952
    %9061 = vmatpush.bf16.msra.mxu0 %v2944
    %9062 = vmatmul.bf16.gmra.mxu0 %v8650
    %v9063 = vpop.f32.mrf.mxu0
    %v9064 = vadd.f32 %v9051, %v9063
    %v9065 = vpop.f32.mrf.mxu0
    %9066 = vdwg.mxu0
    %v9067 = vxor.u32 %v8700, 2147483648
    %v9068 = vxor.u32 %v8752, 2147483648
    %v9069 = vmul.f32 %v9067, 1.442695
    %v9070 = vpow.pop %v9069
    %v9071 = vmul.f32 %v9068, 1.442695
    %v9072 = vpow.pop %v9071
    %v9073 = vadd.f32 %v9070, 1.0
    %v9074 = vadd.f32 %v9072, 1.0
    %v9075 = vrcp.pop %v9073
    %v9076 = vmul.f32 %v9073, %v9075
    %v9077 = vsub.f32 1.0, %v9076
    %v9078 = vmul.f32 %v9075, %v9077
    %v9079 = vadd.f32 %v9075, %v9078
    %vm9080 = vweird.f32 %v9073
    %vm9081 = vweird.f32 %v9075
    %vm9082 = vmor %vm9080, %vm9081
    %v9083 = vsel %vm9082, %v9075, %v9079
    %v9084 = vand.u32 2147483647, %v9073
    %vm9085 = vcmp.eq.f32.partialorder %v9084, 8.507059e+37
    %v9086 = vand.u32 %v9073, 2147483648
    %v9087 = vor.u32 1.1754944e-38, %v9086
    %v9088 = vsel %vm9085, %v9087, %v9083
    %v9089 = vmul.f32 1.0, %v9088
    %v9090 = vrcp.pop %v9074
    %v9091 = vmul.f32 %v9074, %v9090
    %v9092 = vsub.f32 1.0, %v9091
    %v9093 = vmul.f32 %v9090, %v9092
    %v9094 = vadd.f32 %v9090, %v9093
    %vm9095 = vweird.f32 %v9074
    %vm9096 = vweird.f32 %v9090
    %vm9097 = vmor %vm9095, %vm9096
    %v9098 = vsel %vm9097, %v9090, %v9094
    %v9099 = vand.u32 2147483647, %v9074
    %vm9100 = vcmp.eq.f32.partialorder %v9099, 8.507059e+37
    %v9101 = vand.u32 %v9074, 2147483648
    %v9102 = vor.u32 1.1754944e-38, %v9101
    %v9103 = vsel %vm9100, %v9102, %v9098
    %v9104 = vmul.f32 1.0, %v9103
    %v9105 = vxor.u32 %v8804, 2147483648
    %v9106 = vxor.u32 %v8856, 2147483648
    %v9107 = vmul.f32 %v9105, 1.442695
    %v9108 = vpow.pop %v9107
    %v9109 = vmul.f32 %v9106, 1.442695
    %v9110 = vpow.pop %v9109
    %v9111 = vadd.f32 %v9108, 1.0
    %v9112 = vadd.f32 %v9110, 1.0
    %v9113 = vrcp.pop %v9111
    %v9114 = vmul.f32 %v9111, %v9113
    %v9115 = vsub.f32 1.0, %v9114
    %v9116 = vmul.f32 %v9113, %v9115
    %v9117 = vadd.f32 %v9113, %v9116
    %vm9118 = vweird.f32 %v9111
    %vm9119 = vweird.f32 %v9113
    %vm9120 = vmor %vm9118, %vm9119
    %v9121 = vsel %vm9120, %v9113, %v9117
    %v9122 = vand.u32 2147483647, %v9111
    %vm9123 = vcmp.eq.f32.partialorder %v9122, 8.507059e+37
    %v9124 = vand.u32 %v9111, 2147483648
    %v9125 = vor.u32 1.1754944e-38, %v9124
    %v9126 = vsel %vm9123, %v9125, %v9121
    %v9127 = vmul.f32 1.0, %v9126
    %v9128 = vrcp.pop %v9112
    %v9129 = vmul.f32 %v9112, %v9128
    %v9130 = vsub.f32 1.0, %v9129
    %v9131 = vmul.f32 %v9128, %v9130
    %v9132 = vadd.f32 %v9128, %v9131
    %vm9133 = vweird.f32 %v9112
    %vm9134 = vweird.f32 %v9128
    %vm9135 = vmor %vm9133, %vm9134
    %v9136 = vsel %vm9135, %v9128, %v9132
    %v9137 = vand.u32 2147483647, %v9112
    %vm9138 = vcmp.eq.f32.partialorder %v9137, 8.507059e+37
    %v9139 = vand.u32 %v9112, 2147483648
    %v9140 = vor.u32 1.1754944e-38, %v9139
    %v9141 = vsel %vm9138, %v9140, %v9136
    %v9142 = vmul.f32 1.0, %v9141
    %v9143 = vtanh.pop %v8908
    %v9144 = vtanh.pop %v8960
    %v9145 = vxor.u32 %v9012, 2147483648
    %v9146 = vxor.u32 %v9064, 2147483648
    %v9147 = vmul.f32 %v9145, 1.442695
    %v9148 = vpow.pop %v9147
    %v9149 = vmul.f32 %v9146, 1.442695
    %v9150 = vpow.pop %v9149
    %v9151 = vadd.f32 %v9148, 1.0
    %v9152 = vadd.f32 %v9150, 1.0
    %v9153 = vrcp.pop %v9151
    %v9154 = vmul.f32 %v9151, %v9153
    %v9155 = vsub.f32 1.0, %v9154
    %v9156 = vmul.f32 %v9153, %v9155
    %v9157 = vadd.f32 %v9153, %v9156
    %vm9158 = vweird.f32 %v9151
    %vm9159 = vweird.f32 %v9153
    %vm9160 = vmor %vm9158, %vm9159
    %v9161 = vsel %vm9160, %v9153, %v9157
    %v9162 = vand.u32 2147483647, %v9151
    %vm9163 = vcmp.eq.f32.partialorder %v9162, 8.507059e+37
    %v9164 = vand.u32 %v9151, 2147483648
    %v9165 = vor.u32 1.1754944e-38, %v9164
    %v9166 = vsel %vm9163, %v9165, %v9161
    %v9167 = vmul.f32 1.0, %v9166
    %v9168 = vrcp.pop %v9152
    %v9169 = vmul.f32 %v9152, %v9168
    %v9170 = vsub.f32 1.0, %v9169
    %v9171 = vmul.f32 %v9168, %v9170
    %v9172 = vadd.f32 %v9168, %v9171
    %vm9173 = vweird.f32 %v9152
    %vm9174 = vweird.f32 %v9168
    %vm9175 = vmor %vm9173, %vm9174
    %v9176 = vsel %vm9175, %v9168, %v9172
    %v9177 = vand.u32 2147483647, %v9152
    %vm9178 = vcmp.eq.f32.partialorder %v9177, 8.507059e+37
    %v9179 = vand.u32 %v9152, 2147483648
    %v9180 = vor.u32 1.1754944e-38, %v9179
    %v9181 = vsel %vm9178, %v9180, %v9176
    %v9182 = vmul.f32 1.0, %v9181
    %v9183 = vmul.f32 %v9127, %v8288
    %v9184 = vmul.f32 %v9142, %v8289
    %v9185 = vmul.f32 %v9089, %v9143
    %v9186 = vmul.f32 %v9104, %v9144
    %v9187 = vadd.f32 %v9183, %v9185
    %v9188 = vadd.f32 %v9184, %v9186
    %v9189 = vtanh.pop %v9187
    %v9190 = vtanh.pop %v9188
    %v9191 = vmul.f32 %v9167, %v9189
    %v9192 = vmul.f32 %v9182, %v9190
    %s9193 = smul.u32 7, 8
    %s9194 = smul.addr %s9193, 8
    %s9195 = scalar_lea.vmem [#allocation2], %s9194
    %v9196 = vld [vmem:[%s9195] sm:$0xff]
    %v9197 = vld [vmem:[%s9195 + $0x8] sm:$0xff]
    %v9198 = vld [vmem:[%s9195 + $0x10] sm:$0xff]
    %v9199 = vld [vmem:[%s9195 + $0x18] sm:$0xff]
    %v9200 = vld [vmem:[%s9195 + $0x20] sm:$0xff]
    %v9201 = vld [vmem:[%s9195 + $0x28] sm:$0xff]
    %v9202 = vld [vmem:[%s9195 + $0x30] sm:$0xff]
    %v9203 = vld [vmem:[%s9195 + $0x38] sm:$0xff]
    %9204 = vmatpush.bf16.msra.mxu0 %v1414
    %9205 = vmatpush.bf16.msra.mxu0 %v1406
    %9206 = vmatpush.bf16.msra.mxu0 %v1398
    %9207 = vmatpush.bf16.msra.mxu0 %v1390
    %9208 = vmatpush.bf16.msra.mxu0 %v1382
    %9209 = vmatpush.bf16.msra.mxu0 %v1374
    %9210 = vmatpush.bf16.msra.mxu0 %v1366
    %9211 = vmatpush.bf16.msra.mxu0 %v1358
    %9212 = vmatmul.bf16.gmra.mxu0 %v8647
    %v9213 = vpop.f32.mrf.mxu0
    %v9214 = vadd.f32 0.0, %v9213
    %v9215 = vpop.f32.mrf.mxu0
    %9216 = vdwg.mxu0
    %9217 = vmatpush.bf16.msra.mxu0 %v1478
    %9218 = vmatpush.bf16.msra.mxu0 %v1470
    %9219 = vmatpush.bf16.msra.mxu0 %v1462
    %9220 = vmatpush.bf16.msra.mxu0 %v1454
    %9221 = vmatpush.bf16.msra.mxu0 %v1446
    %9222 = vmatpush.bf16.msra.mxu0 %v1438
    %9223 = vmatpush.bf16.msra.mxu0 %v1430
    %9224 = vmatpush.bf16.msra.mxu0 %v1422
    %9225 = vmatmul.bf16.gmra.mxu0 %v8648
    %v9226 = vpop.f32.mrf.mxu0
    %v9227 = vadd.f32 %v9214, %v9226
    %v9228 = vpop.f32.mrf.mxu0
    %9229 = vdwg.mxu0
    %9230 = vmatpush.bf16.msra.mxu0 %v1415
    %9231 = vmatpush.bf16.msra.mxu0 %v1407
    %9232 = vmatpush.bf16.msra.mxu0 %v1399
    %9233 = vmatpush.bf16.msra.mxu0 %v1391
    %9234 = vmatpush.bf16.msra.mxu0 %v1383
    %9235 = vmatpush.bf16.msra.mxu0 %v1375
    %9236 = vmatpush.bf16.msra.mxu0 %v1367
    %9237 = vmatpush.bf16.msra.mxu0 %v1359
    %9238 = vmatmul.bf16.gmra.mxu0 %v8647
    %v9239 = vpop.f32.mrf.mxu0
    %v9240 = vadd.f32 0.0, %v9239
    %v9241 = vpop.f32.mrf.mxu0
    %9242 = vdwg.mxu0
    %9243 = vmatpush.bf16.msra.mxu0 %v1479
    %9244 = vmatpush.bf16.msra.mxu0 %v1471
    %9245 = vmatpush.bf16.msra.mxu0 %v1463
    %9246 = vmatpush.bf16.msra.mxu0 %v1455
    %9247 = vmatpush.bf16.msra.mxu0 %v1447
    %9248 = vmatpush.bf16.msra.mxu0 %v1439
    %9249 = vmatpush.bf16.msra.mxu0 %v1431
    %9250 = vmatpush.bf16.msra.mxu0 %v1423
    %9251 = vmatmul.bf16.gmra.mxu0 %v8648
    %v9252 = vpop.f32.mrf.mxu0
    %v9253 = vadd.f32 %v9240, %v9252
    %v9254 = vpop.f32.mrf.mxu0
    %9255 = vdwg.mxu0
    %9256 = vmatpush.bf16.msra.mxu0 %v1416
    %9257 = vmatpush.bf16.msra.mxu0 %v1408
    %9258 = vmatpush.bf16.msra.mxu0 %v1400
    %9259 = vmatpush.bf16.msra.mxu0 %v1392
    %9260 = vmatpush.bf16.msra.mxu0 %v1384
    %9261 = vmatpush.bf16.msra.mxu0 %v1376
    %9262 = vmatpush.bf16.msra.mxu0 %v1368
    %9263 = vmatpush.bf16.msra.mxu0 %v1360
    %9264 = vmatmul.bf16.gmra.mxu0 %v8647
    %v9265 = vpop.f32.mrf.mxu0
    %v9266 = vadd.f32 0.0, %v9265
    %v9267 = vpop.f32.mrf.mxu0
    %9268 = vdwg.mxu0
    %9269 = vmatpush.bf16.msra.mxu0 %v1480
    %9270 = vmatpush.bf16.msra.mxu0 %v1472
    %9271 = vmatpush.bf16.msra.mxu0 %v1464
    %9272 = vmatpush.bf16.msra.mxu0 %v1456
    %9273 = vmatpush.bf16.msra.mxu0 %v1448
    %9274 = vmatpush.bf16.msra.mxu0 %v1440
    %9275 = vmatpush.bf16.msra.mxu0 %v1432
    %9276 = vmatpush.bf16.msra.mxu0 %v1424
    %9277 = vmatmul.bf16.gmra.mxu0 %v8648
    %v9278 = vpop.f32.mrf.mxu0
    %v9279 = vadd.f32 %v9266, %v9278
    %v9280 = vpop.f32.mrf.mxu0
    %9281 = vdwg.mxu0
    %9282 = vmatpush.bf16.msra.mxu0 %v1417
    %9283 = vmatpush.bf16.msra.mxu0 %v1409
    %9284 = vmatpush.bf16.msra.mxu0 %v1401
    %9285 = vmatpush.bf16.msra.mxu0 %v1393
    %9286 = vmatpush.bf16.msra.mxu0 %v1385
    %9287 = vmatpush.bf16.msra.mxu0 %v1377
    %9288 = vmatpush.bf16.msra.mxu0 %v1369
    %9289 = vmatpush.bf16.msra.mxu0 %v1361
    %9290 = vmatmul.bf16.gmra.mxu0 %v8647
    %v9291 = vpop.f32.mrf.mxu0
    %v9292 = vadd.f32 0.0, %v9291
    %v9293 = vpop.f32.mrf.mxu0
    %9294 = vdwg.mxu0
    %9295 = vmatpush.bf16.msra.mxu0 %v1481
    %9296 = vmatpush.bf16.msra.mxu0 %v1473
    %9297 = vmatpush.bf16.msra.mxu0 %v1465
    %9298 = vmatpush.bf16.msra.mxu0 %v1457
    %9299 = vmatpush.bf16.msra.mxu0 %v1449
    %9300 = vmatpush.bf16.msra.mxu0 %v1441
    %9301 = vmatpush.bf16.msra.mxu0 %v1433
    %9302 = vmatpush.bf16.msra.mxu0 %v1425
    %9303 = vmatmul.bf16.gmra.mxu0 %v8648
    %v9304 = vpop.f32.mrf.mxu0
    %v9305 = vadd.f32 %v9292, %v9304
    %v9306 = vpop.f32.mrf.mxu0
    %9307 = vdwg.mxu0
    %9308 = vmatpush.bf16.msra.mxu0 %v1418
    %9309 = vmatpush.bf16.msra.mxu0 %v1410
    %9310 = vmatpush.bf16.msra.mxu0 %v1402
    %9311 = vmatpush.bf16.msra.mxu0 %v1394
    %9312 = vmatpush.bf16.msra.mxu0 %v1386
    %9313 = vmatpush.bf16.msra.mxu0 %v1378
    %9314 = vmatpush.bf16.msra.mxu0 %v1370
    %9315 = vmatpush.bf16.msra.mxu0 %v1362
    %9316 = vmatmul.bf16.gmra.mxu0 %v8647
    %v9317 = vpop.f32.mrf.mxu0
    %v9318 = vadd.f32 0.0, %v9317
    %v9319 = vpop.f32.mrf.mxu0
    %9320 = vdwg.mxu0
    %9321 = vmatpush.bf16.msra.mxu0 %v1482
    %9322 = vmatpush.bf16.msra.mxu0 %v1474
    %9323 = vmatpush.bf16.msra.mxu0 %v1466
    %9324 = vmatpush.bf16.msra.mxu0 %v1458
    %9325 = vmatpush.bf16.msra.mxu0 %v1450
    %9326 = vmatpush.bf16.msra.mxu0 %v1442
    %9327 = vmatpush.bf16.msra.mxu0 %v1434
    %9328 = vmatpush.bf16.msra.mxu0 %v1426
    %9329 = vmatmul.bf16.gmra.mxu0 %v8648
    %v9330 = vpop.f32.mrf.mxu0
    %v9331 = vadd.f32 %v9318, %v9330
    %v9332 = vpop.f32.mrf.mxu0
    %9333 = vdwg.mxu0
    %9334 = vmatpush.bf16.msra.mxu0 %v1419
    %9335 = vmatpush.bf16.msra.mxu0 %v1411
    %9336 = vmatpush.bf16.msra.mxu0 %v1403
    %9337 = vmatpush.bf16.msra.mxu0 %v1395
    %9338 = vmatpush.bf16.msra.mxu0 %v1387
    %9339 = vmatpush.bf16.msra.mxu0 %v1379
    %9340 = vmatpush.bf16.msra.mxu0 %v1371
    %9341 = vmatpush.bf16.msra.mxu0 %v1363
    %9342 = vmatmul.bf16.gmra.mxu0 %v8647
    %v9343 = vpop.f32.mrf.mxu0
    %v9344 = vadd.f32 0.0, %v9343
    %v9345 = vpop.f32.mrf.mxu0
    %9346 = vdwg.mxu0
    %9347 = vmatpush.bf16.msra.mxu0 %v1483
    %9348 = vmatpush.bf16.msra.mxu0 %v1475
    %9349 = vmatpush.bf16.msra.mxu0 %v1467
    %9350 = vmatpush.bf16.msra.mxu0 %v1459
    %9351 = vmatpush.bf16.msra.mxu0 %v1451
    %9352 = vmatpush.bf16.msra.mxu0 %v1443
    %9353 = vmatpush.bf16.msra.mxu0 %v1435
    %9354 = vmatpush.bf16.msra.mxu0 %v1427
    %9355 = vmatmul.bf16.gmra.mxu0 %v8648
    %v9356 = vpop.f32.mrf.mxu0
    %v9357 = vadd.f32 %v9344, %v9356
    %v9358 = vpop.f32.mrf.mxu0
    %9359 = vdwg.mxu0
    %9360 = vmatpush.bf16.msra.mxu0 %v1420
    %9361 = vmatpush.bf16.msra.mxu0 %v1412
    %9362 = vmatpush.bf16.msra.mxu0 %v1404
    %9363 = vmatpush.bf16.msra.mxu0 %v1396
    %9364 = vmatpush.bf16.msra.mxu0 %v1388
    %9365 = vmatpush.bf16.msra.mxu0 %v1380
    %9366 = vmatpush.bf16.msra.mxu0 %v1372
    %9367 = vmatpush.bf16.msra.mxu0 %v1364
    %9368 = vmatmul.bf16.gmra.mxu0 %v8647
    %v9369 = vpop.f32.mrf.mxu0
    %v9370 = vadd.f32 0.0, %v9369
    %v9371 = vpop.f32.mrf.mxu0
    %9372 = vdwg.mxu0
    %9373 = vmatpush.bf16.msra.mxu0 %v1484
    %9374 = vmatpush.bf16.msra.mxu0 %v1476
    %9375 = vmatpush.bf16.msra.mxu0 %v1468
    %9376 = vmatpush.bf16.msra.mxu0 %v1460
    %9377 = vmatpush.bf16.msra.mxu0 %v1452
    %9378 = vmatpush.bf16.msra.mxu0 %v1444
    %9379 = vmatpush.bf16.msra.mxu0 %v1436
    %9380 = vmatpush.bf16.msra.mxu0 %v1428
    %9381 = vmatmul.bf16.gmra.mxu0 %v8648
    %v9382 = vpop.f32.mrf.mxu0
    %v9383 = vadd.f32 %v9370, %v9382
    %v9384 = vpop.f32.mrf.mxu0
    %9385 = vdwg.mxu0
    %9386 = vmatpush.bf16.msra.mxu0 %v1421
    %9387 = vmatpush.bf16.msra.mxu0 %v1413
    %9388 = vmatpush.bf16.msra.mxu0 %v1405
    %9389 = vmatpush.bf16.msra.mxu0 %v1397
    %9390 = vmatpush.bf16.msra.mxu0 %v1389
    %9391 = vmatpush.bf16.msra.mxu0 %v1381
    %9392 = vmatpush.bf16.msra.mxu0 %v1373
    %9393 = vmatpush.bf16.msra.mxu0 %v1365
    %9394 = vmatmul.bf16.gmra.mxu0 %v8647
    %v9395 = vpop.f32.mrf.mxu0
    %v9396 = vadd.f32 0.0, %v9395
    %v9397 = vpop.f32.mrf.mxu0
    %9398 = vdwg.mxu0
    %9399 = vmatpush.bf16.msra.mxu0 %v1485
    %9400 = vmatpush.bf16.msra.mxu0 %v1477
    %9401 = vmatpush.bf16.msra.mxu0 %v1469
    %9402 = vmatpush.bf16.msra.mxu0 %v1461
    %9403 = vmatpush.bf16.msra.mxu0 %v1453
    %9404 = vmatpush.bf16.msra.mxu0 %v1445
    %9405 = vmatpush.bf16.msra.mxu0 %v1437
    %9406 = vmatpush.bf16.msra.mxu0 %v1429
    %9407 = vmatmul.bf16.gmra.mxu0 %v8648
    %v9408 = vpop.f32.mrf.mxu0
    %v9409 = vadd.f32 %v9396, %v9408
    %v9410 = vpop.f32.mrf.mxu0
    %9411 = vdwg.mxu0
    %v9412 = vadd.f32 %v9196, %v9227
    %v9413 = vadd.f32 %v9197, %v9253
    %v9414 = vadd.f32 %v9198, %v9279
    %v9415 = vadd.f32 %v9199, %v9305
    %v9416 = vadd.f32 %v9200, %v9331
    %v9417 = vadd.f32 %v9201, %v9357
    %v9418 = vadd.f32 %v9202, %v9383
    %v9419 = vadd.f32 %v9203, %v9409
    %v9420 = vxor.u32 %v9412, 2147483648
    %v9421 = vxor.u32 %v9413, 2147483648
    %v9422 = vmul.f32 %v9420, 1.442695
    %v9423 = vpow.pop %v9422
    %v9424 = vmul.f32 %v9421, 1.442695
    %v9425 = vpow.pop %v9424
    %v9426 = vadd.f32 %v9423, 1.0
    %v9427 = vadd.f32 %v9425, 1.0
    %v9428 = vrcp.pop %v9426
    %v9429 = vmul.f32 %v9426, %v9428
    %v9430 = vsub.f32 1.0, %v9429
    %v9431 = vmul.f32 %v9428, %v9430
    %v9432 = vadd.f32 %v9428, %v9431
    %vm9433 = vweird.f32 %v9426
    %vm9434 = vweird.f32 %v9428
    %vm9435 = vmor %vm9433, %vm9434
    %v9436 = vsel %vm9435, %v9428, %v9432
    %v9437 = vand.u32 2147483647, %v9426
    %vm9438 = vcmp.eq.f32.partialorder %v9437, 8.507059e+37
    %v9439 = vand.u32 %v9426, 2147483648
    %v9440 = vor.u32 1.1754944e-38, %v9439
    %v9441 = vsel %vm9438, %v9440, %v9436
    %v9442 = vmul.f32 1.0, %v9441
    %v9443 = vrcp.pop %v9427
    %v9444 = vmul.f32 %v9427, %v9443
    %v9445 = vsub.f32 1.0, %v9444
    %v9446 = vmul.f32 %v9443, %v9445
    %v9447 = vadd.f32 %v9443, %v9446
    %vm9448 = vweird.f32 %v9427
    %vm9449 = vweird.f32 %v9443
    %vm9450 = vmor %vm9448, %vm9449
    %v9451 = vsel %vm9450, %v9443, %v9447
    %v9452 = vand.u32 2147483647, %v9427
    %vm9453 = vcmp.eq.f32.partialorder %v9452, 8.507059e+37
    %v9454 = vand.u32 %v9427, 2147483648
    %v9455 = vor.u32 1.1754944e-38, %v9454
    %v9456 = vsel %vm9453, %v9455, %v9451
    %v9457 = vmul.f32 1.0, %v9456
    %v9458 = vxor.u32 %v9414, 2147483648
    %v9459 = vxor.u32 %v9415, 2147483648
    %v9460 = vmul.f32 %v9458, 1.442695
    %v9461 = vpow.pop %v9460
    %v9462 = vmul.f32 %v9459, 1.442695
    %v9463 = vpow.pop %v9462
    %v9464 = vadd.f32 %v9461, 1.0
    %v9465 = vadd.f32 %v9463, 1.0
    %v9466 = vrcp.pop %v9464
    %v9467 = vmul.f32 %v9464, %v9466
    %v9468 = vsub.f32 1.0, %v9467
    %v9469 = vmul.f32 %v9466, %v9468
    %v9470 = vadd.f32 %v9466, %v9469
    %vm9471 = vweird.f32 %v9464
    %vm9472 = vweird.f32 %v9466
    %vm9473 = vmor %vm9471, %vm9472
    %v9474 = vsel %vm9473, %v9466, %v9470
    %v9475 = vand.u32 2147483647, %v9464
    %vm9476 = vcmp.eq.f32.partialorder %v9475, 8.507059e+37
    %v9477 = vand.u32 %v9464, 2147483648
    %v9478 = vor.u32 1.1754944e-38, %v9477
    %v9479 = vsel %vm9476, %v9478, %v9474
    %v9480 = vmul.f32 1.0, %v9479
    %v9481 = vrcp.pop %v9465
    %v9482 = vmul.f32 %v9465, %v9481
    %v9483 = vsub.f32 1.0, %v9482
    %v9484 = vmul.f32 %v9481, %v9483
    %v9485 = vadd.f32 %v9481, %v9484
    %vm9486 = vweird.f32 %v9465
    %vm9487 = vweird.f32 %v9481
    %vm9488 = vmor %vm9486, %vm9487
    %v9489 = vsel %vm9488, %v9481, %v9485
    %v9490 = vand.u32 2147483647, %v9465
    %vm9491 = vcmp.eq.f32.partialorder %v9490, 8.507059e+37
    %v9492 = vand.u32 %v9465, 2147483648
    %v9493 = vor.u32 1.1754944e-38, %v9492
    %v9494 = vsel %vm9491, %v9493, %v9489
    %v9495 = vmul.f32 1.0, %v9494
    %v9496 = vtanh.pop %v9416
    %v9497 = vtanh.pop %v9417
    %v9498 = vxor.u32 %v9418, 2147483648
    %v9499 = vxor.u32 %v9419, 2147483648
    %v9500 = vmul.f32 %v9498, 1.442695
    %v9501 = vpow.pop %v9500
    %v9502 = vmul.f32 %v9499, 1.442695
    %v9503 = vpow.pop %v9502
    %v9504 = vadd.f32 %v9501, 1.0
    %v9505 = vadd.f32 %v9503, 1.0
    %v9506 = vrcp.pop %v9504
    %v9507 = vmul.f32 %v9504, %v9506
    %v9508 = vsub.f32 1.0, %v9507
    %v9509 = vmul.f32 %v9506, %v9508
    %v9510 = vadd.f32 %v9506, %v9509
    %vm9511 = vweird.f32 %v9504
    %vm9512 = vweird.f32 %v9506
    %vm9513 = vmor %vm9511, %vm9512
    %v9514 = vsel %vm9513, %v9506, %v9510
    %v9515 = vand.u32 2147483647, %v9504
    %vm9516 = vcmp.eq.f32.partialorder %v9515, 8.507059e+37
    %v9517 = vand.u32 %v9504, 2147483648
    %v9518 = vor.u32 1.1754944e-38, %v9517
    %v9519 = vsel %vm9516, %v9518, %v9514
    %v9520 = vmul.f32 1.0, %v9519
    %v9521 = vrcp.pop %v9505
    %v9522 = vmul.f32 %v9505, %v9521
    %v9523 = vsub.f32 1.0, %v9522
    %v9524 = vmul.f32 %v9521, %v9523
    %v9525 = vadd.f32 %v9521, %v9524
    %vm9526 = vweird.f32 %v9505
    %vm9527 = vweird.f32 %v9521
    %vm9528 = vmor %vm9526, %vm9527
    %v9529 = vsel %vm9528, %v9521, %v9525
    %v9530 = vand.u32 2147483647, %v9505
    %vm9531 = vcmp.eq.f32.partialorder %v9530, 8.507059e+37
    %v9532 = vand.u32 %v9505, 2147483648
    %v9533 = vor.u32 1.1754944e-38, %v9532
    %v9534 = vsel %vm9531, %v9533, %v9529
    %v9535 = vmul.f32 1.0, %v9534
    %v9536 = vmul.f32 %v9480, %v8641
    %v9537 = vmul.f32 %v9495, %v8642
    %v9538 = vmul.f32 %v9442, %v9496
    %v9539 = vmul.f32 %v9457, %v9497
    %v9540 = vadd.f32 %v9536, %v9538
    %v9541 = vadd.f32 %v9537, %v9539
    %v9542 = vtanh.pop %v9540
    %v9543 = vtanh.pop %v9541
    %v9544 = vmul.f32 %v9520, %v9542
    %v9545 = vmul.f32 %v9535, %v9543
    %v9546 = vpack.c.bf16 %v9544, %v9544
    %v9547 = vpack.c.bf16 %v9545, %v9545
    %v9548 = vpack.c.bf16 %v9191, %v9191
    %v9549 = vpack.c.bf16 %v9192, %v9192
    %9550 = vmatpush.bf16.msra.mxu0 %v2801
    %9551 = vmatpush.bf16.msra.mxu0 %v2793
    %9552 = vmatpush.bf16.msra.mxu0 %v2785
    %9553 = vmatpush.bf16.msra.mxu0 %v2777
    %9554 = vmatpush.bf16.msra.mxu0 %v2769
    %9555 = vmatpush.bf16.msra.mxu0 %v2761
    %9556 = vmatpush.bf16.msra.mxu0 %v2753
    %9557 = vmatpush.bf16.msra.mxu0 %v2745
    %9558 = vmatmul.bf16.gmra.mxu0 %v9546
    %v9559 = vpop.f32.mrf.mxu0
    %v9560 = vadd.f32 %v1961, %v9559
    %v9561 = vpop.f32.mrf.mxu0
    %9562 = vdwg.mxu0
    %9563 = vmatpush.bf16.msra.mxu0 %v2865
    %9564 = vmatpush.bf16.msra.mxu0 %v2857
    %9565 = vmatpush.bf16.msra.mxu0 %v2849
    %9566 = vmatpush.bf16.msra.mxu0 %v2841
    %9567 = vmatpush.bf16.msra.mxu0 %v2833
    %9568 = vmatpush.bf16.msra.mxu0 %v2825
    %9569 = vmatpush.bf16.msra.mxu0 %v2817
    %9570 = vmatpush.bf16.msra.mxu0 %v2809
    %9571 = vmatmul.bf16.gmra.mxu0 %v9547
    %v9572 = vpop.f32.mrf.mxu0
    %v9573 = vadd.f32 %v9560, %v9572
    %v9574 = vpop.f32.mrf.mxu0
    %9575 = vdwg.mxu0
    %9576 = vmatpush.bf16.msra.mxu0 %v2929
    %9577 = vmatpush.bf16.msra.mxu0 %v2921
    %9578 = vmatpush.bf16.msra.mxu0 %v2913
    %9579 = vmatpush.bf16.msra.mxu0 %v2905
    %9580 = vmatpush.bf16.msra.mxu0 %v2897
    %9581 = vmatpush.bf16.msra.mxu0 %v2889
    %9582 = vmatpush.bf16.msra.mxu0 %v2881
    %9583 = vmatpush.bf16.msra.mxu0 %v2873
    %9584 = vmatmul.bf16.gmra.mxu0 %v9548
    %v9585 = vpop.f32.mrf.mxu0
    %v9586 = vadd.f32 %v9573, %v9585
    %v9587 = vpop.f32.mrf.mxu0
    %9588 = vdwg.mxu0
    %9589 = vmatpush.bf16.msra.mxu0 %v2993
    %9590 = vmatpush.bf16.msra.mxu0 %v2985
    %9591 = vmatpush.bf16.msra.mxu0 %v2977
    %9592 = vmatpush.bf16.msra.mxu0 %v2969
    %9593 = vmatpush.bf16.msra.mxu0 %v2961
    %9594 = vmatpush.bf16.msra.mxu0 %v2953
    %9595 = vmatpush.bf16.msra.mxu0 %v2945
    %9596 = vmatpush.bf16.msra.mxu0 %v2937
    %9597 = vmatmul.bf16.gmra.mxu0 %v9549
    %v9598 = vpop.f32.mrf.mxu0
    %v9599 = vadd.f32 %v9586, %v9598
    %v9600 = vpop.f32.mrf.mxu0
    %9601 = vdwg.mxu0
    %9602 = vmatpush.bf16.msra.mxu0 %v2802
    %9603 = vmatpush.bf16.msra.mxu0 %v2794
    %9604 = vmatpush.bf16.msra.mxu0 %v2786
    %9605 = vmatpush.bf16.msra.mxu0 %v2778
    %9606 = vmatpush.bf16.msra.mxu0 %v2770
    %9607 = vmatpush.bf16.msra.mxu0 %v2762
    %9608 = vmatpush.bf16.msra.mxu0 %v2754
    %9609 = vmatpush.bf16.msra.mxu0 %v2746
    %9610 = vmatmul.bf16.gmra.mxu0 %v9546
    %v9611 = vpop.f32.mrf.mxu0
    %v9612 = vadd.f32 %v1962, %v9611
    %v9613 = vpop.f32.mrf.mxu0
    %9614 = vdwg.mxu0
    %9615 = vmatpush.bf16.msra.mxu0 %v2866
    %9616 = vmatpush.bf16.msra.mxu0 %v2858
    %9617 = vmatpush.bf16.msra.mxu0 %v2850
    %9618 = vmatpush.bf16.msra.mxu0 %v2842
    %9619 = vmatpush.bf16.msra.mxu0 %v2834
    %9620 = vmatpush.bf16.msra.mxu0 %v2826
    %9621 = vmatpush.bf16.msra.mxu0 %v2818
    %9622 = vmatpush.bf16.msra.mxu0 %v2810
    %9623 = vmatmul.bf16.gmra.mxu0 %v9547
    %v9624 = vpop.f32.mrf.mxu0
    %v9625 = vadd.f32 %v9612, %v9624
    %v9626 = vpop.f32.mrf.mxu0
    %9627 = vdwg.mxu0
    %9628 = vmatpush.bf16.msra.mxu0 %v2930
    %9629 = vmatpush.bf16.msra.mxu0 %v2922
    %9630 = vmatpush.bf16.msra.mxu0 %v2914
    %9631 = vmatpush.bf16.msra.mxu0 %v2906
    %9632 = vmatpush.bf16.msra.mxu0 %v2898
    %9633 = vmatpush.bf16.msra.mxu0 %v2890
    %9634 = vmatpush.bf16.msra.mxu0 %v2882
    %9635 = vmatpush.bf16.msra.mxu0 %v2874
    %9636 = vmatmul.bf16.gmra.mxu0 %v9548
    %v9637 = vpop.f32.mrf.mxu0
    %v9638 = vadd.f32 %v9625, %v9637
    %v9639 = vpop.f32.mrf.mxu0
    %9640 = vdwg.mxu0
    %9641 = vmatpush.bf16.msra.mxu0 %v2994
    %9642 = vmatpush.bf16.msra.mxu0 %v2986
    %9643 = vmatpush.bf16.msra.mxu0 %v2978
    %9644 = vmatpush.bf16.msra.mxu0 %v2970
    %9645 = vmatpush.bf16.msra.mxu0 %v2962
    %9646 = vmatpush.bf16.msra.mxu0 %v2954
    %9647 = vmatpush.bf16.msra.mxu0 %v2946
    %9648 = vmatpush.bf16.msra.mxu0 %v2938
    %9649 = vmatmul.bf16.gmra.mxu0 %v9549
    %v9650 = vpop.f32.mrf.mxu0
    %v9651 = vadd.f32 %v9638, %v9650
    %v9652 = vpop.f32.mrf.mxu0
    %9653 = vdwg.mxu0
    %9654 = vmatpush.bf16.msra.mxu0 %v2803
    %9655 = vmatpush.bf16.msra.mxu0 %v2795
    %9656 = vmatpush.bf16.msra.mxu0 %v2787
    %9657 = vmatpush.bf16.msra.mxu0 %v2779
    %9658 = vmatpush.bf16.msra.mxu0 %v2771
    %9659 = vmatpush.bf16.msra.mxu0 %v2763
    %9660 = vmatpush.bf16.msra.mxu0 %v2755
    %9661 = vmatpush.bf16.msra.mxu0 %v2747
    %9662 = vmatmul.bf16.gmra.mxu0 %v9546
    %v9663 = vpop.f32.mrf.mxu0
    %v9664 = vadd.f32 %v1963, %v9663
    %v9665 = vpop.f32.mrf.mxu0
    %9666 = vdwg.mxu0
    %9667 = vmatpush.bf16.msra.mxu0 %v2867
    %9668 = vmatpush.bf16.msra.mxu0 %v2859
    %9669 = vmatpush.bf16.msra.mxu0 %v2851
    %9670 = vmatpush.bf16.msra.mxu0 %v2843
    %9671 = vmatpush.bf16.msra.mxu0 %v2835
    %9672 = vmatpush.bf16.msra.mxu0 %v2827
    %9673 = vmatpush.bf16.msra.mxu0 %v2819
    %9674 = vmatpush.bf16.msra.mxu0 %v2811
    %9675 = vmatmul.bf16.gmra.mxu0 %v9547
    %v9676 = vpop.f32.mrf.mxu0
    %v9677 = vadd.f32 %v9664, %v9676
    %v9678 = vpop.f32.mrf.mxu0
    %9679 = vdwg.mxu0
    %9680 = vmatpush.bf16.msra.mxu0 %v2931
    %9681 = vmatpush.bf16.msra.mxu0 %v2923
    %9682 = vmatpush.bf16.msra.mxu0 %v2915
    %9683 = vmatpush.bf16.msra.mxu0 %v2907
    %9684 = vmatpush.bf16.msra.mxu0 %v2899
    %9685 = vmatpush.bf16.msra.mxu0 %v2891
    %9686 = vmatpush.bf16.msra.mxu0 %v2883
    %9687 = vmatpush.bf16.msra.mxu0 %v2875
    %9688 = vmatmul.bf16.gmra.mxu0 %v9548
    %v9689 = vpop.f32.mrf.mxu0
    %v9690 = vadd.f32 %v9677, %v9689
    %v9691 = vpop.f32.mrf.mxu0
    %9692 = vdwg.mxu0
    %9693 = vmatpush.bf16.msra.mxu0 %v2995
    %9694 = vmatpush.bf16.msra.mxu0 %v2987
    %9695 = vmatpush.bf16.msra.mxu0 %v2979
    %9696 = vmatpush.bf16.msra.mxu0 %v2971
    %9697 = vmatpush.bf16.msra.mxu0 %v2963
    %9698 = vmatpush.bf16.msra.mxu0 %v2955
    %9699 = vmatpush.bf16.msra.mxu0 %v2947
    %9700 = vmatpush.bf16.msra.mxu0 %v2939
    %9701 = vmatmul.bf16.gmra.mxu0 %v9549
    %v9702 = vpop.f32.mrf.mxu0
    %v9703 = vadd.f32 %v9690, %v9702
    %v9704 = vpop.f32.mrf.mxu0
    %9705 = vdwg.mxu0
    %9706 = vmatpush.bf16.msra.mxu0 %v2804
    %9707 = vmatpush.bf16.msra.mxu0 %v2796
    %9708 = vmatpush.bf16.msra.mxu0 %v2788
    %9709 = vmatpush.bf16.msra.mxu0 %v2780
    %9710 = vmatpush.bf16.msra.mxu0 %v2772
    %9711 = vmatpush.bf16.msra.mxu0 %v2764
    %9712 = vmatpush.bf16.msra.mxu0 %v2756
    %9713 = vmatpush.bf16.msra.mxu0 %v2748
    %9714 = vmatmul.bf16.gmra.mxu0 %v9546
    %v9715 = vpop.f32.mrf.mxu0
    %v9716 = vadd.f32 %v1964, %v9715
    %v9717 = vpop.f32.mrf.mxu0
    %9718 = vdwg.mxu0
    %9719 = vmatpush.bf16.msra.mxu0 %v2868
    %9720 = vmatpush.bf16.msra.mxu0 %v2860
    %9721 = vmatpush.bf16.msra.mxu0 %v2852
    %9722 = vmatpush.bf16.msra.mxu0 %v2844
    %9723 = vmatpush.bf16.msra.mxu0 %v2836
    %9724 = vmatpush.bf16.msra.mxu0 %v2828
    %9725 = vmatpush.bf16.msra.mxu0 %v2820
    %9726 = vmatpush.bf16.msra.mxu0 %v2812
    %9727 = vmatmul.bf16.gmra.mxu0 %v9547
    %v9728 = vpop.f32.mrf.mxu0
    %v9729 = vadd.f32 %v9716, %v9728
    %v9730 = vpop.f32.mrf.mxu0
    %9731 = vdwg.mxu0
    %9732 = vmatpush.bf16.msra.mxu0 %v2932
    %9733 = vmatpush.bf16.msra.mxu0 %v2924
    %9734 = vmatpush.bf16.msra.mxu0 %v2916
    %9735 = vmatpush.bf16.msra.mxu0 %v2908
    %9736 = vmatpush.bf16.msra.mxu0 %v2900
    %9737 = vmatpush.bf16.msra.mxu0 %v2892
    %9738 = vmatpush.bf16.msra.mxu0 %v2884
    %9739 = vmatpush.bf16.msra.mxu0 %v2876
    %9740 = vmatmul.bf16.gmra.mxu0 %v9548
    %v9741 = vpop.f32.mrf.mxu0
    %v9742 = vadd.f32 %v9729, %v9741
    %v9743 = vpop.f32.mrf.mxu0
    %9744 = vdwg.mxu0
    %9745 = vmatpush.bf16.msra.mxu0 %v2996
    %9746 = vmatpush.bf16.msra.mxu0 %v2988
    %9747 = vmatpush.bf16.msra.mxu0 %v2980
    %9748 = vmatpush.bf16.msra.mxu0 %v2972
    %9749 = vmatpush.bf16.msra.mxu0 %v2964
    %9750 = vmatpush.bf16.msra.mxu0 %v2956
    %9751 = vmatpush.bf16.msra.mxu0 %v2948
    %9752 = vmatpush.bf16.msra.mxu0 %v2940
    %9753 = vmatmul.bf16.gmra.mxu0 %v9549
    %v9754 = vpop.f32.mrf.mxu0
    %v9755 = vadd.f32 %v9742, %v9754
    %v9756 = vpop.f32.mrf.mxu0
    %9757 = vdwg.mxu0
    %9758 = vmatpush.bf16.msra.mxu0 %v2805
    %9759 = vmatpush.bf16.msra.mxu0 %v2797
    %9760 = vmatpush.bf16.msra.mxu0 %v2789
    %9761 = vmatpush.bf16.msra.mxu0 %v2781
    %9762 = vmatpush.bf16.msra.mxu0 %v2773
    %9763 = vmatpush.bf16.msra.mxu0 %v2765
    %9764 = vmatpush.bf16.msra.mxu0 %v2757
    %9765 = vmatpush.bf16.msra.mxu0 %v2749
    %9766 = vmatmul.bf16.gmra.mxu0 %v9546
    %v9767 = vpop.f32.mrf.mxu0
    %v9768 = vadd.f32 %v1965, %v9767
    %v9769 = vpop.f32.mrf.mxu0
    %9770 = vdwg.mxu0
    %9771 = vmatpush.bf16.msra.mxu0 %v2869
    %9772 = vmatpush.bf16.msra.mxu0 %v2861
    %9773 = vmatpush.bf16.msra.mxu0 %v2853
    %9774 = vmatpush.bf16.msra.mxu0 %v2845
    %9775 = vmatpush.bf16.msra.mxu0 %v2837
    %9776 = vmatpush.bf16.msra.mxu0 %v2829
    %9777 = vmatpush.bf16.msra.mxu0 %v2821
    %9778 = vmatpush.bf16.msra.mxu0 %v2813
    %9779 = vmatmul.bf16.gmra.mxu0 %v9547
    %v9780 = vpop.f32.mrf.mxu0
    %v9781 = vadd.f32 %v9768, %v9780
    %v9782 = vpop.f32.mrf.mxu0
    %9783 = vdwg.mxu0
    %9784 = vmatpush.bf16.msra.mxu0 %v2933
    %9785 = vmatpush.bf16.msra.mxu0 %v2925
    %9786 = vmatpush.bf16.msra.mxu0 %v2917
    %9787 = vmatpush.bf16.msra.mxu0 %v2909
    %9788 = vmatpush.bf16.msra.mxu0 %v2901
    %9789 = vmatpush.bf16.msra.mxu0 %v2893
    %9790 = vmatpush.bf16.msra.mxu0 %v2885
    %9791 = vmatpush.bf16.msra.mxu0 %v2877
    %9792 = vmatmul.bf16.gmra.mxu0 %v9548
    %v9793 = vpop.f32.mrf.mxu0
    %v9794 = vadd.f32 %v9781, %v9793
    %v9795 = vpop.f32.mrf.mxu0
    %9796 = vdwg.mxu0
    %9797 = vmatpush.bf16.msra.mxu0 %v2997
    %9798 = vmatpush.bf16.msra.mxu0 %v2989
    %9799 = vmatpush.bf16.msra.mxu0 %v2981
    %9800 = vmatpush.bf16.msra.mxu0 %v2973
    %9801 = vmatpush.bf16.msra.mxu0 %v2965
    %9802 = vmatpush.bf16.msra.mxu0 %v2957
    %9803 = vmatpush.bf16.msra.mxu0 %v2949
    %9804 = vmatpush.bf16.msra.mxu0 %v2941
    %9805 = vmatmul.bf16.gmra.mxu0 %v9549
    %v9806 = vpop.f32.mrf.mxu0
    %v9807 = vadd.f32 %v9794, %v9806
    %v9808 = vpop.f32.mrf.mxu0
    %9809 = vdwg.mxu0
    %9810 = vmatpush.bf16.msra.mxu0 %v2806
    %9811 = vmatpush.bf16.msra.mxu0 %v2798
    %9812 = vmatpush.bf16.msra.mxu0 %v2790
    %9813 = vmatpush.bf16.msra.mxu0 %v2782
    %9814 = vmatpush.bf16.msra.mxu0 %v2774
    %9815 = vmatpush.bf16.msra.mxu0 %v2766
    %9816 = vmatpush.bf16.msra.mxu0 %v2758
    %9817 = vmatpush.bf16.msra.mxu0 %v2750
    %9818 = vmatmul.bf16.gmra.mxu0 %v9546
    %v9819 = vpop.f32.mrf.mxu0
    %v9820 = vadd.f32 %v1966, %v9819
    %v9821 = vpop.f32.mrf.mxu0
    %9822 = vdwg.mxu0
    %9823 = vmatpush.bf16.msra.mxu0 %v2870
    %9824 = vmatpush.bf16.msra.mxu0 %v2862
    %9825 = vmatpush.bf16.msra.mxu0 %v2854
    %9826 = vmatpush.bf16.msra.mxu0 %v2846
    %9827 = vmatpush.bf16.msra.mxu0 %v2838
    %9828 = vmatpush.bf16.msra.mxu0 %v2830
    %9829 = vmatpush.bf16.msra.mxu0 %v2822
    %9830 = vmatpush.bf16.msra.mxu0 %v2814
    %9831 = vmatmul.bf16.gmra.mxu0 %v9547
    %v9832 = vpop.f32.mrf.mxu0
    %v9833 = vadd.f32 %v9820, %v9832
    %v9834 = vpop.f32.mrf.mxu0
    %9835 = vdwg.mxu0
    %9836 = vmatpush.bf16.msra.mxu0 %v2934
    %9837 = vmatpush.bf16.msra.mxu0 %v2926
    %9838 = vmatpush.bf16.msra.mxu0 %v2918
    %9839 = vmatpush.bf16.msra.mxu0 %v2910
    %9840 = vmatpush.bf16.msra.mxu0 %v2902
    %9841 = vmatpush.bf16.msra.mxu0 %v2894
    %9842 = vmatpush.bf16.msra.mxu0 %v2886
    %9843 = vmatpush.bf16.msra.mxu0 %v2878
    %9844 = vmatmul.bf16.gmra.mxu0 %v9548
    %v9845 = vpop.f32.mrf.mxu0
    %v9846 = vadd.f32 %v9833, %v9845
    %v9847 = vpop.f32.mrf.mxu0
    %9848 = vdwg.mxu0
    %9849 = vmatpush.bf16.msra.mxu0 %v2998
    %9850 = vmatpush.bf16.msra.mxu0 %v2990
    %9851 = vmatpush.bf16.msra.mxu0 %v2982
    %9852 = vmatpush.bf16.msra.mxu0 %v2974
    %9853 = vmatpush.bf16.msra.mxu0 %v2966
    %9854 = vmatpush.bf16.msra.mxu0 %v2958
    %9855 = vmatpush.bf16.msra.mxu0 %v2950
    %9856 = vmatpush.bf16.msra.mxu0 %v2942
    %9857 = vmatmul.bf16.gmra.mxu0 %v9549
    %v9858 = vpop.f32.mrf.mxu0
    %v9859 = vadd.f32 %v9846, %v9858
    %v9860 = vpop.f32.mrf.mxu0
    %9861 = vdwg.mxu0
    %9862 = vmatpush.bf16.msra.mxu0 %v2807
    %9863 = vmatpush.bf16.msra.mxu0 %v2799
    %9864 = vmatpush.bf16.msra.mxu0 %v2791
    %9865 = vmatpush.bf16.msra.mxu0 %v2783
    %9866 = vmatpush.bf16.msra.mxu0 %v2775
    %9867 = vmatpush.bf16.msra.mxu0 %v2767
    %9868 = vmatpush.bf16.msra.mxu0 %v2759
    %9869 = vmatpush.bf16.msra.mxu0 %v2751
    %9870 = vmatmul.bf16.gmra.mxu0 %v9546
    %v9871 = vpop.f32.mrf.mxu0
    %v9872 = vadd.f32 %v1967, %v9871
    %v9873 = vpop.f32.mrf.mxu0
    %9874 = vdwg.mxu0
    %9875 = vmatpush.bf16.msra.mxu0 %v2871
    %9876 = vmatpush.bf16.msra.mxu0 %v2863
    %9877 = vmatpush.bf16.msra.mxu0 %v2855
    %9878 = vmatpush.bf16.msra.mxu0 %v2847
    %9879 = vmatpush.bf16.msra.mxu0 %v2839
    %9880 = vmatpush.bf16.msra.mxu0 %v2831
    %9881 = vmatpush.bf16.msra.mxu0 %v2823
    %9882 = vmatpush.bf16.msra.mxu0 %v2815
    %9883 = vmatmul.bf16.gmra.mxu0 %v9547
    %v9884 = vpop.f32.mrf.mxu0
    %v9885 = vadd.f32 %v9872, %v9884
    %v9886 = vpop.f32.mrf.mxu0
    %9887 = vdwg.mxu0
    %9888 = vmatpush.bf16.msra.mxu0 %v2935
    %9889 = vmatpush.bf16.msra.mxu0 %v2927
    %9890 = vmatpush.bf16.msra.mxu0 %v2919
    %9891 = vmatpush.bf16.msra.mxu0 %v2911
    %9892 = vmatpush.bf16.msra.mxu0 %v2903
    %9893 = vmatpush.bf16.msra.mxu0 %v2895
    %9894 = vmatpush.bf16.msra.mxu0 %v2887
    %9895 = vmatpush.bf16.msra.mxu0 %v2879
    %9896 = vmatmul.bf16.gmra.mxu0 %v9548
    %v9897 = vpop.f32.mrf.mxu0
    %v9898 = vadd.f32 %v9885, %v9897
    %v9899 = vpop.f32.mrf.mxu0
    %9900 = vdwg.mxu0
    %9901 = vmatpush.bf16.msra.mxu0 %v2999
    %9902 = vmatpush.bf16.msra.mxu0 %v2991
    %9903 = vmatpush.bf16.msra.mxu0 %v2983
    %9904 = vmatpush.bf16.msra.mxu0 %v2975
    %9905 = vmatpush.bf16.msra.mxu0 %v2967
    %9906 = vmatpush.bf16.msra.mxu0 %v2959
    %9907 = vmatpush.bf16.msra.mxu0 %v2951
    %9908 = vmatpush.bf16.msra.mxu0 %v2943
    %9909 = vmatmul.bf16.gmra.mxu0 %v9549
    %v9910 = vpop.f32.mrf.mxu0
    %v9911 = vadd.f32 %v9898, %v9910
    %v9912 = vpop.f32.mrf.mxu0
    %9913 = vdwg.mxu0
    %9914 = vmatpush.bf16.msra.mxu0 %v2808
    %9915 = vmatpush.bf16.msra.mxu0 %v2800
    %9916 = vmatpush.bf16.msra.mxu0 %v2792
    %9917 = vmatpush.bf16.msra.mxu0 %v2784
    %9918 = vmatpush.bf16.msra.mxu0 %v2776
    %9919 = vmatpush.bf16.msra.mxu0 %v2768
    %9920 = vmatpush.bf16.msra.mxu0 %v2760
    %9921 = vmatpush.bf16.msra.mxu0 %v2752
    %9922 = vmatmul.bf16.gmra.mxu0 %v9546
    %v9923 = vpop.f32.mrf.mxu0
    %v9924 = vadd.f32 %v1968, %v9923
    %v9925 = vpop.f32.mrf.mxu0
    %9926 = vdwg.mxu0
    %9927 = vmatpush.bf16.msra.mxu0 %v2872
    %9928 = vmatpush.bf16.msra.mxu0 %v2864
    %9929 = vmatpush.bf16.msra.mxu0 %v2856
    %9930 = vmatpush.bf16.msra.mxu0 %v2848
    %9931 = vmatpush.bf16.msra.mxu0 %v2840
    %9932 = vmatpush.bf16.msra.mxu0 %v2832
    %9933 = vmatpush.bf16.msra.mxu0 %v2824
    %9934 = vmatpush.bf16.msra.mxu0 %v2816
    %9935 = vmatmul.bf16.gmra.mxu0 %v9547
    %v9936 = vpop.f32.mrf.mxu0
    %v9937 = vadd.f32 %v9924, %v9936
    %v9938 = vpop.f32.mrf.mxu0
    %9939 = vdwg.mxu0
    %9940 = vmatpush.bf16.msra.mxu0 %v2936
    %9941 = vmatpush.bf16.msra.mxu0 %v2928
    %9942 = vmatpush.bf16.msra.mxu0 %v2920
    %9943 = vmatpush.bf16.msra.mxu0 %v2912
    %9944 = vmatpush.bf16.msra.mxu0 %v2904
    %9945 = vmatpush.bf16.msra.mxu0 %v2896
    %9946 = vmatpush.bf16.msra.mxu0 %v2888
    %9947 = vmatpush.bf16.msra.mxu0 %v2880
    %9948 = vmatmul.bf16.gmra.mxu0 %v9548
    %v9949 = vpop.f32.mrf.mxu0
    %v9950 = vadd.f32 %v9937, %v9949
    %v9951 = vpop.f32.mrf.mxu0
    %9952 = vdwg.mxu0
    %9953 = vmatpush.bf16.msra.mxu0 %v3000
    %9954 = vmatpush.bf16.msra.mxu0 %v2992
    %9955 = vmatpush.bf16.msra.mxu0 %v2984
    %9956 = vmatpush.bf16.msra.mxu0 %v2976
    %9957 = vmatpush.bf16.msra.mxu0 %v2968
    %9958 = vmatpush.bf16.msra.mxu0 %v2960
    %9959 = vmatpush.bf16.msra.mxu0 %v2952
    %9960 = vmatpush.bf16.msra.mxu0 %v2944
    %9961 = vmatmul.bf16.gmra.mxu0 %v9549
    %v9962 = vpop.f32.mrf.mxu0
    %v9963 = vadd.f32 %v9950, %v9962
    %v9964 = vpop.f32.mrf.mxu0
    %9965 = vdwg.mxu0
    %v9966 = vxor.u32 %v9599, 2147483648
    %v9967 = vxor.u32 %v9651, 2147483648
    %v9968 = vmul.f32 %v9966, 1.442695
    %v9969 = vpow.pop %v9968
    %v9970 = vmul.f32 %v9967, 1.442695
    %v9971 = vpow.pop %v9970
    %v9972 = vadd.f32 %v9969, 1.0
    %v9973 = vadd.f32 %v9971, 1.0
    %v9974 = vrcp.pop %v9972
    %v9975 = vmul.f32 %v9972, %v9974
    %v9976 = vsub.f32 1.0, %v9975
    %v9977 = vmul.f32 %v9974, %v9976
    %v9978 = vadd.f32 %v9974, %v9977
    %vm9979 = vweird.f32 %v9972
    %vm9980 = vweird.f32 %v9974
    %vm9981 = vmor %vm9979, %vm9980
    %v9982 = vsel %vm9981, %v9974, %v9978
    %v9983 = vand.u32 2147483647, %v9972
    %vm9984 = vcmp.eq.f32.partialorder %v9983, 8.507059e+37
    %v9985 = vand.u32 %v9972, 2147483648
    %v9986 = vor.u32 1.1754944e-38, %v9985
    %v9987 = vsel %vm9984, %v9986, %v9982
    %v9988 = vmul.f32 1.0, %v9987
    %v9989 = vrcp.pop %v9973
    %v9990 = vmul.f32 %v9973, %v9989
    %v9991 = vsub.f32 1.0, %v9990
    %v9992 = vmul.f32 %v9989, %v9991
    %v9993 = vadd.f32 %v9989, %v9992
    %vm9994 = vweird.f32 %v9973
    %vm9995 = vweird.f32 %v9989
    %vm9996 = vmor %vm9994, %vm9995
    %v9997 = vsel %vm9996, %v9989, %v9993
    %v9998 = vand.u32 2147483647, %v9973
    %vm9999 = vcmp.eq.f32.partialorder %v9998, 8.507059e+37
    %v10000 = vand.u32 %v9973, 2147483648
    %v10001 = vor.u32 1.1754944e-38, %v10000
    %v10002 = vsel %vm9999, %v10001, %v9997
    %v10003 = vmul.f32 1.0, %v10002
    %v10004 = vxor.u32 %v9703, 2147483648
    %v10005 = vxor.u32 %v9755, 2147483648
    %v10006 = vmul.f32 %v10004, 1.442695
    %v10007 = vpow.pop %v10006
    %v10008 = vmul.f32 %v10005, 1.442695
    %v10009 = vpow.pop %v10008
    %v10010 = vadd.f32 %v10007, 1.0
    %v10011 = vadd.f32 %v10009, 1.0
    %v10012 = vrcp.pop %v10010
    %v10013 = vmul.f32 %v10010, %v10012
    %v10014 = vsub.f32 1.0, %v10013
    %v10015 = vmul.f32 %v10012, %v10014
    %v10016 = vadd.f32 %v10012, %v10015
    %vm10017 = vweird.f32 %v10010
    %vm10018 = vweird.f32 %v10012
    %vm10019 = vmor %vm10017, %vm10018
    %v10020 = vsel %vm10019, %v10012, %v10016
    %v10021 = vand.u32 2147483647, %v10010
    %vm10022 = vcmp.eq.f32.partialorder %v10021, 8.507059e+37
    %v10023 = vand.u32 %v10010, 2147483648
    %v10024 = vor.u32 1.1754944e-38, %v10023
    %v10025 = vsel %vm10022, %v10024, %v10020
    %v10026 = vmul.f32 1.0, %v10025
    %v10027 = vrcp.pop %v10011
    %v10028 = vmul.f32 %v10011, %v10027
    %v10029 = vsub.f32 1.0, %v10028
    %v10030 = vmul.f32 %v10027, %v10029
    %v10031 = vadd.f32 %v10027, %v10030
    %vm10032 = vweird.f32 %v10011
    %vm10033 = vweird.f32 %v10027
    %vm10034 = vmor %vm10032, %vm10033
    %v10035 = vsel %vm10034, %v10027, %v10031
    %v10036 = vand.u32 2147483647, %v10011
    %vm10037 = vcmp.eq.f32.partialorder %v10036, 8.507059e+37
    %v10038 = vand.u32 %v10011, 2147483648
    %v10039 = vor.u32 1.1754944e-38, %v10038
    %v10040 = vsel %vm10037, %v10039, %v10035
    %v10041 = vmul.f32 1.0, %v10040
    %v10042 = vtanh.pop %v9807
    %v10043 = vtanh.pop %v9859
    %v10044 = vxor.u32 %v9911, 2147483648
    %v10045 = vxor.u32 %v9963, 2147483648
    %v10046 = vmul.f32 %v10044, 1.442695
    %v10047 = vpow.pop %v10046
    %v10048 = vmul.f32 %v10045, 1.442695
    %v10049 = vpow.pop %v10048
    %v10050 = vadd.f32 %v10047, 1.0
    %v10051 = vadd.f32 %v10049, 1.0
    %v10052 = vrcp.pop %v10050
    %v10053 = vmul.f32 %v10050, %v10052
    %v10054 = vsub.f32 1.0, %v10053
    %v10055 = vmul.f32 %v10052, %v10054
    %v10056 = vadd.f32 %v10052, %v10055
    %vm10057 = vweird.f32 %v10050
    %vm10058 = vweird.f32 %v10052
    %vm10059 = vmor %vm10057, %vm10058
    %v10060 = vsel %vm10059, %v10052, %v10056
    %v10061 = vand.u32 2147483647, %v10050
    %vm10062 = vcmp.eq.f32.partialorder %v10061, 8.507059e+37
    %v10063 = vand.u32 %v10050, 2147483648
    %v10064 = vor.u32 1.1754944e-38, %v10063
    %v10065 = vsel %vm10062, %v10064, %v10060
    %v10066 = vmul.f32 1.0, %v10065
    %v10067 = vrcp.pop %v10051
    %v10068 = vmul.f32 %v10051, %v10067
    %v10069 = vsub.f32 1.0, %v10068
    %v10070 = vmul.f32 %v10067, %v10069
    %v10071 = vadd.f32 %v10067, %v10070
    %vm10072 = vweird.f32 %v10051
    %vm10073 = vweird.f32 %v10067
    %vm10074 = vmor %vm10072, %vm10073
    %v10075 = vsel %vm10074, %v10067, %v10071
    %v10076 = vand.u32 2147483647, %v10051
    %vm10077 = vcmp.eq.f32.partialorder %v10076, 8.507059e+37
    %v10078 = vand.u32 %v10051, 2147483648
    %v10079 = vor.u32 1.1754944e-38, %v10078
    %v10080 = vsel %vm10077, %v10079, %v10075
    %v10081 = vmul.f32 1.0, %v10080
    %v10082 = vmul.f32 %v10026, %v9187
    %v10083 = vmul.f32 %v10041, %v9188
    %v10084 = vmul.f32 %v9988, %v10042
    %v10085 = vmul.f32 %v10003, %v10043
    %v10086 = vadd.f32 %v10082, %v10084
    %v10087 = vadd.f32 %v10083, %v10085
    %v10088 = vtanh.pop %v10086
    %v10089 = vtanh.pop %v10087
    %v10090 = vmul.f32 %v10066, %v10088
    %v10091 = vmul.f32 %v10081, %v10089
    %10092 = vst [vmem:[#allocation7] sm:$0xff] %v9544
    %10093 = vst [vmem:[#allocation7 + $0x8] sm:$0xff] %v9545
    %10094 = vst [vmem:[#allocation8] sm:$0xff] %v9540
    %10095 = vst [vmem:[#allocation8 + $0x8] sm:$0xff] %v9541
    %10096 = vst [vmem:[#allocation9] sm:$0xff] %v10090
    %10097 = vst [vmem:[#allocation9 + $0x8] sm:$0xff] %v10091
    %10098 = vst [vmem:[#allocation10] sm:$0xff] %v10086
    %10099 = vst [vmem:[#allocation10 + $0x8] sm:$0xff] %v10087
    // Predicated region
    $region46: #{tpu_custom_call.1} parent=1 // pred_check
      %p10100 = pneg %p40
    $region47: #{tpu_custom_call.1} parent=1 // pred_check_branch
      %10102 = sbr.rel (%p10100) target = $region49
    $region48: #{tpu_custom_call.1} parent=1 // pred_region
      %v10103 = vpack.c.bf16 %v10090, %v10090
      %v10104 = vpack.c.bf16 %v10091, %v10091
      %v10105 = vld [vmem:[#allocation5] sm:$0xf]
      %v10106 = vld [vmem:[#allocation5 + $0x4] sm:$0xf]
      %v10107 = vld [vmem:[#allocation5 + $0x8] sm:$0xf]
      %v10108 = vld [vmem:[#allocation5 + $0xc] sm:$0xf]
      %v10109 = vld [vmem:[#allocation5 + $0x10] sm:$0xf]
      %v10110 = vld [vmem:[#allocation5 + $0x14] sm:$0xf]
      %v10111 = vld [vmem:[#allocation5 + $0x18] sm:$0xf]
      %v10112 = vld [vmem:[#allocation5 + $0x1c] sm:$0xf]
      %v10113 = vld [vmem:[#allocation5 + $0x20] sm:$0xf]
      %v10114 = vld [vmem:[#allocation5 + $0x24] sm:$0xf]
      %v10115 = vld [vmem:[#allocation5 + $0x28] sm:$0xf]
      %v10116 = vld [vmem:[#allocation5 + $0x2c] sm:$0xf]
      %v10117 = vld [vmem:[#allocation5 + $0x30] sm:$0xf]
      %v10118 = vld [vmem:[#allocation5 + $0x34] sm:$0xf]
      %v10119 = vld [vmem:[#allocation5 + $0x38] sm:$0xf]
      %v10120 = vld [vmem:[#allocation5 + $0x3c] sm:$0xf]
      %v10121 = vld [vmem:[#allocation5 + $0x40] sm:$0xf]
      %v10122 = vld [vmem:[#allocation5 + $0x44] sm:$0xf]
      %v10123 = vld [vmem:[#allocation5 + $0x48] sm:$0xf]
      %v10124 = vld [vmem:[#allocation5 + $0x4c] sm:$0xf]
      %v10125 = vld [vmem:[#allocation5 + $0x50] sm:$0xf]
      %v10126 = vld [vmem:[#allocation5 + $0x54] sm:$0xf]
      %v10127 = vld [vmem:[#allocation5 + $0x58] sm:$0xf]
      %v10128 = vld [vmem:[#allocation5 + $0x5c] sm:$0xf]
      %v10129 = vld [vmem:[#allocation5 + $0x60] sm:$0xf]
      %v10130 = vld [vmem:[#allocation5 + $0x64] sm:$0xf]
      %v10131 = vld [vmem:[#allocation5 + $0x68] sm:$0xf]
      %v10132 = vld [vmem:[#allocation5 + $0x6c] sm:$0xf]
      %v10133 = vld [vmem:[#allocation5 + $0x70] sm:$0xf]
      %v10134 = vld [vmem:[#allocation5 + $0x74] sm:$0xf]
      %v10135 = vld [vmem:[#allocation5 + $0x78] sm:$0xf]
      %v10136 = vld [vmem:[#allocation5 + $0x7c] sm:$0xf]
      %v10137 = vld [vmem:[%s7] sm:$0x1]
      %v10139 = vperm.slane %v10137, 0
      %v10173 = vunpack.c.l.b16 %v10105
      %v10174 = vunpack.c.l.b16 %v10106
      %v10175 = vunpack.c.l.b16 %v10107
      %v10176 = vunpack.c.l.b16 %v10108
      %v10177 = vunpack.c.l.b16 %v10109
      %v10178 = vunpack.c.l.b16 %v10110
      %v10179 = vunpack.c.l.b16 %v10111
      %v10180 = vunpack.c.l.b16 %v10112
      %v10181 = vunpack.c.l.b16 %v10113
      %v10182 = vunpack.c.l.b16 %v10114
      %v10183 = vunpack.c.l.b16 %v10115
      %v10184 = vunpack.c.l.b16 %v10116
      %v10185 = vunpack.c.l.b16 %v10117
      %v10186 = vunpack.c.l.b16 %v10118
      %v10187 = vunpack.c.l.b16 %v10119
      %v10188 = vunpack.c.l.b16 %v10120
      %v10189 = vunpack.c.l.b16 %v10121
      %v10190 = vunpack.c.l.b16 %v10122
      %v10191 = vunpack.c.l.b16 %v10123
      %v10192 = vunpack.c.l.b16 %v10124
      %v10193 = vunpack.c.l.b16 %v10125
      %v10194 = vunpack.c.l.b16 %v10126
      %v10195 = vunpack.c.l.b16 %v10127
      %v10196 = vunpack.c.l.b16 %v10128
      %v10197 = vunpack.c.l.b16 %v10129
      %v10198 = vunpack.c.l.b16 %v10130
      %v10199 = vunpack.c.l.b16 %v10131
      %v10200 = vunpack.c.l.b16 %v10132
      %v10201 = vunpack.c.l.b16 %v10133
      %v10202 = vunpack.c.l.b16 %v10134
      %v10203 = vunpack.c.l.b16 %v10135
      %v10204 = vunpack.c.l.b16 %v10136
      %v10205 = vpack.c.b16 %v10174, %v10173
      %v10206 = vpack.c.b16 %v10176, %v10175
      %v10207 = vpack.c.b16 %v10178, %v10177
      %v10208 = vpack.c.b16 %v10180, %v10179
      %v10209 = vpack.c.b16 %v10182, %v10181
      %v10210 = vpack.c.b16 %v10184, %v10183
      %v10211 = vpack.c.b16 %v10186, %v10185
      %v10212 = vpack.c.b16 %v10188, %v10187
      %v10213 = vpack.c.b16 %v10190, %v10189
      %v10214 = vpack.c.b16 %v10192, %v10191
      %v10215 = vpack.c.b16 %v10194, %v10193
      %v10216 = vpack.c.b16 %v10196, %v10195
      %v10217 = vpack.c.b16 %v10198, %v10197
      %v10218 = vpack.c.b16 %v10200, %v10199
      %v10219 = vpack.c.b16 %v10202, %v10201
      %v10220 = vpack.c.b16 %v10204, %v10203
      %10237 = vmatpush.bf16.msra.mxu0 %v10212
      %10238 = vmatpush.bf16.msra.mxu0 %v10211
      %10239 = vmatpush.bf16.msra.mxu0 %v10210
      %10240 = vmatpush.bf16.msra.mxu0 %v10209
      %10241 = vmatpush.bf16.msra.mxu0 %v10208
      %10242 = vmatpush.bf16.msra.mxu0 %v10207
      %10243 = vmatpush.bf16.msra.mxu0 %v10206
      %10244 = vmatpush.bf16.msra.mxu0 %v10205
      %10245 = vmatmul.bf16.gmra.mxu0 %v10103
      %v10246 = vpop.f32.mrf.mxu0
      %v10247 = vadd.f32 %v10139, %v10246
      %v10248 = vpop.f32.mrf.mxu0
      %10249 = vdwg.mxu0
      %10250 = vmatpush.bf16.msra.mxu0 %v10220
      %10251 = vmatpush.bf16.msra.mxu0 %v10219
      %10252 = vmatpush.bf16.msra.mxu0 %v10218
      %10253 = vmatpush.bf16.msra.mxu0 %v10217
      %10254 = vmatpush.bf16.msra.mxu0 %v10216
      %10255 = vmatpush.bf16.msra.mxu0 %v10215
      %10256 = vmatpush.bf16.msra.mxu0 %v10214
      %10257 = vmatpush.bf16.msra.mxu0 %v10213
      %10258 = vmatmul.bf16.gmra.mxu0 %v10104
      %v10259 = vpop.f32.mrf.mxu0
      %v10260 = vadd.f32 %v10247, %v10259
      %v10261 = vpop.f32.mrf.mxu0
      %10262 = vdwg.mxu0
      %10263 = vst [vmem:[#allocation14] sm:$0xff] %v10260
    $region49: #{tpu_custom_call.1} parent=1 // pred_fallthru
      _
    // Predicated region
    $region50: #{tpu_custom_call.1} parent=1 // pred_check
      _
    $region51: #{tpu_custom_call.1} parent=1 // pred_check_branch
      %10265 = sbr.rel (0) target = $region53
    $region52: #{tpu_custom_call.1} parent=1 // pred_region
      %10267 = vsyncadd [#allocation13], 0
      %s10269 = sshll.u32 [#allocation14], 4
      %s10270 = int_to_ptr.vmem [resolvable:$true] %s10269
      %s10271 = sshll.u32 %s8, 4
      %s10272 = int_to_ptr.hbm [resolvable:$true] %s10271
      %10274 = dma.vmem_to_hbm [thread:$0]  %s10270, 128, %s10272, [#allocation13]
    $region53: #{tpu_custom_call.1} parent=1 // pred_fallthru
      _
    // Predicated region
    $region54: #{tpu_custom_call.1} parent=1 // pred_check
      _
    $region55: #{tpu_custom_call.1} parent=1 // pred_check_branch
      %10276 = sbr.rel (0) target = $region57
    $region56: #{tpu_custom_call.1} parent=1 // pred_region
      %10278 = dma.done [#allocation13], 128
    $region57: #{tpu_custom_call.1} parent=1 // pred_fallthru
      _
    %10279 = vsyncpa [#allocation12], 1
    %10280 = vsyncpa [#allocation13], 1
  %10281 = vsyncmov [#allocation6]
  %s10282 = vpop.sfrf %10281
  %p10283 = scmp.eq.s32.totalorder %s10282, 0
  %p10284 = pneg %p10283
  %10286 = shalt.err (%p10284)
  %s10287 = scalar_lea.sflag [#allocation6], 1
  %10288 = vsyncmov %s10287
  %s10289 = vpop.sfrf %10288
  %p10290 = scmp.eq.s32.totalorder %s10289, 0
  %p10291 = pneg %p10290
  %10293 = shalt.err (%p10291)
  %s10294 = scalar_lea.sflag [#allocation6], 2
  %10295 = vsyncmov %s10294
  %s10296 = vpop.sfrf %10295
  %p10297 = scmp.eq.s32.totalorder %s10296, 0
  %p10298 = pneg %p10297
  %10300 = shalt.err (%p10298)

</llo_original>
